<compile_context>
chip_gen: v7x
topology: tpu7x:2x2x1
jax: 0.10.0
libtpu: 0.0.40
codegen_flags: <defaults>
</compile_context>

<pallas_src>
import jax
import jax.numpy as jnp
from jax.experimental import pallas as pl
from jax.experimental.pallas import tpu as pltpu

# ----------------------------- small, module-consistent shapes ----------------
B = 2            # batch
BP = 8           # batch padded to one full sublane tile
L = 16           # sequence length (longformer tokens)
H = 128          # longformer hidden size (768 in the real model; small here)
C = 64           # conv out_channels
K = 3            # conv1d_1 kernel_size (module uses conv1d_1 / bn1_1 for ALL branches)
POOL = 4         # MaxPool1d kernel_size, stride 1
HID = 64         # LSTM hidden size (bidirectional -> 128 features)
BN_EPS = 1e-5
VOCAB = 50       # synthetic vocab for the stand-in embedding

LC = L - K + 1              # conv output length                     = 14
LP = LC - (POOL - 1)        # maxpool output length                  = 11
T = 3 * LP                  # 3 identical branches concatenated      = 33
GW = 8 * HID                # fused gate width: 4 gates x 2 dirs     = 512
LBP = L * BP                # padded time-major rows                 = 128

# --- static safety checks (roll wrap-around must never reach valid rows) ------
assert LC == L - K + 1 and LP == LC - (POOL - 1) and LP >= 1
assert LP + (POOL - 1) <= LC and LC + (K - 1) <= L
assert B <= BP == 8 and 2 * HID == 128 and GW % 128 == 0


# ----------------------------- the fused kernel --------------------------------
def _caam_fused_kernel(x_ref, wc_ref, bc_ref, wxf_ref, wxb_ref, bx_ref, whh_ref,
                       w1_ref, b1_ref, w2_ref, b2_ref,
                       o_ref,
                       gcomb_ref, gprojb_ref, ya_ref, yb_ref):
    f32 = jnp.float32
    bf16 = jnp.bfloat16

    # ---------------- conv1d(k=3, BN folded) + ReLU + maxpool(4,1) ------------
    # x_ref is padded time-major: row t*BP + p holds hidden[p, t, :] for p < B,
    # zeros for p >= B.  Padding rows never mix with valid rows because every
    # roll shift is a multiple of BP = 8.
    x = x_ref[...].astype(bf16)                                      # (LBP, H)
    z = jnp.dot(x, wc_ref[...], preferred_element_type=f32)          # (LBP, 3C) one MXU push
    # pltpu.roll == jnp.roll: shift LBP - j*BP ≡ -j*BP, i.e. row r picks row r + j*BP.
    z0 = z[:, 0:C]
    z1 = pltpu.roll(z[:, C:2 * C], LBP - BP, 0)
    z2 = pltpu.roll(z[:, 2 * C:3 * C], LBP - 2 * BP, 0)
    conv = jnp.maximum(z0 + z1 + z2 + bc_ref[...], 0.0)              # folded BN + ReLU
    pooled = conv                                                    # MaxPool1d(k=4, s=1)
    for j in range(1, POOL):
        pooled = jnp.maximum(pooled, pltpu.roll(conv, LBP - j * BP, 0))
    branch = pooled[0:LP * BP, :].astype(bf16)                       # (LP*BP, C) valid rows
    # nn.Dropout(p=0.5) is the identity at inference time.

    # ---------------- hoisted LSTM input projections ---------------------------
    # Combined table: gcomb[j] = W_ih_fwd @ branch[j] + W_ih_bwd @ branch[LP-1-j]
    #                 + (b_ih + b_hh of both directions)
    # because at fused step s the fwd direction consumes seq[s]   = branch[s % LP]
    # and the bwd direction consumes        seq[T-1-s] = branch[LP-1 - s % LP].
    gcomb_ref[...] = (jnp.dot(branch, wxf_ref[...], preferred_element_type=f32)
                      + bx_ref[...]).reshape(LP, BP, GW)
    gprojb_ref[...] = jnp.dot(branch, wxb_ref[...],
                              preferred_element_type=f32).reshape(LP, BP, GW)
    for j in range(LP):                      # static prologue fixup, off the critical path
        gcomb_ref[j] = gcomb_ref[j] + gprojb_ref[LP - 1 - j]

    # ---------------- fused bidirectional LSTM recurrence ----------------------
    # state layout : h = [h_fwd | h_bwd], c = [c_fwd | c_bwd]   -> (BP, 2*HID)
    # gate layout  : [i_f i_b | f_f f_b | o_f o_b | g_f g_b]    -> (BP, GW)
    whh = whh_ref[...]                                   # (2*HID, GW) bf16, resident
    h = jnp.zeros((BP, 2 * HID), f32)
    c = jnp.zeros((BP, 2 * HID), f32)
    for s in range(T):                                   # fully unrolled, static indices
        gates = (jnp.dot(h.astype(bf16), whh, preferred_element_type=f32)
                 + gcomb_ref[s % LP])                    # aligned leading-axis load
        sig = jax.nn.sigmoid(gates[:, 0:3 * 2 * HID])    # i|f|o, aligned 384 lanes (f32, EUP)
        g_t = jnp.tanh(gates[:, 3 * 2 * HID:GW])         # g,     aligned 128 lanes
        i_g = sig[:, 0:2 * HID]
        f_g = sig[:, 2 * HID:4 * HID]
        o_g = sig[:, 4 * HID:6 * HID]
        c = f_g * c + i_g * g_t
        h = o_g * jnp.tanh(c)
        # Two full (8,128)-tile stores, both leading-axis indexed / unmasked:
        #   ya[t] holds the correct h_fwd(t) in lanes 0:64,
        #   yb[t] holds the correct h_bwd(t) in lanes 64:128 (written at step T-1-t),
        # so no post-loop reversal is needed.
        ya_ref[s] = h
        yb_ref[T - 1 - s] = h

    # ---------------- attention pooling over the T axis ------------------------
    lane = jax.lax.broadcasted_iota(jnp.int32, (T, BP, 2 * HID), 2)
    y3 = jnp.where(lane < HID, ya_ref[...], yb_ref[...])  # PyTorch out[t] = [h_f(t)|h_b(t)]
    y2 = y3.reshape(T * BP, 2 * HID)                      # zero-cost tile-preserving reshape
    hatt = jnp.tanh(jnp.dot(y2.astype(bf16), w1_ref[...],
                            preferred_element_type=f32) + b1_ref[...])       # (T*BP, 128)
    sc = jnp.sum(hatt * w2_ref[...], axis=-1, keepdims=True) + b2_ref[...]   # (T*BP, 1)

    # Per-batch softmax over that batch's T rows; padding rows (p >= B) excluded.
    p_idx = jax.lax.broadcasted_iota(jnp.int32, (T * BP, 1), 0) % BP
    wgt = jnp.zeros((T * BP, 1), f32)
    for b in range(B):                                    # static unroll, B = 2
        msk = (p_idx == b)
        sb = jnp.where(msk, sc, -1e30)
        m = jnp.max(sb, keepdims=True)                    # (1, 1)
        e = jnp.exp(sb - m) * msk.astype(f32)             # masked AFTER the exp (robust)
        wgt = wgt + e / jnp.sum(e, keepdims=True)

    # Weighted sums for all batches as one tiny MXU matmul -> single aligned store.
    sel = (jax.lax.broadcasted_iota(jnp.int32, (B, T * BP), 1) % BP
           == jax.lax.broadcasted_iota(jnp.int32, (B, T * BP), 0)).astype(f32)
    o_ref[...] = jnp.dot(sel, y2 * wgt, preferred_element_type=f32)          # (B, 2*HID)


def _caam_pallas(x_padded, p):
    vmem = lambda: pl.BlockSpec(memory_space=pltpu.MemorySpace.VMEM)
    return pl.pallas_call(
        _caam_fused_kernel,
        out_shape=jax.ShapeDtypeStruct((B, 2 * HID), jnp.float32),
        in_specs=[vmem() for _ in range(11)],
        out_specs=vmem(),
        scratch_shapes=[
            pltpu.VMEM((LP, BP, GW), jnp.float32),        # combined gate table gcomb[j]
            pltpu.VMEM((LP, BP, GW), jnp.float32),        # bwd input-projection staging
            pltpu.VMEM((T, BP, 2 * HID), jnp.float32),    # y stored at step s   (fwd half valid)
            pltpu.VMEM((T, BP, 2 * HID), jnp.float32),    # y stored at step T-1-s (bwd half valid)
        ],
    )(x_padded, p["conv_w"], p["conv_b"], p["wx_f"], p["wx_b"], p["bx"], p["whh"],
      p["att_w1"], p["att_b1"], p["att_w2"], p["att_b2"])


# ----------------------------- deterministic parameter init -------------------
def init_params(key):
    ks = jax.random.split(key, 16)
    p = {}

    # Conv1d(H -> 64, k=3): PyTorch weight (C, H, K). Fold BatchNorm1d(64)
    # (inference) into the weight/bias, store the 3 taps stacked as (H, 3*C).
    w_conv = 0.05 * jax.random.normal(ks[0], (C, H, K), jnp.float32)
    b_conv = 0.05 * jax.random.normal(ks[1], (C,), jnp.float32)
    gamma = 1.0 + 0.1 * jax.random.normal(ks[2], (C,), jnp.float32)
    beta = 0.1 * jax.random.normal(ks[3], (C,), jnp.float32)
    r_mean = 0.1 * jax.random.normal(ks[4], (C,), jnp.float32)
    r_var = 1.0 + 0.1 * jax.random.uniform(ks[5], (C,), jnp.float32)
    scale = gamma / jnp.sqrt(r_var + BN_EPS)
    w_folded = w_conv * scale[:, None, None]                      # (C, H, K)
    b_folded = b_conv * scale + (beta - r_mean * scale)
    wc = jnp.transpose(w_folded, (1, 2, 0)).reshape(H, K * C)     # cols [k*C:(k+1)*C] = tap k
    p["conv_w"] = wc.astype(jnp.bfloat16)
    p["conv_b"] = b_folded.reshape(1, C)

    # Bidirectional LSTM(64 -> 64). PyTorch weight_ih/_hh are (4*HID, in) with
    # gate row order [i, f, g, o]; biases b_ih + b_hh are fused.  Repack into
    # the fused layout [i_f i_b | f_f f_b | o_f o_b | g_f g_b] (width GW = 512):
    #   wx_f / wx_b (C, GW): input weights of the fwd / bwd direction
    #   whh (2*HID, GW):     block-structured (rows 0:HID = h_fwd, rows HID: = h_bwd)
    #   bx  (1, GW):         fused gate biases of both directions
    def lstm_dir(k):
        k1, k2, k3, k4 = jax.random.split(k, 4)
        wih = 0.05 * jax.random.normal(k1, (4 * HID, C), jnp.float32)
        whh = 0.05 * jax.random.normal(k2, (4 * HID, HID), jnp.float32)
        bih = 0.05 * jax.random.normal(k3, (4 * HID,), jnp.float32)
        bhh = 0.05 * jax.random.normal(k4, (4 * HID,), jnp.float32)
        return wih, whh, bih + bhh

    dirs = [lstm_dir(ks[6]), lstm_dir(ks[7])]
    slot_of = {0: 0, 1: 1, 2: 3, 3: 2}   # torch gate idx (i,f,g,o) -> fused slot (i,f,o,g)
    wx_dir = [jnp.zeros((C, GW), jnp.float32), jnp.zeros((C, GW), jnp.float32)]
    whh_blk = jnp.zeros((2 * HID, GW), jnp.float32)
    bx = jnp.zeros((GW,), jnp.float32)
    for d, (wih, whh, bias) in enumerate(dirs):
        for pg in range(4):
            dst = slot_of[pg] * 2 * HID + d * HID
            wx_dir[d] = wx_dir[d].at[:, dst:dst + HID].set(wih[pg * HID:(pg + 1) * HID, :].T)
            whh_blk = whh_blk.at[d * HID:(d + 1) * HID, dst:dst + HID].set(
                whh[pg * HID:(pg + 1) * HID, :].T)
            bx = bx.at[dst:dst + HID].set(bias[pg * HID:(pg + 1) * HID])
    p["wx_f"] = wx_dir[0].astype(jnp.bfloat16)
    p["wx_b"] = wx_dir[1].astype(jnp.bfloat16)
    p["whh"] = whh_blk.astype(jnp.bfloat16)
    p["bx"] = bx.reshape(1, GW)

    # attention_linear_1: Linear(128 -> 64); attention_linear_2: Linear(64 -> 1).
    # Output dim zero-padded to 128 lanes (exact; pad columns stay 0 through tanh).
    HP = 128
    w1 = 0.05 * jax.random.normal(ks[8], (HID, 2 * HID), jnp.float32)   # torch (out, in)
    p["att_w1"] = jnp.zeros((2 * HID, HP), jnp.float32).at[:, :HID].set(w1.T).astype(jnp.bfloat16)
    b1 = 0.05 * jax.random.normal(ks[9], (HID,), jnp.float32)
    p["att_b1"] = jnp.zeros((1, HP), jnp.float32).at[0, :HID].set(b1)
    w2 = 0.05 * jax.random.normal(ks[10], (1, HID), jnp.float32)
    p["att_w2"] = jnp.zeros((1, HP), jnp.float32).at[:, :HID].set(w2)
    p["att_b2"] = 0.05 * jax.random.normal(ks[11], (1, 1), jnp.float32)

    # Stand-in for the frozen Longformer encoder output.
    p["embed"] = jax.random.normal(ks[12], (VOCAB, H), jnp.float32)
    return p


# ----------------------------- full forward pass ------------------------------
def context_aware_attention_forward(input_ids, p):
    # TODO(synk): the frozen pretrained LongformerModel has no clean Pallas
    # equivalent; its (B, L, H) hidden-state output is synthesized with a
    # deterministic embedding lookup, emitted in the padded time-major layout
    # (L, BP, H) with rows p >= B zeroed so every kernel access is tile-aligned.
    emb = p["embed"][input_ids]                              # (B, L, H)
    emb_t = jnp.swapaxes(emb, 0, 1)                          # (L, B, H)
    x_p = jnp.zeros((L, BP, H), emb.dtype).at[:, :B, :].set(emb_t)
    return _caam_pallas(x_p.reshape(L * BP, H), p)           # (B, 2*HID)


if __name__ == "__main__":
    key = jax.random.PRNGKey(0)
    k_ids, k_params = jax.random.split(key)
    params = init_params(k_params)
    input_ids = jax.random.randint(k_ids, (B, L), 0, VOCAB, dtype=jnp.int32)

    out = jax.jit(context_aware_attention_forward)(input_ids, params)
    jax.block_until_ready(out)
    assert out.shape == (B, 2 * HID) and out.dtype == jnp.float32
    assert bool(jnp.all(jnp.isfinite(out)))
    print("KERNEL_OK")
</pallas_src>

<mosaic_0001>
module attributes {stable_mosaic.version = 11 : i64} {
  func.func @_caam_fused_kernel(%arg0: memref<128x128xf32, #tpu.memory_space<vmem>>, %arg1: memref<128x192xbf16, #tpu.memory_space<vmem>>, %arg2: memref<1x64xf32, #tpu.memory_space<vmem>>, %arg3: memref<64x512xbf16, #tpu.memory_space<vmem>>, %arg4: memref<64x512xbf16, #tpu.memory_space<vmem>>, %arg5: memref<1x512xf32, #tpu.memory_space<vmem>>, %arg6: memref<128x512xbf16, #tpu.memory_space<vmem>>, %arg7: memref<128x128xbf16, #tpu.memory_space<vmem>>, %arg8: memref<1x128xf32, #tpu.memory_space<vmem>>, %arg9: memref<1x128xf32, #tpu.memory_space<vmem>>, %arg10: memref<1x1xf32, #tpu.memory_space<vmem>>, %arg11: memref<2x128xf32, #tpu.memory_space<vmem>>, %arg12: memref<11x8x512xf32, #tpu.memory_space<vmem>>, %arg13: memref<11x8x512xf32, #tpu.memory_space<vmem>>, %arg14: memref<33x8x128xf32, #tpu.memory_space<vmem>>, %arg15: memref<33x8x128xf32, #tpu.memory_space<vmem>>) attributes {dimension_semantics = [], scalar_prefetch = 0 : i64, scratch_operands = 4 : i64, tpu.core_type = #tpu.core_type<tc>} {
    %c0 = arith.constant 0 : index
    %c0_0 = arith.constant 0 : index
    %0 = vector.load %arg0[%c0, %c0_0] : memref<128x128xf32, #tpu.memory_space<vmem>>, vector<128x128xf32>
    %1 = arith.truncf %0 : vector<128x128xf32> to vector<128x128xbf16>
    %c0_1 = arith.constant 0 : index
    %c0_2 = arith.constant 0 : index
    %2 = vector.load %arg1[%c0_1, %c0_2] : memref<128x192xbf16, #tpu.memory_space<vmem>>, vector<128x192xbf16>
    %cst = arith.constant dense<0.000000e+00> : vector<128x192xf32>
    %3 = tpu.matmul %1, %2, %cst {dimension_numbers = #tpu.dot_dimension_numbers<[1], [0], [0], [1], [0, 0, 1, 1], [], []>} : vector<128x128xbf16>, vector<128x192xbf16>, vector<128x192xf32> -> vector<128x192xf32>
    %4 = vector.extract_strided_slice %3 {offsets = [0, 0], sizes = [128, 64], strides = [1, 1]} : vector<128x192xf32> to vector<128x64xf32>
    %5 = vector.extract_strided_slice %3 {offsets = [0, 64], sizes = [128, 64], strides = [1, 1]} : vector<128x192xf32> to vector<128x64xf32>
    %c120_i32 = arith.constant 120 : i32
    %6 = tpu.dynamic_rotate %5 by %c120_i32 dim 0 : vector<128x64xf32>, i32 -> vector<128x64xf32>
    %7 = vector.extract_strided_slice %3 {offsets = [0, 128], sizes = [128, 64], strides = [1, 1]} : vector<128x192xf32> to vector<128x64xf32>
    %c112_i32 = arith.constant 112 : i32
    %8 = tpu.dynamic_rotate %7 by %c112_i32 dim 0 : vector<128x64xf32>, i32 -> vector<128x64xf32>
    %9 = arith.addf %4, %6 : vector<128x64xf32>
    %10 = arith.addf %9, %8 : vector<128x64xf32>
    %c0_3 = arith.constant 0 : index
    %c0_4 = arith.constant 0 : index
    %11 = vector.load %arg2[%c0_3, %c0_4] : memref<1x64xf32, #tpu.memory_space<vmem>>, vector<1x64xf32>
    %12 = vector.broadcast %11 : vector<1x64xf32> to vector<128x64xf32>
    %13 = arith.addf %10, %12 : vector<128x64xf32>
    %cst_5 = arith.constant 0.000000e+00 : f32
    %14 = vector.broadcast %cst_5 : f32 to vector<128x64xf32>
    %15 = arith.maximumf %13, %14 : vector<128x64xf32>
    %c120_i32_6 = arith.constant 120 : i32
    %16 = tpu.dynamic_rotate %15 by %c120_i32_6 dim 0 : vector<128x64xf32>, i32 -> vector<128x64xf32>
    %17 = arith.maximumf %15, %16 : vector<128x64xf32>
    %c112_i32_7 = arith.constant 112 : i32
    %18 = tpu.dynamic_rotate %15 by %c112_i32_7 dim 0 : vector<128x64xf32>, i32 -> vector<128x64xf32>
    %19 = arith.maximumf %17, %18 : vector<128x64xf32>
    %c104_i32 = arith.constant 104 : i32
    %20 = tpu.dynamic_rotate %15 by %c104_i32 dim 0 : vector<128x64xf32>, i32 -> vector<128x64xf32>
    %21 = arith.maximumf %19, %20 : vector<128x64xf32>
    %22 = vector.extract_strided_slice %21 {offsets = [0, 0], sizes = [88, 64], strides = [1, 1]} : vector<128x64xf32> to vector<88x64xf32>
    %23 = arith.truncf %22 : vector<88x64xf32> to vector<88x64xbf16>
    %c0_8 = arith.constant 0 : index
    %c0_9 = arith.constant 0 : index
    %24 = vector.load %arg3[%c0_8, %c0_9] : memref<64x512xbf16, #tpu.memory_space<vmem>>, vector<64x512xbf16>
    %cst_10 = arith.constant dense<0.000000e+00> : vector<88x512xf32>
    %25 = tpu.matmul %23, %24, %cst_10 {dimension_numbers = #tpu.dot_dimension_numbers<[1], [0], [0], [1], [0, 0, 1, 1], [], []>} : vector<88x64xbf16>, vector<64x512xbf16>, vector<88x512xf32> -> vector<88x512xf32>
    %c0_11 = arith.constant 0 : index
    %c0_12 = arith.constant 0 : index
    %26 = vector.load %arg5[%c0_11, %c0_12] : memref<1x512xf32, #tpu.memory_space<vmem>>, vector<1x512xf32>
    %27 = vector.broadcast %26 : vector<1x512xf32> to vector<88x512xf32>
    %28 = arith.addf %25, %27 : vector<88x512xf32>
    %29 = vector.shape_cast %28 : vector<88x512xf32> to vector<11x8x512xf32>
    %c0_13 = arith.constant 0 : index
    %c0_14 = arith.constant 0 : index
    %c0_15 = arith.constant 0 : index
    %30 = vector.load %arg12[%c0_13, %c0_14, %c0_15] : memref<11x8x512xf32, #tpu.memory_space<vmem>>, vector<11x8x512xf32>
    tpu.vector_store %arg12[%c0_13, %c0_14, %c0_15], %29 {strides = array<i32>} : memref<11x8x512xf32, #tpu.memory_space<vmem>>, vector<11x8x512xf32>,
    %c0_16 = arith.constant 0 : index
    %c0_17 = arith.constant 0 : index
    %31 = vector.load %arg4[%c0_16, %c0_17] : memref<64x512xbf16, #tpu.memory_space<vmem>>, vector<64x512xbf16>
    %cst_18 = arith.constant dense<0.000000e+00> : vector<88x512xf32>
    %32 = tpu.matmul %23, %31, %cst_18 {dimension_numbers = #tpu.dot_dimension_numbers<[1], [0], [0], [1], [0, 0, 1, 1], [], []>} : vector<88x64xbf16>, vector<64x512xbf16>, vector<88x512xf32> -> vector<88x512xf32>
    %33 = vector.shape_cast %32 : vector<88x512xf32> to vector<11x8x512xf32>
    %c0_19 = arith.constant 0 : index
    %c0_20 = arith.constant 0 : index
    %c0_21 = arith.constant 0 : index
    %34 = vector.load %arg13[%c0_19, %c0_20, %c0_21] : memref<11x8x512xf32, #tpu.memory_space<vmem>>, vector<11x8x512xf32>
    tpu.vector_store %arg13[%c0_19, %c0_20, %c0_21], %33 {strides = array<i32>} : memref<11x8x512xf32, #tpu.memory_space<vmem>>, vector<11x8x512xf32>,
    %c0_22 = arith.constant 0 : index
    %c0_23 = arith.constant 0 : index
    %c0_24 = arith.constant 0 : index
    %35 = vector.load %arg12[%c0_22, %c0_23, %c0_24] : memref<11x8x512xf32, #tpu.memory_space<vmem>>, vector<1x8x512xf32>
    %36 = vector.shape_cast %35 : vector<1x8x512xf32> to vector<8x512xf32>
    %c10 = arith.constant 10 : index
    %c0_25 = arith.constant 0 : index
    %c0_26 = arith.constant 0 : index
    %37 = vector.load %arg13[%c10, %c0_25, %c0_26] : memref<11x8x512xf32, #tpu.memory_space<vmem>>, vector<1x8x512xf32>
    %38 = vector.shape_cast %37 : vector<1x8x512xf32> to vector<8x512xf32>
    %39 = arith.addf %36, %38 : vector<8x512xf32>
    %c0_27 = arith.constant 0 : index
    %c0_28 = arith.constant 0 : index
    %c0_29 = arith.constant 0 : index
    %40 = vector.load %arg12[%c0_27, %c0_28, %c0_29] : memref<11x8x512xf32, #tpu.memory_space<vmem>>, vector<1x8x512xf32>
    %41 = vector.shape_cast %40 : vector<1x8x512xf32> to vector<8x512xf32>
    %42 = vector.shape_cast %39 : vector<8x512xf32> to vector<1x8x512xf32>
    tpu.vector_store %arg12[%c0_27, %c0_28, %c0_29], %42 {strides = array<i32>} : memref<11x8x512xf32, #tpu.memory_space<vmem>>, vector<1x8x512xf32>,
    %c1 = arith.constant 1 : index
    %c0_30 = arith.constant 0 : index
    %c0_31 = arith.constant 0 : index
    %43 = vector.load %arg12[%c1, %c0_30, %c0_31] : memref<11x8x512xf32, #tpu.memory_space<vmem>>, vector<1x8x512xf32>
    %44 = vector.shape_cast %43 : vector<1x8x512xf32> to vector<8x512xf32>
    %c9 = arith.constant 9 : index
    %c0_32 = arith.constant 0 : index
    %c0_33 = arith.constant 0 : index
    %45 = vector.load %arg13[%c9, %c0_32, %c0_33] : memref<11x8x512xf32, #tpu.memory_space<vmem>>, vector<1x8x512xf32>
    %46 = vector.shape_cast %45 : vector<1x8x512xf32> to vector<8x512xf32>
    %47 = arith.addf %44, %46 : vector<8x512xf32>
    %c1_34 = arith.constant 1 : index
    %c0_35 = arith.constant 0 : index
    %c0_36 = arith.constant 0 : index
    %48 = vector.load %arg12[%c1_34, %c0_35, %c0_36] : memref<11x8x512xf32, #tpu.memory_space<vmem>>, vector<1x8x512xf32>
    %49 = vector.shape_cast %48 : vector<1x8x512xf32> to vector<8x512xf32>
    %50 = vector.shape_cast %47 : vector<8x512xf32> to vector<1x8x512xf32>
    tpu.vector_store %arg12[%c1_34, %c0_35, %c0_36], %50 {strides = array<i32>} : memref<11x8x512xf32, #tpu.memory_space<vmem>>, vector<1x8x512xf32>,
    %c2 = arith.constant 2 : index
    %c0_37 = arith.constant 0 : index
    %c0_38 = arith.constant 0 : index
    %51 = vector.load %arg12[%c2, %c0_37, %c0_38] : memref<11x8x512xf32, #tpu.memory_space<vmem>>, vector<1x8x512xf32>
    %52 = vector.shape_cast %51 : vector<1x8x512xf32> to vector<8x512xf32>
    %c8 = arith.constant 8 : index
    %c0_39 = arith.constant 0 : index
    %c0_40 = arith.constant 0 : index
    %53 = vector.load %arg13[%c8, %c0_39, %c0_40] : memref<11x8x512xf32, #tpu.memory_space<vmem>>, vector<1x8x512xf32>
    %54 = vector.shape_cast %53 : vector<1x8x512xf32> to vector<8x512xf32>
    %55 = arith.addf %52, %54 : vector<8x512xf32>
    %c2_41 = arith.constant 2 : index
    %c0_42 = arith.constant 0 : index
    %c0_43 = arith.constant 0 : index
    %56 = vector.load %arg12[%c2_41, %c0_42, %c0_43] : memref<11x8x512xf32, #tpu.memory_space<vmem>>, vector<1x8x512xf32>
    %57 = vector.shape_cast %56 : vector<1x8x512xf32> to vector<8x512xf32>
    %58 = vector.shape_cast %55 : vector<8x512xf32> to vector<1x8x512xf32>
    tpu.vector_store %arg12[%c2_41, %c0_42, %c0_43], %58 {strides = array<i32>} : memref<11x8x512xf32, #tpu.memory_space<vmem>>, vector<1x8x512xf32>,
    %c3 = arith.constant 3 : index
    %c0_44 = arith.constant 0 : index
    %c0_45 = arith.constant 0 : index
    %59 = vector.load %arg12[%c3, %c0_44, %c0_45] : memref<11x8x512xf32, #tpu.memory_space<vmem>>, vector<1x8x512xf32>
    %60 = vector.shape_cast %59 : vector<1x8x512xf32> to vector<8x512xf32>
    %c7 = arith.constant 7 : index
    %c0_46 = arith.constant 0 : index
    %c0_47 = arith.constant 0 : index
    %61 = vector.load %arg13[%c7, %c0_46, %c0_47] : memref<11x8x512xf32, #tpu.memory_space<vmem>>, vector<1x8x512xf32>
    %62 = vector.shape_cast %61 : vector<1x8x512xf32> to vector<8x512xf32>
    %63 = arith.addf %60, %62 : vector<8x512xf32>
    %c3_48 = arith.constant 3 : index
    %c0_49 = arith.constant 0 : index
    %c0_50 = arith.constant 0 : index
    %64 = vector.load %arg12[%c3_48, %c0_49, %c0_50] : memref<11x8x512xf32, #tpu.memory_space<vmem>>, vector<1x8x512xf32>
    %65 = vector.shape_cast %64 : vector<1x8x512xf32> to vector<8x512xf32>
    %66 = vector.shape_cast %63 : vector<8x512xf32> to vector<1x8x512xf32>
    tpu.vector_store %arg12[%c3_48, %c0_49, %c0_50], %66 {strides = array<i32>} : memref<11x8x512xf32, #tpu.memory_space<vmem>>, vector<1x8x512xf32>,
    %c4 = arith.constant 4 : index
    %c0_51 = arith.constant 0 : index
    %c0_52 = arith.constant 0 : index
    %67 = vector.load %arg12[%c4, %c0_51, %c0_52] : memref<11x8x512xf32, #tpu.memory_space<vmem>>, vector<1x8x512xf32>
    %68 = vector.shape_cast %67 : vector<1x8x512xf32> to vector<8x512xf32>
    %c6 = arith.constant 6 : index
    %c0_53 = arith.constant 0 : index
    %c0_54 = arith.constant 0 : index
    %69 = vector.load %arg13[%c6, %c0_53, %c0_54] : memref<11x8x512xf32, #tpu.memory_space<vmem>>, vector<1x8x512xf32>
    %70 = vector.shape_cast %69 : vector<1x8x512xf32> to vector<8x512xf32>
    %71 = arith.addf %68, %70 : vector<8x512xf32>
    %c4_55 = arith.constant 4 : index
    %c0_56 = arith.constant 0 : index
    %c0_57 = arith.constant 0 : index
    %72 = vector.load %arg12[%c4_55, %c0_56, %c0_57] : memref<11x8x512xf32, #tpu.memory_space<vmem>>, vector<1x8x512xf32>
    %73 = vector.shape_cast %72 : vector<1x8x512xf32> to vector<8x512xf32>
    %74 = vector.shape_cast %71 : vector<8x512xf32> to vector<1x8x512xf32>
    tpu.vector_store %arg12[%c4_55, %c0_56, %c0_57], %74 {strides = array<i32>} : memref<11x8x512xf32, #tpu.memory_space<vmem>>, vector<1x8x512xf32>,
    %c5 = arith.constant 5 : index
    %c0_58 = arith.constant 0 : index
    %c0_59 = arith.constant 0 : index
    %75 = vector.load %arg12[%c5, %c0_58, %c0_59] : memref<11x8x512xf32, #tpu.memory_space<vmem>>, vector<1x8x512xf32>
    %76 = vector.shape_cast %75 : vector<1x8x512xf32> to vector<8x512xf32>
    %c5_60 = arith.constant 5 : index
    %c0_61 = arith.constant 0 : index
    %c0_62 = arith.constant 0 : index
    %77 = vector.load %arg13[%c5_60, %c0_61, %c0_62] : memref<11x8x512xf32, #tpu.memory_space<vmem>>, vector<1x8x512xf32>
    %78 = vector.shape_cast %77 : vector<1x8x512xf32> to vector<8x512xf32>
    %79 = arith.addf %76, %78 : vector<8x512xf32>
    %c5_63 = arith.constant 5 : index
    %c0_64 = arith.constant 0 : index
    %c0_65 = arith.constant 0 : index
    %80 = vector.load %arg12[%c5_63, %c0_64, %c0_65] : memref<11x8x512xf32, #tpu.memory_space<vmem>>, vector<1x8x512xf32>
    %81 = vector.shape_cast %80 : vector<1x8x512xf32> to vector<8x512xf32>
    %82 = vector.shape_cast %79 : vector<8x512xf32> to vector<1x8x512xf32>
    tpu.vector_store %arg12[%c5_63, %c0_64, %c0_65], %82 {strides = array<i32>} : memref<11x8x512xf32, #tpu.memory_space<vmem>>, vector<1x8x512xf32>,
    %c6_66 = arith.constant 6 : index
    %c0_67 = arith.constant 0 : index
    %c0_68 = arith.constant 0 : index
    %83 = vector.load %arg12[%c6_66, %c0_67, %c0_68] : memref<11x8x512xf32, #tpu.memory_space<vmem>>, vector<1x8x512xf32>
    %84 = vector.shape_cast %83 : vector<1x8x512xf32> to vector<8x512xf32>
    %c4_69 = arith.constant 4 : index
    %c0_70 = arith.constant 0 : index
    %c0_71 = arith.constant 0 : index
    %85 = vector.load %arg13[%c4_69, %c0_70, %c0_71] : memref<11x8x512xf32, #tpu.memory_space<vmem>>, vector<1x8x512xf32>
    %86 = vector.shape_cast %85 : vector<1x8x512xf32> to vector<8x512xf32>
    %87 = arith.addf %84, %86 : vector<8x512xf32>
    %c6_72 = arith.constant 6 : index
    %c0_73 = arith.constant 0 : index
    %c0_74 = arith.constant 0 : index
    %88 = vector.load %arg12[%c6_72, %c0_73, %c0_74] : memref<11x8x512xf32, #tpu.memory_space<vmem>>, vector<1x8x512xf32>
    %89 = vector.shape_cast %88 : vector<1x8x512xf32> to vector<8x512xf32>
    %90 = vector.shape_cast %87 : vector<8x512xf32> to vector<1x8x512xf32>
    tpu.vector_store %arg12[%c6_72, %c0_73, %c0_74], %90 {strides = array<i32>} : memref<11x8x512xf32, #tpu.memory_space<vmem>>, vector<1x8x512xf32>,
    %c7_75 = arith.constant 7 : index
    %c0_76 = arith.constant 0 : index
    %c0_77 = arith.constant 0 : index
    %91 = vector.load %arg12[%c7_75, %c0_76, %c0_77] : memref<11x8x512xf32, #tpu.memory_space<vmem>>, vector<1x8x512xf32>
    %92 = vector.shape_cast %91 : vector<1x8x512xf32> to vector<8x512xf32>
    %c3_78 = arith.constant 3 : index
    %c0_79 = arith.constant 0 : index
    %c0_80 = arith.constant 0 : index
    %93 = vector.load %arg13[%c3_78, %c0_79, %c0_80] : memref<11x8x512xf32, #tpu.memory_space<vmem>>, vector<1x8x512xf32>
    %94 = vector.shape_cast %93 : vector<1x8x512xf32> to vector<8x512xf32>
    %95 = arith.addf %92, %94 : vector<8x512xf32>
    %c7_81 = arith.constant 7 : index
    %c0_82 = arith.constant 0 : index
    %c0_83 = arith.constant 0 : index
    %96 = vector.load %arg12[%c7_81, %c0_82, %c0_83] : memref<11x8x512xf32, #tpu.memory_space<vmem>>, vector<1x8x512xf32>
    %97 = vector.shape_cast %96 : vector<1x8x512xf32> to vector<8x512xf32>
    %98 = vector.shape_cast %95 : vector<8x512xf32> to vector<1x8x512xf32>
    tpu.vector_store %arg12[%c7_81, %c0_82, %c0_83], %98 {strides = array<i32>} : memref<11x8x512xf32, #tpu.memory_space<vmem>>, vector<1x8x512xf32>,
    %c8_84 = arith.constant 8 : index
    %c0_85 = arith.constant 0 : index
    %c0_86 = arith.constant 0 : index
    %99 = vector.load %arg12[%c8_84, %c0_85, %c0_86] : memref<11x8x512xf32, #tpu.memory_space<vmem>>, vector<1x8x512xf32>
    %100 = vector.shape_cast %99 : vector<1x8x512xf32> to vector<8x512xf32>
    %c2_87 = arith.constant 2 : index
    %c0_88 = arith.constant 0 : index
    %c0_89 = arith.constant 0 : index
    %101 = vector.load %arg13[%c2_87, %c0_88, %c0_89] : memref<11x8x512xf32, #tpu.memory_space<vmem>>, vector<1x8x512xf32>
    %102 = vector.shape_cast %101 : vector<1x8x512xf32> to vector<8x512xf32>
    %103 = arith.addf %100, %102 : vector<8x512xf32>
    %c8_90 = arith.constant 8 : index
    %c0_91 = arith.constant 0 : index
    %c0_92 = arith.constant 0 : index
    %104 = vector.load %arg12[%c8_90, %c0_91, %c0_92] : memref<11x8x512xf32, #tpu.memory_space<vmem>>, vector<1x8x512xf32>
    %105 = vector.shape_cast %104 : vector<1x8x512xf32> to vector<8x512xf32>
    %106 = vector.shape_cast %103 : vector<8x512xf32> to vector<1x8x512xf32>
    tpu.vector_store %arg12[%c8_90, %c0_91, %c0_92], %106 {strides = array<i32>} : memref<11x8x512xf32, #tpu.memory_space<vmem>>, vector<1x8x512xf32>,
    %c9_93 = arith.constant 9 : index
    %c0_94 = arith.constant 0 : index
    %c0_95 = arith.constant 0 : index
    %107 = vector.load %arg12[%c9_93, %c0_94, %c0_95] : memref<11x8x512xf32, #tpu.memory_space<vmem>>, vector<1x8x512xf32>
    %108 = vector.shape_cast %107 : vector<1x8x512xf32> to vector<8x512xf32>
    %c1_96 = arith.constant 1 : index
    %c0_97 = arith.constant 0 : index
    %c0_98 = arith.constant 0 : index
    %109 = vector.load %arg13[%c1_96, %c0_97, %c0_98] : memref<11x8x512xf32, #tpu.memory_space<vmem>>, vector<1x8x512xf32>
    %110 = vector.shape_cast %109 : vector<1x8x512xf32> to vector<8x512xf32>
    %111 = arith.addf %108, %110 : vector<8x512xf32>
    %c9_99 = arith.constant 9 : index
    %c0_100 = arith.constant 0 : index
    %c0_101 = arith.constant 0 : index
    %112 = vector.load %arg12[%c9_99, %c0_100, %c0_101] : memref<11x8x512xf32, #tpu.memory_space<vmem>>, vector<1x8x512xf32>
    %113 = vector.shape_cast %112 : vector<1x8x512xf32> to vector<8x512xf32>
    %114 = vector.shape_cast %111 : vector<8x512xf32> to vector<1x8x512xf32>
    tpu.vector_store %arg12[%c9_99, %c0_100, %c0_101], %114 {strides = array<i32>} : memref<11x8x512xf32, #tpu.memory_space<vmem>>, vector<1x8x512xf32>,
    %c10_102 = arith.constant 10 : index
    %c0_103 = arith.constant 0 : index
    %c0_104 = arith.constant 0 : index
    %115 = vector.load %arg12[%c10_102, %c0_103, %c0_104] : memref<11x8x512xf32, #tpu.memory_space<vmem>>, vector<1x8x512xf32>
    %116 = vector.shape_cast %115 : vector<1x8x512xf32> to vector<8x512xf32>
    %c0_105 = arith.constant 0 : index
    %c0_106 = arith.constant 0 : index
    %c0_107 = arith.constant 0 : index
    %117 = vector.load %arg13[%c0_105, %c0_106, %c0_107] : memref<11x8x512xf32, #tpu.memory_space<vmem>>, vector<1x8x512xf32>
    %118 = vector.shape_cast %117 : vector<1x8x512xf32> to vector<8x512xf32>
    %119 = arith.addf %116, %118 : vector<8x512xf32>
    %c10_108 = arith.constant 10 : index
    %c0_109 = arith.constant 0 : index
    %c0_110 = arith.constant 0 : index
    %120 = vector.load %arg12[%c10_108, %c0_109, %c0_110] : memref<11x8x512xf32, #tpu.memory_space<vmem>>, vector<1x8x512xf32>
    %121 = vector.shape_cast %120 : vector<1x8x512xf32> to vector<8x512xf32>
    %122 = vector.shape_cast %119 : vector<8x512xf32> to vector<1x8x512xf32>
    tpu.vector_store %arg12[%c10_108, %c0_109, %c0_110], %122 {strides = array<i32>} : memref<11x8x512xf32, #tpu.memory_space<vmem>>, vector<1x8x512xf32>,
    %c0_111 = arith.constant 0 : index
    %c0_112 = arith.constant 0 : index
    %123 = vector.load %arg6[%c0_111, %c0_112] : memref<128x512xbf16, #tpu.memory_space<vmem>>, vector<128x512xbf16>
    %cst_113 = arith.constant 0.000000e+00 : f32
    %124 = vector.broadcast %cst_113 : f32 to vector<8x128xf32>
    %cst_114 = arith.constant 0.000000e+00 : f32
    %125 = vector.broadcast %cst_114 : f32 to vector<8x128xf32>
    %126 = arith.truncf %124 : vector<8x128xf32> to vector<8x128xbf16>
    %cst_115 = arith.constant dense<0.000000e+00> : vector<8x512xf32>
    %127 = tpu.matmul %126, %123, %cst_115 {dimension_numbers = #tpu.dot_dimension_numbers<[1], [0], [0], [1], [0, 0, 1, 1], [], []>} : vector<8x128xbf16>, vector<128x512xbf16>, vector<8x512xf32> -> vector<8x512xf32>
    %c0_116 = arith.constant 0 : index
    %c0_117 = arith.constant 0 : index
    %c0_118 = arith.constant 0 : index
    %128 = vector.load %arg12[%c0_116, %c0_117, %c0_118] : memref<11x8x512xf32, #tpu.memory_space<vmem>>, vector<1x8x512xf32>
    %129 = vector.shape_cast %128 : vector<1x8x512xf32> to vector<8x512xf32>
    %130 = arith.addf %127, %129 : vector<8x512xf32>
    %131 = vector.extract_strided_slice %130 {offsets = [0, 0], sizes = [8, 384], strides = [1, 1]} : vector<8x512xf32> to vector<8x384xf32>
    %132 = arith.negf %131 : vector<8x384xf32>
    %133 = math.exp %132 : vector<8x384xf32>
    %cst_119 = arith.constant 1.000000e+00 : f32
    %134 = vector.broadcast %cst_119 : f32 to vector<8x384xf32>
    %135 = arith.addf %134, %133 : vector<8x384xf32>
    %136 = arith.divf %134, %135 : vector<8x384xf32>
    %137 = vector.extract_strided_slice %130 {offsets = [0, 384], sizes = [8, 128], strides = [1, 1]} : vector<8x512xf32> to vector<8x128xf32>
    %138 = math.tanh %137 : vector<8x128xf32>
    %139 = vector.extract_strided_slice %136 {offsets = [0, 0], sizes = [8, 128], strides = [1, 1]} : vector<8x384xf32> to vector<8x128xf32>
    %140 = vector.extract_strided_slice %136 {offsets = [0, 128], sizes = [8, 128], strides = [1, 1]} : vector<8x384xf32> to vector<8x128xf32>
    %141 = vector.extract_strided_slice %136 {offsets = [0, 256], sizes = [8, 128], strides = [1, 1]} : vector<8x384xf32> to vector<8x128xf32>
    %142 = arith.mulf %140, %125 : vector<8x128xf32>
    %143 = arith.mulf %139, %138 : vector<8x128xf32>
    %144 = arith.addf %142, %143 : vector<8x128xf32>
    %145 = math.tanh %144 : vector<8x128xf32>
    %146 = arith.mulf %141, %145 : vector<8x128xf32>
    %c0_120 = arith.constant 0 : index
    %c0_121 = arith.constant 0 : index
    %c0_122 = arith.constant 0 : index
    %147 = vector.load %arg14[%c0_120, %c0_121, %c0_122] : memref<33x8x128xf32, #tpu.memory_space<vmem>>, vector<1x8x128xf32>
    %148 = vector.shape_cast %147 : vector<1x8x128xf32> to vector<8x128xf32>
    %149 = vector.shape_cast %146 : vector<8x128xf32> to vector<1x8x128xf32>
    tpu.vector_store %arg14[%c0_120, %c0_121, %c0_122], %149 {strides = array<i32>} : memref<33x8x128xf32, #tpu.memory_space<vmem>>, vector<1x8x128xf32>,
    %c32 = arith.constant 32 : index
    %c0_123 = arith.constant 0 : index
    %c0_124 = arith.constant 0 : index
    %150 = vector.load %arg15[%c32, %c0_123, %c0_124] : memref<33x8x128xf32, #tpu.memory_space<vmem>>, vector<1x8x128xf32>
    %151 = vector.shape_cast %150 : vector<1x8x128xf32> to vector<8x128xf32>
    %152 = vector.shape_cast %146 : vector<8x128xf32> to vector<1x8x128xf32>
    tpu.vector_store %arg15[%c32, %c0_123, %c0_124], %152 {strides = array<i32>} : memref<33x8x128xf32, #tpu.memory_space<vmem>>, vector<1x8x128xf32>,
    %153 = arith.truncf %146 : vector<8x128xf32> to vector<8x128xbf16>
    %cst_125 = arith.constant dense<0.000000e+00> : vector<8x512xf32>
    %154 = tpu.matmul %153, %123, %cst_125 {dimension_numbers = #tpu.dot_dimension_numbers<[1], [0], [0], [1], [0, 0, 1, 1], [], []>} : vector<8x128xbf16>, vector<128x512xbf16>, vector<8x512xf32> -> vector<8x512xf32>
    %c1_126 = arith.constant 1 : index
    %c0_127 = arith.constant 0 : index
    %c0_128 = arith.constant 0 : index
    %155 = vector.load %arg12[%c1_126, %c0_127, %c0_128] : memref<11x8x512xf32, #tpu.memory_space<vmem>>, vector<1x8x512xf32>
    %156 = vector.shape_cast %155 : vector<1x8x512xf32> to vector<8x512xf32>
    %157 = arith.addf %154, %156 : vector<8x512xf32>
    %158 = vector.extract_strided_slice %157 {offsets = [0, 0], sizes = [8, 384], strides = [1, 1]} : vector<8x512xf32> to vector<8x384xf32>
    %159 = arith.negf %158 : vector<8x384xf32>
    %160 = math.exp %159 : vector<8x384xf32>
    %cst_129 = arith.constant 1.000000e+00 : f32
    %161 = vector.broadcast %cst_129 : f32 to vector<8x384xf32>
    %162 = arith.addf %161, %160 : vector<8x384xf32>
    %163 = arith.divf %161, %162 : vector<8x384xf32>
    %164 = vector.extract_strided_slice %157 {offsets = [0, 384], sizes = [8, 128], strides = [1, 1]} : vector<8x512xf32> to vector<8x128xf32>
    %165 = math.tanh %164 : vector<8x128xf32>
    %166 = vector.extract_strided_slice %163 {offsets = [0, 0], sizes = [8, 128], strides = [1, 1]} : vector<8x384xf32> to vector<8x128xf32>
    %167 = vector.extract_strided_slice %163 {offsets = [0, 128], sizes = [8, 128], strides = [1, 1]} : vector<8x384xf32> to vector<8x128xf32>
    %168 = vector.extract_strided_slice %163 {offsets = [0, 256], sizes = [8, 128], strides = [1, 1]} : vector<8x384xf32> to vector<8x128xf32>
    %169 = arith.mulf %167, %144 : vector<8x128xf32>
    %170 = arith.mulf %166, %165 : vector<8x128xf32>
    %171 = arith.addf %169, %170 : vector<8x128xf32>
    %172 = math.tanh %171 : vector<8x128xf32>
    %173 = arith.mulf %168, %172 : vector<8x128xf32>
    %c1_130 = arith.constant 1 : index
    %c0_131 = arith.constant 0 : index
    %c0_132 = arith.constant 0 : index
    %174 = vector.load %arg14[%c1_130, %c0_131, %c0_132] : memref<33x8x128xf32, #tpu.memory_space<vmem>>, vector<1x8x128xf32>
    %175 = vector.shape_cast %174 : vector<1x8x128xf32> to vector<8x128xf32>
    %176 = vector.shape_cast %173 : vector<8x128xf32> to vector<1x8x128xf32>
    tpu.vector_store %arg14[%c1_130, %c0_131, %c0_132], %176 {strides = array<i32>} : memref<33x8x128xf32, #tpu.memory_space<vmem>>, vector<1x8x128xf32>,
    %c31 = arith.constant 31 : index
    %c0_133 = arith.constant 0 : index
    %c0_134 = arith.constant 0 : index
    %177 = vector.load %arg15[%c31, %c0_133, %c0_134] : memref<33x8x128xf32, #tpu.memory_space<vmem>>, vector<1x8x128xf32>
    %178 = vector.shape_cast %177 : vector<1x8x128xf32> to vector<8x128xf32>
    %179 = vector.shape_cast %173 : vector<8x128xf32> to vector<1x8x128xf32>
    tpu.vector_store %arg15[%c31, %c0_133, %c0_134], %179 {strides = array<i32>} : memref<33x8x128xf32, #tpu.memory_space<vmem>>, vector<1x8x128xf32>,
    %180 = arith.truncf %173 : vector<8x128xf32> to vector<8x128xbf16>
    %cst_135 = arith.constant dense<0.000000e+00> : vector<8x512xf32>
    %181 = tpu.matmul %180, %123, %cst_135 {dimension_numbers = #tpu.dot_dimension_numbers<[1], [0], [0], [1], [0, 0, 1, 1], [], []>} : vector<8x128xbf16>, vector<128x512xbf16>, vector<8x512xf32> -> vector<8x512xf32>
    %c2_136 = arith.constant 2 : index
    %c0_137 = arith.constant 0 : index
    %c0_138 = arith.constant 0 : index
    %182 = vector.load %arg12[%c2_136, %c0_137, %c0_138] : memref<11x8x512xf32, #tpu.memory_space<vmem>>, vector<1x8x512xf32>
    %183 = vector.shape_cast %182 : vector<1x8x512xf32> to vector<8x512xf32>
    %184 = arith.addf %181, %183 : vector<8x512xf32>
    %185 = vector.extract_strided_slice %184 {offsets = [0, 0], sizes = [8, 384], strides = [1, 1]} : vector<8x512xf32> to vector<8x384xf32>
    %186 = arith.negf %185 : vector<8x384xf32>
    %187 = math.exp %186 : vector<8x384xf32>
    %cst_139 = arith.constant 1.000000e+00 : f32
    %188 = vector.broadcast %cst_139 : f32 to vector<8x384xf32>
    %189 = arith.addf %188, %187 : vector<8x384xf32>
    %190 = arith.divf %188, %189 : vector<8x384xf32>
    %191 = vector.extract_strided_slice %184 {offsets = [0, 384], sizes = [8, 128], strides = [1, 1]} : vector<8x512xf32> to vector<8x128xf32>
    %192 = math.tanh %191 : vector<8x128xf32>
    %193 = vector.extract_strided_slice %190 {offsets = [0, 0], sizes = [8, 128], strides = [1, 1]} : vector<8x384xf32> to vector<8x128xf32>
    %194 = vector.extract_strided_slice %190 {offsets = [0, 128], sizes = [8, 128], strides = [1, 1]} : vector<8x384xf32> to vector<8x128xf32>
    %195 = vector.extract_strided_slice %190 {offsets = [0, 256], sizes = [8, 128], strides = [1, 1]} : vector<8x384xf32> to vector<8x128xf32>
    %196 = arith.mulf %194, %171 : vector<8x128xf32>
    %197 = arith.mulf %193, %192 : vector<8x128xf32>
    %198 = arith.addf %196, %197 : vector<8x128xf32>
    %199 = math.tanh %198 : vector<8x128xf32>
    %200 = arith.mulf %195, %199 : vector<8x128xf32>
    %c2_140 = arith.constant 2 : index
    %c0_141 = arith.constant 0 : index
    %c0_142 = arith.constant 0 : index
    %201 = vector.load %arg14[%c2_140, %c0_141, %c0_142] : memref<33x8x128xf32, #tpu.memory_space<vmem>>, vector<1x8x128xf32>
    %202 = vector.shape_cast %201 : vector<1x8x128xf32> to vector<8x128xf32>
    %203 = vector.shape_cast %200 : vector<8x128xf32> to vector<1x8x128xf32>
    tpu.vector_store %arg14[%c2_140, %c0_141, %c0_142], %203 {strides = array<i32>} : memref<33x8x128xf32, #tpu.memory_space<vmem>>, vector<1x8x128xf32>,
    %c30 = arith.constant 30 : index
    %c0_143 = arith.constant 0 : index
    %c0_144 = arith.constant 0 : index
    %204 = vector.load %arg15[%c30, %c0_143, %c0_144] : memref<33x8x128xf32, #tpu.memory_space<vmem>>, vector<1x8x128xf32>
    %205 = vector.shape_cast %204 : vector<1x8x128xf32> to vector<8x128xf32>
    %206 = vector.shape_cast %200 : vector<8x128xf32> to vector<1x8x128xf32>
    tpu.vector_store %arg15[%c30, %c0_143, %c0_144], %206 {strides = array<i32>} : memref<33x8x128xf32, #tpu.memory_space<vmem>>, vector<1x8x128xf32>,
    %207 = arith.truncf %200 : vector<8x128xf32> to vector<8x128xbf16>
    %cst_145 = arith.constant dense<0.000000e+00> : vector<8x512xf32>
    %208 = tpu.matmul %207, %123, %cst_145 {dimension_numbers = #tpu.dot_dimension_numbers<[1], [0], [0], [1], [0, 0, 1, 1], [], []>} : vector<8x128xbf16>, vector<128x512xbf16>, vector<8x512xf32> -> vector<8x512xf32>
    %c3_146 = arith.constant 3 : index
    %c0_147 = arith.constant 0 : index
    %c0_148 = arith.constant 0 : index
    %209 = vector.load %arg12[%c3_146, %c0_147, %c0_148] : memref<11x8x512xf32, #tpu.memory_space<vmem>>, vector<1x8x512xf32>
    %210 = vector.shape_cast %209 : vector<1x8x512xf32> to vector<8x512xf32>
    %211 = arith.addf %208, %210 : vector<8x512xf32>
    %212 = vector.extract_strided_slice %211 {offsets = [0, 0], sizes = [8, 384], strides = [1, 1]} : vector<8x512xf32> to vector<8x384xf32>
    %213 = arith.negf %212 : vector<8x384xf32>
    %214 = math.exp %213 : vector<8x384xf32>
    %cst_149 = arith.constant 1.000000e+00 : f32
    %215 = vector.broadcast %cst_149 : f32 to vector<8x384xf32>
    %216 = arith.addf %215, %214 : vector<8x384xf32>
    %217 = arith.divf %215, %216 : vector<8x384xf32>
    %218 = vector.extract_strided_slice %211 {offsets = [0, 384], sizes = [8, 128], strides = [1, 1]} : vector<8x512xf32> to vector<8x128xf32>
    %219 = math.tanh %218 : vector<8x128xf32>
    %220 = vector.extract_strided_slice %217 {offsets = [0, 0], sizes = [8, 128], strides = [1, 1]} : vector<8x384xf32> to vector<8x128xf32>
    %221 = vector.extract_strided_slice %217 {offsets = [0, 128], sizes = [8, 128], strides = [1, 1]} : vector<8x384xf32> to vector<8x128xf32>
    %222 = vector.extract_strided_slice %217 {offsets = [0, 256], sizes = [8, 128], strides = [1, 1]} : vector<8x384xf32> to vector<8x128xf32>
    %223 = arith.mulf %221, %198 : vector<8x128xf32>
    %224 = arith.mulf %220, %219 : vector<8x128xf32>
    %225 = arith.addf %223, %224 : vector<8x128xf32>
    %226 = math.tanh %225 : vector<8x128xf32>
    %227 = arith.mulf %222, %226 : vector<8x128xf32>
    %c3_150 = arith.constant 3 : index
    %c0_151 = arith.constant 0 : index
    %c0_152 = arith.constant 0 : index
    %228 = vector.load %arg14[%c3_150, %c0_151, %c0_152] : memref<33x8x128xf32, #tpu.memory_space<vmem>>, vector<1x8x128xf32>
    %229 = vector.shape_cast %228 : vector<1x8x128xf32> to vector<8x128xf32>
    %230 = vector.shape_cast %227 : vector<8x128xf32> to vector<1x8x128xf32>
    tpu.vector_store %arg14[%c3_150, %c0_151, %c0_152], %230 {strides = array<i32>} : memref<33x8x128xf32, #tpu.memory_space<vmem>>, vector<1x8x128xf32>,
    %c29 = arith.constant 29 : index
    %c0_153 = arith.constant 0 : index
    %c0_154 = arith.constant 0 : index
    %231 = vector.load %arg15[%c29, %c0_153, %c0_154] : memref<33x8x128xf32, #tpu.memory_space<vmem>>, vector<1x8x128xf32>
    %232 = vector.shape_cast %231 : vector<1x8x128xf32> to vector<8x128xf32>
    %233 = vector.shape_cast %227 : vector<8x128xf32> to vector<1x8x128xf32>
    tpu.vector_store %arg15[%c29, %c0_153, %c0_154], %233 {strides = array<i32>} : memref<33x8x128xf32, #tpu.memory_space<vmem>>, vector<1x8x128xf32>,
    %234 = arith.truncf %227 : vector<8x128xf32> to vector<8x128xbf16>
    %cst_155 = arith.constant dense<0.000000e+00> : vector<8x512xf32>
    %235 = tpu.matmul %234, %123, %cst_155 {dimension_numbers = #tpu.dot_dimension_numbers<[1], [0], [0], [1], [0, 0, 1, 1], [], []>} : vector<8x128xbf16>, vector<128x512xbf16>, vector<8x512xf32> -> vector<8x512xf32>
    %c4_156 = arith.constant 4 : index
    %c0_157 = arith.constant 0 : index
    %c0_158 = arith.constant 0 : index
    %236 = vector.load %arg12[%c4_156, %c0_157, %c0_158] : memref<11x8x512xf32, #tpu.memory_space<vmem>>, vector<1x8x512xf32>
    %237 = vector.shape_cast %236 : vector<1x8x512xf32> to vector<8x512xf32>
    %238 = arith.addf %235, %237 : vector<8x512xf32>
    %239 = vector.extract_strided_slice %238 {offsets = [0, 0], sizes = [8, 384], strides = [1, 1]} : vector<8x512xf32> to vector<8x384xf32>
    %240 = arith.negf %239 : vector<8x384xf32>
    %241 = math.exp %240 : vector<8x384xf32>
    %cst_159 = arith.constant 1.000000e+00 : f32
    %242 = vector.broadcast %cst_159 : f32 to vector<8x384xf32>
    %243 = arith.addf %242, %241 : vector<8x384xf32>
    %244 = arith.divf %242, %243 : vector<8x384xf32>
    %245 = vector.extract_strided_slice %238 {offsets = [0, 384], sizes = [8, 128], strides = [1, 1]} : vector<8x512xf32> to vector<8x128xf32>
    %246 = math.tanh %245 : vector<8x128xf32>
    %247 = vector.extract_strided_slice %244 {offsets = [0, 0], sizes = [8, 128], strides = [1, 1]} : vector<8x384xf32> to vector<8x128xf32>
    %248 = vector.extract_strided_slice %244 {offsets = [0, 128], sizes = [8, 128], strides = [1, 1]} : vector<8x384xf32> to vector<8x128xf32>
    %249 = vector.extract_strided_slice %244 {offsets = [0, 256], sizes = [8, 128], strides = [1, 1]} : vector<8x384xf32> to vector<8x128xf32>
    %250 = arith.mulf %248, %225 : vector<8x128xf32>
    %251 = arith.mulf %247, %246 : vector<8x128xf32>
    %252 = arith.addf %250, %251 : vector<8x128xf32>
    %253 = math.tanh %252 : vector<8x128xf32>
    %254 = arith.mulf %249, %253 : vector<8x128xf32>
    %c4_160 = arith.constant 4 : index
    %c0_161 = arith.constant 0 : index
    %c0_162 = arith.constant 0 : index
    %255 = vector.load %arg14[%c4_160, %c0_161, %c0_162] : memref<33x8x128xf32, #tpu.memory_space<vmem>>, vector<1x8x128xf32>
    %256 = vector.shape_cast %255 : vector<1x8x128xf32> to vector<8x128xf32>
    %257 = vector.shape_cast %254 : vector<8x128xf32> to vector<1x8x128xf32>
    tpu.vector_store %arg14[%c4_160, %c0_161, %c0_162], %257 {strides = array<i32>} : memref<33x8x128xf32, #tpu.memory_space<vmem>>, vector<1x8x128xf32>,
    %c28 = arith.constant 28 : index
    %c0_163 = arith.constant 0 : index
    %c0_164 = arith.constant 0 : index
    %258 = vector.load %arg15[%c28, %c0_163, %c0_164] : memref<33x8x128xf32, #tpu.memory_space<vmem>>, vector<1x8x128xf32>
    %259 = vector.shape_cast %258 : vector<1x8x128xf32> to vector<8x128xf32>
    %260 = vector.shape_cast %254 : vector<8x128xf32> to vector<1x8x128xf32>
    tpu.vector_store %arg15[%c28, %c0_163, %c0_164], %260 {strides = array<i32>} : memref<33x8x128xf32, #tpu.memory_space<vmem>>, vector<1x8x128xf32>,
    %261 = arith.truncf %254 : vector<8x128xf32> to vector<8x128xbf16>
    %cst_165 = arith.constant dense<0.000000e+00> : vector<8x512xf32>
    %262 = tpu.matmul %261, %123, %cst_165 {dimension_numbers = #tpu.dot_dimension_numbers<[1], [0], [0], [1], [0, 0, 1, 1], [], []>} : vector<8x128xbf16>, vector<128x512xbf16>, vector<8x512xf32> -> vector<8x512xf32>
    %c5_166 = arith.constant 5 : index
    %c0_167 = arith.constant 0 : index
    %c0_168 = arith.constant 0 : index
    %263 = vector.load %arg12[%c5_166, %c0_167, %c0_168] : memref<11x8x512xf32, #tpu.memory_space<vmem>>, vector<1x8x512xf32>
    %264 = vector.shape_cast %263 : vector<1x8x512xf32> to vector<8x512xf32>
    %265 = arith.addf %262, %264 : vector<8x512xf32>
    %266 = vector.extract_strided_slice %265 {offsets = [0, 0], sizes = [8, 384], strides = [1, 1]} : vector<8x512xf32> to vector<8x384xf32>
    %267 = arith.negf %266 : vector<8x384xf32>
    %268 = math.exp %267 : vector<8x384xf32>
    %cst_169 = arith.constant 1.000000e+00 : f32
    %269 = vector.broadcast %cst_169 : f32 to vector<8x384xf32>
    %270 = arith.addf %269, %268 : vector<8x384xf32>
    %271 = arith.divf %269, %270 : vector<8x384xf32>
    %272 = vector.extract_strided_slice %265 {offsets = [0, 384], sizes = [8, 128], strides = [1, 1]} : vector<8x512xf32> to vector<8x128xf32>
    %273 = math.tanh %272 : vector<8x128xf32>
    %274 = vector.extract_strided_slice %271 {offsets = [0, 0], sizes = [8, 128], strides = [1, 1]} : vector<8x384xf32> to vector<8x128xf32>
    %275 = vector.extract_strided_slice %271 {offsets = [0, 128], sizes = [8, 128], strides = [1, 1]} : vector<8x384xf32> to vector<8x128xf32>
    %276 = vector.extract_strided_slice %271 {offsets = [0, 256], sizes = [8, 128], strides = [1, 1]} : vector<8x384xf32> to vector<8x128xf32>
    %277 = arith.mulf %275, %252 : vector<8x128xf32>
    %278 = arith.mulf %274, %273 : vector<8x128xf32>
    %279 = arith.addf %277, %278 : vector<8x128xf32>
    %280 = math.tanh %279 : vector<8x128xf32>
    %281 = arith.mulf %276, %280 : vector<8x128xf32>
    %c5_170 = arith.constant 5 : index
    %c0_171 = arith.constant 0 : index
    %c0_172 = arith.constant 0 : index
    %282 = vector.load %arg14[%c5_170, %c0_171, %c0_172] : memref<33x8x128xf32, #tpu.memory_space<vmem>>, vector<1x8x128xf32>
    %283 = vector.shape_cast %282 : vector<1x8x128xf32> to vector<8x128xf32>
    %284 = vector.shape_cast %281 : vector<8x128xf32> to vector<1x8x128xf32>
    tpu.vector_store %arg14[%c5_170, %c0_171, %c0_172], %284 {strides = array<i32>} : memref<33x8x128xf32, #tpu.memory_space<vmem>>, vector<1x8x128xf32>,
    %c27 = arith.constant 27 : index
    %c0_173 = arith.constant 0 : index
    %c0_174 = arith.constant 0 : index
    %285 = vector.load %arg15[%c27, %c0_173, %c0_174] : memref<33x8x128xf32, #tpu.memory_space<vmem>>, vector<1x8x128xf32>
    %286 = vector.shape_cast %285 : vector<1x8x128xf32> to vector<8x128xf32>
    %287 = vector.shape_cast %281 : vector<8x128xf32> to vector<1x8x128xf32>
    tpu.vector_store %arg15[%c27, %c0_173, %c0_174], %287 {strides = array<i32>} : memref<33x8x128xf32, #tpu.memory_space<vmem>>, vector<1x8x128xf32>,
    %288 = arith.truncf %281 : vector<8x128xf32> to vector<8x128xbf16>
    %cst_175 = arith.constant dense<0.000000e+00> : vector<8x512xf32>
    %289 = tpu.matmul %288, %123, %cst_175 {dimension_numbers = #tpu.dot_dimension_numbers<[1], [0], [0], [1], [0, 0, 1, 1], [], []>} : vector<8x128xbf16>, vector<128x512xbf16>, vector<8x512xf32> -> vector<8x512xf32>
    %c6_176 = arith.constant 6 : index
    %c0_177 = arith.constant 0 : index
    %c0_178 = arith.constant 0 : index
    %290 = vector.load %arg12[%c6_176, %c0_177, %c0_178] : memref<11x8x512xf32, #tpu.memory_space<vmem>>, vector<1x8x512xf32>
    %291 = vector.shape_cast %290 : vector<1x8x512xf32> to vector<8x512xf32>
    %292 = arith.addf %289, %291 : vector<8x512xf32>
    %293 = vector.extract_strided_slice %292 {offsets = [0, 0], sizes = [8, 384], strides = [1, 1]} : vector<8x512xf32> to vector<8x384xf32>
    %294 = arith.negf %293 : vector<8x384xf32>
    %295 = math.exp %294 : vector<8x384xf32>
    %cst_179 = arith.constant 1.000000e+00 : f32
    %296 = vector.broadcast %cst_179 : f32 to vector<8x384xf32>
    %297 = arith.addf %296, %295 : vector<8x384xf32>
    %298 = arith.divf %296, %297 : vector<8x384xf32>
    %299 = vector.extract_strided_slice %292 {offsets = [0, 384], sizes = [8, 128], strides = [1, 1]} : vector<8x512xf32> to vector<8x128xf32>
    %300 = math.tanh %299 : vector<8x128xf32>
    %301 = vector.extract_strided_slice %298 {offsets = [0, 0], sizes = [8, 128], strides = [1, 1]} : vector<8x384xf32> to vector<8x128xf32>
    %302 = vector.extract_strided_slice %298 {offsets = [0, 128], sizes = [8, 128], strides = [1, 1]} : vector<8x384xf32> to vector<8x128xf32>
    %303 = vector.extract_strided_slice %298 {offsets = [0, 256], sizes = [8, 128], strides = [1, 1]} : vector<8x384xf32> to vector<8x128xf32>
    %304 = arith.mulf %302, %279 : vector<8x128xf32>
    %305 = arith.mulf %301, %300 : vector<8x128xf32>
    %306 = arith.addf %304, %305 : vector<8x128xf32>
    %307 = math.tanh %306 : vector<8x128xf32>
    %308 = arith.mulf %303, %307 : vector<8x128xf32>
    %c6_180 = arith.constant 6 : index
    %c0_181 = arith.constant 0 : index
    %c0_182 = arith.constant 0 : index
    %309 = vector.load %arg14[%c6_180, %c0_181, %c0_182] : memref<33x8x128xf32, #tpu.memory_space<vmem>>, vector<1x8x128xf32>
    %310 = vector.shape_cast %309 : vector<1x8x128xf32> to vector<8x128xf32>
    %311 = vector.shape_cast %308 : vector<8x128xf32> to vector<1x8x128xf32>
    tpu.vector_store %arg14[%c6_180, %c0_181, %c0_182], %311 {strides = array<i32>} : memref<33x8x128xf32, #tpu.memory_space<vmem>>, vector<1x8x128xf32>,
    %c26 = arith.constant 26 : index
    %c0_183 = arith.constant 0 : index
    %c0_184 = arith.constant 0 : index
    %312 = vector.load %arg15[%c26, %c0_183, %c0_184] : memref<33x8x128xf32, #tpu.memory_space<vmem>>, vector<1x8x128xf32>
    %313 = vector.shape_cast %312 : vector<1x8x128xf32> to vector<8x128xf32>
    %314 = vector.shape_cast %308 : vector<8x128xf32> to vector<1x8x128xf32>
    tpu.vector_store %arg15[%c26, %c0_183, %c0_184], %314 {strides = array<i32>} : memref<33x8x128xf32, #tpu.memory_space<vmem>>, vector<1x8x128xf32>,
    %315 = arith.truncf %308 : vector<8x128xf32> to vector<8x128xbf16>
    %cst_185 = arith.constant dense<0.000000e+00> : vector<8x512xf32>
    %316 = tpu.matmul %315, %123, %cst_185 {dimension_numbers = #tpu.dot_dimension_numbers<[1], [0], [0], [1], [0, 0, 1, 1], [], []>} : vector<8x128xbf16>, vector<128x512xbf16>, vector<8x512xf32> -> vector<8x512xf32>
    %c7_186 = arith.constant 7 : index
    %c0_187 = arith.constant 0 : index
    %c0_188 = arith.constant 0 : index
    %317 = vector.load %arg12[%c7_186, %c0_187, %c0_188] : memref<11x8x512xf32, #tpu.memory_space<vmem>>, vector<1x8x512xf32>
    %318 = vector.shape_cast %317 : vector<1x8x512xf32> to vector<8x512xf32>
    %319 = arith.addf %316, %318 : vector<8x512xf32>
    %320 = vector.extract_strided_slice %319 {offsets = [0, 0], sizes = [8, 384], strides = [1, 1]} : vector<8x512xf32> to vector<8x384xf32>
    %321 = arith.negf %320 : vector<8x384xf32>
    %322 = math.exp %321 : vector<8x384xf32>
    %cst_189 = arith.constant 1.000000e+00 : f32
    %323 = vector.broadcast %cst_189 : f32 to vector<8x384xf32>
    %324 = arith.addf %323, %322 : vector<8x384xf32>
    %325 = arith.divf %323, %324 : vector<8x384xf32>
    %326 = vector.extract_strided_slice %319 {offsets = [0, 384], sizes = [8, 128], strides = [1, 1]} : vector<8x512xf32> to vector<8x128xf32>
    %327 = math.tanh %326 : vector<8x128xf32>
    %328 = vector.extract_strided_slice %325 {offsets = [0, 0], sizes = [8, 128], strides = [1, 1]} : vector<8x384xf32> to vector<8x128xf32>
    %329 = vector.extract_strided_slice %325 {offsets = [0, 128], sizes = [8, 128], strides = [1, 1]} : vector<8x384xf32> to vector<8x128xf32>
    %330 = vector.extract_strided_slice %325 {offsets = [0, 256], sizes = [8, 128], strides = [1, 1]} : vector<8x384xf32> to vector<8x128xf32>
    %331 = arith.mulf %329, %306 : vector<8x128xf32>
    %332 = arith.mulf %328, %327 : vector<8x128xf32>
    %333 = arith.addf %331, %332 : vector<8x128xf32>
    %334 = math.tanh %333 : vector<8x128xf32>
    %335 = arith.mulf %330, %334 : vector<8x128xf32>
    %c7_190 = arith.constant 7 : index
    %c0_191 = arith.constant 0 : index
    %c0_192 = arith.constant 0 : index
    %336 = vector.load %arg14[%c7_190, %c0_191, %c0_192] : memref<33x8x128xf32, #tpu.memory_space<vmem>>, vector<1x8x128xf32>
    %337 = vector.shape_cast %336 : vector<1x8x128xf32> to vector<8x128xf32>
    %338 = vector.shape_cast %335 : vector<8x128xf32> to vector<1x8x128xf32>
    tpu.vector_store %arg14[%c7_190, %c0_191, %c0_192], %338 {strides = array<i32>} : memref<33x8x128xf32, #tpu.memory_space<vmem>>, vector<1x8x128xf32>,
    %c25 = arith.constant 25 : index
    %c0_193 = arith.constant 0 : index
    %c0_194 = arith.constant 0 : index
    %339 = vector.load %arg15[%c25, %c0_193, %c0_194] : memref<33x8x128xf32, #tpu.memory_space<vmem>>, vector<1x8x128xf32>
    %340 = vector.shape_cast %339 : vector<1x8x128xf32> to vector<8x128xf32>
    %341 = vector.shape_cast %335 : vector<8x128xf32> to vector<1x8x128xf32>
    tpu.vector_store %arg15[%c25, %c0_193, %c0_194], %341 {strides = array<i32>} : memref<33x8x128xf32, #tpu.memory_space<vmem>>, vector<1x8x128xf32>,
    %342 = arith.truncf %335 : vector<8x128xf32> to vector<8x128xbf16>
    %cst_195 = arith.constant dense<0.000000e+00> : vector<8x512xf32>
    %343 = tpu.matmul %342, %123, %cst_195 {dimension_numbers = #tpu.dot_dimension_numbers<[1], [0], [0], [1], [0, 0, 1, 1], [], []>} : vector<8x128xbf16>, vector<128x512xbf16>, vector<8x512xf32> -> vector<8x512xf32>
    %c8_196 = arith.constant 8 : index
    %c0_197 = arith.constant 0 : index
    %c0_198 = arith.constant 0 : index
    %344 = vector.load %arg12[%c8_196, %c0_197, %c0_198] : memref<11x8x512xf32, #tpu.memory_space<vmem>>, vector<1x8x512xf32>
    %345 = vector.shape_cast %344 : vector<1x8x512xf32> to vector<8x512xf32>
    %346 = arith.addf %343, %345 : vector<8x512xf32>
    %347 = vector.extract_strided_slice %346 {offsets = [0, 0], sizes = [8, 384], strides = [1, 1]} : vector<8x512xf32> to vector<8x384xf32>
    %348 = arith.negf %347 : vector<8x384xf32>
    %349 = math.exp %348 : vector<8x384xf32>
    %cst_199 = arith.constant 1.000000e+00 : f32
    %350 = vector.broadcast %cst_199 : f32 to vector<8x384xf32>
    %351 = arith.addf %350, %349 : vector<8x384xf32>
    %352 = arith.divf %350, %351 : vector<8x384xf32>
    %353 = vector.extract_strided_slice %346 {offsets = [0, 384], sizes = [8, 128], strides = [1, 1]} : vector<8x512xf32> to vector<8x128xf32>
    %354 = math.tanh %353 : vector<8x128xf32>
    %355 = vector.extract_strided_slice %352 {offsets = [0, 0], sizes = [8, 128], strides = [1, 1]} : vector<8x384xf32> to vector<8x128xf32>
    %356 = vector.extract_strided_slice %352 {offsets = [0, 128], sizes = [8, 128], strides = [1, 1]} : vector<8x384xf32> to vector<8x128xf32>
    %357 = vector.extract_strided_slice %352 {offsets = [0, 256], sizes = [8, 128], strides = [1, 1]} : vector<8x384xf32> to vector<8x128xf32>
    %358 = arith.mulf %356, %333 : vector<8x128xf32>
    %359 = arith.mulf %355, %354 : vector<8x128xf32>
    %360 = arith.addf %358, %359 : vector<8x128xf32>
    %361 = math.tanh %360 : vector<8x128xf32>
    %362 = arith.mulf %357, %361 : vector<8x128xf32>
    %c8_200 = arith.constant 8 : index
    %c0_201 = arith.constant 0 : index
    %c0_202 = arith.constant 0 : index
    %363 = vector.load %arg14[%c8_200, %c0_201, %c0_202] : memref<33x8x128xf32, #tpu.memory_space<vmem>>, vector<1x8x128xf32>
    %364 = vector.shape_cast %363 : vector<1x8x128xf32> to vector<8x128xf32>
    %365 = vector.shape_cast %362 : vector<8x128xf32> to vector<1x8x128xf32>
    tpu.vector_store %arg14[%c8_200, %c0_201, %c0_202], %365 {strides = array<i32>} : memref<33x8x128xf32, #tpu.memory_space<vmem>>, vector<1x8x128xf32>,
    %c24 = arith.constant 24 : index
    %c0_203 = arith.constant 0 : index
    %c0_204 = arith.constant 0 : index
    %366 = vector.load %arg15[%c24, %c0_203, %c0_204] : memref<33x8x128xf32, #tpu.memory_space<vmem>>, vector<1x8x128xf32>
    %367 = vector.shape_cast %366 : vector<1x8x128xf32> to vector<8x128xf32>
    %368 = vector.shape_cast %362 : vector<8x128xf32> to vector<1x8x128xf32>
    tpu.vector_store %arg15[%c24, %c0_203, %c0_204], %368 {strides = array<i32>} : memref<33x8x128xf32, #tpu.memory_space<vmem>>, vector<1x8x128xf32>,
    %369 = arith.truncf %362 : vector<8x128xf32> to vector<8x128xbf16>
    %cst_205 = arith.constant dense<0.000000e+00> : vector<8x512xf32>
    %370 = tpu.matmul %369, %123, %cst_205 {dimension_numbers = #tpu.dot_dimension_numbers<[1], [0], [0], [1], [0, 0, 1, 1], [], []>} : vector<8x128xbf16>, vector<128x512xbf16>, vector<8x512xf32> -> vector<8x512xf32>
    %c9_206 = arith.constant 9 : index
    %c0_207 = arith.constant 0 : index
    %c0_208 = arith.constant 0 : index
    %371 = vector.load %arg12[%c9_206, %c0_207, %c0_208] : memref<11x8x512xf32, #tpu.memory_space<vmem>>, vector<1x8x512xf32>
    %372 = vector.shape_cast %371 : vector<1x8x512xf32> to vector<8x512xf32>
    %373 = arith.addf %370, %372 : vector<8x512xf32>
    %374 = vector.extract_strided_slice %373 {offsets = [0, 0], sizes = [8, 384], strides = [1, 1]} : vector<8x512xf32> to vector<8x384xf32>
    %375 = arith.negf %374 : vector<8x384xf32>
    %376 = math.exp %375 : vector<8x384xf32>
    %cst_209 = arith.constant 1.000000e+00 : f32
    %377 = vector.broadcast %cst_209 : f32 to vector<8x384xf32>
    %378 = arith.addf %377, %376 : vector<8x384xf32>
    %379 = arith.divf %377, %378 : vector<8x384xf32>
    %380 = vector.extract_strided_slice %373 {offsets = [0, 384], sizes = [8, 128], strides = [1, 1]} : vector<8x512xf32> to vector<8x128xf32>
    %381 = math.tanh %380 : vector<8x128xf32>
    %382 = vector.extract_strided_slice %379 {offsets = [0, 0], sizes = [8, 128], strides = [1, 1]} : vector<8x384xf32> to vector<8x128xf32>
    %383 = vector.extract_strided_slice %379 {offsets = [0, 128], sizes = [8, 128], strides = [1, 1]} : vector<8x384xf32> to vector<8x128xf32>
    %384 = vector.extract_strided_slice %379 {offsets = [0, 256], sizes = [8, 128], strides = [1, 1]} : vector<8x384xf32> to vector<8x128xf32>
    %385 = arith.mulf %383, %360 : vector<8x128xf32>
    %386 = arith.mulf %382, %381 : vector<8x128xf32>
    %387 = arith.addf %385, %386 : vector<8x128xf32>
    %388 = math.tanh %387 : vector<8x128xf32>
    %389 = arith.mulf %384, %388 : vector<8x128xf32>
    %c9_210 = arith.constant 9 : index
    %c0_211 = arith.constant 0 : index
    %c0_212 = arith.constant 0 : index
    %390 = vector.load %arg14[%c9_210, %c0_211, %c0_212] : memref<33x8x128xf32, #tpu.memory_space<vmem>>, vector<1x8x128xf32>
    %391 = vector.shape_cast %390 : vector<1x8x128xf32> to vector<8x128xf32>
    %392 = vector.shape_cast %389 : vector<8x128xf32> to vector<1x8x128xf32>
    tpu.vector_store %arg14[%c9_210, %c0_211, %c0_212], %392 {strides = array<i32>} : memref<33x8x128xf32, #tpu.memory_space<vmem>>, vector<1x8x128xf32>,
    %c23 = arith.constant 23 : index
    %c0_213 = arith.constant 0 : index
    %c0_214 = arith.constant 0 : index
    %393 = vector.load %arg15[%c23, %c0_213, %c0_214] : memref<33x8x128xf32, #tpu.memory_space<vmem>>, vector<1x8x128xf32>
    %394 = vector.shape_cast %393 : vector<1x8x128xf32> to vector<8x128xf32>
    %395 = vector.shape_cast %389 : vector<8x128xf32> to vector<1x8x128xf32>
    tpu.vector_store %arg15[%c23, %c0_213, %c0_214], %395 {strides = array<i32>} : memref<33x8x128xf32, #tpu.memory_space<vmem>>, vector<1x8x128xf32>,
    %396 = arith.truncf %389 : vector<8x128xf32> to vector<8x128xbf16>
    %cst_215 = arith.constant dense<0.000000e+00> : vector<8x512xf32>
    %397 = tpu.matmul %396, %123, %cst_215 {dimension_numbers = #tpu.dot_dimension_numbers<[1], [0], [0], [1], [0, 0, 1, 1], [], []>} : vector<8x128xbf16>, vector<128x512xbf16>, vector<8x512xf32> -> vector<8x512xf32>
    %c10_216 = arith.constant 10 : index
    %c0_217 = arith.constant 0 : index
    %c0_218 = arith.constant 0 : index
    %398 = vector.load %arg12[%c10_216, %c0_217, %c0_218] : memref<11x8x512xf32, #tpu.memory_space<vmem>>, vector<1x8x512xf32>
    %399 = vector.shape_cast %398 : vector<1x8x512xf32> to vector<8x512xf32>
    %400 = arith.addf %397, %399 : vector<8x512xf32>
    %401 = vector.extract_strided_slice %400 {offsets = [0, 0], sizes = [8, 384], strides = [1, 1]} : vector<8x512xf32> to vector<8x384xf32>
    %402 = arith.negf %401 : vector<8x384xf32>
    %403 = math.exp %402 : vector<8x384xf32>
    %cst_219 = arith.constant 1.000000e+00 : f32
    %404 = vector.broadcast %cst_219 : f32 to vector<8x384xf32>
    %405 = arith.addf %404, %403 : vector<8x384xf32>
    %406 = arith.divf %404, %405 : vector<8x384xf32>
    %407 = vector.extract_strided_slice %400 {offsets = [0, 384], sizes = [8, 128], strides = [1, 1]} : vector<8x512xf32> to vector<8x128xf32>
    %408 = math.tanh %407 : vector<8x128xf32>
    %409 = vector.extract_strided_slice %406 {offsets = [0, 0], sizes = [8, 128], strides = [1, 1]} : vector<8x384xf32> to vector<8x128xf32>
    %410 = vector.extract_strided_slice %406 {offsets = [0, 128], sizes = [8, 128], strides = [1, 1]} : vector<8x384xf32> to vector<8x128xf32>
    %411 = vector.extract_strided_slice %406 {offsets = [0, 256], sizes = [8, 128], strides = [1, 1]} : vector<8x384xf32> to vector<8x128xf32>
    %412 = arith.mulf %410, %387 : vector<8x128xf32>
    %413 = arith.mulf %409, %408 : vector<8x128xf32>
    %414 = arith.addf %412, %413 : vector<8x128xf32>
    %415 = math.tanh %414 : vector<8x128xf32>
    %416 = arith.mulf %411, %415 : vector<8x128xf32>
    %c10_220 = arith.constant 10 : index
    %c0_221 = arith.constant 0 : index
    %c0_222 = arith.constant 0 : index
    %417 = vector.load %arg14[%c10_220, %c0_221, %c0_222] : memref<33x8x128xf32, #tpu.memory_space<vmem>>, vector<1x8x128xf32>
    %418 = vector.shape_cast %417 : vector<1x8x128xf32> to vector<8x128xf32>
    %419 = vector.shape_cast %416 : vector<8x128xf32> to vector<1x8x128xf32>
    tpu.vector_store %arg14[%c10_220, %c0_221, %c0_222], %419 {strides = array<i32>} : memref<33x8x128xf32, #tpu.memory_space<vmem>>, vector<1x8x128xf32>,
    %c22 = arith.constant 22 : index
    %c0_223 = arith.constant 0 : index
    %c0_224 = arith.constant 0 : index
    %420 = vector.load %arg15[%c22, %c0_223, %c0_224] : memref<33x8x128xf32, #tpu.memory_space<vmem>>, vector<1x8x128xf32>
    %421 = vector.shape_cast %420 : vector<1x8x128xf32> to vector<8x128xf32>
    %422 = vector.shape_cast %416 : vector<8x128xf32> to vector<1x8x128xf32>
    tpu.vector_store %arg15[%c22, %c0_223, %c0_224], %422 {strides = array<i32>} : memref<33x8x128xf32, #tpu.memory_space<vmem>>, vector<1x8x128xf32>,
    %423 = arith.truncf %416 : vector<8x128xf32> to vector<8x128xbf16>
    %cst_225 = arith.constant dense<0.000000e+00> : vector<8x512xf32>
    %424 = tpu.matmul %423, %123, %cst_225 {dimension_numbers = #tpu.dot_dimension_numbers<[1], [0], [0], [1], [0, 0, 1, 1], [], []>} : vector<8x128xbf16>, vector<128x512xbf16>, vector<8x512xf32> -> vector<8x512xf32>
    %c0_226 = arith.constant 0 : index
    %c0_227 = arith.constant 0 : index
    %c0_228 = arith.constant 0 : index
    %425 = vector.load %arg12[%c0_226, %c0_227, %c0_228] : memref<11x8x512xf32, #tpu.memory_space<vmem>>, vector<1x8x512xf32>
    %426 = vector.shape_cast %425 : vector<1x8x512xf32> to vector<8x512xf32>
    %427 = arith.addf %424, %426 : vector<8x512xf32>
    %428 = vector.extract_strided_slice %427 {offsets = [0, 0], sizes = [8, 384], strides = [1, 1]} : vector<8x512xf32> to vector<8x384xf32>
    %429 = arith.negf %428 : vector<8x384xf32>
    %430 = math.exp %429 : vector<8x384xf32>
    %cst_229 = arith.constant 1.000000e+00 : f32
    %431 = vector.broadcast %cst_229 : f32 to vector<8x384xf32>
    %432 = arith.addf %431, %430 : vector<8x384xf32>
    %433 = arith.divf %431, %432 : vector<8x384xf32>
    %434 = vector.extract_strided_slice %427 {offsets = [0, 384], sizes = [8, 128], strides = [1, 1]} : vector<8x512xf32> to vector<8x128xf32>
    %435 = math.tanh %434 : vector<8x128xf32>
    %436 = vector.extract_strided_slice %433 {offsets = [0, 0], sizes = [8, 128], strides = [1, 1]} : vector<8x384xf32> to vector<8x128xf32>
    %437 = vector.extract_strided_slice %433 {offsets = [0, 128], sizes = [8, 128], strides = [1, 1]} : vector<8x384xf32> to vector<8x128xf32>
    %438 = vector.extract_strided_slice %433 {offsets = [0, 256], sizes = [8, 128], strides = [1, 1]} : vector<8x384xf32> to vector<8x128xf32>
    %439 = arith.mulf %437, %414 : vector<8x128xf32>
    %440 = arith.mulf %436, %435 : vector<8x128xf32>
    %441 = arith.addf %439, %440 : vector<8x128xf32>
    %442 = math.tanh %441 : vector<8x128xf32>
    %443 = arith.mulf %438, %442 : vector<8x128xf32>
    %c11 = arith.constant 11 : index
    %c0_230 = arith.constant 0 : index
    %c0_231 = arith.constant 0 : index
    %444 = vector.load %arg14[%c11, %c0_230, %c0_231] : memref<33x8x128xf32, #tpu.memory_space<vmem>>, vector<1x8x128xf32>
    %445 = vector.shape_cast %444 : vector<1x8x128xf32> to vector<8x128xf32>
    %446 = vector.shape_cast %443 : vector<8x128xf32> to vector<1x8x128xf32>
    tpu.vector_store %arg14[%c11, %c0_230, %c0_231], %446 {strides = array<i32>} : memref<33x8x128xf32, #tpu.memory_space<vmem>>, vector<1x8x128xf32>,
    %c21 = arith.constant 21 : index
    %c0_232 = arith.constant 0 : index
    %c0_233 = arith.constant 0 : index
    %447 = vector.load %arg15[%c21, %c0_232, %c0_233] : memref<33x8x128xf32, #tpu.memory_space<vmem>>, vector<1x8x128xf32>
    %448 = vector.shape_cast %447 : vector<1x8x128xf32> to vector<8x128xf32>
    %449 = vector.shape_cast %443 : vector<8x128xf32> to vector<1x8x128xf32>
    tpu.vector_store %arg15[%c21, %c0_232, %c0_233], %449 {strides = array<i32>} : memref<33x8x128xf32, #tpu.memory_space<vmem>>, vector<1x8x128xf32>,
    %450 = arith.truncf %443 : vector<8x128xf32> to vector<8x128xbf16>
    %cst_234 = arith.constant dense<0.000000e+00> : vector<8x512xf32>
    %451 = tpu.matmul %450, %123, %cst_234 {dimension_numbers = #tpu.dot_dimension_numbers<[1], [0], [0], [1], [0, 0, 1, 1], [], []>} : vector<8x128xbf16>, vector<128x512xbf16>, vector<8x512xf32> -> vector<8x512xf32>
    %c1_235 = arith.constant 1 : index
    %c0_236 = arith.constant 0 : index
    %c0_237 = arith.constant 0 : index
    %452 = vector.load %arg12[%c1_235, %c0_236, %c0_237] : memref<11x8x512xf32, #tpu.memory_space<vmem>>, vector<1x8x512xf32>
    %453 = vector.shape_cast %452 : vector<1x8x512xf32> to vector<8x512xf32>
    %454 = arith.addf %451, %453 : vector<8x512xf32>
    %455 = vector.extract_strided_slice %454 {offsets = [0, 0], sizes = [8, 384], strides = [1, 1]} : vector<8x512xf32> to vector<8x384xf32>
    %456 = arith.negf %455 : vector<8x384xf32>
    %457 = math.exp %456 : vector<8x384xf32>
    %cst_238 = arith.constant 1.000000e+00 : f32
    %458 = vector.broadcast %cst_238 : f32 to vector<8x384xf32>
    %459 = arith.addf %458, %457 : vector<8x384xf32>
    %460 = arith.divf %458, %459 : vector<8x384xf32>
    %461 = vector.extract_strided_slice %454 {offsets = [0, 384], sizes = [8, 128], strides = [1, 1]} : vector<8x512xf32> to vector<8x128xf32>
    %462 = math.tanh %461 : vector<8x128xf32>
    %463 = vector.extract_strided_slice %460 {offsets = [0, 0], sizes = [8, 128], strides = [1, 1]} : vector<8x384xf32> to vector<8x128xf32>
    %464 = vector.extract_strided_slice %460 {offsets = [0, 128], sizes = [8, 128], strides = [1, 1]} : vector<8x384xf32> to vector<8x128xf32>
    %465 = vector.extract_strided_slice %460 {offsets = [0, 256], sizes = [8, 128], strides = [1, 1]} : vector<8x384xf32> to vector<8x128xf32>
    %466 = arith.mulf %464, %441 : vector<8x128xf32>
    %467 = arith.mulf %463, %462 : vector<8x128xf32>
    %468 = arith.addf %466, %467 : vector<8x128xf32>
    %469 = math.tanh %468 : vector<8x128xf32>
    %470 = arith.mulf %465, %469 : vector<8x128xf32>
    %c12 = arith.constant 12 : index
    %c0_239 = arith.constant 0 : index
    %c0_240 = arith.constant 0 : index
    %471 = vector.load %arg14[%c12, %c0_239, %c0_240] : memref<33x8x128xf32, #tpu.memory_space<vmem>>, vector<1x8x128xf32>
    %472 = vector.shape_cast %471 : vector<1x8x128xf32> to vector<8x128xf32>
    %473 = vector.shape_cast %470 : vector<8x128xf32> to vector<1x8x128xf32>
    tpu.vector_store %arg14[%c12, %c0_239, %c0_240], %473 {strides = array<i32>} : memref<33x8x128xf32, #tpu.memory_space<vmem>>, vector<1x8x128xf32>,
    %c20 = arith.constant 20 : index
    %c0_241 = arith.constant 0 : index
    %c0_242 = arith.constant 0 : index
    %474 = vector.load %arg15[%c20, %c0_241, %c0_242] : memref<33x8x128xf32, #tpu.memory_space<vmem>>, vector<1x8x128xf32>
    %475 = vector.shape_cast %474 : vector<1x8x128xf32> to vector<8x128xf32>
    %476 = vector.shape_cast %470 : vector<8x128xf32> to vector<1x8x128xf32>
    tpu.vector_store %arg15[%c20, %c0_241, %c0_242], %476 {strides = array<i32>} : memref<33x8x128xf32, #tpu.memory_space<vmem>>, vector<1x8x128xf32>,
    %477 = arith.truncf %470 : vector<8x128xf32> to vector<8x128xbf16>
    %cst_243 = arith.constant dense<0.000000e+00> : vector<8x512xf32>
    %478 = tpu.matmul %477, %123, %cst_243 {dimension_numbers = #tpu.dot_dimension_numbers<[1], [0], [0], [1], [0, 0, 1, 1], [], []>} : vector<8x128xbf16>, vector<128x512xbf16>, vector<8x512xf32> -> vector<8x512xf32>
    %c2_244 = arith.constant 2 : index
    %c0_245 = arith.constant 0 : index
    %c0_246 = arith.constant 0 : index
    %479 = vector.load %arg12[%c2_244, %c0_245, %c0_246] : memref<11x8x512xf32, #tpu.memory_space<vmem>>, vector<1x8x512xf32>
    %480 = vector.shape_cast %479 : vector<1x8x512xf32> to vector<8x512xf32>
    %481 = arith.addf %478, %480 : vector<8x512xf32>
    %482 = vector.extract_strided_slice %481 {offsets = [0, 0], sizes = [8, 384], strides = [1, 1]} : vector<8x512xf32> to vector<8x384xf32>
    %483 = arith.negf %482 : vector<8x384xf32>
    %484 = math.exp %483 : vector<8x384xf32>
    %cst_247 = arith.constant 1.000000e+00 : f32
    %485 = vector.broadcast %cst_247 : f32 to vector<8x384xf32>
    %486 = arith.addf %485, %484 : vector<8x384xf32>
    %487 = arith.divf %485, %486 : vector<8x384xf32>
    %488 = vector.extract_strided_slice %481 {offsets = [0, 384], sizes = [8, 128], strides = [1, 1]} : vector<8x512xf32> to vector<8x128xf32>
    %489 = math.tanh %488 : vector<8x128xf32>
    %490 = vector.extract_strided_slice %487 {offsets = [0, 0], sizes = [8, 128], strides = [1, 1]} : vector<8x384xf32> to vector<8x128xf32>
    %491 = vector.extract_strided_slice %487 {offsets = [0, 128], sizes = [8, 128], strides = [1, 1]} : vector<8x384xf32> to vector<8x128xf32>
    %492 = vector.extract_strided_slice %487 {offsets = [0, 256], sizes = [8, 128], strides = [1, 1]} : vector<8x384xf32> to vector<8x128xf32>
    %493 = arith.mulf %491, %468 : vector<8x128xf32>
    %494 = arith.mulf %490, %489 : vector<8x128xf32>
    %495 = arith.addf %493, %494 : vector<8x128xf32>
    %496 = math.tanh %495 : vector<8x128xf32>
    %497 = arith.mulf %492, %496 : vector<8x128xf32>
    %c13 = arith.constant 13 : index
    %c0_248 = arith.constant 0 : index
    %c0_249 = arith.constant 0 : index
    %498 = vector.load %arg14[%c13, %c0_248, %c0_249] : memref<33x8x128xf32, #tpu.memory_space<vmem>>, vector<1x8x128xf32>
    %499 = vector.shape_cast %498 : vector<1x8x128xf32> to vector<8x128xf32>
    %500 = vector.shape_cast %497 : vector<8x128xf32> to vector<1x8x128xf32>
    tpu.vector_store %arg14[%c13, %c0_248, %c0_249], %500 {strides = array<i32>} : memref<33x8x128xf32, #tpu.memory_space<vmem>>, vector<1x8x128xf32>,
    %c19 = arith.constant 19 : index
    %c0_250 = arith.constant 0 : index
    %c0_251 = arith.constant 0 : index
    %501 = vector.load %arg15[%c19, %c0_250, %c0_251] : memref<33x8x128xf32, #tpu.memory_space<vmem>>, vector<1x8x128xf32>
    %502 = vector.shape_cast %501 : vector<1x8x128xf32> to vector<8x128xf32>
    %503 = vector.shape_cast %497 : vector<8x128xf32> to vector<1x8x128xf32>
    tpu.vector_store %arg15[%c19, %c0_250, %c0_251], %503 {strides = array<i32>} : memref<33x8x128xf32, #tpu.memory_space<vmem>>, vector<1x8x128xf32>,
    %504 = arith.truncf %497 : vector<8x128xf32> to vector<8x128xbf16>
    %cst_252 = arith.constant dense<0.000000e+00> : vector<8x512xf32>
    %505 = tpu.matmul %504, %123, %cst_252 {dimension_numbers = #tpu.dot_dimension_numbers<[1], [0], [0], [1], [0, 0, 1, 1], [], []>} : vector<8x128xbf16>, vector<128x512xbf16>, vector<8x512xf32> -> vector<8x512xf32>
    %c3_253 = arith.constant 3 : index
    %c0_254 = arith.constant 0 : index
    %c0_255 = arith.constant 0 : index
    %506 = vector.load %arg12[%c3_253, %c0_254, %c0_255] : memref<11x8x512xf32, #tpu.memory_space<vmem>>, vector<1x8x512xf32>
    %507 = vector.shape_cast %506 : vector<1x8x512xf32> to vector<8x512xf32>
    %508 = arith.addf %505, %507 : vector<8x512xf32>
    %509 = vector.extract_strided_slice %508 {offsets = [0, 0], sizes = [8, 384], strides = [1, 1]} : vector<8x512xf32> to vector<8x384xf32>
    %510 = arith.negf %509 : vector<8x384xf32>
    %511 = math.exp %510 : vector<8x384xf32>
    %cst_256 = arith.constant 1.000000e+00 : f32
    %512 = vector.broadcast %cst_256 : f32 to vector<8x384xf32>
    %513 = arith.addf %512, %511 : vector<8x384xf32>
    %514 = arith.divf %512, %513 : vector<8x384xf32>
    %515 = vector.extract_strided_slice %508 {offsets = [0, 384], sizes = [8, 128], strides = [1, 1]} : vector<8x512xf32> to vector<8x128xf32>
    %516 = math.tanh %515 : vector<8x128xf32>
    %517 = vector.extract_strided_slice %514 {offsets = [0, 0], sizes = [8, 128], strides = [1, 1]} : vector<8x384xf32> to vector<8x128xf32>
    %518 = vector.extract_strided_slice %514 {offsets = [0, 128], sizes = [8, 128], strides = [1, 1]} : vector<8x384xf32> to vector<8x128xf32>
    %519 = vector.extract_strided_slice %514 {offsets = [0, 256], sizes = [8, 128], strides = [1, 1]} : vector<8x384xf32> to vector<8x128xf32>
    %520 = arith.mulf %518, %495 : vector<8x128xf32>
    %521 = arith.mulf %517, %516 : vector<8x128xf32>
    %522 = arith.addf %520, %521 : vector<8x128xf32>
    %523 = math.tanh %522 : vector<8x128xf32>
    %524 = arith.mulf %519, %523 : vector<8x128xf32>
    %c14 = arith.constant 14 : index
    %c0_257 = arith.constant 0 : index
    %c0_258 = arith.constant 0 : index
    %525 = vector.load %arg14[%c14, %c0_257, %c0_258] : memref<33x8x128xf32, #tpu.memory_space<vmem>>, vector<1x8x128xf32>
    %526 = vector.shape_cast %525 : vector<1x8x128xf32> to vector<8x128xf32>
    %527 = vector.shape_cast %524 : vector<8x128xf32> to vector<1x8x128xf32>
    tpu.vector_store %arg14[%c14, %c0_257, %c0_258], %527 {strides = array<i32>} : memref<33x8x128xf32, #tpu.memory_space<vmem>>, vector<1x8x128xf32>,
    %c18 = arith.constant 18 : index
    %c0_259 = arith.constant 0 : index
    %c0_260 = arith.constant 0 : index
    %528 = vector.load %arg15[%c18, %c0_259, %c0_260] : memref<33x8x128xf32, #tpu.memory_space<vmem>>, vector<1x8x128xf32>
    %529 = vector.shape_cast %528 : vector<1x8x128xf32> to vector<8x128xf32>
    %530 = vector.shape_cast %524 : vector<8x128xf32> to vector<1x8x128xf32>
    tpu.vector_store %arg15[%c18, %c0_259, %c0_260], %530 {strides = array<i32>} : memref<33x8x128xf32, #tpu.memory_space<vmem>>, vector<1x8x128xf32>,
    %531 = arith.truncf %524 : vector<8x128xf32> to vector<8x128xbf16>
    %cst_261 = arith.constant dense<0.000000e+00> : vector<8x512xf32>
    %532 = tpu.matmul %531, %123, %cst_261 {dimension_numbers = #tpu.dot_dimension_numbers<[1], [0], [0], [1], [0, 0, 1, 1], [], []>} : vector<8x128xbf16>, vector<128x512xbf16>, vector<8x512xf32> -> vector<8x512xf32>
    %c4_262 = arith.constant 4 : index
    %c0_263 = arith.constant 0 : index
    %c0_264 = arith.constant 0 : index
    %533 = vector.load %arg12[%c4_262, %c0_263, %c0_264] : memref<11x8x512xf32, #tpu.memory_space<vmem>>, vector<1x8x512xf32>
    %534 = vector.shape_cast %533 : vector<1x8x512xf32> to vector<8x512xf32>
    %535 = arith.addf %532, %534 : vector<8x512xf32>
    %536 = vector.extract_strided_slice %535 {offsets = [0, 0], sizes = [8, 384], strides = [1, 1]} : vector<8x512xf32> to vector<8x384xf32>
    %537 = arith.negf %536 : vector<8x384xf32>
    %538 = math.exp %537 : vector<8x384xf32>
    %cst_265 = arith.constant 1.000000e+00 : f32
    %539 = vector.broadcast %cst_265 : f32 to vector<8x384xf32>
    %540 = arith.addf %539, %538 : vector<8x384xf32>
    %541 = arith.divf %539, %540 : vector<8x384xf32>
    %542 = vector.extract_strided_slice %535 {offsets = [0, 384], sizes = [8, 128], strides = [1, 1]} : vector<8x512xf32> to vector<8x128xf32>
    %543 = math.tanh %542 : vector<8x128xf32>
    %544 = vector.extract_strided_slice %541 {offsets = [0, 0], sizes = [8, 128], strides = [1, 1]} : vector<8x384xf32> to vector<8x128xf32>
    %545 = vector.extract_strided_slice %541 {offsets = [0, 128], sizes = [8, 128], strides = [1, 1]} : vector<8x384xf32> to vector<8x128xf32>
    %546 = vector.extract_strided_slice %541 {offsets = [0, 256], sizes = [8, 128], strides = [1, 1]} : vector<8x384xf32> to vector<8x128xf32>
    %547 = arith.mulf %545, %522 : vector<8x128xf32>
    %548 = arith.mulf %544, %543 : vector<8x128xf32>
    %549 = arith.addf %547, %548 : vector<8x128xf32>
    %550 = math.tanh %549 : vector<8x128xf32>
    %551 = arith.mulf %546, %550 : vector<8x128xf32>
    %c15 = arith.constant 15 : index
    %c0_266 = arith.constant 0 : index
    %c0_267 = arith.constant 0 : index
    %552 = vector.load %arg14[%c15, %c0_266, %c0_267] : memref<33x8x128xf32, #tpu.memory_space<vmem>>, vector<1x8x128xf32>
    %553 = vector.shape_cast %552 : vector<1x8x128xf32> to vector<8x128xf32>
    %554 = vector.shape_cast %551 : vector<8x128xf32> to vector<1x8x128xf32>
    tpu.vector_store %arg14[%c15, %c0_266, %c0_267], %554 {strides = array<i32>} : memref<33x8x128xf32, #tpu.memory_space<vmem>>, vector<1x8x128xf32>,
    %c17 = arith.constant 17 : index
    %c0_268 = arith.constant 0 : index
    %c0_269 = arith.constant 0 : index
    %555 = vector.load %arg15[%c17, %c0_268, %c0_269] : memref<33x8x128xf32, #tpu.memory_space<vmem>>, vector<1x8x128xf32>
    %556 = vector.shape_cast %555 : vector<1x8x128xf32> to vector<8x128xf32>
    %557 = vector.shape_cast %551 : vector<8x128xf32> to vector<1x8x128xf32>
    tpu.vector_store %arg15[%c17, %c0_268, %c0_269], %557 {strides = array<i32>} : memref<33x8x128xf32, #tpu.memory_space<vmem>>, vector<1x8x128xf32>,
    %558 = arith.truncf %551 : vector<8x128xf32> to vector<8x128xbf16>
    %cst_270 = arith.constant dense<0.000000e+00> : vector<8x512xf32>
    %559 = tpu.matmul %558, %123, %cst_270 {dimension_numbers = #tpu.dot_dimension_numbers<[1], [0], [0], [1], [0, 0, 1, 1], [], []>} : vector<8x128xbf16>, vector<128x512xbf16>, vector<8x512xf32> -> vector<8x512xf32>
    %c5_271 = arith.constant 5 : index
    %c0_272 = arith.constant 0 : index
    %c0_273 = arith.constant 0 : index
    %560 = vector.load %arg12[%c5_271, %c0_272, %c0_273] : memref<11x8x512xf32, #tpu.memory_space<vmem>>, vector<1x8x512xf32>
    %561 = vector.shape_cast %560 : vector<1x8x512xf32> to vector<8x512xf32>
    %562 = arith.addf %559, %561 : vector<8x512xf32>
    %563 = vector.extract_strided_slice %562 {offsets = [0, 0], sizes = [8, 384], strides = [1, 1]} : vector<8x512xf32> to vector<8x384xf32>
    %564 = arith.negf %563 : vector<8x384xf32>
    %565 = math.exp %564 : vector<8x384xf32>
    %cst_274 = arith.constant 1.000000e+00 : f32
    %566 = vector.broadcast %cst_274 : f32 to vector<8x384xf32>
    %567 = arith.addf %566, %565 : vector<8x384xf32>
    %568 = arith.divf %566, %567 : vector<8x384xf32>
    %569 = vector.extract_strided_slice %562 {offsets = [0, 384], sizes = [8, 128], strides = [1, 1]} : vector<8x512xf32> to vector<8x128xf32>
    %570 = math.tanh %569 : vector<8x128xf32>
    %571 = vector.extract_strided_slice %568 {offsets = [0, 0], sizes = [8, 128], strides = [1, 1]} : vector<8x384xf32> to vector<8x128xf32>
    %572 = vector.extract_strided_slice %568 {offsets = [0, 128], sizes = [8, 128], strides = [1, 1]} : vector<8x384xf32> to vector<8x128xf32>
    %573 = vector.extract_strided_slice %568 {offsets = [0, 256], sizes = [8, 128], strides = [1, 1]} : vector<8x384xf32> to vector<8x128xf32>
    %574 = arith.mulf %572, %549 : vector<8x128xf32>
    %575 = arith.mulf %571, %570 : vector<8x128xf32>
    %576 = arith.addf %574, %575 : vector<8x128xf32>
    %577 = math.tanh %576 : vector<8x128xf32>
    %578 = arith.mulf %573, %577 : vector<8x128xf32>
    %c16 = arith.constant 16 : index
    %c0_275 = arith.constant 0 : index
    %c0_276 = arith.constant 0 : index
    %579 = vector.load %arg14[%c16, %c0_275, %c0_276] : memref<33x8x128xf32, #tpu.memory_space<vmem>>, vector<1x8x128xf32>
    %580 = vector.shape_cast %579 : vector<1x8x128xf32> to vector<8x128xf32>
    %581 = vector.shape_cast %578 : vector<8x128xf32> to vector<1x8x128xf32>
    tpu.vector_store %arg14[%c16, %c0_275, %c0_276], %581 {strides = array<i32>} : memref<33x8x128xf32, #tpu.memory_space<vmem>>, vector<1x8x128xf32>,
    %c16_277 = arith.constant 16 : index
    %c0_278 = arith.constant 0 : index
    %c0_279 = arith.constant 0 : index
    %582 = vector.load %arg15[%c16_277, %c0_278, %c0_279] : memref<33x8x128xf32, #tpu.memory_space<vmem>>, vector<1x8x128xf32>
    %583 = vector.shape_cast %582 : vector<1x8x128xf32> to vector<8x128xf32>
    %584 = vector.shape_cast %578 : vector<8x128xf32> to vector<1x8x128xf32>
    tpu.vector_store %arg15[%c16_277, %c0_278, %c0_279], %584 {strides = array<i32>} : memref<33x8x128xf32, #tpu.memory_space<vmem>>, vector<1x8x128xf32>,
    %585 = arith.truncf %578 : vector<8x128xf32> to vector<8x128xbf16>
    %cst_280 = arith.constant dense<0.000000e+00> : vector<8x512xf32>
    %586 = tpu.matmul %585, %123, %cst_280 {dimension_numbers = #tpu.dot_dimension_numbers<[1], [0], [0], [1], [0, 0, 1, 1], [], []>} : vector<8x128xbf16>, vector<128x512xbf16>, vector<8x512xf32> -> vector<8x512xf32>
    %c6_281 = arith.constant 6 : index
    %c0_282 = arith.constant 0 : index
    %c0_283 = arith.constant 0 : index
    %587 = vector.load %arg12[%c6_281, %c0_282, %c0_283] : memref<11x8x512xf32, #tpu.memory_space<vmem>>, vector<1x8x512xf32>
    %588 = vector.shape_cast %587 : vector<1x8x512xf32> to vector<8x512xf32>
    %589 = arith.addf %586, %588 : vector<8x512xf32>
    %590 = vector.extract_strided_slice %589 {offsets = [0, 0], sizes = [8, 384], strides = [1, 1]} : vector<8x512xf32> to vector<8x384xf32>
    %591 = arith.negf %590 : vector<8x384xf32>
    %592 = math.exp %591 : vector<8x384xf32>
    %cst_284 = arith.constant 1.000000e+00 : f32
    %593 = vector.broadcast %cst_284 : f32 to vector<8x384xf32>
    %594 = arith.addf %593, %592 : vector<8x384xf32>
    %595 = arith.divf %593, %594 : vector<8x384xf32>
    %596 = vector.extract_strided_slice %589 {offsets = [0, 384], sizes = [8, 128], strides = [1, 1]} : vector<8x512xf32> to vector<8x128xf32>
    %597 = math.tanh %596 : vector<8x128xf32>
    %598 = vector.extract_strided_slice %595 {offsets = [0, 0], sizes = [8, 128], strides = [1, 1]} : vector<8x384xf32> to vector<8x128xf32>
    %599 = vector.extract_strided_slice %595 {offsets = [0, 128], sizes = [8, 128], strides = [1, 1]} : vector<8x384xf32> to vector<8x128xf32>
    %600 = vector.extract_strided_slice %595 {offsets = [0, 256], sizes = [8, 128], strides = [1, 1]} : vector<8x384xf32> to vector<8x128xf32>
    %601 = arith.mulf %599, %576 : vector<8x128xf32>
    %602 = arith.mulf %598, %597 : vector<8x128xf32>
    %603 = arith.addf %601, %602 : vector<8x128xf32>
    %604 = math.tanh %603 : vector<8x128xf32>
    %605 = arith.mulf %600, %604 : vector<8x128xf32>
    %c17_285 = arith.constant 17 : index
    %c0_286 = arith.constant 0 : index
    %c0_287 = arith.constant 0 : index
    %606 = vector.load %arg14[%c17_285, %c0_286, %c0_287] : memref<33x8x128xf32, #tpu.memory_space<vmem>>, vector<1x8x128xf32>
    %607 = vector.shape_cast %606 : vector<1x8x128xf32> to vector<8x128xf32>
    %608 = vector.shape_cast %605 : vector<8x128xf32> to vector<1x8x128xf32>
    tpu.vector_store %arg14[%c17_285, %c0_286, %c0_287], %608 {strides = array<i32>} : memref<33x8x128xf32, #tpu.memory_space<vmem>>, vector<1x8x128xf32>,
    %c15_288 = arith.constant 15 : index
    %c0_289 = arith.constant 0 : index
    %c0_290 = arith.constant 0 : index
    %609 = vector.load %arg15[%c15_288, %c0_289, %c0_290] : memref<33x8x128xf32, #tpu.memory_space<vmem>>, vector<1x8x128xf32>
    %610 = vector.shape_cast %609 : vector<1x8x128xf32> to vector<8x128xf32>
    %611 = vector.shape_cast %605 : vector<8x128xf32> to vector<1x8x128xf32>
    tpu.vector_store %arg15[%c15_288, %c0_289, %c0_290], %611 {strides = array<i32>} : memref<33x8x128xf32, #tpu.memory_space<vmem>>, vector<1x8x128xf32>,
    %612 = arith.truncf %605 : vector<8x128xf32> to vector<8x128xbf16>
    %cst_291 = arith.constant dense<0.000000e+00> : vector<8x512xf32>
    %613 = tpu.matmul %612, %123, %cst_291 {dimension_numbers = #tpu.dot_dimension_numbers<[1], [0], [0], [1], [0, 0, 1, 1], [], []>} : vector<8x128xbf16>, vector<128x512xbf16>, vector<8x512xf32> -> vector<8x512xf32>
    %c7_292 = arith.constant 7 : index
    %c0_293 = arith.constant 0 : index
    %c0_294 = arith.constant 0 : index
    %614 = vector.load %arg12[%c7_292, %c0_293, %c0_294] : memref<11x8x512xf32, #tpu.memory_space<vmem>>, vector<1x8x512xf32>
    %615 = vector.shape_cast %614 : vector<1x8x512xf32> to vector<8x512xf32>
    %616 = arith.addf %613, %615 : vector<8x512xf32>
    %617 = vector.extract_strided_slice %616 {offsets = [0, 0], sizes = [8, 384], strides = [1, 1]} : vector<8x512xf32> to vector<8x384xf32>
    %618 = arith.negf %617 : vector<8x384xf32>
    %619 = math.exp %618 : vector<8x384xf32>
    %cst_295 = arith.constant 1.000000e+00 : f32
    %620 = vector.broadcast %cst_295 : f32 to vector<8x384xf32>
    %621 = arith.addf %620, %619 : vector<8x384xf32>
    %622 = arith.divf %620, %621 : vector<8x384xf32>
    %623 = vector.extract_strided_slice %616 {offsets = [0, 384], sizes = [8, 128], strides = [1, 1]} : vector<8x512xf32> to vector<8x128xf32>
    %624 = math.tanh %623 : vector<8x128xf32>
    %625 = vector.extract_strided_slice %622 {offsets = [0, 0], sizes = [8, 128], strides = [1, 1]} : vector<8x384xf32> to vector<8x128xf32>
    %626 = vector.extract_strided_slice %622 {offsets = [0, 128], sizes = [8, 128], strides = [1, 1]} : vector<8x384xf32> to vector<8x128xf32>
    %627 = vector.extract_strided_slice %622 {offsets = [0, 256], sizes = [8, 128], strides = [1, 1]} : vector<8x384xf32> to vector<8x128xf32>
    %628 = arith.mulf %626, %603 : vector<8x128xf32>
    %629 = arith.mulf %625, %624 : vector<8x128xf32>
    %630 = arith.addf %628, %629 : vector<8x128xf32>
    %631 = math.tanh %630 : vector<8x128xf32>
    %632 = arith.mulf %627, %631 : vector<8x128xf32>
    %c18_296 = arith.constant 18 : index
    %c0_297 = arith.constant 0 : index
    %c0_298 = arith.constant 0 : index
    %633 = vector.load %arg14[%c18_296, %c0_297, %c0_298] : memref<33x8x128xf32, #tpu.memory_space<vmem>>, vector<1x8x128xf32>
    %634 = vector.shape_cast %633 : vector<1x8x128xf32> to vector<8x128xf32>
    %635 = vector.shape_cast %632 : vector<8x128xf32> to vector<1x8x128xf32>
    tpu.vector_store %arg14[%c18_296, %c0_297, %c0_298], %635 {strides = array<i32>} : memref<33x8x128xf32, #tpu.memory_space<vmem>>, vector<1x8x128xf32>,
    %c14_299 = arith.constant 14 : index
    %c0_300 = arith.constant 0 : index
    %c0_301 = arith.constant 0 : index
    %636 = vector.load %arg15[%c14_299, %c0_300, %c0_301] : memref<33x8x128xf32, #tpu.memory_space<vmem>>, vector<1x8x128xf32>
    %637 = vector.shape_cast %636 : vector<1x8x128xf32> to vector<8x128xf32>
    %638 = vector.shape_cast %632 : vector<8x128xf32> to vector<1x8x128xf32>
    tpu.vector_store %arg15[%c14_299, %c0_300, %c0_301], %638 {strides = array<i32>} : memref<33x8x128xf32, #tpu.memory_space<vmem>>, vector<1x8x128xf32>,
    %639 = arith.truncf %632 : vector<8x128xf32> to vector<8x128xbf16>
    %cst_302 = arith.constant dense<0.000000e+00> : vector<8x512xf32>
    %640 = tpu.matmul %639, %123, %cst_302 {dimension_numbers = #tpu.dot_dimension_numbers<[1], [0], [0], [1], [0, 0, 1, 1], [], []>} : vector<8x128xbf16>, vector<128x512xbf16>, vector<8x512xf32> -> vector<8x512xf32>
    %c8_303 = arith.constant 8 : index
    %c0_304 = arith.constant 0 : index
    %c0_305 = arith.constant 0 : index
    %641 = vector.load %arg12[%c8_303, %c0_304, %c0_305] : memref<11x8x512xf32, #tpu.memory_space<vmem>>, vector<1x8x512xf32>
    %642 = vector.shape_cast %641 : vector<1x8x512xf32> to vector<8x512xf32>
    %643 = arith.addf %640, %642 : vector<8x512xf32>
    %644 = vector.extract_strided_slice %643 {offsets = [0, 0], sizes = [8, 384], strides = [1, 1]} : vector<8x512xf32> to vector<8x384xf32>
    %645 = arith.negf %644 : vector<8x384xf32>
    %646 = math.exp %645 : vector<8x384xf32>
    %cst_306 = arith.constant 1.000000e+00 : f32
    %647 = vector.broadcast %cst_306 : f32 to vector<8x384xf32>
    %648 = arith.addf %647, %646 : vector<8x384xf32>
    %649 = arith.divf %647, %648 : vector<8x384xf32>
    %650 = vector.extract_strided_slice %643 {offsets = [0, 384], sizes = [8, 128], strides = [1, 1]} : vector<8x512xf32> to vector<8x128xf32>
    %651 = math.tanh %650 : vector<8x128xf32>
    %652 = vector.extract_strided_slice %649 {offsets = [0, 0], sizes = [8, 128], strides = [1, 1]} : vector<8x384xf32> to vector<8x128xf32>
    %653 = vector.extract_strided_slice %649 {offsets = [0, 128], sizes = [8, 128], strides = [1, 1]} : vector<8x384xf32> to vector<8x128xf32>
    %654 = vector.extract_strided_slice %649 {offsets = [0, 256], sizes = [8, 128], strides = [1, 1]} : vector<8x384xf32> to vector<8x128xf32>
    %655 = arith.mulf %653, %630 : vector<8x128xf32>
    %656 = arith.mulf %652, %651 : vector<8x128xf32>
    %657 = arith.addf %655, %656 : vector<8x128xf32>
    %658 = math.tanh %657 : vector<8x128xf32>
    %659 = arith.mulf %654, %658 : vector<8x128xf32>
    %c19_307 = arith.constant 19 : index
    %c0_308 = arith.constant 0 : index
    %c0_309 = arith.constant 0 : index
    %660 = vector.load %arg14[%c19_307, %c0_308, %c0_309] : memref<33x8x128xf32, #tpu.memory_space<vmem>>, vector<1x8x128xf32>
    %661 = vector.shape_cast %660 : vector<1x8x128xf32> to vector<8x128xf32>
    %662 = vector.shape_cast %659 : vector<8x128xf32> to vector<1x8x128xf32>
    tpu.vector_store %arg14[%c19_307, %c0_308, %c0_309], %662 {strides = array<i32>} : memref<33x8x128xf32, #tpu.memory_space<vmem>>, vector<1x8x128xf32>,
    %c13_310 = arith.constant 13 : index
    %c0_311 = arith.constant 0 : index
    %c0_312 = arith.constant 0 : index
    %663 = vector.load %arg15[%c13_310, %c0_311, %c0_312] : memref<33x8x128xf32, #tpu.memory_space<vmem>>, vector<1x8x128xf32>
    %664 = vector.shape_cast %663 : vector<1x8x128xf32> to vector<8x128xf32>
    %665 = vector.shape_cast %659 : vector<8x128xf32> to vector<1x8x128xf32>
    tpu.vector_store %arg15[%c13_310, %c0_311, %c0_312], %665 {strides = array<i32>} : memref<33x8x128xf32, #tpu.memory_space<vmem>>, vector<1x8x128xf32>,
    %666 = arith.truncf %659 : vector<8x128xf32> to vector<8x128xbf16>
    %cst_313 = arith.constant dense<0.000000e+00> : vector<8x512xf32>
    %667 = tpu.matmul %666, %123, %cst_313 {dimension_numbers = #tpu.dot_dimension_numbers<[1], [0], [0], [1], [0, 0, 1, 1], [], []>} : vector<8x128xbf16>, vector<128x512xbf16>, vector<8x512xf32> -> vector<8x512xf32>
    %c9_314 = arith.constant 9 : index
    %c0_315 = arith.constant 0 : index
    %c0_316 = arith.constant 0 : index
    %668 = vector.load %arg12[%c9_314, %c0_315, %c0_316] : memref<11x8x512xf32, #tpu.memory_space<vmem>>, vector<1x8x512xf32>
    %669 = vector.shape_cast %668 : vector<1x8x512xf32> to vector<8x512xf32>
    %670 = arith.addf %667, %669 : vector<8x512xf32>
    %671 = vector.extract_strided_slice %670 {offsets = [0, 0], sizes = [8, 384], strides = [1, 1]} : vector<8x512xf32> to vector<8x384xf32>
    %672 = arith.negf %671 : vector<8x384xf32>
    %673 = math.exp %672 : vector<8x384xf32>
    %cst_317 = arith.constant 1.000000e+00 : f32
    %674 = vector.broadcast %cst_317 : f32 to vector<8x384xf32>
    %675 = arith.addf %674, %673 : vector<8x384xf32>
    %676 = arith.divf %674, %675 : vector<8x384xf32>
    %677 = vector.extract_strided_slice %670 {offsets = [0, 384], sizes = [8, 128], strides = [1, 1]} : vector<8x512xf32> to vector<8x128xf32>
    %678 = math.tanh %677 : vector<8x128xf32>
    %679 = vector.extract_strided_slice %676 {offsets = [0, 0], sizes = [8, 128], strides = [1, 1]} : vector<8x384xf32> to vector<8x128xf32>
    %680 = vector.extract_strided_slice %676 {offsets = [0, 128], sizes = [8, 128], strides = [1, 1]} : vector<8x384xf32> to vector<8x128xf32>
    %681 = vector.extract_strided_slice %676 {offsets = [0, 256], sizes = [8, 128], strides = [1, 1]} : vector<8x384xf32> to vector<8x128xf32>
    %682 = arith.mulf %680, %657 : vector<8x128xf32>
    %683 = arith.mulf %679, %678 : vector<8x128xf32>
    %684 = arith.addf %682, %683 : vector<8x128xf32>
    %685 = math.tanh %684 : vector<8x128xf32>
    %686 = arith.mulf %681, %685 : vector<8x128xf32>
    %c20_318 = arith.constant 20 : index
    %c0_319 = arith.constant 0 : index
    %c0_320 = arith.constant 0 : index
    %687 = vector.load %arg14[%c20_318, %c0_319, %c0_320] : memref<33x8x128xf32, #tpu.memory_space<vmem>>, vector<1x8x128xf32>
    %688 = vector.shape_cast %687 : vector<1x8x128xf32> to vector<8x128xf32>
    %689 = vector.shape_cast %686 : vector<8x128xf32> to vector<1x8x128xf32>
    tpu.vector_store %arg14[%c20_318, %c0_319, %c0_320], %689 {strides = array<i32>} : memref<33x8x128xf32, #tpu.memory_space<vmem>>, vector<1x8x128xf32>,
    %c12_321 = arith.constant 12 : index
    %c0_322 = arith.constant 0 : index
    %c0_323 = arith.constant 0 : index
    %690 = vector.load %arg15[%c12_321, %c0_322, %c0_323] : memref<33x8x128xf32, #tpu.memory_space<vmem>>, vector<1x8x128xf32>
    %691 = vector.shape_cast %690 : vector<1x8x128xf32> to vector<8x128xf32>
    %692 = vector.shape_cast %686 : vector<8x128xf32> to vector<1x8x128xf32>
    tpu.vector_store %arg15[%c12_321, %c0_322, %c0_323], %692 {strides = array<i32>} : memref<33x8x128xf32, #tpu.memory_space<vmem>>, vector<1x8x128xf32>,
    %693 = arith.truncf %686 : vector<8x128xf32> to vector<8x128xbf16>
    %cst_324 = arith.constant dense<0.000000e+00> : vector<8x512xf32>
    %694 = tpu.matmul %693, %123, %cst_324 {dimension_numbers = #tpu.dot_dimension_numbers<[1], [0], [0], [1], [0, 0, 1, 1], [], []>} : vector<8x128xbf16>, vector<128x512xbf16>, vector<8x512xf32> -> vector<8x512xf32>
    %c10_325 = arith.constant 10 : index
    %c0_326 = arith.constant 0 : index
    %c0_327 = arith.constant 0 : index
    %695 = vector.load %arg12[%c10_325, %c0_326, %c0_327] : memref<11x8x512xf32, #tpu.memory_space<vmem>>, vector<1x8x512xf32>
    %696 = vector.shape_cast %695 : vector<1x8x512xf32> to vector<8x512xf32>
    %697 = arith.addf %694, %696 : vector<8x512xf32>
    %698 = vector.extract_strided_slice %697 {offsets = [0, 0], sizes = [8, 384], strides = [1, 1]} : vector<8x512xf32> to vector<8x384xf32>
    %699 = arith.negf %698 : vector<8x384xf32>
    %700 = math.exp %699 : vector<8x384xf32>
    %cst_328 = arith.constant 1.000000e+00 : f32
    %701 = vector.broadcast %cst_328 : f32 to vector<8x384xf32>
    %702 = arith.addf %701, %700 : vector<8x384xf32>
    %703 = arith.divf %701, %702 : vector<8x384xf32>
    %704 = vector.extract_strided_slice %697 {offsets = [0, 384], sizes = [8, 128], strides = [1, 1]} : vector<8x512xf32> to vector<8x128xf32>
    %705 = math.tanh %704 : vector<8x128xf32>
    %706 = vector.extract_strided_slice %703 {offsets = [0, 0], sizes = [8, 128], strides = [1, 1]} : vector<8x384xf32> to vector<8x128xf32>
    %707 = vector.extract_strided_slice %703 {offsets = [0, 128], sizes = [8, 128], strides = [1, 1]} : vector<8x384xf32> to vector<8x128xf32>
    %708 = vector.extract_strided_slice %703 {offsets = [0, 256], sizes = [8, 128], strides = [1, 1]} : vector<8x384xf32> to vector<8x128xf32>
    %709 = arith.mulf %707, %684 : vector<8x128xf32>
    %710 = arith.mulf %706, %705 : vector<8x128xf32>
    %711 = arith.addf %709, %710 : vector<8x128xf32>
    %712 = math.tanh %711 : vector<8x128xf32>
    %713 = arith.mulf %708, %712 : vector<8x128xf32>
    %c21_329 = arith.constant 21 : index
    %c0_330 = arith.constant 0 : index
    %c0_331 = arith.constant 0 : index
    %714 = vector.load %arg14[%c21_329, %c0_330, %c0_331] : memref<33x8x128xf32, #tpu.memory_space<vmem>>, vector<1x8x128xf32>
    %715 = vector.shape_cast %714 : vector<1x8x128xf32> to vector<8x128xf32>
    %716 = vector.shape_cast %713 : vector<8x128xf32> to vector<1x8x128xf32>
    tpu.vector_store %arg14[%c21_329, %c0_330, %c0_331], %716 {strides = array<i32>} : memref<33x8x128xf32, #tpu.memory_space<vmem>>, vector<1x8x128xf32>,
    %c11_332 = arith.constant 11 : index
    %c0_333 = arith.constant 0 : index
    %c0_334 = arith.constant 0 : index
    %717 = vector.load %arg15[%c11_332, %c0_333, %c0_334] : memref<33x8x128xf32, #tpu.memory_space<vmem>>, vector<1x8x128xf32>
    %718 = vector.shape_cast %717 : vector<1x8x128xf32> to vector<8x128xf32>
    %719 = vector.shape_cast %713 : vector<8x128xf32> to vector<1x8x128xf32>
    tpu.vector_store %arg15[%c11_332, %c0_333, %c0_334], %719 {strides = array<i32>} : memref<33x8x128xf32, #tpu.memory_space<vmem>>, vector<1x8x128xf32>,
    %720 = arith.truncf %713 : vector<8x128xf32> to vector<8x128xbf16>
    %cst_335 = arith.constant dense<0.000000e+00> : vector<8x512xf32>
    %721 = tpu.matmul %720, %123, %cst_335 {dimension_numbers = #tpu.dot_dimension_numbers<[1], [0], [0], [1], [0, 0, 1, 1], [], []>} : vector<8x128xbf16>, vector<128x512xbf16>, vector<8x512xf32> -> vector<8x512xf32>
    %c0_336 = arith.constant 0 : index
    %c0_337 = arith.constant 0 : index
    %c0_338 = arith.constant 0 : index
    %722 = vector.load %arg12[%c0_336, %c0_337, %c0_338] : memref<11x8x512xf32, #tpu.memory_space<vmem>>, vector<1x8x512xf32>
    %723 = vector.shape_cast %722 : vector<1x8x512xf32> to vector<8x512xf32>
    %724 = arith.addf %721, %723 : vector<8x512xf32>
    %725 = vector.extract_strided_slice %724 {offsets = [0, 0], sizes = [8, 384], strides = [1, 1]} : vector<8x512xf32> to vector<8x384xf32>
    %726 = arith.negf %725 : vector<8x384xf32>
    %727 = math.exp %726 : vector<8x384xf32>
    %cst_339 = arith.constant 1.000000e+00 : f32
    %728 = vector.broadcast %cst_339 : f32 to vector<8x384xf32>
    %729 = arith.addf %728, %727 : vector<8x384xf32>
    %730 = arith.divf %728, %729 : vector<8x384xf32>
    %731 = vector.extract_strided_slice %724 {offsets = [0, 384], sizes = [8, 128], strides = [1, 1]} : vector<8x512xf32> to vector<8x128xf32>
    %732 = math.tanh %731 : vector<8x128xf32>
    %733 = vector.extract_strided_slice %730 {offsets = [0, 0], sizes = [8, 128], strides = [1, 1]} : vector<8x384xf32> to vector<8x128xf32>
    %734 = vector.extract_strided_slice %730 {offsets = [0, 128], sizes = [8, 128], strides = [1, 1]} : vector<8x384xf32> to vector<8x128xf32>
    %735 = vector.extract_strided_slice %730 {offsets = [0, 256], sizes = [8, 128], strides = [1, 1]} : vector<8x384xf32> to vector<8x128xf32>
    %736 = arith.mulf %734, %711 : vector<8x128xf32>
    %737 = arith.mulf %733, %732 : vector<8x128xf32>
    %738 = arith.addf %736, %737 : vector<8x128xf32>
    %739 = math.tanh %738 : vector<8x128xf32>
    %740 = arith.mulf %735, %739 : vector<8x128xf32>
    %c22_340 = arith.constant 22 : index
    %c0_341 = arith.constant 0 : index
    %c0_342 = arith.constant 0 : index
    %741 = vector.load %arg14[%c22_340, %c0_341, %c0_342] : memref<33x8x128xf32, #tpu.memory_space<vmem>>, vector<1x8x128xf32>
    %742 = vector.shape_cast %741 : vector<1x8x128xf32> to vector<8x128xf32>
    %743 = vector.shape_cast %740 : vector<8x128xf32> to vector<1x8x128xf32>
    tpu.vector_store %arg14[%c22_340, %c0_341, %c0_342], %743 {strides = array<i32>} : memref<33x8x128xf32, #tpu.memory_space<vmem>>, vector<1x8x128xf32>,
    %c10_343 = arith.constant 10 : index
    %c0_344 = arith.constant 0 : index
    %c0_345 = arith.constant 0 : index
    %744 = vector.load %arg15[%c10_343, %c0_344, %c0_345] : memref<33x8x128xf32, #tpu.memory_space<vmem>>, vector<1x8x128xf32>
    %745 = vector.shape_cast %744 : vector<1x8x128xf32> to vector<8x128xf32>
    %746 = vector.shape_cast %740 : vector<8x128xf32> to vector<1x8x128xf32>
    tpu.vector_store %arg15[%c10_343, %c0_344, %c0_345], %746 {strides = array<i32>} : memref<33x8x128xf32, #tpu.memory_space<vmem>>, vector<1x8x128xf32>,
    %747 = arith.truncf %740 : vector<8x128xf32> to vector<8x128xbf16>
    %cst_346 = arith.constant dense<0.000000e+00> : vector<8x512xf32>
    %748 = tpu.matmul %747, %123, %cst_346 {dimension_numbers = #tpu.dot_dimension_numbers<[1], [0], [0], [1], [0, 0, 1, 1], [], []>} : vector<8x128xbf16>, vector<128x512xbf16>, vector<8x512xf32> -> vector<8x512xf32>
    %c1_347 = arith.constant 1 : index
    %c0_348 = arith.constant 0 : index
    %c0_349 = arith.constant 0 : index
    %749 = vector.load %arg12[%c1_347, %c0_348, %c0_349] : memref<11x8x512xf32, #tpu.memory_space<vmem>>, vector<1x8x512xf32>
    %750 = vector.shape_cast %749 : vector<1x8x512xf32> to vector<8x512xf32>
    %751 = arith.addf %748, %750 : vector<8x512xf32>
    %752 = vector.extract_strided_slice %751 {offsets = [0, 0], sizes = [8, 384], strides = [1, 1]} : vector<8x512xf32> to vector<8x384xf32>
    %753 = arith.negf %752 : vector<8x384xf32>
    %754 = math.exp %753 : vector<8x384xf32>
    %cst_350 = arith.constant 1.000000e+00 : f32
    %755 = vector.broadcast %cst_350 : f32 to vector<8x384xf32>
    %756 = arith.addf %755, %754 : vector<8x384xf32>
    %757 = arith.divf %755, %756 : vector<8x384xf32>
    %758 = vector.extract_strided_slice %751 {offsets = [0, 384], sizes = [8, 128], strides = [1, 1]} : vector<8x512xf32> to vector<8x128xf32>
    %759 = math.tanh %758 : vector<8x128xf32>
    %760 = vector.extract_strided_slice %757 {offsets = [0, 0], sizes = [8, 128], strides = [1, 1]} : vector<8x384xf32> to vector<8x128xf32>
    %761 = vector.extract_strided_slice %757 {offsets = [0, 128], sizes = [8, 128], strides = [1, 1]} : vector<8x384xf32> to vector<8x128xf32>
    %762 = vector.extract_strided_slice %757 {offsets = [0, 256], sizes = [8, 128], strides = [1, 1]} : vector<8x384xf32> to vector<8x128xf32>
    %763 = arith.mulf %761, %738 : vector<8x128xf32>
    %764 = arith.mulf %760, %759 : vector<8x128xf32>
    %765 = arith.addf %763, %764 : vector<8x128xf32>
    %766 = math.tanh %765 : vector<8x128xf32>
    %767 = arith.mulf %762, %766 : vector<8x128xf32>
    %c23_351 = arith.constant 23 : index
    %c0_352 = arith.constant 0 : index
    %c0_353 = arith.constant 0 : index
    %768 = vector.load %arg14[%c23_351, %c0_352, %c0_353] : memref<33x8x128xf32, #tpu.memory_space<vmem>>, vector<1x8x128xf32>
    %769 = vector.shape_cast %768 : vector<1x8x128xf32> to vector<8x128xf32>
    %770 = vector.shape_cast %767 : vector<8x128xf32> to vector<1x8x128xf32>
    tpu.vector_store %arg14[%c23_351, %c0_352, %c0_353], %770 {strides = array<i32>} : memref<33x8x128xf32, #tpu.memory_space<vmem>>, vector<1x8x128xf32>,
    %c9_354 = arith.constant 9 : index
    %c0_355 = arith.constant 0 : index
    %c0_356 = arith.constant 0 : index
    %771 = vector.load %arg15[%c9_354, %c0_355, %c0_356] : memref<33x8x128xf32, #tpu.memory_space<vmem>>, vector<1x8x128xf32>
    %772 = vector.shape_cast %771 : vector<1x8x128xf32> to vector<8x128xf32>
    %773 = vector.shape_cast %767 : vector<8x128xf32> to vector<1x8x128xf32>
    tpu.vector_store %arg15[%c9_354, %c0_355, %c0_356], %773 {strides = array<i32>} : memref<33x8x128xf32, #tpu.memory_space<vmem>>, vector<1x8x128xf32>,
    %774 = arith.truncf %767 : vector<8x128xf32> to vector<8x128xbf16>
    %cst_357 = arith.constant dense<0.000000e+00> : vector<8x512xf32>
    %775 = tpu.matmul %774, %123, %cst_357 {dimension_numbers = #tpu.dot_dimension_numbers<[1], [0], [0], [1], [0, 0, 1, 1], [], []>} : vector<8x128xbf16>, vector<128x512xbf16>, vector<8x512xf32> -> vector<8x512xf32>
    %c2_358 = arith.constant 2 : index
    %c0_359 = arith.constant 0 : index
    %c0_360 = arith.constant 0 : index
    %776 = vector.load %arg12[%c2_358, %c0_359, %c0_360] : memref<11x8x512xf32, #tpu.memory_space<vmem>>, vector<1x8x512xf32>
    %777 = vector.shape_cast %776 : vector<1x8x512xf32> to vector<8x512xf32>
    %778 = arith.addf %775, %777 : vector<8x512xf32>
    %779 = vector.extract_strided_slice %778 {offsets = [0, 0], sizes = [8, 384], strides = [1, 1]} : vector<8x512xf32> to vector<8x384xf32>
    %780 = arith.negf %779 : vector<8x384xf32>
    %781 = math.exp %780 : vector<8x384xf32>
    %cst_361 = arith.constant 1.000000e+00 : f32
    %782 = vector.broadcast %cst_361 : f32 to vector<8x384xf32>
    %783 = arith.addf %782, %781 : vector<8x384xf32>
    %784 = arith.divf %782, %783 : vector<8x384xf32>
    %785 = vector.extract_strided_slice %778 {offsets = [0, 384], sizes = [8, 128], strides = [1, 1]} : vector<8x512xf32> to vector<8x128xf32>
    %786 = math.tanh %785 : vector<8x128xf32>
    %787 = vector.extract_strided_slice %784 {offsets = [0, 0], sizes = [8, 128], strides = [1, 1]} : vector<8x384xf32> to vector<8x128xf32>
    %788 = vector.extract_strided_slice %784 {offsets = [0, 128], sizes = [8, 128], strides = [1, 1]} : vector<8x384xf32> to vector<8x128xf32>
    %789 = vector.extract_strided_slice %784 {offsets = [0, 256], sizes = [8, 128], strides = [1, 1]} : vector<8x384xf32> to vector<8x128xf32>
    %790 = arith.mulf %788, %765 : vector<8x128xf32>
    %791 = arith.mulf %787, %786 : vector<8x128xf32>
    %792 = arith.addf %790, %791 : vector<8x128xf32>
    %793 = math.tanh %792 : vector<8x128xf32>
    %794 = arith.mulf %789, %793 : vector<8x128xf32>
    %c24_362 = arith.constant 24 : index
    %c0_363 = arith.constant 0 : index
    %c0_364 = arith.constant 0 : index
    %795 = vector.load %arg14[%c24_362, %c0_363, %c0_364] : memref<33x8x128xf32, #tpu.memory_space<vmem>>, vector<1x8x128xf32>
    %796 = vector.shape_cast %795 : vector<1x8x128xf32> to vector<8x128xf32>
    %797 = vector.shape_cast %794 : vector<8x128xf32> to vector<1x8x128xf32>
    tpu.vector_store %arg14[%c24_362, %c0_363, %c0_364], %797 {strides = array<i32>} : memref<33x8x128xf32, #tpu.memory_space<vmem>>, vector<1x8x128xf32>,
    %c8_365 = arith.constant 8 : index
    %c0_366 = arith.constant 0 : index
    %c0_367 = arith.constant 0 : index
    %798 = vector.load %arg15[%c8_365, %c0_366, %c0_367] : memref<33x8x128xf32, #tpu.memory_space<vmem>>, vector<1x8x128xf32>
    %799 = vector.shape_cast %798 : vector<1x8x128xf32> to vector<8x128xf32>
    %800 = vector.shape_cast %794 : vector<8x128xf32> to vector<1x8x128xf32>
    tpu.vector_store %arg15[%c8_365, %c0_366, %c0_367], %800 {strides = array<i32>} : memref<33x8x128xf32, #tpu.memory_space<vmem>>, vector<1x8x128xf32>,
    %801 = arith.truncf %794 : vector<8x128xf32> to vector<8x128xbf16>
    %cst_368 = arith.constant dense<0.000000e+00> : vector<8x512xf32>
    %802 = tpu.matmul %801, %123, %cst_368 {dimension_numbers = #tpu.dot_dimension_numbers<[1], [0], [0], [1], [0, 0, 1, 1], [], []>} : vector<8x128xbf16>, vector<128x512xbf16>, vector<8x512xf32> -> vector<8x512xf32>
    %c3_369 = arith.constant 3 : index
    %c0_370 = arith.constant 0 : index
    %c0_371 = arith.constant 0 : index
    %803 = vector.load %arg12[%c3_369, %c0_370, %c0_371] : memref<11x8x512xf32, #tpu.memory_space<vmem>>, vector<1x8x512xf32>
    %804 = vector.shape_cast %803 : vector<1x8x512xf32> to vector<8x512xf32>
    %805 = arith.addf %802, %804 : vector<8x512xf32>
    %806 = vector.extract_strided_slice %805 {offsets = [0, 0], sizes = [8, 384], strides = [1, 1]} : vector<8x512xf32> to vector<8x384xf32>
    %807 = arith.negf %806 : vector<8x384xf32>
    %808 = math.exp %807 : vector<8x384xf32>
    %cst_372 = arith.constant 1.000000e+00 : f32
    %809 = vector.broadcast %cst_372 : f32 to vector<8x384xf32>
    %810 = arith.addf %809, %808 : vector<8x384xf32>
    %811 = arith.divf %809, %810 : vector<8x384xf32>
    %812 = vector.extract_strided_slice %805 {offsets = [0, 384], sizes = [8, 128], strides = [1, 1]} : vector<8x512xf32> to vector<8x128xf32>
    %813 = math.tanh %812 : vector<8x128xf32>
    %814 = vector.extract_strided_slice %811 {offsets = [0, 0], sizes = [8, 128], strides = [1, 1]} : vector<8x384xf32> to vector<8x128xf32>
    %815 = vector.extract_strided_slice %811 {offsets = [0, 128], sizes = [8, 128], strides = [1, 1]} : vector<8x384xf32> to vector<8x128xf32>
    %816 = vector.extract_strided_slice %811 {offsets = [0, 256], sizes = [8, 128], strides = [1, 1]} : vector<8x384xf32> to vector<8x128xf32>
    %817 = arith.mulf %815, %792 : vector<8x128xf32>
    %818 = arith.mulf %814, %813 : vector<8x128xf32>
    %819 = arith.addf %817, %818 : vector<8x128xf32>
    %820 = math.tanh %819 : vector<8x128xf32>
    %821 = arith.mulf %816, %820 : vector<8x128xf32>
    %c25_373 = arith.constant 25 : index
    %c0_374 = arith.constant 0 : index
    %c0_375 = arith.constant 0 : index
    %822 = vector.load %arg14[%c25_373, %c0_374, %c0_375] : memref<33x8x128xf32, #tpu.memory_space<vmem>>, vector<1x8x128xf32>
    %823 = vector.shape_cast %822 : vector<1x8x128xf32> to vector<8x128xf32>
    %824 = vector.shape_cast %821 : vector<8x128xf32> to vector<1x8x128xf32>
    tpu.vector_store %arg14[%c25_373, %c0_374, %c0_375], %824 {strides = array<i32>} : memref<33x8x128xf32, #tpu.memory_space<vmem>>, vector<1x8x128xf32>,
    %c7_376 = arith.constant 7 : index
    %c0_377 = arith.constant 0 : index
    %c0_378 = arith.constant 0 : index
    %825 = vector.load %arg15[%c7_376, %c0_377, %c0_378] : memref<33x8x128xf32, #tpu.memory_space<vmem>>, vector<1x8x128xf32>
    %826 = vector.shape_cast %825 : vector<1x8x128xf32> to vector<8x128xf32>
    %827 = vector.shape_cast %821 : vector<8x128xf32> to vector<1x8x128xf32>
    tpu.vector_store %arg15[%c7_376, %c0_377, %c0_378], %827 {strides = array<i32>} : memref<33x8x128xf32, #tpu.memory_space<vmem>>, vector<1x8x128xf32>,
    %828 = arith.truncf %821 : vector<8x128xf32> to vector<8x128xbf16>
    %cst_379 = arith.constant dense<0.000000e+00> : vector<8x512xf32>
    %829 = tpu.matmul %828, %123, %cst_379 {dimension_numbers = #tpu.dot_dimension_numbers<[1], [0], [0], [1], [0, 0, 1, 1], [], []>} : vector<8x128xbf16>, vector<128x512xbf16>, vector<8x512xf32> -> vector<8x512xf32>
    %c4_380 = arith.constant 4 : index
    %c0_381 = arith.constant 0 : index
    %c0_382 = arith.constant 0 : index
    %830 = vector.load %arg12[%c4_380, %c0_381, %c0_382] : memref<11x8x512xf32, #tpu.memory_space<vmem>>, vector<1x8x512xf32>
    %831 = vector.shape_cast %830 : vector<1x8x512xf32> to vector<8x512xf32>
    %832 = arith.addf %829, %831 : vector<8x512xf32>
    %833 = vector.extract_strided_slice %832 {offsets = [0, 0], sizes = [8, 384], strides = [1, 1]} : vector<8x512xf32> to vector<8x384xf32>
    %834 = arith.negf %833 : vector<8x384xf32>
    %835 = math.exp %834 : vector<8x384xf32>
    %cst_383 = arith.constant 1.000000e+00 : f32
    %836 = vector.broadcast %cst_383 : f32 to vector<8x384xf32>
    %837 = arith.addf %836, %835 : vector<8x384xf32>
    %838 = arith.divf %836, %837 : vector<8x384xf32>
    %839 = vector.extract_strided_slice %832 {offsets = [0, 384], sizes = [8, 128], strides = [1, 1]} : vector<8x512xf32> to vector<8x128xf32>
    %840 = math.tanh %839 : vector<8x128xf32>
    %841 = vector.extract_strided_slice %838 {offsets = [0, 0], sizes = [8, 128], strides = [1, 1]} : vector<8x384xf32> to vector<8x128xf32>
    %842 = vector.extract_strided_slice %838 {offsets = [0, 128], sizes = [8, 128], strides = [1, 1]} : vector<8x384xf32> to vector<8x128xf32>
    %843 = vector.extract_strided_slice %838 {offsets = [0, 256], sizes = [8, 128], strides = [1, 1]} : vector<8x384xf32> to vector<8x128xf32>
    %844 = arith.mulf %842, %819 : vector<8x128xf32>
    %845 = arith.mulf %841, %840 : vector<8x128xf32>
    %846 = arith.addf %844, %845 : vector<8x128xf32>
    %847 = math.tanh %846 : vector<8x128xf32>
    %848 = arith.mulf %843, %847 : vector<8x128xf32>
    %c26_384 = arith.constant 26 : index
    %c0_385 = arith.constant 0 : index
    %c0_386 = arith.constant 0 : index
    %849 = vector.load %arg14[%c26_384, %c0_385, %c0_386] : memref<33x8x128xf32, #tpu.memory_space<vmem>>, vector<1x8x128xf32>
    %850 = vector.shape_cast %849 : vector<1x8x128xf32> to vector<8x128xf32>
    %851 = vector.shape_cast %848 : vector<8x128xf32> to vector<1x8x128xf32>
    tpu.vector_store %arg14[%c26_384, %c0_385, %c0_386], %851 {strides = array<i32>} : memref<33x8x128xf32, #tpu.memory_space<vmem>>, vector<1x8x128xf32>,
    %c6_387 = arith.constant 6 : index
    %c0_388 = arith.constant 0 : index
    %c0_389 = arith.constant 0 : index
    %852 = vector.load %arg15[%c6_387, %c0_388, %c0_389] : memref<33x8x128xf32, #tpu.memory_space<vmem>>, vector<1x8x128xf32>
    %853 = vector.shape_cast %852 : vector<1x8x128xf32> to vector<8x128xf32>
    %854 = vector.shape_cast %848 : vector<8x128xf32> to vector<1x8x128xf32>
    tpu.vector_store %arg15[%c6_387, %c0_388, %c0_389], %854 {strides = array<i32>} : memref<33x8x128xf32, #tpu.memory_space<vmem>>, vector<1x8x128xf32>,
    %855 = arith.truncf %848 : vector<8x128xf32> to vector<8x128xbf16>
    %cst_390 = arith.constant dense<0.000000e+00> : vector<8x512xf32>
    %856 = tpu.matmul %855, %123, %cst_390 {dimension_numbers = #tpu.dot_dimension_numbers<[1], [0], [0], [1], [0, 0, 1, 1], [], []>} : vector<8x128xbf16>, vector<128x512xbf16>, vector<8x512xf32> -> vector<8x512xf32>
    %c5_391 = arith.constant 5 : index
    %c0_392 = arith.constant 0 : index
    %c0_393 = arith.constant 0 : index
    %857 = vector.load %arg12[%c5_391, %c0_392, %c0_393] : memref<11x8x512xf32, #tpu.memory_space<vmem>>, vector<1x8x512xf32>
    %858 = vector.shape_cast %857 : vector<1x8x512xf32> to vector<8x512xf32>
    %859 = arith.addf %856, %858 : vector<8x512xf32>
    %860 = vector.extract_strided_slice %859 {offsets = [0, 0], sizes = [8, 384], strides = [1, 1]} : vector<8x512xf32> to vector<8x384xf32>
    %861 = arith.negf %860 : vector<8x384xf32>
    %862 = math.exp %861 : vector<8x384xf32>
    %cst_394 = arith.constant 1.000000e+00 : f32
    %863 = vector.broadcast %cst_394 : f32 to vector<8x384xf32>
    %864 = arith.addf %863, %862 : vector<8x384xf32>
    %865 = arith.divf %863, %864 : vector<8x384xf32>
    %866 = vector.extract_strided_slice %859 {offsets = [0, 384], sizes = [8, 128], strides = [1, 1]} : vector<8x512xf32> to vector<8x128xf32>
    %867 = math.tanh %866 : vector<8x128xf32>
    %868 = vector.extract_strided_slice %865 {offsets = [0, 0], sizes = [8, 128], strides = [1, 1]} : vector<8x384xf32> to vector<8x128xf32>
    %869 = vector.extract_strided_slice %865 {offsets = [0, 128], sizes = [8, 128], strides = [1, 1]} : vector<8x384xf32> to vector<8x128xf32>
    %870 = vector.extract_strided_slice %865 {offsets = [0, 256], sizes = [8, 128], strides = [1, 1]} : vector<8x384xf32> to vector<8x128xf32>
    %871 = arith.mulf %869, %846 : vector<8x128xf32>
    %872 = arith.mulf %868, %867 : vector<8x128xf32>
    %873 = arith.addf %871, %872 : vector<8x128xf32>
    %874 = math.tanh %873 : vector<8x128xf32>
    %875 = arith.mulf %870, %874 : vector<8x128xf32>
    %c27_395 = arith.constant 27 : index
    %c0_396 = arith.constant 0 : index
    %c0_397 = arith.constant 0 : index
    %876 = vector.load %arg14[%c27_395, %c0_396, %c0_397] : memref<33x8x128xf32, #tpu.memory_space<vmem>>, vector<1x8x128xf32>
    %877 = vector.shape_cast %876 : vector<1x8x128xf32> to vector<8x128xf32>
    %878 = vector.shape_cast %875 : vector<8x128xf32> to vector<1x8x128xf32>
    tpu.vector_store %arg14[%c27_395, %c0_396, %c0_397], %878 {strides = array<i32>} : memref<33x8x128xf32, #tpu.memory_space<vmem>>, vector<1x8x128xf32>,
    %c5_398 = arith.constant 5 : index
    %c0_399 = arith.constant 0 : index
    %c0_400 = arith.constant 0 : index
    %879 = vector.load %arg15[%c5_398, %c0_399, %c0_400] : memref<33x8x128xf32, #tpu.memory_space<vmem>>, vector<1x8x128xf32>
    %880 = vector.shape_cast %879 : vector<1x8x128xf32> to vector<8x128xf32>
    %881 = vector.shape_cast %875 : vector<8x128xf32> to vector<1x8x128xf32>
    tpu.vector_store %arg15[%c5_398, %c0_399, %c0_400], %881 {strides = array<i32>} : memref<33x8x128xf32, #tpu.memory_space<vmem>>, vector<1x8x128xf32>,
    %882 = arith.truncf %875 : vector<8x128xf32> to vector<8x128xbf16>
    %cst_401 = arith.constant dense<0.000000e+00> : vector<8x512xf32>
    %883 = tpu.matmul %882, %123, %cst_401 {dimension_numbers = #tpu.dot_dimension_numbers<[1], [0], [0], [1], [0, 0, 1, 1], [], []>} : vector<8x128xbf16>, vector<128x512xbf16>, vector<8x512xf32> -> vector<8x512xf32>
    %c6_402 = arith.constant 6 : index
    %c0_403 = arith.constant 0 : index
    %c0_404 = arith.constant 0 : index
    %884 = vector.load %arg12[%c6_402, %c0_403, %c0_404] : memref<11x8x512xf32, #tpu.memory_space<vmem>>, vector<1x8x512xf32>
    %885 = vector.shape_cast %884 : vector<1x8x512xf32> to vector<8x512xf32>
    %886 = arith.addf %883, %885 : vector<8x512xf32>
    %887 = vector.extract_strided_slice %886 {offsets = [0, 0], sizes = [8, 384], strides = [1, 1]} : vector<8x512xf32> to vector<8x384xf32>
    %888 = arith.negf %887 : vector<8x384xf32>
    %889 = math.exp %888 : vector<8x384xf32>
    %cst_405 = arith.constant 1.000000e+00 : f32
    %890 = vector.broadcast %cst_405 : f32 to vector<8x384xf32>
    %891 = arith.addf %890, %889 : vector<8x384xf32>
    %892 = arith.divf %890, %891 : vector<8x384xf32>
    %893 = vector.extract_strided_slice %886 {offsets = [0, 384], sizes = [8, 128], strides = [1, 1]} : vector<8x512xf32> to vector<8x128xf32>
    %894 = math.tanh %893 : vector<8x128xf32>
    %895 = vector.extract_strided_slice %892 {offsets = [0, 0], sizes = [8, 128], strides = [1, 1]} : vector<8x384xf32> to vector<8x128xf32>
    %896 = vector.extract_strided_slice %892 {offsets = [0, 128], sizes = [8, 128], strides = [1, 1]} : vector<8x384xf32> to vector<8x128xf32>
    %897 = vector.extract_strided_slice %892 {offsets = [0, 256], sizes = [8, 128], strides = [1, 1]} : vector<8x384xf32> to vector<8x128xf32>
    %898 = arith.mulf %896, %873 : vector<8x128xf32>
    %899 = arith.mulf %895, %894 : vector<8x128xf32>
    %900 = arith.addf %898, %899 : vector<8x128xf32>
    %901 = math.tanh %900 : vector<8x128xf32>
    %902 = arith.mulf %897, %901 : vector<8x128xf32>
    %c28_406 = arith.constant 28 : index
    %c0_407 = arith.constant 0 : index
    %c0_408 = arith.constant 0 : index
    %903 = vector.load %arg14[%c28_406, %c0_407, %c0_408] : memref<33x8x128xf32, #tpu.memory_space<vmem>>, vector<1x8x128xf32>
    %904 = vector.shape_cast %903 : vector<1x8x128xf32> to vector<8x128xf32>
    %905 = vector.shape_cast %902 : vector<8x128xf32> to vector<1x8x128xf32>
    tpu.vector_store %arg14[%c28_406, %c0_407, %c0_408], %905 {strides = array<i32>} : memref<33x8x128xf32, #tpu.memory_space<vmem>>, vector<1x8x128xf32>,
    %c4_409 = arith.constant 4 : index
    %c0_410 = arith.constant 0 : index
    %c0_411 = arith.constant 0 : index
    %906 = vector.load %arg15[%c4_409, %c0_410, %c0_411] : memref<33x8x128xf32, #tpu.memory_space<vmem>>, vector<1x8x128xf32>
    %907 = vector.shape_cast %906 : vector<1x8x128xf32> to vector<8x128xf32>
    %908 = vector.shape_cast %902 : vector<8x128xf32> to vector<1x8x128xf32>
    tpu.vector_store %arg15[%c4_409, %c0_410, %c0_411], %908 {strides = array<i32>} : memref<33x8x128xf32, #tpu.memory_space<vmem>>, vector<1x8x128xf32>,
    %909 = arith.truncf %902 : vector<8x128xf32> to vector<8x128xbf16>
    %cst_412 = arith.constant dense<0.000000e+00> : vector<8x512xf32>
    %910 = tpu.matmul %909, %123, %cst_412 {dimension_numbers = #tpu.dot_dimension_numbers<[1], [0], [0], [1], [0, 0, 1, 1], [], []>} : vector<8x128xbf16>, vector<128x512xbf16>, vector<8x512xf32> -> vector<8x512xf32>
    %c7_413 = arith.constant 7 : index
    %c0_414 = arith.constant 0 : index
    %c0_415 = arith.constant 0 : index
    %911 = vector.load %arg12[%c7_413, %c0_414, %c0_415] : memref<11x8x512xf32, #tpu.memory_space<vmem>>, vector<1x8x512xf32>
    %912 = vector.shape_cast %911 : vector<1x8x512xf32> to vector<8x512xf32>
    %913 = arith.addf %910, %912 : vector<8x512xf32>
    %914 = vector.extract_strided_slice %913 {offsets = [0, 0], sizes = [8, 384], strides = [1, 1]} : vector<8x512xf32> to vector<8x384xf32>
    %915 = arith.negf %914 : vector<8x384xf32>
    %916 = math.exp %915 : vector<8x384xf32>
    %cst_416 = arith.constant 1.000000e+00 : f32
    %917 = vector.broadcast %cst_416 : f32 to vector<8x384xf32>
    %918 = arith.addf %917, %916 : vector<8x384xf32>
    %919 = arith.divf %917, %918 : vector<8x384xf32>
    %920 = vector.extract_strided_slice %913 {offsets = [0, 384], sizes = [8, 128], strides = [1, 1]} : vector<8x512xf32> to vector<8x128xf32>
    %921 = math.tanh %920 : vector<8x128xf32>
    %922 = vector.extract_strided_slice %919 {offsets = [0, 0], sizes = [8, 128], strides = [1, 1]} : vector<8x384xf32> to vector<8x128xf32>
    %923 = vector.extract_strided_slice %919 {offsets = [0, 128], sizes = [8, 128], strides = [1, 1]} : vector<8x384xf32> to vector<8x128xf32>
    %924 = vector.extract_strided_slice %919 {offsets = [0, 256], sizes = [8, 128], strides = [1, 1]} : vector<8x384xf32> to vector<8x128xf32>
    %925 = arith.mulf %923, %900 : vector<8x128xf32>
    %926 = arith.mulf %922, %921 : vector<8x128xf32>
    %927 = arith.addf %925, %926 : vector<8x128xf32>
    %928 = math.tanh %927 : vector<8x128xf32>
    %929 = arith.mulf %924, %928 : vector<8x128xf32>
    %c29_417 = arith.constant 29 : index
    %c0_418 = arith.constant 0 : index
    %c0_419 = arith.constant 0 : index
    %930 = vector.load %arg14[%c29_417, %c0_418, %c0_419] : memref<33x8x128xf32, #tpu.memory_space<vmem>>, vector<1x8x128xf32>
    %931 = vector.shape_cast %930 : vector<1x8x128xf32> to vector<8x128xf32>
    %932 = vector.shape_cast %929 : vector<8x128xf32> to vector<1x8x128xf32>
    tpu.vector_store %arg14[%c29_417, %c0_418, %c0_419], %932 {strides = array<i32>} : memref<33x8x128xf32, #tpu.memory_space<vmem>>, vector<1x8x128xf32>,
    %c3_420 = arith.constant 3 : index
    %c0_421 = arith.constant 0 : index
    %c0_422 = arith.constant 0 : index
    %933 = vector.load %arg15[%c3_420, %c0_421, %c0_422] : memref<33x8x128xf32, #tpu.memory_space<vmem>>, vector<1x8x128xf32>
    %934 = vector.shape_cast %933 : vector<1x8x128xf32> to vector<8x128xf32>
    %935 = vector.shape_cast %929 : vector<8x128xf32> to vector<1x8x128xf32>
    tpu.vector_store %arg15[%c3_420, %c0_421, %c0_422], %935 {strides = array<i32>} : memref<33x8x128xf32, #tpu.memory_space<vmem>>, vector<1x8x128xf32>,
    %936 = arith.truncf %929 : vector<8x128xf32> to vector<8x128xbf16>
    %cst_423 = arith.constant dense<0.000000e+00> : vector<8x512xf32>
    %937 = tpu.matmul %936, %123, %cst_423 {dimension_numbers = #tpu.dot_dimension_numbers<[1], [0], [0], [1], [0, 0, 1, 1], [], []>} : vector<8x128xbf16>, vector<128x512xbf16>, vector<8x512xf32> -> vector<8x512xf32>
    %c8_424 = arith.constant 8 : index
    %c0_425 = arith.constant 0 : index
    %c0_426 = arith.constant 0 : index
    %938 = vector.load %arg12[%c8_424, %c0_425, %c0_426] : memref<11x8x512xf32, #tpu.memory_space<vmem>>, vector<1x8x512xf32>
    %939 = vector.shape_cast %938 : vector<1x8x512xf32> to vector<8x512xf32>
    %940 = arith.addf %937, %939 : vector<8x512xf32>
    %941 = vector.extract_strided_slice %940 {offsets = [0, 0], sizes = [8, 384], strides = [1, 1]} : vector<8x512xf32> to vector<8x384xf32>
    %942 = arith.negf %941 : vector<8x384xf32>
    %943 = math.exp %942 : vector<8x384xf32>
    %cst_427 = arith.constant 1.000000e+00 : f32
    %944 = vector.broadcast %cst_427 : f32 to vector<8x384xf32>
    %945 = arith.addf %944, %943 : vector<8x384xf32>
    %946 = arith.divf %944, %945 : vector<8x384xf32>
    %947 = vector.extract_strided_slice %940 {offsets = [0, 384], sizes = [8, 128], strides = [1, 1]} : vector<8x512xf32> to vector<8x128xf32>
    %948 = math.tanh %947 : vector<8x128xf32>
    %949 = vector.extract_strided_slice %946 {offsets = [0, 0], sizes = [8, 128], strides = [1, 1]} : vector<8x384xf32> to vector<8x128xf32>
    %950 = vector.extract_strided_slice %946 {offsets = [0, 128], sizes = [8, 128], strides = [1, 1]} : vector<8x384xf32> to vector<8x128xf32>
    %951 = vector.extract_strided_slice %946 {offsets = [0, 256], sizes = [8, 128], strides = [1, 1]} : vector<8x384xf32> to vector<8x128xf32>
    %952 = arith.mulf %950, %927 : vector<8x128xf32>
    %953 = arith.mulf %949, %948 : vector<8x128xf32>
    %954 = arith.addf %952, %953 : vector<8x128xf32>
    %955 = math.tanh %954 : vector<8x128xf32>
    %956 = arith.mulf %951, %955 : vector<8x128xf32>
    %c30_428 = arith.constant 30 : index
    %c0_429 = arith.constant 0 : index
    %c0_430 = arith.constant 0 : index
    %957 = vector.load %arg14[%c30_428, %c0_429, %c0_430] : memref<33x8x128xf32, #tpu.memory_space<vmem>>, vector<1x8x128xf32>
    %958 = vector.shape_cast %957 : vector<1x8x128xf32> to vector<8x128xf32>
    %959 = vector.shape_cast %956 : vector<8x128xf32> to vector<1x8x128xf32>
    tpu.vector_store %arg14[%c30_428, %c0_429, %c0_430], %959 {strides = array<i32>} : memref<33x8x128xf32, #tpu.memory_space<vmem>>, vector<1x8x128xf32>,
    %c2_431 = arith.constant 2 : index
    %c0_432 = arith.constant 0 : index
    %c0_433 = arith.constant 0 : index
    %960 = vector.load %arg15[%c2_431, %c0_432, %c0_433] : memref<33x8x128xf32, #tpu.memory_space<vmem>>, vector<1x8x128xf32>
    %961 = vector.shape_cast %960 : vector<1x8x128xf32> to vector<8x128xf32>
    %962 = vector.shape_cast %956 : vector<8x128xf32> to vector<1x8x128xf32>
    tpu.vector_store %arg15[%c2_431, %c0_432, %c0_433], %962 {strides = array<i32>} : memref<33x8x128xf32, #tpu.memory_space<vmem>>, vector<1x8x128xf32>,
    %963 = arith.truncf %956 : vector<8x128xf32> to vector<8x128xbf16>
    %cst_434 = arith.constant dense<0.000000e+00> : vector<8x512xf32>
    %964 = tpu.matmul %963, %123, %cst_434 {dimension_numbers = #tpu.dot_dimension_numbers<[1], [0], [0], [1], [0, 0, 1, 1], [], []>} : vector<8x128xbf16>, vector<128x512xbf16>, vector<8x512xf32> -> vector<8x512xf32>
    %c9_435 = arith.constant 9 : index
    %c0_436 = arith.constant 0 : index
    %c0_437 = arith.constant 0 : index
    %965 = vector.load %arg12[%c9_435, %c0_436, %c0_437] : memref<11x8x512xf32, #tpu.memory_space<vmem>>, vector<1x8x512xf32>
    %966 = vector.shape_cast %965 : vector<1x8x512xf32> to vector<8x512xf32>
    %967 = arith.addf %964, %966 : vector<8x512xf32>
    %968 = vector.extract_strided_slice %967 {offsets = [0, 0], sizes = [8, 384], strides = [1, 1]} : vector<8x512xf32> to vector<8x384xf32>
    %969 = arith.negf %968 : vector<8x384xf32>
    %970 = math.exp %969 : vector<8x384xf32>
    %cst_438 = arith.constant 1.000000e+00 : f32
    %971 = vector.broadcast %cst_438 : f32 to vector<8x384xf32>
    %972 = arith.addf %971, %970 : vector<8x384xf32>
    %973 = arith.divf %971, %972 : vector<8x384xf32>
    %974 = vector.extract_strided_slice %967 {offsets = [0, 384], sizes = [8, 128], strides = [1, 1]} : vector<8x512xf32> to vector<8x128xf32>
    %975 = math.tanh %974 : vector<8x128xf32>
    %976 = vector.extract_strided_slice %973 {offsets = [0, 0], sizes = [8, 128], strides = [1, 1]} : vector<8x384xf32> to vector<8x128xf32>
    %977 = vector.extract_strided_slice %973 {offsets = [0, 128], sizes = [8, 128], strides = [1, 1]} : vector<8x384xf32> to vector<8x128xf32>
    %978 = vector.extract_strided_slice %973 {offsets = [0, 256], sizes = [8, 128], strides = [1, 1]} : vector<8x384xf32> to vector<8x128xf32>
    %979 = arith.mulf %977, %954 : vector<8x128xf32>
    %980 = arith.mulf %976, %975 : vector<8x128xf32>
    %981 = arith.addf %979, %980 : vector<8x128xf32>
    %982 = math.tanh %981 : vector<8x128xf32>
    %983 = arith.mulf %978, %982 : vector<8x128xf32>
    %c31_439 = arith.constant 31 : index
    %c0_440 = arith.constant 0 : index
    %c0_441 = arith.constant 0 : index
    %984 = vector.load %arg14[%c31_439, %c0_440, %c0_441] : memref<33x8x128xf32, #tpu.memory_space<vmem>>, vector<1x8x128xf32>
    %985 = vector.shape_cast %984 : vector<1x8x128xf32> to vector<8x128xf32>
    %986 = vector.shape_cast %983 : vector<8x128xf32> to vector<1x8x128xf32>
    tpu.vector_store %arg14[%c31_439, %c0_440, %c0_441], %986 {strides = array<i32>} : memref<33x8x128xf32, #tpu.memory_space<vmem>>, vector<1x8x128xf32>,
    %c1_442 = arith.constant 1 : index
    %c0_443 = arith.constant 0 : index
    %c0_444 = arith.constant 0 : index
    %987 = vector.load %arg15[%c1_442, %c0_443, %c0_444] : memref<33x8x128xf32, #tpu.memory_space<vmem>>, vector<1x8x128xf32>
    %988 = vector.shape_cast %987 : vector<1x8x128xf32> to vector<8x128xf32>
    %989 = vector.shape_cast %983 : vector<8x128xf32> to vector<1x8x128xf32>
    tpu.vector_store %arg15[%c1_442, %c0_443, %c0_444], %989 {strides = array<i32>} : memref<33x8x128xf32, #tpu.memory_space<vmem>>, vector<1x8x128xf32>,
    %990 = arith.truncf %983 : vector<8x128xf32> to vector<8x128xbf16>
    %cst_445 = arith.constant dense<0.000000e+00> : vector<8x512xf32>
    %991 = tpu.matmul %990, %123, %cst_445 {dimension_numbers = #tpu.dot_dimension_numbers<[1], [0], [0], [1], [0, 0, 1, 1], [], []>} : vector<8x128xbf16>, vector<128x512xbf16>, vector<8x512xf32> -> vector<8x512xf32>
    %c10_446 = arith.constant 10 : index
    %c0_447 = arith.constant 0 : index
    %c0_448 = arith.constant 0 : index
    %992 = vector.load %arg12[%c10_446, %c0_447, %c0_448] : memref<11x8x512xf32, #tpu.memory_space<vmem>>, vector<1x8x512xf32>
    %993 = vector.shape_cast %992 : vector<1x8x512xf32> to vector<8x512xf32>
    %994 = arith.addf %991, %993 : vector<8x512xf32>
    %995 = vector.extract_strided_slice %994 {offsets = [0, 0], sizes = [8, 384], strides = [1, 1]} : vector<8x512xf32> to vector<8x384xf32>
    %996 = arith.negf %995 : vector<8x384xf32>
    %997 = math.exp %996 : vector<8x384xf32>
    %cst_449 = arith.constant 1.000000e+00 : f32
    %998 = vector.broadcast %cst_449 : f32 to vector<8x384xf32>
    %999 = arith.addf %998, %997 : vector<8x384xf32>
    %1000 = arith.divf %998, %999 : vector<8x384xf32>
    %1001 = vector.extract_strided_slice %994 {offsets = [0, 384], sizes = [8, 128], strides = [1, 1]} : vector<8x512xf32> to vector<8x128xf32>
    %1002 = math.tanh %1001 : vector<8x128xf32>
    %1003 = vector.extract_strided_slice %1000 {offsets = [0, 0], sizes = [8, 128], strides = [1, 1]} : vector<8x384xf32> to vector<8x128xf32>
    %1004 = vector.extract_strided_slice %1000 {offsets = [0, 128], sizes = [8, 128], strides = [1, 1]} : vector<8x384xf32> to vector<8x128xf32>
    %1005 = vector.extract_strided_slice %1000 {offsets = [0, 256], sizes = [8, 128], strides = [1, 1]} : vector<8x384xf32> to vector<8x128xf32>
    %1006 = arith.mulf %1004, %981 : vector<8x128xf32>
    %1007 = arith.mulf %1003, %1002 : vector<8x128xf32>
    %1008 = arith.addf %1006, %1007 : vector<8x128xf32>
    %1009 = math.tanh %1008 : vector<8x128xf32>
    %1010 = arith.mulf %1005, %1009 : vector<8x128xf32>
    %c32_450 = arith.constant 32 : index
    %c0_451 = arith.constant 0 : index
    %c0_452 = arith.constant 0 : index
    %1011 = vector.load %arg14[%c32_450, %c0_451, %c0_452] : memref<33x8x128xf32, #tpu.memory_space<vmem>>, vector<1x8x128xf32>
    %1012 = vector.shape_cast %1011 : vector<1x8x128xf32> to vector<8x128xf32>
    %1013 = vector.shape_cast %1010 : vector<8x128xf32> to vector<1x8x128xf32>
    tpu.vector_store %arg14[%c32_450, %c0_451, %c0_452], %1013 {strides = array<i32>} : memref<33x8x128xf32, #tpu.memory_space<vmem>>, vector<1x8x128xf32>,
    %c0_453 = arith.constant 0 : index
    %c0_454 = arith.constant 0 : index
    %c0_455 = arith.constant 0 : index
    %1014 = vector.load %arg15[%c0_453, %c0_454, %c0_455] : memref<33x8x128xf32, #tpu.memory_space<vmem>>, vector<1x8x128xf32>
    %1015 = vector.shape_cast %1014 : vector<1x8x128xf32> to vector<8x128xf32>
    %1016 = vector.shape_cast %1010 : vector<8x128xf32> to vector<1x8x128xf32>
    tpu.vector_store %arg15[%c0_453, %c0_454, %c0_455], %1016 {strides = array<i32>} : memref<33x8x128xf32, #tpu.memory_space<vmem>>, vector<1x8x128xf32>,
    %1017 = tpu.iota {dimensions = array<i32: 2>} : vector<33x8x128xi32>
    %c64_i32 = arith.constant 64 : i32
    %1018 = vector.broadcast %c64_i32 : i32 to vector<33x8x128xi32>
    %1019 = arith.cmpi slt, %1017, %1018 : vector<33x8x128xi32>
    %c0_456 = arith.constant 0 : index
    %c0_457 = arith.constant 0 : index
    %c0_458 = arith.constant 0 : index
    %1020 = vector.load %arg14[%c0_456, %c0_457, %c0_458] : memref<33x8x128xf32, #tpu.memory_space<vmem>>, vector<33x8x128xf32>
    %c0_459 = arith.constant 0 : index
    %c0_460 = arith.constant 0 : index
    %c0_461 = arith.constant 0 : index
    %1021 = vector.load %arg15[%c0_459, %c0_460, %c0_461] : memref<33x8x128xf32, #tpu.memory_space<vmem>>, vector<33x8x128xf32>
    %1022 = arith.select %1019, %1020, %1021 : vector<33x8x128xi1>, vector<33x8x128xf32>
    %1023 = vector.shape_cast %1022 : vector<33x8x128xf32> to vector<264x128xf32>
    %1024 = arith.truncf %1023 : vector<264x128xf32> to vector<264x128xbf16>
    %c0_462 = arith.constant 0 : index
    %c0_463 = arith.constant 0 : index
    %1025 = vector.load %arg7[%c0_462, %c0_463] : memref<128x128xbf16, #tpu.memory_space<vmem>>, vector<128x128xbf16>
    %cst_464 = arith.constant dense<0.000000e+00> : vector<264x128xf32>
    %1026 = tpu.matmul %1024, %1025, %cst_464 {dimension_numbers = #tpu.dot_dimension_numbers<[1], [0], [0], [1], [0, 0, 1, 1], [], []>} : vector<264x128xbf16>, vector<128x128xbf16>, vector<264x128xf32> -> vector<264x128xf32>
    %c0_465 = arith.constant 0 : index
    %c0_466 = arith.constant 0 : index
    %1027 = vector.load %arg8[%c0_465, %c0_466] : memref<1x128xf32, #tpu.memory_space<vmem>>, vector<1x128xf32>
    %1028 = vector.broadcast %1027 : vector<1x128xf32> to vector<264x128xf32>
    %1029 = arith.addf %1026, %1028 : vector<264x128xf32>
    %1030 = math.tanh %1029 : vector<264x128xf32>
    %c0_467 = arith.constant 0 : index
    %c0_468 = arith.constant 0 : index
    %1031 = vector.load %arg9[%c0_467, %c0_468] : memref<1x128xf32, #tpu.memory_space<vmem>>, vector<1x128xf32>
    %1032 = vector.broadcast %1031 : vector<1x128xf32> to vector<264x128xf32>
    %1033 = arith.mulf %1030, %1032 : vector<264x128xf32>
    %cst_469 = arith.constant dense<0.000000e+00> : vector<264xf32>
    %1034 = vector.multi_reduction <add>, %1033, %cst_469 [1] : vector<264x128xf32> to vector<264xf32>
    %1035 = vector.shape_cast %1034 : vector<264xf32> to vector<264x1xf32>
    %c0_470 = arith.constant 0 : index
    %c0_471 = arith.constant 0 : index
    %1036 = vector.load %arg10[%c0_470, %c0_471] : memref<1x1xf32, #tpu.memory_space<vmem>>, vector<1x1xf32>
    %1037 = vector.broadcast %1036 : vector<1x1xf32> to vector<264x1xf32>
    %1038 = arith.addf %1035, %1037 : vector<264x1xf32>
    %1039 = tpu.iota {dimensions = array<i32: 0>} : vector<264x1xi32>
    %c8_i32 = arith.constant 8 : i32
    %c0_i32 = arith.constant 0 : i32
    %1040 = arith.cmpi eq, %c8_i32, %c0_i32 : i32
    %c1_i32 = arith.constant 1 : i32
    %1041 = arith.select %1040, %c1_i32, %c8_i32 : i32
    %1042 = vector.broadcast %1041 : i32 to vector<264x1xi32>
    %1043 = arith.remsi %1039, %1042 : vector<264x1xi32>
    %c0_i32_472 = arith.constant 0 : i32
    %1044 = vector.broadcast %c0_i32_472 : i32 to vector<264x1xi32>
    %1045 = arith.cmpi ne, %1043, %1044 : vector<264x1xi32>
    %c0_i32_473 = arith.constant 0 : i32
    %1046 = vector.broadcast %c0_i32_473 : i32 to vector<264x1xi32>
    %1047 = arith.cmpi slt, %1043, %1046 : vector<264x1xi32>
    %c0_i32_474 = arith.constant 0 : i32
    %1048 = arith.cmpi slt, %1041, %c0_i32_474 : i32
    %1049 = vector.broadcast %1048 : i1 to vector<264x1xi1>
    %1050 = vector.broadcast %1049 : vector<264x1xi1> to vector<264x1xi1>
    %1051 = arith.xori %1047, %1050 : vector<264x1xi1>
    %1052 = arith.andi %1051, %1045 : vector<264x1xi1>
    %1053 = vector.broadcast %1041 : i32 to vector<264x1xi32>
    %1054 = arith.addi %1043, %1053 : vector<264x1xi32>
    %1055 = arith.select %1052, %1054, %1043 : vector<264x1xi1>, vector<264x1xi32>
    %cst_475 = arith.constant 0.000000e+00 : f32
    %1056 = vector.broadcast %cst_475 : f32 to vector<264x1xf32>
    %c0_i32_476 = arith.constant 0 : i32
    %1057 = vector.broadcast %c0_i32_476 : i32 to vector<264x1xi32>
    %1058 = arith.cmpi eq, %1055, %1057 : vector<264x1xi32>
    %cst_477 = arith.constant -1.000000e+30 : f32
    %1059 = vector.broadcast %cst_477 : f32 to vector<264x1xf32>
    %1060 = arith.select %1058, %1038, %1059 : vector<264x1xi1>, vector<264x1xf32>
    %1061 = vector.shape_cast %1060 : vector<264x1xf32> to vector<1x264x1xf32>
    %cst_478 = arith.constant dense<0xFF800000> : vector<1xf32>
    %1062 = vector.multi_reduction <maximumf>, %1061, %cst_478 [1, 2] : vector<1x264x1xf32> to vector<1xf32>
    %1063 = vector.shape_cast %1062 : vector<1xf32> to vector<1x1x1xf32>
    %1064 = vector.extract %1063[0, 0, 0] : f32 from vector<1x1x1xf32>
    %1065 = vector.broadcast %1064 : f32 to vector<1x1xf32>
    %1066 = vector.broadcast %1065 : vector<1x1xf32> to vector<264x1xf32>
    %1067 = arith.subf %1060, %1066 : vector<264x1xf32>
    %1068 = math.exp %1067 : vector<264x1xf32>
    %1069 = arith.extui %1058 : vector<264x1xi1> to vector<264x1xi32>
    %1070 = arith.sitofp %1069 : vector<264x1xi32> to vector<264x1xf32>
    %1071 = arith.mulf %1068, %1070 : vector<264x1xf32>
    %1072 = vector.shape_cast %1071 : vector<264x1xf32> to vector<1x264x1xf32>
    %cst_479 = arith.constant dense<0.000000e+00> : vector<1xf32>
    %1073 = vector.multi_reduction <add>, %1072, %cst_479 [1, 2] : vector<1x264x1xf32> to vector<1xf32>
    %1074 = vector.shape_cast %1073 : vector<1xf32> to vector<1x1x1xf32>
    %1075 = vector.extract %1074[0, 0, 0] : f32 from vector<1x1x1xf32>
    %1076 = vector.broadcast %1075 : f32 to vector<1x1xf32>
    %1077 = vector.broadcast %1076 : vector<1x1xf32> to vector<264x1xf32>
    %1078 = arith.divf %1071, %1077 : vector<264x1xf32>
    %1079 = arith.addf %1056, %1078 : vector<264x1xf32>
    %c1_i32_480 = arith.constant 1 : i32
    %1080 = vector.broadcast %c1_i32_480 : i32 to vector<264x1xi32>
    %1081 = arith.cmpi eq, %1055, %1080 : vector<264x1xi32>
    %cst_481 = arith.constant -1.000000e+30 : f32
    %1082 = vector.broadcast %cst_481 : f32 to vector<264x1xf32>
    %1083 = arith.select %1081, %1038, %1082 : vector<264x1xi1>, vector<264x1xf32>
    %1084 = vector.shape_cast %1083 : vector<264x1xf32> to vector<1x264x1xf32>
    %cst_482 = arith.constant dense<0xFF800000> : vector<1xf32>
    %1085 = vector.multi_reduction <maximumf>, %1084, %cst_482 [1, 2] : vector<1x264x1xf32> to vector<1xf32>
    %1086 = vector.shape_cast %1085 : vector<1xf32> to vector<1x1x1xf32>
    %1087 = vector.extract %1086[0, 0, 0] : f32 from vector<1x1x1xf32>
    %1088 = vector.broadcast %1087 : f32 to vector<1x1xf32>
    %1089 = vector.broadcast %1088 : vector<1x1xf32> to vector<264x1xf32>
    %1090 = arith.subf %1083, %1089 : vector<264x1xf32>
    %1091 = math.exp %1090 : vector<264x1xf32>
    %1092 = arith.extui %1081 : vector<264x1xi1> to vector<264x1xi32>
    %1093 = arith.sitofp %1092 : vector<264x1xi32> to vector<264x1xf32>
    %1094 = arith.mulf %1091, %1093 : vector<264x1xf32>
    %1095 = vector.shape_cast %1094 : vector<264x1xf32> to vector<1x264x1xf32>
    %cst_483 = arith.constant dense<0.000000e+00> : vector<1xf32>
    %1096 = vector.multi_reduction <add>, %1095, %cst_483 [1, 2] : vector<1x264x1xf32> to vector<1xf32>
    %1097 = vector.shape_cast %1096 : vector<1xf32> to vector<1x1x1xf32>
    %1098 = vector.extract %1097[0, 0, 0] : f32 from vector<1x1x1xf32>
    %1099 = vector.broadcast %1098 : f32 to vector<1x1xf32>
    %1100 = vector.broadcast %1099 : vector<1x1xf32> to vector<264x1xf32>
    %1101 = arith.divf %1094, %1100 : vector<264x1xf32>
    %1102 = arith.addf %1079, %1101 : vector<264x1xf32>
    %1103 = tpu.iota {dimensions = array<i32: 1>} : vector<2x264xi32>
    %c8_i32_484 = arith.constant 8 : i32
    %c0_i32_485 = arith.constant 0 : i32
    %1104 = arith.cmpi eq, %c8_i32_484, %c0_i32_485 : i32
    %c1_i32_486 = arith.constant 1 : i32
    %1105 = arith.select %1104, %c1_i32_486, %c8_i32_484 : i32
    %1106 = vector.broadcast %1105 : i32 to vector<2x264xi32>
    %1107 = arith.remsi %1103, %1106 : vector<2x264xi32>
    %c0_i32_487 = arith.constant 0 : i32
    %1108 = vector.broadcast %c0_i32_487 : i32 to vector<2x264xi32>
    %1109 = arith.cmpi ne, %1107, %1108 : vector<2x264xi32>
    %c0_i32_488 = arith.constant 0 : i32
    %1110 = vector.broadcast %c0_i32_488 : i32 to vector<2x264xi32>
    %1111 = arith.cmpi slt, %1107, %1110 : vector<2x264xi32>
    %c0_i32_489 = arith.constant 0 : i32
    %1112 = arith.cmpi slt, %1105, %c0_i32_489 : i32
    %1113 = vector.broadcast %1112 : i1 to vector<2x264xi1>
    %1114 = vector.broadcast %1113 : vector<2x264xi1> to vector<2x264xi1>
    %1115 = arith.xori %1111, %1114 : vector<2x264xi1>
    %1116 = arith.andi %1115, %1109 : vector<2x264xi1>
    %1117 = vector.broadcast %1105 : i32 to vector<2x264xi32>
    %1118 = arith.addi %1107, %1117 : vector<2x264xi32>
    %1119 = arith.select %1116, %1118, %1107 : vector<2x264xi1>, vector<2x264xi32>
    %1120 = tpu.iota {dimensions = array<i32: 0>} : vector<2x264xi32>
    %1121 = arith.cmpi eq, %1119, %1120 : vector<2x264xi32>
    %1122 = arith.extui %1121 : vector<2x264xi1> to vector<2x264xi32>
    %1123 = arith.sitofp %1122 : vector<2x264xi32> to vector<2x264xf32>
    %1124 = vector.broadcast %1102 : vector<264x1xf32> to vector<264x128xf32>
    %1125 = arith.mulf %1023, %1124 : vector<264x128xf32>
    %cst_490 = arith.constant dense<0.000000e+00> : vector<2x128xf32>
    %1126 = tpu.matmul %1123, %1125, %cst_490 {dimension_numbers = #tpu.dot_dimension_numbers<[1], [0], [0], [1], [0, 0, 1, 1], [], []>} : vector<2x264xf32>, vector<264x128xf32>, vector<2x128xf32> -> vector<2x128xf32>
    %c0_491 = arith.constant 0 : index
    %c0_492 = arith.constant 0 : index
    %1127 = vector.load %arg11[%c0_491, %c0_492] : memref<2x128xf32, #tpu.memory_space<vmem>>, vector<2x128xf32>
    tpu.vector_store %arg11[%c0_491, %c0_492], %1126 {strides = array<i32>} : memref<2x128xf32, #tpu.memory_space<vmem>>, vector<2x128xf32>,
    return
  }
}

</mosaic_0001>

<llo_original>
// kernel: context_aware_attention_forward.1
$region0: #{context_aware_attention_forward.1}
  #allocation0 [shape = 'u32[]', space=smem, size = 0x4, offset = 0x4, fixed_abs, tag = 'smem constant byte address 0x4 - core index']
  #allocation1 [shape = 'u32[144,128]{1,0:T(1,128)}', space=vmem, size = 0x12000, scoped, tag = 'internal scratch']
  #allocation2 [shape = 'f32[11,8,512]{2,1,0:T(8,128)}', space=vmem, size = 0x2c000, scoped, tag = 'scratch operand']
  #allocation3 [shape = 'f32[11,8,512]{2,1,0:T(8,128)}', space=vmem, size = 0x2c000, scoped, tag = 'scratch operand']
  #allocation4 [shape = 'f32[33,8,128]{2,1,0:T(8,128)}', space=vmem, size = 0x21000, scoped, tag = 'scratch operand']
  #allocation5 [shape = 'f32[33,8,128]{2,1,0:T(8,128)}', space=vmem, size = 0x21000, scoped, tag = 'scratch operand']
  #allocation6 [shape = 'f32[1,1]{1,0:T(1,128)S(1)}', space=vmem, size = 0x200, scoped, tag = 'scoped memory for context_aware_attention_forward.1']
  %s0 = inlined_call_operand.vmem [shape: f32[128,128], index: 0, kind: input, shape index: {}]
  %s1 = inlined_call_operand.vmem [shape: bf16[128,192], index: 1, kind: input, shape index: {}]
  %s2 = inlined_call_operand.vmem [shape: f32[1,64], index: 2, kind: input, shape index: {}]
  %s3 = inlined_call_operand.vmem [shape: bf16[64,512], index: 3, kind: input, shape index: {}]
  %s4 = inlined_call_operand.vmem [shape: bf16[64,512], index: 4, kind: input, shape index: {}]
  %s5 = inlined_call_operand.vmem [shape: f32[1,512], index: 5, kind: input, shape index: {}]
  %s6 = inlined_call_operand.vmem [shape: bf16[128,512], index: 6, kind: input, shape index: {}]
  %s7 = inlined_call_operand.vmem [shape: bf16[128,128], index: 7, kind: input, shape index: {}]
  %s8 = inlined_call_operand.vmem [shape: f32[1,128], index: 8, kind: input, shape index: {}]
  %s9 = inlined_call_operand.vmem [shape: f32[1,128], index: 9, kind: input, shape index: {}]
  %s10 = inlined_call_operand.<no memory space> [shape: f32[1,1], index: 10, kind: input, shape index: {}]
  %s11 = inlined_call_operand.hbm [shape: f32[2,128], index: 11, kind: output, shape index: {}]
  %s12 = sld [smem:[#allocation0]]
  $region54: #{context_aware_attention_forward.1} parent=0
    _
  %s14 = ssub.s32 1, %s12
  %s15 = scalar_select 0, %s14, %s12
  %v16 = vstv %s10
  %17 = vst [vmem:[#allocation6] sm:$0x1] %v16
  $region1: #{context_aware_attention_forward.1} parent=0
    #allocation7 [shape = 'u8[1024]{0}', space=vmem, size = 0x400, scoped, tag = 'output window, operand 0, single buffered']
    #allocation8 [shape = 's32[1]{0}', space=sflag, size = 0x4, scoped, tag = 'scoped memory for context_aware_attention_forward.1']
    %18 = vsyncpa [#allocation8], 0
    // Predicated region
    $region2: #{context_aware_attention_forward.1} parent=1 // pred_check
      _
    $region3: #{context_aware_attention_forward.1} parent=1 // pred_check_branch
      %20 = sbr.rel (0) target = $region5
    $region4: #{context_aware_attention_forward.1} parent=1 // pred_region
      _
    $region5: #{context_aware_attention_forward.1} parent=1 // pred_fallthru
      _
    // Predicated region
    $region6: #{context_aware_attention_forward.1} parent=1 // pred_check
      _
    $region7: #{context_aware_attention_forward.1} parent=1 // pred_check_branch
      %22 = sbr.rel (0) target = $region9
    $region8: #{context_aware_attention_forward.1} parent=1 // pred_region
      _
    $region9: #{context_aware_attention_forward.1} parent=1 // pred_fallthru
      _
    // Predicated region
    $region10: #{context_aware_attention_forward.1} parent=1 // pred_check
      _
    $region11: #{context_aware_attention_forward.1} parent=1 // pred_check_branch
      %24 = sbr.rel (0) target = $region13
    $region12: #{context_aware_attention_forward.1} parent=1 // pred_region
      _
    $region13: #{context_aware_attention_forward.1} parent=1 // pred_fallthru
      _
    // Predicated region
    $region14: #{context_aware_attention_forward.1} parent=1 // pred_check
      _
    $region15: #{context_aware_attention_forward.1} parent=1 // pred_check_branch
      %26 = sbr.rel (0) target = $region17
    $region16: #{context_aware_attention_forward.1} parent=1 // pred_region
      _
    $region17: #{context_aware_attention_forward.1} parent=1 // pred_fallthru
      _
    // Predicated region
    $region18: #{context_aware_attention_forward.1} parent=1 // pred_check
      _
    $region19: #{context_aware_attention_forward.1} parent=1 // pred_check_branch
      %28 = sbr.rel (0) target = $region21
    $region20: #{context_aware_attention_forward.1} parent=1 // pred_region
      _
    $region21: #{context_aware_attention_forward.1} parent=1 // pred_fallthru
      _
    // Predicated region
    $region22: #{context_aware_attention_forward.1} parent=1 // pred_check
      _
    $region23: #{context_aware_attention_forward.1} parent=1 // pred_check_branch
      %30 = sbr.rel (0) target = $region25
    $region24: #{context_aware_attention_forward.1} parent=1 // pred_region
      _
    $region25: #{context_aware_attention_forward.1} parent=1 // pred_fallthru
      _
    // Predicated region
    $region26: #{context_aware_attention_forward.1} parent=1 // pred_check
      _
    $region27: #{context_aware_attention_forward.1} parent=1 // pred_check_branch
      %32 = sbr.rel (0) target = $region29
    $region28: #{context_aware_attention_forward.1} parent=1 // pred_region
      _
    $region29: #{context_aware_attention_forward.1} parent=1 // pred_fallthru
      _
    // Predicated region
    $region30: #{context_aware_attention_forward.1} parent=1 // pred_check
      _
    $region31: #{context_aware_attention_forward.1} parent=1 // pred_check_branch
      %34 = sbr.rel (0) target = $region33
    $region32: #{context_aware_attention_forward.1} parent=1 // pred_region
      _
    $region33: #{context_aware_attention_forward.1} parent=1 // pred_fallthru
      _
    // Predicated region
    $region34: #{context_aware_attention_forward.1} parent=1 // pred_check
      _
    $region35: #{context_aware_attention_forward.1} parent=1 // pred_check_branch
      %36 = sbr.rel (0) target = $region37
    $region36: #{context_aware_attention_forward.1} parent=1 // pred_region
      _
    $region37: #{context_aware_attention_forward.1} parent=1 // pred_fallthru
      _
    // Predicated region
    $region38: #{context_aware_attention_forward.1} parent=1 // pred_check
      _
    $region39: #{context_aware_attention_forward.1} parent=1 // pred_check_branch
      %38 = sbr.rel (0) target = $region41
    $region40: #{context_aware_attention_forward.1} parent=1 // pred_region
      _
    $region41: #{context_aware_attention_forward.1} parent=1 // pred_fallthru
      _
    // Predicated region
    $region42: #{context_aware_attention_forward.1} parent=1 // pred_check
      _
    $region43: #{context_aware_attention_forward.1} parent=1 // pred_check_branch
      %40 = sbr.rel (0) target = $region45
    $region44: #{context_aware_attention_forward.1} parent=1 // pred_region
      _
    $region45: #{context_aware_attention_forward.1} parent=1 // pred_fallthru
      _
    %v42 = vld [vmem:[%s0] sm:$0xff]
    %v43 = vld [vmem:[%s0 + $0x8] sm:$0xff]
    %v44 = vld [vmem:[%s0 + $0x10] sm:$0xff]
    %v45 = vld [vmem:[%s0 + $0x18] sm:$0xff]
    %v46 = vld [vmem:[%s0 + $0x20] sm:$0xff]
    %v47 = vld [vmem:[%s0 + $0x28] sm:$0xff]
    %v48 = vld [vmem:[%s0 + $0x30] sm:$0xff]
    %v49 = vld [vmem:[%s0 + $0x38] sm:$0xff]
    %v50 = vld [vmem:[%s0 + $0x40] sm:$0xff]
    %v51 = vld [vmem:[%s0 + $0x48] sm:$0xff]
    %v52 = vld [vmem:[%s0 + $0x50] sm:$0xff]
    %v53 = vld [vmem:[%s0 + $0x58] sm:$0xff]
    %v54 = vld [vmem:[%s0 + $0x60] sm:$0xff]
    %v55 = vld [vmem:[%s0 + $0x68] sm:$0xff]
    %v56 = vld [vmem:[%s0 + $0x70] sm:$0xff]
    %v57 = vld [vmem:[%s0 + $0x78] sm:$0xff]
    %v58 = vpack.c.bf16 %v43, %v42
    %v59 = vpack.c.bf16 %v45, %v44
    %v60 = vpack.c.bf16 %v47, %v46
    %v61 = vpack.c.bf16 %v49, %v48
    %v62 = vpack.c.bf16 %v51, %v50
    %v63 = vpack.c.bf16 %v53, %v52
    %v64 = vpack.c.bf16 %v55, %v54
    %v65 = vpack.c.bf16 %v57, %v56
    %v66 = vld [vmem:[%s1] sm:$0xff]
    %v67 = vld [vmem:[%s1 + $0x8] sm:$0xff]
    %v68 = vld [vmem:[%s1 + $0x10] sm:$0xff]
    %v69 = vld [vmem:[%s1 + $0x18] sm:$0xff]
    %v70 = vld [vmem:[%s1 + $0x20] sm:$0xff]
    %v71 = vld [vmem:[%s1 + $0x28] sm:$0xff]
    %v72 = vld [vmem:[%s1 + $0x30] sm:$0xff]
    %v73 = vld [vmem:[%s1 + $0x38] sm:$0xff]
    %v74 = vld [vmem:[%s1 + $0x40] sm:$0xff]
    %v75 = vld [vmem:[%s1 + $0x48] sm:$0xff]
    %v76 = vld [vmem:[%s1 + $0x50] sm:$0xff]
    %v77 = vld [vmem:[%s1 + $0x58] sm:$0xff]
    %v78 = vld [vmem:[%s1 + $0x60] sm:$0xff]
    %v79 = vld [vmem:[%s1 + $0x68] sm:$0xff]
    %v80 = vld [vmem:[%s1 + $0x70] sm:$0xff]
    %v81 = vld [vmem:[%s1 + $0x78] sm:$0xff]
    %v98 = vunpack.c.l.b16 %v66
    %v99 = vunpack.c.h.b16 %v66
    %v100 = vunpack.c.l.b16 %v67
    %v101 = vunpack.c.h.b16 %v67
    %v102 = vunpack.c.l.b16 %v68
    %v103 = vunpack.c.h.b16 %v68
    %v104 = vunpack.c.l.b16 %v69
    %v105 = vunpack.c.h.b16 %v69
    %v106 = vunpack.c.l.b16 %v70
    %v107 = vunpack.c.h.b16 %v70
    %v108 = vunpack.c.l.b16 %v71
    %v109 = vunpack.c.h.b16 %v71
    %v110 = vunpack.c.l.b16 %v72
    %v111 = vunpack.c.h.b16 %v72
    %v112 = vunpack.c.l.b16 %v73
    %v113 = vunpack.c.h.b16 %v73
    %v114 = vunpack.c.l.b16 %v74
    %v115 = vunpack.c.h.b16 %v74
    %v116 = vunpack.c.l.b16 %v75
    %v117 = vunpack.c.h.b16 %v75
    %v118 = vunpack.c.l.b16 %v76
    %v119 = vunpack.c.h.b16 %v76
    %v120 = vunpack.c.l.b16 %v77
    %v121 = vunpack.c.h.b16 %v77
    %v122 = vunpack.c.l.b16 %v78
    %v123 = vunpack.c.h.b16 %v78
    %v124 = vunpack.c.l.b16 %v79
    %v125 = vunpack.c.h.b16 %v79
    %v126 = vunpack.c.l.b16 %v80
    %v127 = vunpack.c.h.b16 %v80
    %v128 = vunpack.c.l.b16 %v81
    %v129 = vunpack.c.h.b16 %v81
    %v130 = vpack.c.b16 %v100, %v98
    %v131 = vpack.c.b16 %v101, %v99
    %v132 = vpack.c.b16 %v104, %v102
    %v133 = vpack.c.b16 %v105, %v103
    %v134 = vpack.c.b16 %v108, %v106
    %v135 = vpack.c.b16 %v109, %v107
    %v136 = vpack.c.b16 %v112, %v110
    %v137 = vpack.c.b16 %v113, %v111
    %v138 = vpack.c.b16 %v116, %v114
    %v139 = vpack.c.b16 %v117, %v115
    %v140 = vpack.c.b16 %v120, %v118
    %v141 = vpack.c.b16 %v121, %v119
    %v142 = vpack.c.b16 %v124, %v122
    %v143 = vpack.c.b16 %v125, %v123
    %v144 = vpack.c.b16 %v128, %v126
    %v145 = vpack.c.b16 %v129, %v127
    %162 = vmatprep.subr.bf16.mxu0 %v131
    %163 = vmatpush1.bf16.msra.mxu0 %v130
    %164 = vmatprep.subr.bf16.mxu0 %v133
    %165 = vmatpush1.bf16.msra.mxu0 %v132
    %166 = vmatprep.subr.bf16.mxu0 %v135
    %167 = vmatpush1.bf16.msra.mxu0 %v134
    %168 = vmatprep.subr.bf16.mxu0 %v137
    %169 = vmatpush1.bf16.msra.mxu0 %v136
    %170 = vmatprep.subr.bf16.mxu0 %v139
    %171 = vmatpush1.bf16.msra.mxu0 %v138
    %172 = vmatprep.subr.bf16.mxu0 %v141
    %173 = vmatpush1.bf16.msra.mxu0 %v140
    %174 = vmatprep.subr.bf16.mxu0 %v143
    %175 = vmatpush1.bf16.msra.mxu0 %v142
    %176 = vmatprep.subr.bf16.mxu0 %v145
    %177 = vmatpush1.bf16.msra.mxu0 %v144
    %178 = vmatprep.subr.bf16.mxu0 0
    %179 = vmatpush1.bf16.msra.mxu0 0
    %180 = vmatprep.subr.bf16.mxu0 0
    %181 = vmatpush1.bf16.msra.mxu0 0
    %182 = vmatprep.subr.bf16.mxu0 0
    %183 = vmatpush1.bf16.msra.mxu0 0
    %184 = vmatprep.subr.bf16.mxu0 0
    %185 = vmatpush1.bf16.msra.mxu0 0
    %186 = vmatprep.subr.bf16.mxu0 0
    %187 = vmatpush1.bf16.msra.mxu0 0
    %188 = vmatprep.subr.bf16.mxu0 0
    %189 = vmatpush1.bf16.msra.mxu0 0
    %190 = vmatprep.subr.bf16.mxu0 0
    %191 = vmatpush1.bf16.msra.mxu0 0
    %192 = vmatprep.subr.bf16.mxu0 0
    %193 = vmatpush1.bf16.msra.mxu0 0
    %194 = vmatprep.mubr.bf16.mxu0 0
    %195 = vmatmul.mubr.bf16.gmra.mrb[0].mxu0 %v58
    %v196 = vpop.f32.mrb[0].mxu0
    %v197 = vadd.f32 0.0, %v196
    %v198 = vpop.f32.mrb[0].mxu0
    %v199 = vpop.f32.mrb[0].mxu0
    %v200 = vadd.f32 0.0, %v199
    %v201 = vpop.f32.mrb[0].mxu0
    %202 = vmatprep.mubr.bf16.mxu0 0
    %203 = vmatmul.mubr.bf16.gmra.mrb[0].mxu0 %v59
    %v204 = vpop.f32.mrb[0].mxu0
    %v205 = vadd.f32 0.0, %v204
    %v206 = vpop.f32.mrb[0].mxu0
    %v207 = vadd.f32 0.0, %v206
    %v208 = vpop.f32.mrb[0].mxu0
    %v209 = vadd.f32 0.0, %v208
    %v210 = vpop.f32.mrb[0].mxu0
    %v211 = vadd.f32 0.0, %v210
    %212 = vmatprep.mubr.bf16.mxu0 0
    %213 = vmatmul.mubr.bf16.gmra.mrb[0].mxu0 %v60
    %v214 = vpop.f32.mrb[0].mxu0
    %v215 = vadd.f32 0.0, %v214
    %v216 = vpop.f32.mrb[0].mxu0
    %v217 = vadd.f32 0.0, %v216
    %v218 = vpop.f32.mrb[0].mxu0
    %v219 = vadd.f32 0.0, %v218
    %v220 = vpop.f32.mrb[0].mxu0
    %v221 = vadd.f32 0.0, %v220
    %222 = vmatprep.mubr.bf16.mxu0 0
    %223 = vmatmul.mubr.bf16.gmra.mrb[0].mxu0 %v61
    %v224 = vpop.f32.mrb[0].mxu0
    %v225 = vadd.f32 0.0, %v224
    %v226 = vpop.f32.mrb[0].mxu0
    %v227 = vadd.f32 0.0, %v226
    %v228 = vpop.f32.mrb[0].mxu0
    %v229 = vadd.f32 0.0, %v228
    %v230 = vpop.f32.mrb[0].mxu0
    %v231 = vadd.f32 0.0, %v230
    %232 = vmatprep.mubr.bf16.mxu0 0
    %233 = vmatmul.mubr.bf16.gmra.mrb[0].mxu0 %v62
    %v234 = vpop.f32.mrb[0].mxu0
    %v235 = vadd.f32 0.0, %v234
    %v236 = vpop.f32.mrb[0].mxu0
    %v237 = vadd.f32 0.0, %v236
    %v238 = vpop.f32.mrb[0].mxu0
    %v239 = vadd.f32 0.0, %v238
    %v240 = vpop.f32.mrb[0].mxu0
    %v241 = vadd.f32 0.0, %v240
    %242 = vmatprep.mubr.bf16.mxu0 0
    %243 = vmatmul.mubr.bf16.gmra.mrb[0].mxu0 %v63
    %v244 = vpop.f32.mrb[0].mxu0
    %v245 = vadd.f32 0.0, %v244
    %v246 = vpop.f32.mrb[0].mxu0
    %v247 = vadd.f32 0.0, %v246
    %v248 = vpop.f32.mrb[0].mxu0
    %v249 = vadd.f32 0.0, %v248
    %v250 = vpop.f32.mrb[0].mxu0
    %v251 = vadd.f32 0.0, %v250
    %252 = vmatprep.mubr.bf16.mxu0 0
    %253 = vmatmul.mubr.bf16.gmra.mrb[0].mxu0 %v64
    %v254 = vpop.f32.mrb[0].mxu0
    %v255 = vadd.f32 0.0, %v254
    %v256 = vpop.f32.mrb[0].mxu0
    %v257 = vadd.f32 0.0, %v256
    %v258 = vpop.f32.mrb[0].mxu0
    %v259 = vadd.f32 0.0, %v258
    %v260 = vpop.f32.mrb[0].mxu0
    %v261 = vadd.f32 0.0, %v260
    %262 = vmatprep.mubr.bf16.mxu0 0
    %263 = vmatmul.mubr.bf16.gmra.mrb[0].mxu0 %v65
    %v264 = vpop.f32.mrb[0].mxu0
    %v265 = vadd.f32 0.0, %v264
    %v266 = vpop.f32.mrb[0].mxu0
    %v267 = vadd.f32 0.0, %v266
    %v268 = vpop.f32.mrb[0].mxu0
    %v269 = vpop.f32.mrb[0].mxu0
    %v270 = vadd.f32 0.0, %v269
    %271 = vdwg.mxu0
    %286 = vrot.lane.b32.xlu0 %v200, 64
    %v287 = vpop.permute.xlu0 %286
    %288 = vrot.lane.b32.xlu0 %v205, 64
    %v289 = vpop.permute.xlu0 %288
    %290 = vrot.lane.b32.xlu0 %v209, 64
    %v291 = vpop.permute.xlu0 %290
    %292 = vrot.lane.b32.xlu0 %v215, 64
    %v293 = vpop.permute.xlu0 %292
    %294 = vrot.lane.b32.xlu0 %v219, 64
    %v295 = vpop.permute.xlu0 %294
    %296 = vrot.lane.b32.xlu0 %v225, 64
    %v297 = vpop.permute.xlu0 %296
    %298 = vrot.lane.b32.xlu0 %v229, 64
    %v299 = vpop.permute.xlu0 %298
    %300 = vrot.lane.b32.xlu0 %v235, 64
    %v301 = vpop.permute.xlu0 %300
    %302 = vrot.lane.b32.xlu0 %v239, 64
    %v303 = vpop.permute.xlu0 %302
    %304 = vrot.lane.b32.xlu0 %v245, 64
    %v305 = vpop.permute.xlu0 %304
    %306 = vrot.lane.b32.xlu0 %v249, 64
    %v307 = vpop.permute.xlu0 %306
    %308 = vrot.lane.b32.xlu0 %v255, 64
    %v309 = vpop.permute.xlu0 %308
    %310 = vrot.lane.b32.xlu0 %v259, 64
    %v311 = vpop.permute.xlu0 %310
    %312 = vrot.lane.b32.xlu0 %v265, 64
    %v313 = vpop.permute.xlu0 %312
    %v328 = vadd.f32 %v197, %v287
    %v329 = vadd.f32 %v200, %v289
    %v330 = vadd.f32 %v205, %v291
    %v331 = vadd.f32 %v209, %v293
    %v332 = vadd.f32 %v215, %v295
    %v333 = vadd.f32 %v219, %v297
    %v334 = vadd.f32 %v225, %v299
    %v335 = vadd.f32 %v229, %v301
    %v336 = vadd.f32 %v235, %v303
    %v337 = vadd.f32 %v239, %v305
    %v338 = vadd.f32 %v245, %v307
    %v339 = vadd.f32 %v249, %v309
    %v340 = vadd.f32 %v255, %v311
    %v341 = vadd.f32 %v259, %v313
    %v342 = vadd.f32 %v328, %v207
    %v343 = vadd.f32 %v329, %v211
    %v344 = vadd.f32 %v330, %v217
    %v345 = vadd.f32 %v331, %v221
    %v346 = vadd.f32 %v332, %v227
    %v347 = vadd.f32 %v333, %v231
    %v348 = vadd.f32 %v334, %v237
    %v349 = vadd.f32 %v335, %v241
    %v350 = vadd.f32 %v336, %v247
    %v351 = vadd.f32 %v337, %v251
    %v352 = vadd.f32 %v338, %v257
    %v353 = vadd.f32 %v339, %v261
    %v354 = vadd.f32 %v340, %v267
    %v355 = vadd.f32 %v341, %v270
    %v356 = vld [vmem:[%s2] sm:$0x1]
    %v358 = vlaneseq
    %v359 = vshrl.u32 %v358, 7
    %v360 = vsub.s32 0, %v359
    %v361 = vrot.slane %v356, %v360
    %v363 = vadd.f32 %v342, %v361
    %v364 = vadd.f32 %v343, %v361
    %v365 = vadd.f32 %v344, %v361
    %v366 = vadd.f32 %v345, %v361
    %v367 = vadd.f32 %v346, %v361
    %v368 = vadd.f32 %v347, %v361
    %v369 = vadd.f32 %v348, %v361
    %v370 = vadd.f32 %v349, %v361
    %v371 = vadd.f32 %v350, %v361
    %v372 = vadd.f32 %v351, %v361
    %v373 = vadd.f32 %v352, %v361
    %v374 = vadd.f32 %v353, %v361
    %v375 = vadd.f32 %v354, %v361
    %v376 = vadd.f32 %v355, %v361
    %v377 = vmax.f32 %v363, 0.0
    %v378 = vmax.f32 %v364, 0.0
    %v379 = vmax.f32 %v365, 0.0
    %v380 = vmax.f32 %v366, 0.0
    %v381 = vmax.f32 %v367, 0.0
    %v382 = vmax.f32 %v368, 0.0
    %v383 = vmax.f32 %v369, 0.0
    %v384 = vmax.f32 %v370, 0.0
    %v385 = vmax.f32 %v371, 0.0
    %v386 = vmax.f32 %v372, 0.0
    %v387 = vmax.f32 %v373, 0.0
    %v388 = vmax.f32 %v374, 0.0
    %v389 = vmax.f32 %v375, 0.0
    %v390 = vmax.f32 %v376, 0.0
    %v391 = vmax.f32 %v377, %v378
    %v392 = vmax.f32 %v378, %v379
    %v393 = vmax.f32 %v379, %v380
    %v394 = vmax.f32 %v380, %v381
    %v395 = vmax.f32 %v381, %v382
    %v396 = vmax.f32 %v382, %v383
    %v397 = vmax.f32 %v383, %v384
    %v398 = vmax.f32 %v384, %v385
    %v399 = vmax.f32 %v385, %v386
    %v400 = vmax.f32 %v386, %v387
    %v401 = vmax.f32 %v387, %v388
    %v402 = vmax.f32 %v391, %v379
    %v403 = vmax.f32 %v392, %v380
    %v404 = vmax.f32 %v393, %v381
    %v405 = vmax.f32 %v394, %v382
    %v406 = vmax.f32 %v395, %v383
    %v407 = vmax.f32 %v396, %v384
    %v408 = vmax.f32 %v397, %v385
    %v409 = vmax.f32 %v398, %v386
    %v410 = vmax.f32 %v399, %v387
    %v411 = vmax.f32 %v400, %v388
    %v412 = vmax.f32 %v401, %v389
    %v413 = vmax.f32 %v402, %v380
    %v414 = vmax.f32 %v403, %v381
    %v415 = vmax.f32 %v404, %v382
    %v416 = vmax.f32 %v405, %v383
    %v417 = vmax.f32 %v406, %v384
    %v418 = vmax.f32 %v407, %v385
    %v419 = vmax.f32 %v408, %v386
    %v420 = vmax.f32 %v409, %v387
    %v421 = vmax.f32 %v410, %v388
    %v422 = vmax.f32 %v411, %v389
    %v423 = vmax.f32 %v412, %v390
    %v424 = vpack.c.bf16 %v414, %v413
    %v425 = vpack.c.bf16 %v416, %v415
    %v426 = vpack.c.bf16 %v418, %v417
    %v427 = vpack.c.bf16 %v420, %v419
    %v428 = vpack.c.bf16 %v422, %v421
    %v429 = vpack.c.bf16 %v423, %v423
    %v430 = vld [vmem:[%s3] sm:$0xff]
    %v431 = vld [vmem:[%s3 + $0x8] sm:$0xff]
    %v432 = vld [vmem:[%s3 + $0x10] sm:$0xff]
    %v433 = vld [vmem:[%s3 + $0x18] sm:$0xff]
    %v434 = vld [vmem:[%s3 + $0x20] sm:$0xff]
    %v435 = vld [vmem:[%s3 + $0x28] sm:$0xff]
    %v436 = vld [vmem:[%s3 + $0x30] sm:$0xff]
    %v437 = vld [vmem:[%s3 + $0x38] sm:$0xff]
    %v438 = vld [vmem:[%s3 + $0x40] sm:$0xff]
    %v439 = vld [vmem:[%s3 + $0x48] sm:$0xff]
    %v440 = vld [vmem:[%s3 + $0x50] sm:$0xff]
    %v441 = vld [vmem:[%s3 + $0x58] sm:$0xff]
    %v442 = vld [vmem:[%s3 + $0x60] sm:$0xff]
    %v443 = vld [vmem:[%s3 + $0x68] sm:$0xff]
    %v444 = vld [vmem:[%s3 + $0x70] sm:$0xff]
    %v445 = vld [vmem:[%s3 + $0x78] sm:$0xff]
    %v446 = vld [vmem:[%s5] sm:$0xf]
    %v448 = vlaneseq
    %v449 = vshrl.u32 %v448, 7
    %v450 = vsub.s32 0, %v449
    %v451 = vrot.slane %v446, %v450
    %v452 = vlaneseq
    %v453 = vshrl.u32 %v452, 7
    %v454 = vsub.s32 1, %v453
    %v455 = vrot.slane %v446, %v454
    %v456 = vlaneseq
    %v457 = vshrl.u32 %v456, 7
    %v458 = vsub.s32 2, %v457
    %v459 = vrot.slane %v446, %v458
    %v460 = vlaneseq
    %v461 = vshrl.u32 %v460, 7
    %v462 = vsub.s32 3, %v461
    %v463 = vrot.slane %v446, %v462
    %v484 = vunpack.c.l.b16 %v430
    %v485 = vunpack.c.h.b16 %v430
    %v486 = vunpack.c.l.b16 %v431
    %v487 = vunpack.c.h.b16 %v431
    %v488 = vunpack.c.l.b16 %v432
    %v489 = vunpack.c.h.b16 %v432
    %v490 = vunpack.c.l.b16 %v433
    %v491 = vunpack.c.h.b16 %v433
    %v492 = vunpack.c.l.b16 %v434
    %v493 = vunpack.c.h.b16 %v434
    %v494 = vunpack.c.l.b16 %v435
    %v495 = vunpack.c.h.b16 %v435
    %v496 = vunpack.c.l.b16 %v436
    %v497 = vunpack.c.h.b16 %v436
    %v498 = vunpack.c.l.b16 %v437
    %v499 = vunpack.c.h.b16 %v437
    %v500 = vunpack.c.l.b16 %v438
    %v501 = vunpack.c.h.b16 %v438
    %v502 = vunpack.c.l.b16 %v439
    %v503 = vunpack.c.h.b16 %v439
    %v504 = vunpack.c.l.b16 %v440
    %v505 = vunpack.c.h.b16 %v440
    %v506 = vunpack.c.l.b16 %v441
    %v507 = vunpack.c.h.b16 %v441
    %v508 = vunpack.c.l.b16 %v442
    %v509 = vunpack.c.h.b16 %v442
    %v510 = vunpack.c.l.b16 %v443
    %v511 = vunpack.c.h.b16 %v443
    %v512 = vunpack.c.l.b16 %v444
    %v513 = vunpack.c.h.b16 %v444
    %v514 = vunpack.c.l.b16 %v445
    %v515 = vunpack.c.h.b16 %v445
    %v516 = vpack.c.b16 %v488, %v484
    %v517 = vpack.c.b16 %v489, %v485
    %v518 = vpack.c.b16 %v490, %v486
    %v519 = vpack.c.b16 %v491, %v487
    %v520 = vpack.c.b16 %v496, %v492
    %v521 = vpack.c.b16 %v497, %v493
    %v522 = vpack.c.b16 %v498, %v494
    %v523 = vpack.c.b16 %v499, %v495
    %v524 = vpack.c.b16 %v504, %v500
    %v525 = vpack.c.b16 %v505, %v501
    %v526 = vpack.c.b16 %v506, %v502
    %v527 = vpack.c.b16 %v507, %v503
    %v528 = vpack.c.b16 %v512, %v508
    %v529 = vpack.c.b16 %v513, %v509
    %v530 = vpack.c.b16 %v514, %v510
    %v531 = vpack.c.b16 %v515, %v511
    %vm548 = vcmask 523264
    %v550 = vsel %vm548, %v424, 0
    %v553 = vsel %vm548, %v425, 0
    %v556 = vsel %vm548, %v426, 0
    %v559 = vsel %vm548, %v427, 0
    %v562 = vsel %vm548, %v428, 0
    %v565 = vsel %vm548, %v429, 0
    %567 = vmatprep.subr.bf16.mxu0 %v517
    %568 = vmatpush1.bf16.msra.mxu0 %v516
    %569 = vmatprep.subr.bf16.mxu0 %v521
    %570 = vmatpush1.bf16.msra.mxu0 %v520
    %571 = vmatprep.subr.bf16.mxu0 %v525
    %572 = vmatpush1.bf16.msra.mxu0 %v524
    %573 = vmatprep.subr.bf16.mxu0 %v529
    %574 = vmatpush1.bf16.msra.mxu0 %v528
    %575 = vmatprep.subr.bf16.mxu0 0
    %576 = vmatpush1.bf16.msra.mxu0 0
    %577 = vmatprep.subr.bf16.mxu0 0
    %578 = vmatpush1.bf16.msra.mxu0 0
    %579 = vmatprep.subr.bf16.mxu0 0
    %580 = vmatpush1.bf16.msra.mxu0 0
    %581 = vmatprep.subr.bf16.mxu0 0
    %582 = vmatpush1.bf16.msra.mxu0 0
    %583 = vmatprep.subr.bf16.mxu0 0
    %584 = vmatpush1.bf16.msra.mxu0 0
    %585 = vmatprep.subr.bf16.mxu0 0
    %586 = vmatpush1.bf16.msra.mxu0 0
    %587 = vmatprep.subr.bf16.mxu0 0
    %588 = vmatpush1.bf16.msra.mxu0 0
    %589 = vmatprep.subr.bf16.mxu0 0
    %590 = vmatpush1.bf16.msra.mxu0 0
    %591 = vmatprep.subr.bf16.mxu0 0
    %592 = vmatpush1.bf16.msra.mxu0 0
    %593 = vmatprep.subr.bf16.mxu0 0
    %594 = vmatpush1.bf16.msra.mxu0 0
    %595 = vmatprep.subr.bf16.mxu0 0
    %596 = vmatpush1.bf16.msra.mxu0 0
    %597 = vmatprep.subr.bf16.mxu0 0
    %598 = vmatpush1.bf16.msra.mxu0 0
    %599 = vmatprep.mubr.bf16.mxu0 0
    %600 = vmatmul.mubr.bf16.gmra.mrb[0].mxu0 %v550
    %v601 = vpop.f32.mrb[0].mxu0
    %v602 = vadd.f32 %v451, %v601
    %v603 = vpop.f32.mrb[0].mxu0
    %v604 = vadd.f32 %v455, %v603
    %v605 = vpop.f32.mrb[0].mxu0
    %v606 = vadd.f32 %v451, %v605
    %v607 = vpop.f32.mrb[0].mxu0
    %v608 = vadd.f32 %v455, %v607
    %609 = vmatprep.mubr.bf16.mxu0 0
    %610 = vmatmul.mubr.bf16.gmra.mrb[0].mxu0 %v553
    %v611 = vpop.f32.mrb[0].mxu0
    %v612 = vadd.f32 %v451, %v611
    %v613 = vpop.f32.mrb[0].mxu0
    %v614 = vadd.f32 %v455, %v613
    %v615 = vpop.f32.mrb[0].mxu0
    %v616 = vadd.f32 %v451, %v615
    %v617 = vpop.f32.mrb[0].mxu0
    %v618 = vadd.f32 %v455, %v617
    %619 = vmatprep.mubr.bf16.mxu0 0
    %620 = vmatmul.mubr.bf16.gmra.mrb[0].mxu0 %v556
    %v621 = vpop.f32.mrb[0].mxu0
    %v622 = vadd.f32 %v451, %v621
    %v623 = vpop.f32.mrb[0].mxu0
    %v624 = vadd.f32 %v455, %v623
    %v625 = vpop.f32.mrb[0].mxu0
    %v626 = vadd.f32 %v451, %v625
    %v627 = vpop.f32.mrb[0].mxu0
    %v628 = vadd.f32 %v455, %v627
    %629 = vmatprep.mubr.bf16.mxu0 0
    %630 = vmatmul.mubr.bf16.gmra.mrb[0].mxu0 %v559
    %v631 = vpop.f32.mrb[0].mxu0
    %v632 = vadd.f32 %v451, %v631
    %v633 = vpop.f32.mrb[0].mxu0
    %v634 = vadd.f32 %v455, %v633
    %v635 = vpop.f32.mrb[0].mxu0
    %v636 = vadd.f32 %v451, %v635
    %v637 = vpop.f32.mrb[0].mxu0
    %v638 = vadd.f32 %v455, %v637
    %639 = vmatprep.mubr.bf16.mxu0 0
    %640 = vmatmul.mubr.bf16.gmra.mrb[0].mxu0 %v562
    %v641 = vpop.f32.mrb[0].mxu0
    %v642 = vadd.f32 %v451, %v641
    %v643 = vpop.f32.mrb[0].mxu0
    %v644 = vadd.f32 %v455, %v643
    %v645 = vpop.f32.mrb[0].mxu0
    %v646 = vadd.f32 %v451, %v645
    %v647 = vpop.f32.mrb[0].mxu0
    %v648 = vadd.f32 %v455, %v647
    %649 = vmatprep.mubr.bf16.mxu0 0
    %650 = vmatmul.mubr.bf16.gmra.mrb[0].mxu0 %v565
    %v651 = vpop.f32.mrb[0].mxu0
    %v652 = vadd.f32 %v451, %v651
    %v653 = vpop.f32.mrb[0].mxu0
    %v654 = vadd.f32 %v455, %v653
    %v655 = vpop.f32.mrb[0].mxu0
    %v656 = vpop.f32.mrb[0].mxu0
    %657 = vdwg.mxu0
    %658 = vmatprep.subr.bf16.mxu0 %v519
    %659 = vmatpush1.bf16.msra.mxu0 %v518
    %660 = vmatprep.subr.bf16.mxu0 %v523
    %661 = vmatpush1.bf16.msra.mxu0 %v522
    %662 = vmatprep.subr.bf16.mxu0 %v527
    %663 = vmatpush1.bf16.msra.mxu0 %v526
    %664 = vmatprep.subr.bf16.mxu0 %v531
    %665 = vmatpush1.bf16.msra.mxu0 %v530
    %666 = vmatprep.subr.bf16.mxu0 0
    %667 = vmatpush1.bf16.msra.mxu0 0
    %668 = vmatprep.subr.bf16.mxu0 0
    %669 = vmatpush1.bf16.msra.mxu0 0
    %670 = vmatprep.subr.bf16.mxu0 0
    %671 = vmatpush1.bf16.msra.mxu0 0
    %672 = vmatprep.subr.bf16.mxu0 0
    %673 = vmatpush1.bf16.msra.mxu0 0
    %674 = vmatprep.subr.bf16.mxu0 0
    %675 = vmatpush1.bf16.msra.mxu0 0
    %676 = vmatprep.subr.bf16.mxu0 0
    %677 = vmatpush1.bf16.msra.mxu0 0
    %678 = vmatprep.subr.bf16.mxu0 0
    %679 = vmatpush1.bf16.msra.mxu0 0
    %680 = vmatprep.subr.bf16.mxu0 0
    %681 = vmatpush1.bf16.msra.mxu0 0
    %682 = vmatprep.subr.bf16.mxu0 0
    %683 = vmatpush1.bf16.msra.mxu0 0
    %684 = vmatprep.subr.bf16.mxu0 0
    %685 = vmatpush1.bf16.msra.mxu0 0
    %686 = vmatprep.subr.bf16.mxu0 0
    %687 = vmatpush1.bf16.msra.mxu0 0
    %688 = vmatprep.subr.bf16.mxu0 0
    %689 = vmatpush1.bf16.msra.mxu0 0
    %690 = vmatprep.mubr.bf16.mxu0 0
    %691 = vmatmul.mubr.bf16.gmra.mrb[0].mxu0 %v550
    %v692 = vpop.f32.mrb[0].mxu0
    %v693 = vadd.f32 %v459, %v692
    %v694 = vpop.f32.mrb[0].mxu0
    %v695 = vadd.f32 %v463, %v694
    %v696 = vpop.f32.mrb[0].mxu0
    %v697 = vadd.f32 %v459, %v696
    %v698 = vpop.f32.mrb[0].mxu0
    %v699 = vadd.f32 %v463, %v698
    %700 = vmatprep.mubr.bf16.mxu0 0
    %701 = vmatmul.mubr.bf16.gmra.mrb[0].mxu0 %v553
    %v702 = vpop.f32.mrb[0].mxu0
    %v703 = vadd.f32 %v459, %v702
    %v704 = vpop.f32.mrb[0].mxu0
    %v705 = vadd.f32 %v463, %v704
    %v706 = vpop.f32.mrb[0].mxu0
    %v707 = vadd.f32 %v459, %v706
    %v708 = vpop.f32.mrb[0].mxu0
    %v709 = vadd.f32 %v463, %v708
    %710 = vmatprep.mubr.bf16.mxu0 0
    %711 = vmatmul.mubr.bf16.gmra.mrb[0].mxu0 %v556
    %v712 = vpop.f32.mrb[0].mxu0
    %v713 = vadd.f32 %v459, %v712
    %v714 = vpop.f32.mrb[0].mxu0
    %v715 = vadd.f32 %v463, %v714
    %v716 = vpop.f32.mrb[0].mxu0
    %v717 = vadd.f32 %v459, %v716
    %v718 = vpop.f32.mrb[0].mxu0
    %v719 = vadd.f32 %v463, %v718
    %720 = vmatprep.mubr.bf16.mxu0 0
    %721 = vmatmul.mubr.bf16.gmra.mrb[0].mxu0 %v559
    %v722 = vpop.f32.mrb[0].mxu0
    %v723 = vadd.f32 %v459, %v722
    %v724 = vpop.f32.mrb[0].mxu0
    %v725 = vadd.f32 %v463, %v724
    %v726 = vpop.f32.mrb[0].mxu0
    %v727 = vadd.f32 %v459, %v726
    %v728 = vpop.f32.mrb[0].mxu0
    %v729 = vadd.f32 %v463, %v728
    %730 = vmatprep.mubr.bf16.mxu0 0
    %731 = vmatmul.mubr.bf16.gmra.mrb[0].mxu0 %v562
    %v732 = vpop.f32.mrb[0].mxu0
    %v733 = vadd.f32 %v459, %v732
    %v734 = vpop.f32.mrb[0].mxu0
    %v735 = vadd.f32 %v463, %v734
    %v736 = vpop.f32.mrb[0].mxu0
    %v737 = vadd.f32 %v459, %v736
    %v738 = vpop.f32.mrb[0].mxu0
    %v739 = vadd.f32 %v463, %v738
    %740 = vmatprep.mubr.bf16.mxu0 0
    %741 = vmatmul.mubr.bf16.gmra.mrb[0].mxu0 %v565
    %v742 = vpop.f32.mrb[0].mxu0
    %v743 = vadd.f32 %v459, %v742
    %v744 = vpop.f32.mrb[0].mxu0
    %v745 = vadd.f32 %v463, %v744
    %v746 = vpop.f32.mrb[0].mxu0
    %v747 = vpop.f32.mrb[0].mxu0
    %748 = vdwg.mxu0
    %749 = vst [vmem:[#allocation2] sm:$0xff] %v602
    %750 = vst [vmem:[#allocation2 + $0x8] sm:$0xff] %v604
    %751 = vst [vmem:[#allocation2 + $0x10] sm:$0xff] %v693
    %752 = vst [vmem:[#allocation2 + $0x18] sm:$0xff] %v695
    %753 = vst [vmem:[#allocation2 + $0x20] sm:$0xff] %v606
    %754 = vst [vmem:[#allocation2 + $0x28] sm:$0xff] %v608
    %755 = vst [vmem:[#allocation2 + $0x30] sm:$0xff] %v697
    %756 = vst [vmem:[#allocation2 + $0x38] sm:$0xff] %v699
    %757 = vst [vmem:[#allocation2 + $0x40] sm:$0xff] %v612
    %758 = vst [vmem:[#allocation2 + $0x48] sm:$0xff] %v614
    %759 = vst [vmem:[#allocation2 + $0x50] sm:$0xff] %v703
    %760 = vst [vmem:[#allocation2 + $0x58] sm:$0xff] %v705
    %761 = vst [vmem:[#allocation2 + $0x60] sm:$0xff] %v616
    %762 = vst [vmem:[#allocation2 + $0x68] sm:$0xff] %v618
    %763 = vst [vmem:[#allocation2 + $0x70] sm:$0xff] %v707
    %764 = vst [vmem:[#allocation2 + $0x78] sm:$0xff] %v709
    %765 = vst [vmem:[#allocation2 + $0x80] sm:$0xff] %v622
    %766 = vst [vmem:[#allocation2 + $0x88] sm:$0xff] %v624
    %767 = vst [vmem:[#allocation2 + $0x90] sm:$0xff] %v713
    %768 = vst [vmem:[#allocation2 + $0x98] sm:$0xff] %v715
    %769 = vst [vmem:[#allocation2 + $0xa0] sm:$0xff] %v626
    %770 = vst [vmem:[#allocation2 + $0xa8] sm:$0xff] %v628
    %771 = vst [vmem:[#allocation2 + $0xb0] sm:$0xff] %v717
    %772 = vst [vmem:[#allocation2 + $0xb8] sm:$0xff] %v719
    %773 = vst [vmem:[#allocation2 + $0xc0] sm:$0xff] %v632
    %774 = vst [vmem:[#allocation2 + $0xc8] sm:$0xff] %v634
    %775 = vst [vmem:[#allocation2 + $0xd0] sm:$0xff] %v723
    %776 = vst [vmem:[#allocation2 + $0xd8] sm:$0xff] %v725
    %777 = vst [vmem:[#allocation2 + $0xe0] sm:$0xff] %v636
    %778 = vst [vmem:[#allocation2 + $0xe8] sm:$0xff] %v638
    %779 = vst [vmem:[#allocation2 + $0xf0] sm:$0xff] %v727
    %780 = vst [vmem:[#allocation2 + $0xf8] sm:$0xff] %v729
    %781 = vst [vmem:[#allocation2 + $0x100] sm:$0xff] %v642
    %782 = vst [vmem:[#allocation2 + $0x108] sm:$0xff] %v644
    %783 = vst [vmem:[#allocation2 + $0x110] sm:$0xff] %v733
    %784 = vst [vmem:[#allocation2 + $0x118] sm:$0xff] %v735
    %785 = vst [vmem:[#allocation2 + $0x120] sm:$0xff] %v646
    %786 = vst [vmem:[#allocation2 + $0x128] sm:$0xff] %v648
    %787 = vst [vmem:[#allocation2 + $0x130] sm:$0xff] %v737
    %788 = vst [vmem:[#allocation2 + $0x138] sm:$0xff] %v739
    %789 = vst [vmem:[#allocation2 + $0x140] sm:$0xff] %v652
    %790 = vst [vmem:[#allocation2 + $0x148] sm:$0xff] %v654
    %791 = vst [vmem:[#allocation2 + $0x150] sm:$0xff] %v743
    %792 = vst [vmem:[#allocation2 + $0x158] sm:$0xff] %v745
    %v793 = vld [vmem:[%s4] sm:$0xff]
    %v794 = vld [vmem:[%s4 + $0x8] sm:$0xff]
    %v795 = vld [vmem:[%s4 + $0x10] sm:$0xff]
    %v796 = vld [vmem:[%s4 + $0x18] sm:$0xff]
    %v797 = vld [vmem:[%s4 + $0x20] sm:$0xff]
    %v798 = vld [vmem:[%s4 + $0x28] sm:$0xff]
    %v799 = vld [vmem:[%s4 + $0x30] sm:$0xff]
    %v800 = vld [vmem:[%s4 + $0x38] sm:$0xff]
    %v801 = vld [vmem:[%s4 + $0x40] sm:$0xff]
    %v802 = vld [vmem:[%s4 + $0x48] sm:$0xff]
    %v803 = vld [vmem:[%s4 + $0x50] sm:$0xff]
    %v804 = vld [vmem:[%s4 + $0x58] sm:$0xff]
    %v805 = vld [vmem:[%s4 + $0x60] sm:$0xff]
    %v806 = vld [vmem:[%s4 + $0x68] sm:$0xff]
    %v807 = vld [vmem:[%s4 + $0x70] sm:$0xff]
    %v808 = vld [vmem:[%s4 + $0x78] sm:$0xff]
    %v825 = vunpack.c.l.b16 %v793
    %v826 = vunpack.c.h.b16 %v793
    %v827 = vunpack.c.l.b16 %v794
    %v828 = vunpack.c.h.b16 %v794
    %v829 = vunpack.c.l.b16 %v795
    %v830 = vunpack.c.h.b16 %v795
    %v831 = vunpack.c.l.b16 %v796
    %v832 = vunpack.c.h.b16 %v796
    %v833 = vunpack.c.l.b16 %v797
    %v834 = vunpack.c.h.b16 %v797
    %v835 = vunpack.c.l.b16 %v798
    %v836 = vunpack.c.h.b16 %v798
    %v837 = vunpack.c.l.b16 %v799
    %v838 = vunpack.c.h.b16 %v799
    %v839 = vunpack.c.l.b16 %v800
    %v840 = vunpack.c.h.b16 %v800
    %v841 = vunpack.c.l.b16 %v801
    %v842 = vunpack.c.h.b16 %v801
    %v843 = vunpack.c.l.b16 %v802
    %v844 = vunpack.c.h.b16 %v802
    %v845 = vunpack.c.l.b16 %v803
    %v846 = vunpack.c.h.b16 %v803
    %v847 = vunpack.c.l.b16 %v804
    %v848 = vunpack.c.h.b16 %v804
    %v849 = vunpack.c.l.b16 %v805
    %v850 = vunpack.c.h.b16 %v805
    %v851 = vunpack.c.l.b16 %v806
    %v852 = vunpack.c.h.b16 %v806
    %v853 = vunpack.c.l.b16 %v807
    %v854 = vunpack.c.h.b16 %v807
    %v855 = vunpack.c.l.b16 %v808
    %v856 = vunpack.c.h.b16 %v808
    %v857 = vpack.c.b16 %v829, %v825
    %v858 = vpack.c.b16 %v830, %v826
    %v859 = vpack.c.b16 %v831, %v827
    %v860 = vpack.c.b16 %v832, %v828
    %v861 = vpack.c.b16 %v837, %v833
    %v862 = vpack.c.b16 %v838, %v834
    %v863 = vpack.c.b16 %v839, %v835
    %v864 = vpack.c.b16 %v840, %v836
    %v865 = vpack.c.b16 %v845, %v841
    %v866 = vpack.c.b16 %v846, %v842
    %v867 = vpack.c.b16 %v847, %v843
    %v868 = vpack.c.b16 %v848, %v844
    %v869 = vpack.c.b16 %v853, %v849
    %v870 = vpack.c.b16 %v854, %v850
    %v871 = vpack.c.b16 %v855, %v851
    %v872 = vpack.c.b16 %v856, %v852
    %889 = vmatprep.subr.bf16.mxu0 %v858
    %890 = vmatpush1.bf16.msra.mxu0 %v857
    %891 = vmatprep.subr.bf16.mxu0 %v862
    %892 = vmatpush1.bf16.msra.mxu0 %v861
    %893 = vmatprep.subr.bf16.mxu0 %v866
    %894 = vmatpush1.bf16.msra.mxu0 %v865
    %895 = vmatprep.subr.bf16.mxu0 %v870
    %896 = vmatpush1.bf16.msra.mxu0 %v869
    %897 = vmatprep.subr.bf16.mxu0 0
    %898 = vmatpush1.bf16.msra.mxu0 0
    %899 = vmatprep.subr.bf16.mxu0 0
    %900 = vmatpush1.bf16.msra.mxu0 0
    %901 = vmatprep.subr.bf16.mxu0 0
    %902 = vmatpush1.bf16.msra.mxu0 0
    %903 = vmatprep.subr.bf16.mxu0 0
    %904 = vmatpush1.bf16.msra.mxu0 0
    %905 = vmatprep.subr.bf16.mxu0 0
    %906 = vmatpush1.bf16.msra.mxu0 0
    %907 = vmatprep.subr.bf16.mxu0 0
    %908 = vmatpush1.bf16.msra.mxu0 0
    %909 = vmatprep.subr.bf16.mxu0 0
    %910 = vmatpush1.bf16.msra.mxu0 0
    %911 = vmatprep.subr.bf16.mxu0 0
    %912 = vmatpush1.bf16.msra.mxu0 0
    %913 = vmatprep.subr.bf16.mxu0 0
    %914 = vmatpush1.bf16.msra.mxu0 0
    %915 = vmatprep.subr.bf16.mxu0 0
    %916 = vmatpush1.bf16.msra.mxu0 0
    %917 = vmatprep.subr.bf16.mxu0 0
    %918 = vmatpush1.bf16.msra.mxu0 0
    %919 = vmatprep.subr.bf16.mxu0 0
    %920 = vmatpush1.bf16.msra.mxu0 0
    %921 = vmatprep.mubr.bf16.mxu0 0
    %922 = vmatmul.mubr.bf16.gmra.mrb[0].mxu0 %v550
    %v923 = vpop.f32.mrb[0].mxu0
    %v924 = vadd.f32 0.0, %v923
    %v925 = vpop.f32.mrb[0].mxu0
    %v926 = vadd.f32 0.0, %v925
    %v927 = vpop.f32.mrb[0].mxu0
    %v928 = vadd.f32 0.0, %v927
    %v929 = vpop.f32.mrb[0].mxu0
    %v930 = vadd.f32 0.0, %v929
    %931 = vmatprep.mubr.bf16.mxu0 0
    %932 = vmatmul.mubr.bf16.gmra.mrb[0].mxu0 %v553
    %v933 = vpop.f32.mrb[0].mxu0
    %v934 = vadd.f32 0.0, %v933
    %v935 = vpop.f32.mrb[0].mxu0
    %v936 = vadd.f32 0.0, %v935
    %v937 = vpop.f32.mrb[0].mxu0
    %v938 = vadd.f32 0.0, %v937
    %v939 = vpop.f32.mrb[0].mxu0
    %v940 = vadd.f32 0.0, %v939
    %941 = vmatprep.mubr.bf16.mxu0 0
    %942 = vmatmul.mubr.bf16.gmra.mrb[0].mxu0 %v556
    %v943 = vpop.f32.mrb[0].mxu0
    %v944 = vadd.f32 0.0, %v943
    %v945 = vpop.f32.mrb[0].mxu0
    %v946 = vadd.f32 0.0, %v945
    %v947 = vpop.f32.mrb[0].mxu0
    %v948 = vadd.f32 0.0, %v947
    %v949 = vpop.f32.mrb[0].mxu0
    %v950 = vadd.f32 0.0, %v949
    %951 = vmatprep.mubr.bf16.mxu0 0
    %952 = vmatmul.mubr.bf16.gmra.mrb[0].mxu0 %v559
    %v953 = vpop.f32.mrb[0].mxu0
    %v954 = vadd.f32 0.0, %v953
    %v955 = vpop.f32.mrb[0].mxu0
    %v956 = vadd.f32 0.0, %v955
    %v957 = vpop.f32.mrb[0].mxu0
    %v958 = vadd.f32 0.0, %v957
    %v959 = vpop.f32.mrb[0].mxu0
    %v960 = vadd.f32 0.0, %v959
    %961 = vmatprep.mubr.bf16.mxu0 0
    %962 = vmatmul.mubr.bf16.gmra.mrb[0].mxu0 %v562
    %v963 = vpop.f32.mrb[0].mxu0
    %v964 = vadd.f32 0.0, %v963
    %v965 = vpop.f32.mrb[0].mxu0
    %v966 = vadd.f32 0.0, %v965
    %v967 = vpop.f32.mrb[0].mxu0
    %v968 = vadd.f32 0.0, %v967
    %v969 = vpop.f32.mrb[0].mxu0
    %v970 = vadd.f32 0.0, %v969
    %971 = vmatprep.mubr.bf16.mxu0 0
    %972 = vmatmul.mubr.bf16.gmra.mrb[0].mxu0 %v565
    %v973 = vpop.f32.mrb[0].mxu0
    %v974 = vadd.f32 0.0, %v973
    %v975 = vpop.f32.mrb[0].mxu0
    %v976 = vadd.f32 0.0, %v975
    %v977 = vpop.f32.mrb[0].mxu0
    %v978 = vpop.f32.mrb[0].mxu0
    %979 = vdwg.mxu0
    %980 = vmatprep.subr.bf16.mxu0 %v860
    %981 = vmatpush1.bf16.msra.mxu0 %v859
    %982 = vmatprep.subr.bf16.mxu0 %v864
    %983 = vmatpush1.bf16.msra.mxu0 %v863
    %984 = vmatprep.subr.bf16.mxu0 %v868
    %985 = vmatpush1.bf16.msra.mxu0 %v867
    %986 = vmatprep.subr.bf16.mxu0 %v872
    %987 = vmatpush1.bf16.msra.mxu0 %v871
    %988 = vmatprep.subr.bf16.mxu0 0
    %989 = vmatpush1.bf16.msra.mxu0 0
    %990 = vmatprep.subr.bf16.mxu0 0
    %991 = vmatpush1.bf16.msra.mxu0 0
    %992 = vmatprep.subr.bf16.mxu0 0
    %993 = vmatpush1.bf16.msra.mxu0 0
    %994 = vmatprep.subr.bf16.mxu0 0
    %995 = vmatpush1.bf16.msra.mxu0 0
    %996 = vmatprep.subr.bf16.mxu0 0
    %997 = vmatpush1.bf16.msra.mxu0 0
    %998 = vmatprep.subr.bf16.mxu0 0
    %999 = vmatpush1.bf16.msra.mxu0 0
    %1000 = vmatprep.subr.bf16.mxu0 0
    %1001 = vmatpush1.bf16.msra.mxu0 0
    %1002 = vmatprep.subr.bf16.mxu0 0
    %1003 = vmatpush1.bf16.msra.mxu0 0
    %1004 = vmatprep.subr.bf16.mxu0 0
    %1005 = vmatpush1.bf16.msra.mxu0 0
    %1006 = vmatprep.subr.bf16.mxu0 0
    %1007 = vmatpush1.bf16.msra.mxu0 0
    %1008 = vmatprep.subr.bf16.mxu0 0
    %1009 = vmatpush1.bf16.msra.mxu0 0
    %1010 = vmatprep.subr.bf16.mxu0 0
    %1011 = vmatpush1.bf16.msra.mxu0 0
    %1012 = vmatprep.mubr.bf16.mxu0 0
    %1013 = vmatmul.mubr.bf16.gmra.mrb[0].mxu0 %v550
    %v1014 = vpop.f32.mrb[0].mxu0
    %v1015 = vadd.f32 0.0, %v1014
    %v1016 = vpop.f32.mrb[0].mxu0
    %v1017 = vadd.f32 0.0, %v1016
    %v1018 = vpop.f32.mrb[0].mxu0
    %v1019 = vadd.f32 0.0, %v1018
    %v1020 = vpop.f32.mrb[0].mxu0
    %v1021 = vadd.f32 0.0, %v1020
    %1022 = vmatprep.mubr.bf16.mxu0 0
    %1023 = vmatmul.mubr.bf16.gmra.mrb[0].mxu0 %v553
    %v1024 = vpop.f32.mrb[0].mxu0
    %v1025 = vadd.f32 0.0, %v1024
    %v1026 = vpop.f32.mrb[0].mxu0
    %v1027 = vadd.f32 0.0, %v1026
    %v1028 = vpop.f32.mrb[0].mxu0
    %v1029 = vadd.f32 0.0, %v1028
    %v1030 = vpop.f32.mrb[0].mxu0
    %v1031 = vadd.f32 0.0, %v1030
    %1032 = vmatprep.mubr.bf16.mxu0 0
    %1033 = vmatmul.mubr.bf16.gmra.mrb[0].mxu0 %v556
    %v1034 = vpop.f32.mrb[0].mxu0
    %v1035 = vadd.f32 0.0, %v1034
    %v1036 = vpop.f32.mrb[0].mxu0
    %v1037 = vadd.f32 0.0, %v1036
    %v1038 = vpop.f32.mrb[0].mxu0
    %v1039 = vadd.f32 0.0, %v1038
    %v1040 = vpop.f32.mrb[0].mxu0
    %v1041 = vadd.f32 0.0, %v1040
    %1042 = vmatprep.mubr.bf16.mxu0 0
    %1043 = vmatmul.mubr.bf16.gmra.mrb[0].mxu0 %v559
    %v1044 = vpop.f32.mrb[0].mxu0
    %v1045 = vadd.f32 0.0, %v1044
    %v1046 = vpop.f32.mrb[0].mxu0
    %v1047 = vadd.f32 0.0, %v1046
    %v1048 = vpop.f32.mrb[0].mxu0
    %v1049 = vadd.f32 0.0, %v1048
    %v1050 = vpop.f32.mrb[0].mxu0
    %v1051 = vadd.f32 0.0, %v1050
    %1052 = vmatprep.mubr.bf16.mxu0 0
    %1053 = vmatmul.mubr.bf16.gmra.mrb[0].mxu0 %v562
    %v1054 = vpop.f32.mrb[0].mxu0
    %v1055 = vadd.f32 0.0, %v1054
    %v1056 = vpop.f32.mrb[0].mxu0
    %v1057 = vadd.f32 0.0, %v1056
    %v1058 = vpop.f32.mrb[0].mxu0
    %v1059 = vadd.f32 0.0, %v1058
    %v1060 = vpop.f32.mrb[0].mxu0
    %v1061 = vadd.f32 0.0, %v1060
    %1062 = vmatprep.mubr.bf16.mxu0 0
    %1063 = vmatmul.mubr.bf16.gmra.mrb[0].mxu0 %v565
    %v1064 = vpop.f32.mrb[0].mxu0
    %v1065 = vadd.f32 0.0, %v1064
    %v1066 = vpop.f32.mrb[0].mxu0
    %v1067 = vadd.f32 0.0, %v1066
    %v1068 = vpop.f32.mrb[0].mxu0
    %v1069 = vpop.f32.mrb[0].mxu0
    %1070 = vdwg.mxu0
    %1071 = vst [vmem:[#allocation3] sm:$0xff] %v924
    %1072 = vst [vmem:[#allocation3 + $0x8] sm:$0xff] %v926
    %1073 = vst [vmem:[#allocation3 + $0x10] sm:$0xff] %v1015
    %1074 = vst [vmem:[#allocation3 + $0x18] sm:$0xff] %v1017
    %1075 = vst [vmem:[#allocation3 + $0x20] sm:$0xff] %v928
    %1076 = vst [vmem:[#allocation3 + $0x28] sm:$0xff] %v930
    %1077 = vst [vmem:[#allocation3 + $0x30] sm:$0xff] %v1019
    %1078 = vst [vmem:[#allocation3 + $0x38] sm:$0xff] %v1021
    %1079 = vst [vmem:[#allocation3 + $0x40] sm:$0xff] %v934
    %1080 = vst [vmem:[#allocation3 + $0x48] sm:$0xff] %v936
    %1081 = vst [vmem:[#allocation3 + $0x50] sm:$0xff] %v1025
    %1082 = vst [vmem:[#allocation3 + $0x58] sm:$0xff] %v1027
    %1083 = vst [vmem:[#allocation3 + $0x60] sm:$0xff] %v938
    %1084 = vst [vmem:[#allocation3 + $0x68] sm:$0xff] %v940
    %1085 = vst [vmem:[#allocation3 + $0x70] sm:$0xff] %v1029
    %1086 = vst [vmem:[#allocation3 + $0x78] sm:$0xff] %v1031
    %1087 = vst [vmem:[#allocation3 + $0x80] sm:$0xff] %v944
    %1088 = vst [vmem:[#allocation3 + $0x88] sm:$0xff] %v946
    %1089 = vst [vmem:[#allocation3 + $0x90] sm:$0xff] %v1035
    %1090 = vst [vmem:[#allocation3 + $0x98] sm:$0xff] %v1037
    %1091 = vst [vmem:[#allocation3 + $0xa0] sm:$0xff] %v948
    %1092 = vst [vmem:[#allocation3 + $0xa8] sm:$0xff] %v950
    %1093 = vst [vmem:[#allocation3 + $0xb0] sm:$0xff] %v1039
    %1094 = vst [vmem:[#allocation3 + $0xb8] sm:$0xff] %v1041
    %1095 = vst [vmem:[#allocation3 + $0xc0] sm:$0xff] %v954
    %1096 = vst [vmem:[#allocation3 + $0xc8] sm:$0xff] %v956
    %1097 = vst [vmem:[#allocation3 + $0xd0] sm:$0xff] %v1045
    %1098 = vst [vmem:[#allocation3 + $0xd8] sm:$0xff] %v1047
    %1099 = vst [vmem:[#allocation3 + $0xe0] sm:$0xff] %v958
    %1100 = vst [vmem:[#allocation3 + $0xe8] sm:$0xff] %v960
    %1101 = vst [vmem:[#allocation3 + $0xf0] sm:$0xff] %v1049
    %1102 = vst [vmem:[#allocation3 + $0xf8] sm:$0xff] %v1051
    %1103 = vst [vmem:[#allocation3 + $0x100] sm:$0xff] %v964
    %1104 = vst [vmem:[#allocation3 + $0x108] sm:$0xff] %v966
    %1105 = vst [vmem:[#allocation3 + $0x110] sm:$0xff] %v1055
    %1106 = vst [vmem:[#allocation3 + $0x118] sm:$0xff] %v1057
    %1107 = vst [vmem:[#allocation3 + $0x120] sm:$0xff] %v968
    %1108 = vst [vmem:[#allocation3 + $0x128] sm:$0xff] %v970
    %1109 = vst [vmem:[#allocation3 + $0x130] sm:$0xff] %v1059
    %1110 = vst [vmem:[#allocation3 + $0x138] sm:$0xff] %v1061
    %1111 = vst [vmem:[#allocation3 + $0x140] sm:$0xff] %v974
    %1112 = vst [vmem:[#allocation3 + $0x148] sm:$0xff] %v976
    %1113 = vst [vmem:[#allocation3 + $0x150] sm:$0xff] %v1065
    %1114 = vst [vmem:[#allocation3 + $0x158] sm:$0xff] %v1067
    %v1115 = vld [vmem:[#allocation2] sm:$0xff]
    %v1116 = vld [vmem:[#allocation2 + $0x8] sm:$0xff]
    %v1117 = vld [vmem:[#allocation2 + $0x10] sm:$0xff]
    %v1118 = vld [vmem:[#allocation2 + $0x18] sm:$0xff]
    %s1119 = scalar_lea.vmem [#allocation3], 320
    %v1120 = vld [vmem:[%s1119] sm:$0xff]
    %v1121 = vld [vmem:[%s1119 + $0x8] sm:$0xff]
    %v1122 = vld [vmem:[%s1119 + $0x10] sm:$0xff]
    %v1123 = vld [vmem:[%s1119 + $0x18] sm:$0xff]
    %v1124 = vadd.f32 %v1115, %v1120
    %v1125 = vadd.f32 %v1116, %v1121
    %v1126 = vadd.f32 %v1117, %v1122
    %v1127 = vadd.f32 %v1118, %v1123
    %1128 = vst [vmem:[#allocation2] sm:$0xff] %v1124
    %1129 = vst [vmem:[#allocation2 + $0x8] sm:$0xff] %v1125
    %1130 = vst [vmem:[#allocation2 + $0x10] sm:$0xff] %v1126
    %1131 = vst [vmem:[#allocation2 + $0x18] sm:$0xff] %v1127
    %s1132 = scalar_lea.vmem [#allocation2], 32
    %v1133 = vld [vmem:[%s1132] sm:$0xff]
    %v1134 = vld [vmem:[%s1132 + $0x8] sm:$0xff]
    %v1135 = vld [vmem:[%s1132 + $0x10] sm:$0xff]
    %v1136 = vld [vmem:[%s1132 + $0x18] sm:$0xff]
    %s1137 = scalar_lea.vmem [#allocation3], 288
    %v1138 = vld [vmem:[%s1137] sm:$0xff]
    %v1139 = vld [vmem:[%s1137 + $0x8] sm:$0xff]
    %v1140 = vld [vmem:[%s1137 + $0x10] sm:$0xff]
    %v1141 = vld [vmem:[%s1137 + $0x18] sm:$0xff]
    %v1142 = vadd.f32 %v1133, %v1138
    %v1143 = vadd.f32 %v1134, %v1139
    %v1144 = vadd.f32 %v1135, %v1140
    %v1145 = vadd.f32 %v1136, %v1141
    %1146 = vst [vmem:[%s1132] sm:$0xff] %v1142
    %1147 = vst [vmem:[%s1132 + $0x8] sm:$0xff] %v1143
    %1148 = vst [vmem:[%s1132 + $0x10] sm:$0xff] %v1144
    %1149 = vst [vmem:[%s1132 + $0x18] sm:$0xff] %v1145
    %s1150 = scalar_lea.vmem [#allocation2], 64
    %v1151 = vld [vmem:[%s1150] sm:$0xff]
    %v1152 = vld [vmem:[%s1150 + $0x8] sm:$0xff]
    %v1153 = vld [vmem:[%s1150 + $0x10] sm:$0xff]
    %v1154 = vld [vmem:[%s1150 + $0x18] sm:$0xff]
    %s1155 = scalar_lea.vmem [#allocation3], 256
    %v1156 = vld [vmem:[%s1155] sm:$0xff]
    %v1157 = vld [vmem:[%s1155 + $0x8] sm:$0xff]
    %v1158 = vld [vmem:[%s1155 + $0x10] sm:$0xff]
    %v1159 = vld [vmem:[%s1155 + $0x18] sm:$0xff]
    %v1160 = vadd.f32 %v1151, %v1156
    %v1161 = vadd.f32 %v1152, %v1157
    %v1162 = vadd.f32 %v1153, %v1158
    %v1163 = vadd.f32 %v1154, %v1159
    %1164 = vst [vmem:[%s1150] sm:$0xff] %v1160
    %1165 = vst [vmem:[%s1150 + $0x8] sm:$0xff] %v1161
    %1166 = vst [vmem:[%s1150 + $0x10] sm:$0xff] %v1162
    %1167 = vst [vmem:[%s1150 + $0x18] sm:$0xff] %v1163
    %s1168 = scalar_lea.vmem [#allocation2], 96
    %v1169 = vld [vmem:[%s1168] sm:$0xff]
    %v1170 = vld [vmem:[%s1168 + $0x8] sm:$0xff]
    %v1171 = vld [vmem:[%s1168 + $0x10] sm:$0xff]
    %v1172 = vld [vmem:[%s1168 + $0x18] sm:$0xff]
    %s1173 = scalar_lea.vmem [#allocation3], 224
    %v1174 = vld [vmem:[%s1173] sm:$0xff]
    %v1175 = vld [vmem:[%s1173 + $0x8] sm:$0xff]
    %v1176 = vld [vmem:[%s1173 + $0x10] sm:$0xff]
    %v1177 = vld [vmem:[%s1173 + $0x18] sm:$0xff]
    %v1178 = vadd.f32 %v1169, %v1174
    %v1179 = vadd.f32 %v1170, %v1175
    %v1180 = vadd.f32 %v1171, %v1176
    %v1181 = vadd.f32 %v1172, %v1177
    %1182 = vst [vmem:[%s1168] sm:$0xff] %v1178
    %1183 = vst [vmem:[%s1168 + $0x8] sm:$0xff] %v1179
    %1184 = vst [vmem:[%s1168 + $0x10] sm:$0xff] %v1180
    %1185 = vst [vmem:[%s1168 + $0x18] sm:$0xff] %v1181
    %s1186 = scalar_lea.vmem [#allocation2], 128
    %v1187 = vld [vmem:[%s1186] sm:$0xff]
    %v1188 = vld [vmem:[%s1186 + $0x8] sm:$0xff]
    %v1189 = vld [vmem:[%s1186 + $0x10] sm:$0xff]
    %v1190 = vld [vmem:[%s1186 + $0x18] sm:$0xff]
    %s1191 = scalar_lea.vmem [#allocation3], 192
    %v1192 = vld [vmem:[%s1191] sm:$0xff]
    %v1193 = vld [vmem:[%s1191 + $0x8] sm:$0xff]
    %v1194 = vld [vmem:[%s1191 + $0x10] sm:$0xff]
    %v1195 = vld [vmem:[%s1191 + $0x18] sm:$0xff]
    %v1196 = vadd.f32 %v1187, %v1192
    %v1197 = vadd.f32 %v1188, %v1193
    %v1198 = vadd.f32 %v1189, %v1194
    %v1199 = vadd.f32 %v1190, %v1195
    %1200 = vst [vmem:[%s1186] sm:$0xff] %v1196
    %1201 = vst [vmem:[%s1186 + $0x8] sm:$0xff] %v1197
    %1202 = vst [vmem:[%s1186 + $0x10] sm:$0xff] %v1198
    %1203 = vst [vmem:[%s1186 + $0x18] sm:$0xff] %v1199
    %s1204 = scalar_lea.vmem [#allocation2], 160
    %v1205 = vld [vmem:[%s1204] sm:$0xff]
    %v1206 = vld [vmem:[%s1204 + $0x8] sm:$0xff]
    %v1207 = vld [vmem:[%s1204 + $0x10] sm:$0xff]
    %v1208 = vld [vmem:[%s1204 + $0x18] sm:$0xff]
    %s1209 = scalar_lea.vmem [#allocation3], 160
    %v1210 = vld [vmem:[%s1209] sm:$0xff]
    %v1211 = vld [vmem:[%s1209 + $0x8] sm:$0xff]
    %v1212 = vld [vmem:[%s1209 + $0x10] sm:$0xff]
    %v1213 = vld [vmem:[%s1209 + $0x18] sm:$0xff]
    %v1214 = vadd.f32 %v1205, %v1210
    %v1215 = vadd.f32 %v1206, %v1211
    %v1216 = vadd.f32 %v1207, %v1212
    %v1217 = vadd.f32 %v1208, %v1213
    %1218 = vst [vmem:[%s1204] sm:$0xff] %v1214
    %1219 = vst [vmem:[%s1204 + $0x8] sm:$0xff] %v1215
    %1220 = vst [vmem:[%s1204 + $0x10] sm:$0xff] %v1216
    %1221 = vst [vmem:[%s1204 + $0x18] sm:$0xff] %v1217
    %s1222 = scalar_lea.vmem [#allocation2], 192
    %v1223 = vld [vmem:[%s1222] sm:$0xff]
    %v1224 = vld [vmem:[%s1222 + $0x8] sm:$0xff]
    %v1225 = vld [vmem:[%s1222 + $0x10] sm:$0xff]
    %v1226 = vld [vmem:[%s1222 + $0x18] sm:$0xff]
    %s1227 = scalar_lea.vmem [#allocation3], 128
    %v1228 = vld [vmem:[%s1227] sm:$0xff]
    %v1229 = vld [vmem:[%s1227 + $0x8] sm:$0xff]
    %v1230 = vld [vmem:[%s1227 + $0x10] sm:$0xff]
    %v1231 = vld [vmem:[%s1227 + $0x18] sm:$0xff]
    %v1232 = vadd.f32 %v1223, %v1228
    %v1233 = vadd.f32 %v1224, %v1229
    %v1234 = vadd.f32 %v1225, %v1230
    %v1235 = vadd.f32 %v1226, %v1231
    %1236 = vst [vmem:[%s1222] sm:$0xff] %v1232
    %1237 = vst [vmem:[%s1222 + $0x8] sm:$0xff] %v1233
    %1238 = vst [vmem:[%s1222 + $0x10] sm:$0xff] %v1234
    %1239 = vst [vmem:[%s1222 + $0x18] sm:$0xff] %v1235
    %s1240 = scalar_lea.vmem [#allocation2], 224
    %v1241 = vld [vmem:[%s1240] sm:$0xff]
    %v1242 = vld [vmem:[%s1240 + $0x8] sm:$0xff]
    %v1243 = vld [vmem:[%s1240 + $0x10] sm:$0xff]
    %v1244 = vld [vmem:[%s1240 + $0x18] sm:$0xff]
    %s1245 = scalar_lea.vmem [#allocation3], 96
    %v1246 = vld [vmem:[%s1245] sm:$0xff]
    %v1247 = vld [vmem:[%s1245 + $0x8] sm:$0xff]
    %v1248 = vld [vmem:[%s1245 + $0x10] sm:$0xff]
    %v1249 = vld [vmem:[%s1245 + $0x18] sm:$0xff]
    %v1250 = vadd.f32 %v1241, %v1246
    %v1251 = vadd.f32 %v1242, %v1247
    %v1252 = vadd.f32 %v1243, %v1248
    %v1253 = vadd.f32 %v1244, %v1249
    %1254 = vst [vmem:[%s1240] sm:$0xff] %v1250
    %1255 = vst [vmem:[%s1240 + $0x8] sm:$0xff] %v1251
    %1256 = vst [vmem:[%s1240 + $0x10] sm:$0xff] %v1252
    %1257 = vst [vmem:[%s1240 + $0x18] sm:$0xff] %v1253
    %s1258 = scalar_lea.vmem [#allocation2], 256
    %v1259 = vld [vmem:[%s1258] sm:$0xff]
    %v1260 = vld [vmem:[%s1258 + $0x8] sm:$0xff]
    %v1261 = vld [vmem:[%s1258 + $0x10] sm:$0xff]
    %v1262 = vld [vmem:[%s1258 + $0x18] sm:$0xff]
    %s1263 = scalar_lea.vmem [#allocation3], 64
    %v1264 = vld [vmem:[%s1263] sm:$0xff]
    %v1265 = vld [vmem:[%s1263 + $0x8] sm:$0xff]
    %v1266 = vld [vmem:[%s1263 + $0x10] sm:$0xff]
    %v1267 = vld [vmem:[%s1263 + $0x18] sm:$0xff]
    %v1268 = vadd.f32 %v1259, %v1264
    %v1269 = vadd.f32 %v1260, %v1265
    %v1270 = vadd.f32 %v1261, %v1266
    %v1271 = vadd.f32 %v1262, %v1267
    %1272 = vst [vmem:[%s1258] sm:$0xff] %v1268
    %1273 = vst [vmem:[%s1258 + $0x8] sm:$0xff] %v1269
    %1274 = vst [vmem:[%s1258 + $0x10] sm:$0xff] %v1270
    %1275 = vst [vmem:[%s1258 + $0x18] sm:$0xff] %v1271
    %s1276 = scalar_lea.vmem [#allocation2], 288
    %v1277 = vld [vmem:[%s1276] sm:$0xff]
    %v1278 = vld [vmem:[%s1276 + $0x8] sm:$0xff]
    %v1279 = vld [vmem:[%s1276 + $0x10] sm:$0xff]
    %v1280 = vld [vmem:[%s1276 + $0x18] sm:$0xff]
    %s1281 = scalar_lea.vmem [#allocation3], 32
    %v1282 = vld [vmem:[%s1281] sm:$0xff]
    %v1283 = vld [vmem:[%s1281 + $0x8] sm:$0xff]
    %v1284 = vld [vmem:[%s1281 + $0x10] sm:$0xff]
    %v1285 = vld [vmem:[%s1281 + $0x18] sm:$0xff]
    %v1286 = vadd.f32 %v1277, %v1282
    %v1287 = vadd.f32 %v1278, %v1283
    %v1288 = vadd.f32 %v1279, %v1284
    %v1289 = vadd.f32 %v1280, %v1285
    %1290 = vst [vmem:[%s1276] sm:$0xff] %v1286
    %1291 = vst [vmem:[%s1276 + $0x8] sm:$0xff] %v1287
    %1292 = vst [vmem:[%s1276 + $0x10] sm:$0xff] %v1288
    %1293 = vst [vmem:[%s1276 + $0x18] sm:$0xff] %v1289
    %s1294 = scalar_lea.vmem [#allocation2], 320
    %v1295 = vld [vmem:[%s1294] sm:$0xff]
    %v1296 = vld [vmem:[%s1294 + $0x8] sm:$0xff]
    %v1297 = vld [vmem:[%s1294 + $0x10] sm:$0xff]
    %v1298 = vld [vmem:[%s1294 + $0x18] sm:$0xff]
    %v1299 = vld [vmem:[#allocation3] sm:$0xff]
    %v1300 = vld [vmem:[#allocation3 + $0x8] sm:$0xff]
    %v1301 = vld [vmem:[#allocation3 + $0x10] sm:$0xff]
    %v1302 = vld [vmem:[#allocation3 + $0x18] sm:$0xff]
    %v1303 = vadd.f32 %v1295, %v1299
    %v1304 = vadd.f32 %v1296, %v1300
    %v1305 = vadd.f32 %v1297, %v1301
    %v1306 = vadd.f32 %v1298, %v1302
    %1307 = vst [vmem:[%s1294] sm:$0xff] %v1303
    %1308 = vst [vmem:[%s1294 + $0x8] sm:$0xff] %v1304
    %1309 = vst [vmem:[%s1294 + $0x10] sm:$0xff] %v1305
    %1310 = vst [vmem:[%s1294 + $0x18] sm:$0xff] %v1306
    %v1311 = vld [vmem:[%s6] sm:$0xff]
    %v1312 = vld [vmem:[%s6 + $0x8] sm:$0xff]
    %v1313 = vld [vmem:[%s6 + $0x10] sm:$0xff]
    %v1314 = vld [vmem:[%s6 + $0x18] sm:$0xff]
    %v1315 = vld [vmem:[%s6 + $0x20] sm:$0xff]
    %v1316 = vld [vmem:[%s6 + $0x28] sm:$0xff]
    %v1317 = vld [vmem:[%s6 + $0x30] sm:$0xff]
    %v1318 = vld [vmem:[%s6 + $0x38] sm:$0xff]
    %v1319 = vld [vmem:[%s6 + $0x40] sm:$0xff]
    %v1320 = vld [vmem:[%s6 + $0x48] sm:$0xff]
    %v1321 = vld [vmem:[%s6 + $0x50] sm:$0xff]
    %v1322 = vld [vmem:[%s6 + $0x58] sm:$0xff]
    %v1323 = vld [vmem:[%s6 + $0x60] sm:$0xff]
    %v1324 = vld [vmem:[%s6 + $0x68] sm:$0xff]
    %v1325 = vld [vmem:[%s6 + $0x70] sm:$0xff]
    %v1326 = vld [vmem:[%s6 + $0x78] sm:$0xff]
    %v1327 = vld [vmem:[%s6 + $0x80] sm:$0xff]
    %v1328 = vld [vmem:[%s6 + $0x88] sm:$0xff]
    %v1329 = vld [vmem:[%s6 + $0x90] sm:$0xff]
    %v1330 = vld [vmem:[%s6 + $0x98] sm:$0xff]
    %v1331 = vld [vmem:[%s6 + $0xa0] sm:$0xff]
    %v1332 = vld [vmem:[%s6 + $0xa8] sm:$0xff]
    %v1333 = vld [vmem:[%s6 + $0xb0] sm:$0xff]
    %v1334 = vld [vmem:[%s6 + $0xb8] sm:$0xff]
    %v1335 = vld [vmem:[%s6 + $0xc0] sm:$0xff]
    %v1336 = vld [vmem:[%s6 + $0xc8] sm:$0xff]
    %v1337 = vld [vmem:[%s6 + $0xd0] sm:$0xff]
    %v1338 = vld [vmem:[%s6 + $0xd8] sm:$0xff]
    %v1339 = vld [vmem:[%s6 + $0xe0] sm:$0xff]
    %v1340 = vld [vmem:[%s6 + $0xe8] sm:$0xff]
    %v1341 = vld [vmem:[%s6 + $0xf0] sm:$0xff]
    %v1342 = vld [vmem:[%s6 + $0xf8] sm:$0xff]
    %v1343 = vld [vmem:[#allocation2] sm:$0xff]
    %v1344 = vld [vmem:[#allocation2 + $0x8] sm:$0xff]
    %v1345 = vld [vmem:[#allocation2 + $0x10] sm:$0xff]
    %v1346 = vld [vmem:[#allocation2 + $0x18] sm:$0xff]
    %v1379 = vunpack.c.l.b16 %v1311
    %v1380 = vunpack.c.h.b16 %v1311
    %v1381 = vunpack.c.l.b16 %v1312
    %v1382 = vunpack.c.h.b16 %v1312
    %v1383 = vunpack.c.l.b16 %v1313
    %v1384 = vunpack.c.h.b16 %v1313
    %v1385 = vunpack.c.l.b16 %v1314
    %v1386 = vunpack.c.h.b16 %v1314
    %v1387 = vunpack.c.l.b16 %v1315
    %v1388 = vunpack.c.h.b16 %v1315
    %v1389 = vunpack.c.l.b16 %v1316
    %v1390 = vunpack.c.h.b16 %v1316
    %v1391 = vunpack.c.l.b16 %v1317
    %v1392 = vunpack.c.h.b16 %v1317
    %v1393 = vunpack.c.l.b16 %v1318
    %v1394 = vunpack.c.h.b16 %v1318
    %v1395 = vunpack.c.l.b16 %v1319
    %v1396 = vunpack.c.h.b16 %v1319
    %v1397 = vunpack.c.l.b16 %v1320
    %v1398 = vunpack.c.h.b16 %v1320
    %v1399 = vunpack.c.l.b16 %v1321
    %v1400 = vunpack.c.h.b16 %v1321
    %v1401 = vunpack.c.l.b16 %v1322
    %v1402 = vunpack.c.h.b16 %v1322
    %v1403 = vunpack.c.l.b16 %v1323
    %v1404 = vunpack.c.h.b16 %v1323
    %v1405 = vunpack.c.l.b16 %v1324
    %v1406 = vunpack.c.h.b16 %v1324
    %v1407 = vunpack.c.l.b16 %v1325
    %v1408 = vunpack.c.h.b16 %v1325
    %v1409 = vunpack.c.l.b16 %v1326
    %v1410 = vunpack.c.h.b16 %v1326
    %v1411 = vunpack.c.l.b16 %v1327
    %v1412 = vunpack.c.h.b16 %v1327
    %v1413 = vunpack.c.l.b16 %v1328
    %v1414 = vunpack.c.h.b16 %v1328
    %v1415 = vunpack.c.l.b16 %v1329
    %v1416 = vunpack.c.h.b16 %v1329
    %v1417 = vunpack.c.l.b16 %v1330
    %v1418 = vunpack.c.h.b16 %v1330
    %v1419 = vunpack.c.l.b16 %v1331
    %v1420 = vunpack.c.h.b16 %v1331
    %v1421 = vunpack.c.l.b16 %v1332
    %v1422 = vunpack.c.h.b16 %v1332
    %v1423 = vunpack.c.l.b16 %v1333
    %v1424 = vunpack.c.h.b16 %v1333
    %v1425 = vunpack.c.l.b16 %v1334
    %v1426 = vunpack.c.h.b16 %v1334
    %v1427 = vunpack.c.l.b16 %v1335
    %v1428 = vunpack.c.h.b16 %v1335
    %v1429 = vunpack.c.l.b16 %v1336
    %v1430 = vunpack.c.h.b16 %v1336
    %v1431 = vunpack.c.l.b16 %v1337
    %v1432 = vunpack.c.h.b16 %v1337
    %v1433 = vunpack.c.l.b16 %v1338
    %v1434 = vunpack.c.h.b16 %v1338
    %v1435 = vunpack.c.l.b16 %v1339
    %v1436 = vunpack.c.h.b16 %v1339
    %v1437 = vunpack.c.l.b16 %v1340
    %v1438 = vunpack.c.h.b16 %v1340
    %v1439 = vunpack.c.l.b16 %v1341
    %v1440 = vunpack.c.h.b16 %v1341
    %v1441 = vunpack.c.l.b16 %v1342
    %v1442 = vunpack.c.h.b16 %v1342
    %v1443 = vpack.c.b16 %v1383, %v1379
    %v1444 = vpack.c.b16 %v1384, %v1380
    %v1445 = vpack.c.b16 %v1385, %v1381
    %v1446 = vpack.c.b16 %v1386, %v1382
    %v1447 = vpack.c.b16 %v1391, %v1387
    %v1448 = vpack.c.b16 %v1392, %v1388
    %v1449 = vpack.c.b16 %v1393, %v1389
    %v1450 = vpack.c.b16 %v1394, %v1390
    %v1451 = vpack.c.b16 %v1399, %v1395
    %v1452 = vpack.c.b16 %v1400, %v1396
    %v1453 = vpack.c.b16 %v1401, %v1397
    %v1454 = vpack.c.b16 %v1402, %v1398
    %v1455 = vpack.c.b16 %v1407, %v1403
    %v1456 = vpack.c.b16 %v1408, %v1404
    %v1457 = vpack.c.b16 %v1409, %v1405
    %v1458 = vpack.c.b16 %v1410, %v1406
    %v1459 = vpack.c.b16 %v1415, %v1411
    %v1460 = vpack.c.b16 %v1416, %v1412
    %v1461 = vpack.c.b16 %v1417, %v1413
    %v1462 = vpack.c.b16 %v1418, %v1414
    %v1463 = vpack.c.b16 %v1423, %v1419
    %v1464 = vpack.c.b16 %v1424, %v1420
    %v1465 = vpack.c.b16 %v1425, %v1421
    %v1466 = vpack.c.b16 %v1426, %v1422
    %v1467 = vpack.c.b16 %v1431, %v1427
    %v1468 = vpack.c.b16 %v1432, %v1428
    %v1469 = vpack.c.b16 %v1433, %v1429
    %v1470 = vpack.c.b16 %v1434, %v1430
    %v1471 = vpack.c.b16 %v1439, %v1435
    %v1472 = vpack.c.b16 %v1440, %v1436
    %v1473 = vpack.c.b16 %v1441, %v1437
    %v1474 = vpack.c.b16 %v1442, %v1438
    %1507 = vmatprep.subr.bf16.mxu0 %v1444
    %1508 = vmatpush1.bf16.msra.mxu0 %v1443
    %1509 = vmatprep.subr.bf16.mxu0 %v1448
    %1510 = vmatpush1.bf16.msra.mxu0 %v1447
    %1511 = vmatprep.subr.bf16.mxu0 %v1452
    %1512 = vmatpush1.bf16.msra.mxu0 %v1451
    %1513 = vmatprep.subr.bf16.mxu0 %v1456
    %1514 = vmatpush1.bf16.msra.mxu0 %v1455
    %1515 = vmatprep.subr.bf16.mxu0 %v1460
    %1516 = vmatpush1.bf16.msra.mxu0 %v1459
    %1517 = vmatprep.subr.bf16.mxu0 %v1464
    %1518 = vmatpush1.bf16.msra.mxu0 %v1463
    %1519 = vmatprep.subr.bf16.mxu0 %v1468
    %1520 = vmatpush1.bf16.msra.mxu0 %v1467
    %1521 = vmatprep.subr.bf16.mxu0 %v1472
    %1522 = vmatpush1.bf16.msra.mxu0 %v1471
    %1523 = vmatprep.subr.bf16.mxu0 0
    %1524 = vmatpush1.bf16.msra.mxu0 0
    %1525 = vmatprep.subr.bf16.mxu0 0
    %1526 = vmatpush1.bf16.msra.mxu0 0
    %1527 = vmatprep.subr.bf16.mxu0 0
    %1528 = vmatpush1.bf16.msra.mxu0 0
    %1529 = vmatprep.subr.bf16.mxu0 0
    %1530 = vmatpush1.bf16.msra.mxu0 0
    %1531 = vmatprep.subr.bf16.mxu0 0
    %1532 = vmatpush1.bf16.msra.mxu0 0
    %1533 = vmatprep.subr.bf16.mxu0 0
    %1534 = vmatpush1.bf16.msra.mxu0 0
    %1535 = vmatprep.subr.bf16.mxu0 0
    %1536 = vmatpush1.bf16.msra.mxu0 0
    %1537 = vmatprep.subr.bf16.mxu0 0
    %1538 = vmatpush1.bf16.msra.mxu0 0
    %1539 = vmatprep.mubr.bf16.mxu0 0
    %1540 = vmatmul.mubr.bf16.gmra.mrb[0].mxu0 0
    %v1541 = vpop.f32.mrb[0].mxu0
    %v1542 = vadd.f32 %v1343, %v1541
    %v1543 = vpop.f32.mrb[0].mxu0
    %v1544 = vadd.f32 %v1344, %v1543
    %v1545 = vpop.f32.mrb[0].mxu0
    %v1546 = vpop.f32.mrb[0].mxu0
    %1547 = vdwg.mxu0
    %1548 = vmatprep.subr.bf16.mxu0 %v1446
    %1549 = vmatpush1.bf16.msra.mxu0 %v1445
    %1550 = vmatprep.subr.bf16.mxu0 %v1450
    %1551 = vmatpush1.bf16.msra.mxu0 %v1449
    %1552 = vmatprep.subr.bf16.mxu0 %v1454
    %1553 = vmatpush1.bf16.msra.mxu0 %v1453
    %1554 = vmatprep.subr.bf16.mxu0 %v1458
    %1555 = vmatpush1.bf16.msra.mxu0 %v1457
    %1556 = vmatprep.subr.bf16.mxu0 %v1462
    %1557 = vmatpush1.bf16.msra.mxu0 %v1461
    %1558 = vmatprep.subr.bf16.mxu0 %v1466
    %1559 = vmatpush1.bf16.msra.mxu0 %v1465
    %1560 = vmatprep.subr.bf16.mxu0 %v1470
    %1561 = vmatpush1.bf16.msra.mxu0 %v1469
    %1562 = vmatprep.subr.bf16.mxu0 %v1474
    %1563 = vmatpush1.bf16.msra.mxu0 %v1473
    %1564 = vmatprep.subr.bf16.mxu0 0
    %1565 = vmatpush1.bf16.msra.mxu0 0
    %1566 = vmatprep.subr.bf16.mxu0 0
    %1567 = vmatpush1.bf16.msra.mxu0 0
    %1568 = vmatprep.subr.bf16.mxu0 0
    %1569 = vmatpush1.bf16.msra.mxu0 0
    %1570 = vmatprep.subr.bf16.mxu0 0
    %1571 = vmatpush1.bf16.msra.mxu0 0
    %1572 = vmatprep.subr.bf16.mxu0 0
    %1573 = vmatpush1.bf16.msra.mxu0 0
    %1574 = vmatprep.subr.bf16.mxu0 0
    %1575 = vmatpush1.bf16.msra.mxu0 0
    %1576 = vmatprep.subr.bf16.mxu0 0
    %1577 = vmatpush1.bf16.msra.mxu0 0
    %1578 = vmatprep.subr.bf16.mxu0 0
    %1579 = vmatpush1.bf16.msra.mxu0 0
    %1580 = vmatprep.mubr.bf16.mxu0 0
    %1581 = vmatmul.mubr.bf16.gmra.mrb[0].mxu0 0
    %v1582 = vpop.f32.mrb[0].mxu0
    %v1583 = vadd.f32 %v1345, %v1582
    %v1584 = vpop.f32.mrb[0].mxu0
    %v1585 = vadd.f32 %v1346, %v1584
    %v1586 = vpop.f32.mrb[0].mxu0
    %v1587 = vpop.f32.mrb[0].mxu0
    %1588 = vdwg.mxu0
    %v1589 = vxor.u32 %v1542, 2147483648
    %v1590 = vxor.u32 %v1544, 2147483648
    %v1591 = vxor.u32 %v1583, 2147483648
    %v1592 = vmul.f32 %v1589, 1.442695
    %v1593 = vpow.pop %v1592
    %v1594 = vmul.f32 %v1590, 1.442695
    %v1595 = vpow.pop %v1594
    %v1596 = vmul.f32 %v1591, 1.442695
    %v1597 = vpow.pop %v1596
    %v1598 = vadd.f32 %v1593, 1.0
    %v1599 = vadd.f32 %v1595, 1.0
    %v1600 = vadd.f32 %v1597, 1.0
    %v1601 = vrcp.pop %v1598
    %v1602 = vmul.f32 1.0, %v1601
    %v1603 = vrcp.pop %v1599
    %v1604 = vmul.f32 1.0, %v1603
    %v1605 = vrcp.pop %v1600
    %v1606 = vmul.f32 1.0, %v1605
    %v1607 = vtanh.pop %v1585
    %v1608 = vmul.f32 %v1604, 0.0
    %v1609 = vmul.f32 %v1602, %v1607
    %v1610 = vadd.f32 %v1608, %v1609
    %v1611 = vtanh.pop %v1610
    %v1612 = vmul.f32 %v1606, %v1611
    %1613 = vst [vmem:[#allocation4] sm:$0xff] %v1612
    %s1614 = scalar_lea.vmem [#allocation5], 256
    %1615 = vst [vmem:[%s1614] sm:$0xff] %v1612
    %v1616 = vpack.c.bf16 %v1612, %v1612
    %v1617 = vld [vmem:[%s1132] sm:$0xff]
    %v1618 = vld [vmem:[%s1132 + $0x8] sm:$0xff]
    %v1619 = vld [vmem:[%s1132 + $0x10] sm:$0xff]
    %v1620 = vld [vmem:[%s1132 + $0x18] sm:$0xff]
    %1621 = vmatprep.subr.bf16.mxu0 %v1444
    %1622 = vmatpush1.bf16.msra.mxu0 %v1443
    %1623 = vmatprep.subr.bf16.mxu0 %v1448
    %1624 = vmatpush1.bf16.msra.mxu0 %v1447
    %1625 = vmatprep.subr.bf16.mxu0 %v1452
    %1626 = vmatpush1.bf16.msra.mxu0 %v1451
    %1627 = vmatprep.subr.bf16.mxu0 %v1456
    %1628 = vmatpush1.bf16.msra.mxu0 %v1455
    %1629 = vmatprep.subr.bf16.mxu0 %v1460
    %1630 = vmatpush1.bf16.msra.mxu0 %v1459
    %1631 = vmatprep.subr.bf16.mxu0 %v1464
    %1632 = vmatpush1.bf16.msra.mxu0 %v1463
    %1633 = vmatprep.subr.bf16.mxu0 %v1468
    %1634 = vmatpush1.bf16.msra.mxu0 %v1467
    %1635 = vmatprep.subr.bf16.mxu0 %v1472
    %1636 = vmatpush1.bf16.msra.mxu0 %v1471
    %1637 = vmatprep.subr.bf16.mxu0 0
    %1638 = vmatpush1.bf16.msra.mxu0 0
    %1639 = vmatprep.subr.bf16.mxu0 0
    %1640 = vmatpush1.bf16.msra.mxu0 0
    %1641 = vmatprep.subr.bf16.mxu0 0
    %1642 = vmatpush1.bf16.msra.mxu0 0
    %1643 = vmatprep.subr.bf16.mxu0 0
    %1644 = vmatpush1.bf16.msra.mxu0 0
    %1645 = vmatprep.subr.bf16.mxu0 0
    %1646 = vmatpush1.bf16.msra.mxu0 0
    %1647 = vmatprep.subr.bf16.mxu0 0
    %1648 = vmatpush1.bf16.msra.mxu0 0
    %1649 = vmatprep.subr.bf16.mxu0 0
    %1650 = vmatpush1.bf16.msra.mxu0 0
    %1651 = vmatprep.subr.bf16.mxu0 0
    %1652 = vmatpush1.bf16.msra.mxu0 0
    %1653 = vmatprep.mubr.bf16.mxu0 0
    %1654 = vmatmul.mubr.bf16.gmra.mrb[0].mxu0 %v1616
    %v1655 = vpop.f32.mrb[0].mxu0
    %v1656 = vadd.f32 %v1617, %v1655
    %v1657 = vpop.f32.mrb[0].mxu0
    %v1658 = vadd.f32 %v1618, %v1657
    %v1659 = vpop.f32.mrb[0].mxu0
    %v1660 = vpop.f32.mrb[0].mxu0
    %1661 = vdwg.mxu0
    %1662 = vmatprep.subr.bf16.mxu0 %v1446
    %1663 = vmatpush1.bf16.msra.mxu0 %v1445
    %1664 = vmatprep.subr.bf16.mxu0 %v1450
    %1665 = vmatpush1.bf16.msra.mxu0 %v1449
    %1666 = vmatprep.subr.bf16.mxu0 %v1454
    %1667 = vmatpush1.bf16.msra.mxu0 %v1453
    %1668 = vmatprep.subr.bf16.mxu0 %v1458
    %1669 = vmatpush1.bf16.msra.mxu0 %v1457
    %1670 = vmatprep.subr.bf16.mxu0 %v1462
    %1671 = vmatpush1.bf16.msra.mxu0 %v1461
    %1672 = vmatprep.subr.bf16.mxu0 %v1466
    %1673 = vmatpush1.bf16.msra.mxu0 %v1465
    %1674 = vmatprep.subr.bf16.mxu0 %v1470
    %1675 = vmatpush1.bf16.msra.mxu0 %v1469
    %1676 = vmatprep.subr.bf16.mxu0 %v1474
    %1677 = vmatpush1.bf16.msra.mxu0 %v1473
    %1678 = vmatprep.subr.bf16.mxu0 0
    %1679 = vmatpush1.bf16.msra.mxu0 0
    %1680 = vmatprep.subr.bf16.mxu0 0
    %1681 = vmatpush1.bf16.msra.mxu0 0
    %1682 = vmatprep.subr.bf16.mxu0 0
    %1683 = vmatpush1.bf16.msra.mxu0 0
    %1684 = vmatprep.subr.bf16.mxu0 0
    %1685 = vmatpush1.bf16.msra.mxu0 0
    %1686 = vmatprep.subr.bf16.mxu0 0
    %1687 = vmatpush1.bf16.msra.mxu0 0
    %1688 = vmatprep.subr.bf16.mxu0 0
    %1689 = vmatpush1.bf16.msra.mxu0 0
    %1690 = vmatprep.subr.bf16.mxu0 0
    %1691 = vmatpush1.bf16.msra.mxu0 0
    %1692 = vmatprep.subr.bf16.mxu0 0
    %1693 = vmatpush1.bf16.msra.mxu0 0
    %1694 = vmatprep.mubr.bf16.mxu0 0
    %1695 = vmatmul.mubr.bf16.gmra.mrb[0].mxu0 %v1616
    %v1696 = vpop.f32.mrb[0].mxu0
    %v1697 = vadd.f32 %v1619, %v1696
    %v1698 = vpop.f32.mrb[0].mxu0
    %v1699 = vadd.f32 %v1620, %v1698
    %v1700 = vpop.f32.mrb[0].mxu0
    %v1701 = vpop.f32.mrb[0].mxu0
    %1702 = vdwg.mxu0
    %v1703 = vxor.u32 %v1656, 2147483648
    %v1704 = vxor.u32 %v1658, 2147483648
    %v1705 = vxor.u32 %v1697, 2147483648
    %v1706 = vmul.f32 %v1703, 1.442695
    %v1707 = vpow.pop %v1706
    %v1708 = vmul.f32 %v1704, 1.442695
    %v1709 = vpow.pop %v1708
    %v1710 = vmul.f32 %v1705, 1.442695
    %v1711 = vpow.pop %v1710
    %v1712 = vadd.f32 %v1707, 1.0
    %v1713 = vadd.f32 %v1709, 1.0
    %v1714 = vadd.f32 %v1711, 1.0
    %v1715 = vrcp.pop %v1712
    %v1716 = vmul.f32 1.0, %v1715
    %v1717 = vrcp.pop %v1713
    %v1718 = vmul.f32 1.0, %v1717
    %v1719 = vrcp.pop %v1714
    %v1720 = vmul.f32 1.0, %v1719
    %v1721 = vtanh.pop %v1699
    %v1722 = vmul.f32 %v1718, %v1610
    %v1723 = vmul.f32 %v1716, %v1721
    %v1724 = vadd.f32 %v1722, %v1723
    %v1725 = vtanh.pop %v1724
    %v1726 = vmul.f32 %v1720, %v1725
    %s1727 = scalar_lea.vmem [#allocation4], 8
    %1728 = vst [vmem:[%s1727] sm:$0xff] %v1726
    %s1729 = scalar_lea.vmem [#allocation5], 248
    %1730 = vst [vmem:[%s1729] sm:$0xff] %v1726
    %v1731 = vpack.c.bf16 %v1726, %v1726
    %v1732 = vld [vmem:[%s1150] sm:$0xff]
    %v1733 = vld [vmem:[%s1150 + $0x8] sm:$0xff]
    %v1734 = vld [vmem:[%s1150 + $0x10] sm:$0xff]
    %v1735 = vld [vmem:[%s1150 + $0x18] sm:$0xff]
    %1736 = vmatprep.subr.bf16.mxu0 %v1444
    %1737 = vmatpush1.bf16.msra.mxu0 %v1443
    %1738 = vmatprep.subr.bf16.mxu0 %v1448
    %1739 = vmatpush1.bf16.msra.mxu0 %v1447
    %1740 = vmatprep.subr.bf16.mxu0 %v1452
    %1741 = vmatpush1.bf16.msra.mxu0 %v1451
    %1742 = vmatprep.subr.bf16.mxu0 %v1456
    %1743 = vmatpush1.bf16.msra.mxu0 %v1455
    %1744 = vmatprep.subr.bf16.mxu0 %v1460
    %1745 = vmatpush1.bf16.msra.mxu0 %v1459
    %1746 = vmatprep.subr.bf16.mxu0 %v1464
    %1747 = vmatpush1.bf16.msra.mxu0 %v1463
    %1748 = vmatprep.subr.bf16.mxu0 %v1468
    %1749 = vmatpush1.bf16.msra.mxu0 %v1467
    %1750 = vmatprep.subr.bf16.mxu0 %v1472
    %1751 = vmatpush1.bf16.msra.mxu0 %v1471
    %1752 = vmatprep.subr.bf16.mxu0 0
    %1753 = vmatpush1.bf16.msra.mxu0 0
    %1754 = vmatprep.subr.bf16.mxu0 0
    %1755 = vmatpush1.bf16.msra.mxu0 0
    %1756 = vmatprep.subr.bf16.mxu0 0
    %1757 = vmatpush1.bf16.msra.mxu0 0
    %1758 = vmatprep.subr.bf16.mxu0 0
    %1759 = vmatpush1.bf16.msra.mxu0 0
    %1760 = vmatprep.subr.bf16.mxu0 0
    %1761 = vmatpush1.bf16.msra.mxu0 0
    %1762 = vmatprep.subr.bf16.mxu0 0
    %1763 = vmatpush1.bf16.msra.mxu0 0
    %1764 = vmatprep.subr.bf16.mxu0 0
    %1765 = vmatpush1.bf16.msra.mxu0 0
    %1766 = vmatprep.subr.bf16.mxu0 0
    %1767 = vmatpush1.bf16.msra.mxu0 0
    %1768 = vmatprep.mubr.bf16.mxu0 0
    %1769 = vmatmul.mubr.bf16.gmra.mrb[0].mxu0 %v1731
    %v1770 = vpop.f32.mrb[0].mxu0
    %v1771 = vadd.f32 %v1732, %v1770
    %v1772 = vpop.f32.mrb[0].mxu0
    %v1773 = vadd.f32 %v1733, %v1772
    %v1774 = vpop.f32.mrb[0].mxu0
    %v1775 = vpop.f32.mrb[0].mxu0
    %1776 = vdwg.mxu0
    %1777 = vmatprep.subr.bf16.mxu0 %v1446
    %1778 = vmatpush1.bf16.msra.mxu0 %v1445
    %1779 = vmatprep.subr.bf16.mxu0 %v1450
    %1780 = vmatpush1.bf16.msra.mxu0 %v1449
    %1781 = vmatprep.subr.bf16.mxu0 %v1454
    %1782 = vmatpush1.bf16.msra.mxu0 %v1453
    %1783 = vmatprep.subr.bf16.mxu0 %v1458
    %1784 = vmatpush1.bf16.msra.mxu0 %v1457
    %1785 = vmatprep.subr.bf16.mxu0 %v1462
    %1786 = vmatpush1.bf16.msra.mxu0 %v1461
    %1787 = vmatprep.subr.bf16.mxu0 %v1466
    %1788 = vmatpush1.bf16.msra.mxu0 %v1465
    %1789 = vmatprep.subr.bf16.mxu0 %v1470
    %1790 = vmatpush1.bf16.msra.mxu0 %v1469
    %1791 = vmatprep.subr.bf16.mxu0 %v1474
    %1792 = vmatpush1.bf16.msra.mxu0 %v1473
    %1793 = vmatprep.subr.bf16.mxu0 0
    %1794 = vmatpush1.bf16.msra.mxu0 0
    %1795 = vmatprep.subr.bf16.mxu0 0
    %1796 = vmatpush1.bf16.msra.mxu0 0
    %1797 = vmatprep.subr.bf16.mxu0 0
    %1798 = vmatpush1.bf16.msra.mxu0 0
    %1799 = vmatprep.subr.bf16.mxu0 0
    %1800 = vmatpush1.bf16.msra.mxu0 0
    %1801 = vmatprep.subr.bf16.mxu0 0
    %1802 = vmatpush1.bf16.msra.mxu0 0
    %1803 = vmatprep.subr.bf16.mxu0 0
    %1804 = vmatpush1.bf16.msra.mxu0 0
    %1805 = vmatprep.subr.bf16.mxu0 0
    %1806 = vmatpush1.bf16.msra.mxu0 0
    %1807 = vmatprep.subr.bf16.mxu0 0
    %1808 = vmatpush1.bf16.msra.mxu0 0
    %1809 = vmatprep.mubr.bf16.mxu0 0
    %1810 = vmatmul.mubr.bf16.gmra.mrb[0].mxu0 %v1731
    %v1811 = vpop.f32.mrb[0].mxu0
    %v1812 = vadd.f32 %v1734, %v1811
    %v1813 = vpop.f32.mrb[0].mxu0
    %v1814 = vadd.f32 %v1735, %v1813
    %v1815 = vpop.f32.mrb[0].mxu0
    %v1816 = vpop.f32.mrb[0].mxu0
    %1817 = vdwg.mxu0
    %v1818 = vxor.u32 %v1771, 2147483648
    %v1819 = vxor.u32 %v1773, 2147483648
    %v1820 = vxor.u32 %v1812, 2147483648
    %v1821 = vmul.f32 %v1818, 1.442695
    %v1822 = vpow.pop %v1821
    %v1823 = vmul.f32 %v1819, 1.442695
    %v1824 = vpow.pop %v1823
    %v1825 = vmul.f32 %v1820, 1.442695
    %v1826 = vpow.pop %v1825
    %v1827 = vadd.f32 %v1822, 1.0
    %v1828 = vadd.f32 %v1824, 1.0
    %v1829 = vadd.f32 %v1826, 1.0
    %v1830 = vrcp.pop %v1827
    %v1831 = vmul.f32 1.0, %v1830
    %v1832 = vrcp.pop %v1828
    %v1833 = vmul.f32 1.0, %v1832
    %v1834 = vrcp.pop %v1829
    %v1835 = vmul.f32 1.0, %v1834
    %v1836 = vtanh.pop %v1814
    %v1837 = vmul.f32 %v1833, %v1724
    %v1838 = vmul.f32 %v1831, %v1836
    %v1839 = vadd.f32 %v1837, %v1838
    %v1840 = vtanh.pop %v1839
    %v1841 = vmul.f32 %v1835, %v1840
    %s1842 = scalar_lea.vmem [#allocation4], 16
    %1843 = vst [vmem:[%s1842] sm:$0xff] %v1841
    %s1844 = scalar_lea.vmem [#allocation5], 240
    %1845 = vst [vmem:[%s1844] sm:$0xff] %v1841
    %v1846 = vpack.c.bf16 %v1841, %v1841
    %v1847 = vld [vmem:[%s1168] sm:$0xff]
    %v1848 = vld [vmem:[%s1168 + $0x8] sm:$0xff]
    %v1849 = vld [vmem:[%s1168 + $0x10] sm:$0xff]
    %v1850 = vld [vmem:[%s1168 + $0x18] sm:$0xff]
    %1851 = vmatprep.subr.bf16.mxu0 %v1444
    %1852 = vmatpush1.bf16.msra.mxu0 %v1443
    %1853 = vmatprep.subr.bf16.mxu0 %v1448
    %1854 = vmatpush1.bf16.msra.mxu0 %v1447
    %1855 = vmatprep.subr.bf16.mxu0 %v1452
    %1856 = vmatpush1.bf16.msra.mxu0 %v1451
    %1857 = vmatprep.subr.bf16.mxu0 %v1456
    %1858 = vmatpush1.bf16.msra.mxu0 %v1455
    %1859 = vmatprep.subr.bf16.mxu0 %v1460
    %1860 = vmatpush1.bf16.msra.mxu0 %v1459
    %1861 = vmatprep.subr.bf16.mxu0 %v1464
    %1862 = vmatpush1.bf16.msra.mxu0 %v1463
    %1863 = vmatprep.subr.bf16.mxu0 %v1468
    %1864 = vmatpush1.bf16.msra.mxu0 %v1467
    %1865 = vmatprep.subr.bf16.mxu0 %v1472
    %1866 = vmatpush1.bf16.msra.mxu0 %v1471
    %1867 = vmatprep.subr.bf16.mxu0 0
    %1868 = vmatpush1.bf16.msra.mxu0 0
    %1869 = vmatprep.subr.bf16.mxu0 0
    %1870 = vmatpush1.bf16.msra.mxu0 0
    %1871 = vmatprep.subr.bf16.mxu0 0
    %1872 = vmatpush1.bf16.msra.mxu0 0
    %1873 = vmatprep.subr.bf16.mxu0 0
    %1874 = vmatpush1.bf16.msra.mxu0 0
    %1875 = vmatprep.subr.bf16.mxu0 0
    %1876 = vmatpush1.bf16.msra.mxu0 0
    %1877 = vmatprep.subr.bf16.mxu0 0
    %1878 = vmatpush1.bf16.msra.mxu0 0
    %1879 = vmatprep.subr.bf16.mxu0 0
    %1880 = vmatpush1.bf16.msra.mxu0 0
    %1881 = vmatprep.subr.bf16.mxu0 0
    %1882 = vmatpush1.bf16.msra.mxu0 0
    %1883 = vmatprep.mubr.bf16.mxu0 0
    %1884 = vmatmul.mubr.bf16.gmra.mrb[0].mxu0 %v1846
    %v1885 = vpop.f32.mrb[0].mxu0
    %v1886 = vadd.f32 %v1847, %v1885
    %v1887 = vpop.f32.mrb[0].mxu0
    %v1888 = vadd.f32 %v1848, %v1887
    %v1889 = vpop.f32.mrb[0].mxu0
    %v1890 = vpop.f32.mrb[0].mxu0
    %1891 = vdwg.mxu0
    %1892 = vmatprep.subr.bf16.mxu0 %v1446
    %1893 = vmatpush1.bf16.msra.mxu0 %v1445
    %1894 = vmatprep.subr.bf16.mxu0 %v1450
    %1895 = vmatpush1.bf16.msra.mxu0 %v1449
    %1896 = vmatprep.subr.bf16.mxu0 %v1454
    %1897 = vmatpush1.bf16.msra.mxu0 %v1453
    %1898 = vmatprep.subr.bf16.mxu0 %v1458
    %1899 = vmatpush1.bf16.msra.mxu0 %v1457
    %1900 = vmatprep.subr.bf16.mxu0 %v1462
    %1901 = vmatpush1.bf16.msra.mxu0 %v1461
    %1902 = vmatprep.subr.bf16.mxu0 %v1466
    %1903 = vmatpush1.bf16.msra.mxu0 %v1465
    %1904 = vmatprep.subr.bf16.mxu0 %v1470
    %1905 = vmatpush1.bf16.msra.mxu0 %v1469
    %1906 = vmatprep.subr.bf16.mxu0 %v1474
    %1907 = vmatpush1.bf16.msra.mxu0 %v1473
    %1908 = vmatprep.subr.bf16.mxu0 0
    %1909 = vmatpush1.bf16.msra.mxu0 0
    %1910 = vmatprep.subr.bf16.mxu0 0
    %1911 = vmatpush1.bf16.msra.mxu0 0
    %1912 = vmatprep.subr.bf16.mxu0 0
    %1913 = vmatpush1.bf16.msra.mxu0 0
    %1914 = vmatprep.subr.bf16.mxu0 0
    %1915 = vmatpush1.bf16.msra.mxu0 0
    %1916 = vmatprep.subr.bf16.mxu0 0
    %1917 = vmatpush1.bf16.msra.mxu0 0
    %1918 = vmatprep.subr.bf16.mxu0 0
    %1919 = vmatpush1.bf16.msra.mxu0 0
    %1920 = vmatprep.subr.bf16.mxu0 0
    %1921 = vmatpush1.bf16.msra.mxu0 0
    %1922 = vmatprep.subr.bf16.mxu0 0
    %1923 = vmatpush1.bf16.msra.mxu0 0
    %1924 = vmatprep.mubr.bf16.mxu0 0
    %1925 = vmatmul.mubr.bf16.gmra.mrb[0].mxu0 %v1846
    %v1926 = vpop.f32.mrb[0].mxu0
    %v1927 = vadd.f32 %v1849, %v1926
    %v1928 = vpop.f32.mrb[0].mxu0
    %v1929 = vadd.f32 %v1850, %v1928
    %v1930 = vpop.f32.mrb[0].mxu0
    %v1931 = vpop.f32.mrb[0].mxu0
    %1932 = vdwg.mxu0
    %v1933 = vxor.u32 %v1886, 2147483648
    %v1934 = vxor.u32 %v1888, 2147483648
    %v1935 = vxor.u32 %v1927, 2147483648
    %v1936 = vmul.f32 %v1933, 1.442695
    %v1937 = vpow.pop %v1936
    %v1938 = vmul.f32 %v1934, 1.442695
    %v1939 = vpow.pop %v1938
    %v1940 = vmul.f32 %v1935, 1.442695
    %v1941 = vpow.pop %v1940
    %v1942 = vadd.f32 %v1937, 1.0
    %v1943 = vadd.f32 %v1939, 1.0
    %v1944 = vadd.f32 %v1941, 1.0
    %v1945 = vrcp.pop %v1942
    %v1946 = vmul.f32 1.0, %v1945
    %v1947 = vrcp.pop %v1943
    %v1948 = vmul.f32 1.0, %v1947
    %v1949 = vrcp.pop %v1944
    %v1950 = vmul.f32 1.0, %v1949
    %v1951 = vtanh.pop %v1929
    %v1952 = vmul.f32 %v1948, %v1839
    %v1953 = vmul.f32 %v1946, %v1951
    %v1954 = vadd.f32 %v1952, %v1953
    %v1955 = vtanh.pop %v1954
    %v1956 = vmul.f32 %v1950, %v1955
    %s1957 = scalar_lea.vmem [#allocation4], 24
    %1958 = vst [vmem:[%s1957] sm:$0xff] %v1956
    %s1959 = scalar_lea.vmem [#allocation5], 232
    %1960 = vst [vmem:[%s1959] sm:$0xff] %v1956
    %v1961 = vpack.c.bf16 %v1956, %v1956
    %v1962 = vld [vmem:[%s1186] sm:$0xff]
    %v1963 = vld [vmem:[%s1186 + $0x8] sm:$0xff]
    %v1964 = vld [vmem:[%s1186 + $0x10] sm:$0xff]
    %v1965 = vld [vmem:[%s1186 + $0x18] sm:$0xff]
    %1966 = vmatprep.subr.bf16.mxu0 %v1444
    %1967 = vmatpush1.bf16.msra.mxu0 %v1443
    %1968 = vmatprep.subr.bf16.mxu0 %v1448
    %1969 = vmatpush1.bf16.msra.mxu0 %v1447
    %1970 = vmatprep.subr.bf16.mxu0 %v1452
    %1971 = vmatpush1.bf16.msra.mxu0 %v1451
    %1972 = vmatprep.subr.bf16.mxu0 %v1456
    %1973 = vmatpush1.bf16.msra.mxu0 %v1455
    %1974 = vmatprep.subr.bf16.mxu0 %v1460
    %1975 = vmatpush1.bf16.msra.mxu0 %v1459
    %1976 = vmatprep.subr.bf16.mxu0 %v1464
    %1977 = vmatpush1.bf16.msra.mxu0 %v1463
    %1978 = vmatprep.subr.bf16.mxu0 %v1468
    %1979 = vmatpush1.bf16.msra.mxu0 %v1467
    %1980 = vmatprep.subr.bf16.mxu0 %v1472
    %1981 = vmatpush1.bf16.msra.mxu0 %v1471
    %1982 = vmatprep.subr.bf16.mxu0 0
    %1983 = vmatpush1.bf16.msra.mxu0 0
    %1984 = vmatprep.subr.bf16.mxu0 0
    %1985 = vmatpush1.bf16.msra.mxu0 0
    %1986 = vmatprep.subr.bf16.mxu0 0
    %1987 = vmatpush1.bf16.msra.mxu0 0
    %1988 = vmatprep.subr.bf16.mxu0 0
    %1989 = vmatpush1.bf16.msra.mxu0 0
    %1990 = vmatprep.subr.bf16.mxu0 0
    %1991 = vmatpush1.bf16.msra.mxu0 0
    %1992 = vmatprep.subr.bf16.mxu0 0
    %1993 = vmatpush1.bf16.msra.mxu0 0
    %1994 = vmatprep.subr.bf16.mxu0 0
    %1995 = vmatpush1.bf16.msra.mxu0 0
    %1996 = vmatprep.subr.bf16.mxu0 0
    %1997 = vmatpush1.bf16.msra.mxu0 0
    %1998 = vmatprep.mubr.bf16.mxu0 0
    %1999 = vmatmul.mubr.bf16.gmra.mrb[0].mxu0 %v1961
    %v2000 = vpop.f32.mrb[0].mxu0
    %v2001 = vadd.f32 %v1962, %v2000
    %v2002 = vpop.f32.mrb[0].mxu0
    %v2003 = vadd.f32 %v1963, %v2002
    %v2004 = vpop.f32.mrb[0].mxu0
    %v2005 = vpop.f32.mrb[0].mxu0
    %2006 = vdwg.mxu0
    %2007 = vmatprep.subr.bf16.mxu0 %v1446
    %2008 = vmatpush1.bf16.msra.mxu0 %v1445
    %2009 = vmatprep.subr.bf16.mxu0 %v1450
    %2010 = vmatpush1.bf16.msra.mxu0 %v1449
    %2011 = vmatprep.subr.bf16.mxu0 %v1454
    %2012 = vmatpush1.bf16.msra.mxu0 %v1453
    %2013 = vmatprep.subr.bf16.mxu0 %v1458
    %2014 = vmatpush1.bf16.msra.mxu0 %v1457
    %2015 = vmatprep.subr.bf16.mxu0 %v1462
    %2016 = vmatpush1.bf16.msra.mxu0 %v1461
    %2017 = vmatprep.subr.bf16.mxu0 %v1466
    %2018 = vmatpush1.bf16.msra.mxu0 %v1465
    %2019 = vmatprep.subr.bf16.mxu0 %v1470
    %2020 = vmatpush1.bf16.msra.mxu0 %v1469
    %2021 = vmatprep.subr.bf16.mxu0 %v1474
    %2022 = vmatpush1.bf16.msra.mxu0 %v1473
    %2023 = vmatprep.subr.bf16.mxu0 0
    %2024 = vmatpush1.bf16.msra.mxu0 0
    %2025 = vmatprep.subr.bf16.mxu0 0
    %2026 = vmatpush1.bf16.msra.mxu0 0
    %2027 = vmatprep.subr.bf16.mxu0 0
    %2028 = vmatpush1.bf16.msra.mxu0 0
    %2029 = vmatprep.subr.bf16.mxu0 0
    %2030 = vmatpush1.bf16.msra.mxu0 0
    %2031 = vmatprep.subr.bf16.mxu0 0
    %2032 = vmatpush1.bf16.msra.mxu0 0
    %2033 = vmatprep.subr.bf16.mxu0 0
    %2034 = vmatpush1.bf16.msra.mxu0 0
    %2035 = vmatprep.subr.bf16.mxu0 0
    %2036 = vmatpush1.bf16.msra.mxu0 0
    %2037 = vmatprep.subr.bf16.mxu0 0
    %2038 = vmatpush1.bf16.msra.mxu0 0
    %2039 = vmatprep.mubr.bf16.mxu0 0
    %2040 = vmatmul.mubr.bf16.gmra.mrb[0].mxu0 %v1961
    %v2041 = vpop.f32.mrb[0].mxu0
    %v2042 = vadd.f32 %v1964, %v2041
    %v2043 = vpop.f32.mrb[0].mxu0
    %v2044 = vadd.f32 %v1965, %v2043
    %v2045 = vpop.f32.mrb[0].mxu0
    %v2046 = vpop.f32.mrb[0].mxu0
    %2047 = vdwg.mxu0
    %v2048 = vxor.u32 %v2001, 2147483648
    %v2049 = vxor.u32 %v2003, 2147483648
    %v2050 = vxor.u32 %v2042, 2147483648
    %v2051 = vmul.f32 %v2048, 1.442695
    %v2052 = vpow.pop %v2051
    %v2053 = vmul.f32 %v2049, 1.442695
    %v2054 = vpow.pop %v2053
    %v2055 = vmul.f32 %v2050, 1.442695
    %v2056 = vpow.pop %v2055
    %v2057 = vadd.f32 %v2052, 1.0
    %v2058 = vadd.f32 %v2054, 1.0
    %v2059 = vadd.f32 %v2056, 1.0
    %v2060 = vrcp.pop %v2057
    %v2061 = vmul.f32 1.0, %v2060
    %v2062 = vrcp.pop %v2058
    %v2063 = vmul.f32 1.0, %v2062
    %v2064 = vrcp.pop %v2059
    %v2065 = vmul.f32 1.0, %v2064
    %v2066 = vtanh.pop %v2044
    %v2067 = vmul.f32 %v2063, %v1954
    %v2068 = vmul.f32 %v2061, %v2066
    %v2069 = vadd.f32 %v2067, %v2068
    %v2070 = vtanh.pop %v2069
    %v2071 = vmul.f32 %v2065, %v2070
    %s2072 = scalar_lea.vmem [#allocation4], 32
    %2073 = vst [vmem:[%s2072] sm:$0xff] %v2071
    %s2074 = scalar_lea.vmem [#allocation5], 224
    %2075 = vst [vmem:[%s2074] sm:$0xff] %v2071
    %v2076 = vpack.c.bf16 %v2071, %v2071
    %v2077 = vld [vmem:[%s1204] sm:$0xff]
    %v2078 = vld [vmem:[%s1204 + $0x8] sm:$0xff]
    %v2079 = vld [vmem:[%s1204 + $0x10] sm:$0xff]
    %v2080 = vld [vmem:[%s1204 + $0x18] sm:$0xff]
    %2081 = vmatprep.subr.bf16.mxu0 %v1444
    %2082 = vmatpush1.bf16.msra.mxu0 %v1443
    %2083 = vmatprep.subr.bf16.mxu0 %v1448
    %2084 = vmatpush1.bf16.msra.mxu0 %v1447
    %2085 = vmatprep.subr.bf16.mxu0 %v1452
    %2086 = vmatpush1.bf16.msra.mxu0 %v1451
    %2087 = vmatprep.subr.bf16.mxu0 %v1456
    %2088 = vmatpush1.bf16.msra.mxu0 %v1455
    %2089 = vmatprep.subr.bf16.mxu0 %v1460
    %2090 = vmatpush1.bf16.msra.mxu0 %v1459
    %2091 = vmatprep.subr.bf16.mxu0 %v1464
    %2092 = vmatpush1.bf16.msra.mxu0 %v1463
    %2093 = vmatprep.subr.bf16.mxu0 %v1468
    %2094 = vmatpush1.bf16.msra.mxu0 %v1467
    %2095 = vmatprep.subr.bf16.mxu0 %v1472
    %2096 = vmatpush1.bf16.msra.mxu0 %v1471
    %2097 = vmatprep.subr.bf16.mxu0 0
    %2098 = vmatpush1.bf16.msra.mxu0 0
    %2099 = vmatprep.subr.bf16.mxu0 0
    %2100 = vmatpush1.bf16.msra.mxu0 0
    %2101 = vmatprep.subr.bf16.mxu0 0
    %2102 = vmatpush1.bf16.msra.mxu0 0
    %2103 = vmatprep.subr.bf16.mxu0 0
    %2104 = vmatpush1.bf16.msra.mxu0 0
    %2105 = vmatprep.subr.bf16.mxu0 0
    %2106 = vmatpush1.bf16.msra.mxu0 0
    %2107 = vmatprep.subr.bf16.mxu0 0
    %2108 = vmatpush1.bf16.msra.mxu0 0
    %2109 = vmatprep.subr.bf16.mxu0 0
    %2110 = vmatpush1.bf16.msra.mxu0 0
    %2111 = vmatprep.subr.bf16.mxu0 0
    %2112 = vmatpush1.bf16.msra.mxu0 0
    %2113 = vmatprep.mubr.bf16.mxu0 0
    %2114 = vmatmul.mubr.bf16.gmra.mrb[0].mxu0 %v2076
    %v2115 = vpop.f32.mrb[0].mxu0
    %v2116 = vadd.f32 %v2077, %v2115
    %v2117 = vpop.f32.mrb[0].mxu0
    %v2118 = vadd.f32 %v2078, %v2117
    %v2119 = vpop.f32.mrb[0].mxu0
    %v2120 = vpop.f32.mrb[0].mxu0
    %2121 = vdwg.mxu0
    %2122 = vmatprep.subr.bf16.mxu0 %v1446
    %2123 = vmatpush1.bf16.msra.mxu0 %v1445
    %2124 = vmatprep.subr.bf16.mxu0 %v1450
    %2125 = vmatpush1.bf16.msra.mxu0 %v1449
    %2126 = vmatprep.subr.bf16.mxu0 %v1454
    %2127 = vmatpush1.bf16.msra.mxu0 %v1453
    %2128 = vmatprep.subr.bf16.mxu0 %v1458
    %2129 = vmatpush1.bf16.msra.mxu0 %v1457
    %2130 = vmatprep.subr.bf16.mxu0 %v1462
    %2131 = vmatpush1.bf16.msra.mxu0 %v1461
    %2132 = vmatprep.subr.bf16.mxu0 %v1466
    %2133 = vmatpush1.bf16.msra.mxu0 %v1465
    %2134 = vmatprep.subr.bf16.mxu0 %v1470
    %2135 = vmatpush1.bf16.msra.mxu0 %v1469
    %2136 = vmatprep.subr.bf16.mxu0 %v1474
    %2137 = vmatpush1.bf16.msra.mxu0 %v1473
    %2138 = vmatprep.subr.bf16.mxu0 0
    %2139 = vmatpush1.bf16.msra.mxu0 0
    %2140 = vmatprep.subr.bf16.mxu0 0
    %2141 = vmatpush1.bf16.msra.mxu0 0
    %2142 = vmatprep.subr.bf16.mxu0 0
    %2143 = vmatpush1.bf16.msra.mxu0 0
    %2144 = vmatprep.subr.bf16.mxu0 0
    %2145 = vmatpush1.bf16.msra.mxu0 0
    %2146 = vmatprep.subr.bf16.mxu0 0
    %2147 = vmatpush1.bf16.msra.mxu0 0
    %2148 = vmatprep.subr.bf16.mxu0 0
    %2149 = vmatpush1.bf16.msra.mxu0 0
    %2150 = vmatprep.subr.bf16.mxu0 0
    %2151 = vmatpush1.bf16.msra.mxu0 0
    %2152 = vmatprep.subr.bf16.mxu0 0
    %2153 = vmatpush1.bf16.msra.mxu0 0
    %2154 = vmatprep.mubr.bf16.mxu0 0
    %2155 = vmatmul.mubr.bf16.gmra.mrb[0].mxu0 %v2076
    %v2156 = vpop.f32.mrb[0].mxu0
    %v2157 = vadd.f32 %v2079, %v2156
    %v2158 = vpop.f32.mrb[0].mxu0
    %v2159 = vadd.f32 %v2080, %v2158
    %v2160 = vpop.f32.mrb[0].mxu0
    %v2161 = vpop.f32.mrb[0].mxu0
    %2162 = vdwg.mxu0
    %v2163 = vxor.u32 %v2116, 2147483648
    %v2164 = vxor.u32 %v2118, 2147483648
    %v2165 = vxor.u32 %v2157, 2147483648
    %v2166 = vmul.f32 %v2163, 1.442695
    %v2167 = vpow.pop %v2166
    %v2168 = vmul.f32 %v2164, 1.442695
    %v2169 = vpow.pop %v2168
    %v2170 = vmul.f32 %v2165, 1.442695
    %v2171 = vpow.pop %v2170
    %v2172 = vadd.f32 %v2167, 1.0
    %v2173 = vadd.f32 %v2169, 1.0
    %v2174 = vadd.f32 %v2171, 1.0
    %v2175 = vrcp.pop %v2172
    %v2176 = vmul.f32 1.0, %v2175
    %v2177 = vrcp.pop %v2173
    %v2178 = vmul.f32 1.0, %v2177
    %v2179 = vrcp.pop %v2174
    %v2180 = vmul.f32 1.0, %v2179
    %v2181 = vtanh.pop %v2159
    %v2182 = vmul.f32 %v2178, %v2069
    %v2183 = vmul.f32 %v2176, %v2181
    %v2184 = vadd.f32 %v2182, %v2183
    %v2185 = vtanh.pop %v2184
    %v2186 = vmul.f32 %v2180, %v2185
    %s2187 = scalar_lea.vmem [#allocation4], 40
    %2188 = vst [vmem:[%s2187] sm:$0xff] %v2186
    %s2189 = scalar_lea.vmem [#allocation5], 216
    %2190 = vst [vmem:[%s2189] sm:$0xff] %v2186
    %v2191 = vpack.c.bf16 %v2186, %v2186
    %v2192 = vld [vmem:[%s1222] sm:$0xff]
    %v2193 = vld [vmem:[%s1222 + $0x8] sm:$0xff]
    %v2194 = vld [vmem:[%s1222 + $0x10] sm:$0xff]
    %v2195 = vld [vmem:[%s1222 + $0x18] sm:$0xff]
    %2196 = vmatprep.subr.bf16.mxu0 %v1444
    %2197 = vmatpush1.bf16.msra.mxu0 %v1443
    %2198 = vmatprep.subr.bf16.mxu0 %v1448
    %2199 = vmatpush1.bf16.msra.mxu0 %v1447
    %2200 = vmatprep.subr.bf16.mxu0 %v1452
    %2201 = vmatpush1.bf16.msra.mxu0 %v1451
    %2202 = vmatprep.subr.bf16.mxu0 %v1456
    %2203 = vmatpush1.bf16.msra.mxu0 %v1455
    %2204 = vmatprep.subr.bf16.mxu0 %v1460
    %2205 = vmatpush1.bf16.msra.mxu0 %v1459
    %2206 = vmatprep.subr.bf16.mxu0 %v1464
    %2207 = vmatpush1.bf16.msra.mxu0 %v1463
    %2208 = vmatprep.subr.bf16.mxu0 %v1468
    %2209 = vmatpush1.bf16.msra.mxu0 %v1467
    %2210 = vmatprep.subr.bf16.mxu0 %v1472
    %2211 = vmatpush1.bf16.msra.mxu0 %v1471
    %2212 = vmatprep.subr.bf16.mxu0 0
    %2213 = vmatpush1.bf16.msra.mxu0 0
    %2214 = vmatprep.subr.bf16.mxu0 0
    %2215 = vmatpush1.bf16.msra.mxu0 0
    %2216 = vmatprep.subr.bf16.mxu0 0
    %2217 = vmatpush1.bf16.msra.mxu0 0
    %2218 = vmatprep.subr.bf16.mxu0 0
    %2219 = vmatpush1.bf16.msra.mxu0 0
    %2220 = vmatprep.subr.bf16.mxu0 0
    %2221 = vmatpush1.bf16.msra.mxu0 0
    %2222 = vmatprep.subr.bf16.mxu0 0
    %2223 = vmatpush1.bf16.msra.mxu0 0
    %2224 = vmatprep.subr.bf16.mxu0 0
    %2225 = vmatpush1.bf16.msra.mxu0 0
    %2226 = vmatprep.subr.bf16.mxu0 0
    %2227 = vmatpush1.bf16.msra.mxu0 0
    %2228 = vmatprep.mubr.bf16.mxu0 0
    %2229 = vmatmul.mubr.bf16.gmra.mrb[0].mxu0 %v2191
    %v2230 = vpop.f32.mrb[0].mxu0
    %v2231 = vadd.f32 %v2192, %v2230
    %v2232 = vpop.f32.mrb[0].mxu0
    %v2233 = vadd.f32 %v2193, %v2232
    %v2234 = vpop.f32.mrb[0].mxu0
    %v2235 = vpop.f32.mrb[0].mxu0
    %2236 = vdwg.mxu0
    %2237 = vmatprep.subr.bf16.mxu0 %v1446
    %2238 = vmatpush1.bf16.msra.mxu0 %v1445
    %2239 = vmatprep.subr.bf16.mxu0 %v1450
    %2240 = vmatpush1.bf16.msra.mxu0 %v1449
    %2241 = vmatprep.subr.bf16.mxu0 %v1454
    %2242 = vmatpush1.bf16.msra.mxu0 %v1453
    %2243 = vmatprep.subr.bf16.mxu0 %v1458
    %2244 = vmatpush1.bf16.msra.mxu0 %v1457
    %2245 = vmatprep.subr.bf16.mxu0 %v1462
    %2246 = vmatpush1.bf16.msra.mxu0 %v1461
    %2247 = vmatprep.subr.bf16.mxu0 %v1466
    %2248 = vmatpush1.bf16.msra.mxu0 %v1465
    %2249 = vmatprep.subr.bf16.mxu0 %v1470
    %2250 = vmatpush1.bf16.msra.mxu0 %v1469
    %2251 = vmatprep.subr.bf16.mxu0 %v1474
    %2252 = vmatpush1.bf16.msra.mxu0 %v1473
    %2253 = vmatprep.subr.bf16.mxu0 0
    %2254 = vmatpush1.bf16.msra.mxu0 0
    %2255 = vmatprep.subr.bf16.mxu0 0
    %2256 = vmatpush1.bf16.msra.mxu0 0
    %2257 = vmatprep.subr.bf16.mxu0 0
    %2258 = vmatpush1.bf16.msra.mxu0 0
    %2259 = vmatprep.subr.bf16.mxu0 0
    %2260 = vmatpush1.bf16.msra.mxu0 0
    %2261 = vmatprep.subr.bf16.mxu0 0
    %2262 = vmatpush1.bf16.msra.mxu0 0
    %2263 = vmatprep.subr.bf16.mxu0 0
    %2264 = vmatpush1.bf16.msra.mxu0 0
    %2265 = vmatprep.subr.bf16.mxu0 0
    %2266 = vmatpush1.bf16.msra.mxu0 0
    %2267 = vmatprep.subr.bf16.mxu0 0
    %2268 = vmatpush1.bf16.msra.mxu0 0
    %2269 = vmatprep.mubr.bf16.mxu0 0
    %2270 = vmatmul.mubr.bf16.gmra.mrb[0].mxu0 %v2191
    %v2271 = vpop.f32.mrb[0].mxu0
    %v2272 = vadd.f32 %v2194, %v2271
    %v2273 = vpop.f32.mrb[0].mxu0
    %v2274 = vadd.f32 %v2195, %v2273
    %v2275 = vpop.f32.mrb[0].mxu0
    %v2276 = vpop.f32.mrb[0].mxu0
    %2277 = vdwg.mxu0
    %v2278 = vxor.u32 %v2231, 2147483648
    %v2279 = vxor.u32 %v2233, 2147483648
    %v2280 = vxor.u32 %v2272, 2147483648
    %v2281 = vmul.f32 %v2278, 1.442695
    %v2282 = vpow.pop %v2281
    %v2283 = vmul.f32 %v2279, 1.442695
    %v2284 = vpow.pop %v2283
    %v2285 = vmul.f32 %v2280, 1.442695
    %v2286 = vpow.pop %v2285
    %v2287 = vadd.f32 %v2282, 1.0
    %v2288 = vadd.f32 %v2284, 1.0
    %v2289 = vadd.f32 %v2286, 1.0
    %v2290 = vrcp.pop %v2287
    %v2291 = vmul.f32 1.0, %v2290
    %v2292 = vrcp.pop %v2288
    %v2293 = vmul.f32 1.0, %v2292
    %v2294 = vrcp.pop %v2289
    %v2295 = vmul.f32 1.0, %v2294
    %v2296 = vtanh.pop %v2274
    %v2297 = vmul.f32 %v2293, %v2184
    %v2298 = vmul.f32 %v2291, %v2296
    %v2299 = vadd.f32 %v2297, %v2298
    %v2300 = vtanh.pop %v2299
    %v2301 = vmul.f32 %v2295, %v2300
    %s2302 = scalar_lea.vmem [#allocation4], 48
    %2303 = vst [vmem:[%s2302] sm:$0xff] %v2301
    %s2304 = scalar_lea.vmem [#allocation5], 208
    %2305 = vst [vmem:[%s2304] sm:$0xff] %v2301
    %v2306 = vpack.c.bf16 %v2301, %v2301
    %v2307 = vld [vmem:[%s1240] sm:$0xff]
    %v2308 = vld [vmem:[%s1240 + $0x8] sm:$0xff]
    %v2309 = vld [vmem:[%s1240 + $0x10] sm:$0xff]
    %v2310 = vld [vmem:[%s1240 + $0x18] sm:$0xff]
    %2311 = vmatprep.subr.bf16.mxu0 %v1444
    %2312 = vmatpush1.bf16.msra.mxu0 %v1443
    %2313 = vmatprep.subr.bf16.mxu0 %v1448
    %2314 = vmatpush1.bf16.msra.mxu0 %v1447
    %2315 = vmatprep.subr.bf16.mxu0 %v1452
    %2316 = vmatpush1.bf16.msra.mxu0 %v1451
    %2317 = vmatprep.subr.bf16.mxu0 %v1456
    %2318 = vmatpush1.bf16.msra.mxu0 %v1455
    %2319 = vmatprep.subr.bf16.mxu0 %v1460
    %2320 = vmatpush1.bf16.msra.mxu0 %v1459
    %2321 = vmatprep.subr.bf16.mxu0 %v1464
    %2322 = vmatpush1.bf16.msra.mxu0 %v1463
    %2323 = vmatprep.subr.bf16.mxu0 %v1468
    %2324 = vmatpush1.bf16.msra.mxu0 %v1467
    %2325 = vmatprep.subr.bf16.mxu0 %v1472
    %2326 = vmatpush1.bf16.msra.mxu0 %v1471
    %2327 = vmatprep.subr.bf16.mxu0 0
    %2328 = vmatpush1.bf16.msra.mxu0 0
    %2329 = vmatprep.subr.bf16.mxu0 0
    %2330 = vmatpush1.bf16.msra.mxu0 0
    %2331 = vmatprep.subr.bf16.mxu0 0
    %2332 = vmatpush1.bf16.msra.mxu0 0
    %2333 = vmatprep.subr.bf16.mxu0 0
    %2334 = vmatpush1.bf16.msra.mxu0 0
    %2335 = vmatprep.subr.bf16.mxu0 0
    %2336 = vmatpush1.bf16.msra.mxu0 0
    %2337 = vmatprep.subr.bf16.mxu0 0
    %2338 = vmatpush1.bf16.msra.mxu0 0
    %2339 = vmatprep.subr.bf16.mxu0 0
    %2340 = vmatpush1.bf16.msra.mxu0 0
    %2341 = vmatprep.subr.bf16.mxu0 0
    %2342 = vmatpush1.bf16.msra.mxu0 0
    %2343 = vmatprep.mubr.bf16.mxu0 0
    %2344 = vmatmul.mubr.bf16.gmra.mrb[0].mxu0 %v2306
    %v2345 = vpop.f32.mrb[0].mxu0
    %v2346 = vadd.f32 %v2307, %v2345
    %v2347 = vpop.f32.mrb[0].mxu0
    %v2348 = vadd.f32 %v2308, %v2347
    %v2349 = vpop.f32.mrb[0].mxu0
    %v2350 = vpop.f32.mrb[0].mxu0
    %2351 = vdwg.mxu0
    %2352 = vmatprep.subr.bf16.mxu0 %v1446
    %2353 = vmatpush1.bf16.msra.mxu0 %v1445
    %2354 = vmatprep.subr.bf16.mxu0 %v1450
    %2355 = vmatpush1.bf16.msra.mxu0 %v1449
    %2356 = vmatprep.subr.bf16.mxu0 %v1454
    %2357 = vmatpush1.bf16.msra.mxu0 %v1453
    %2358 = vmatprep.subr.bf16.mxu0 %v1458
    %2359 = vmatpush1.bf16.msra.mxu0 %v1457
    %2360 = vmatprep.subr.bf16.mxu0 %v1462
    %2361 = vmatpush1.bf16.msra.mxu0 %v1461
    %2362 = vmatprep.subr.bf16.mxu0 %v1466
    %2363 = vmatpush1.bf16.msra.mxu0 %v1465
    %2364 = vmatprep.subr.bf16.mxu0 %v1470
    %2365 = vmatpush1.bf16.msra.mxu0 %v1469
    %2366 = vmatprep.subr.bf16.mxu0 %v1474
    %2367 = vmatpush1.bf16.msra.mxu0 %v1473
    %2368 = vmatprep.subr.bf16.mxu0 0
    %2369 = vmatpush1.bf16.msra.mxu0 0
    %2370 = vmatprep.subr.bf16.mxu0 0
    %2371 = vmatpush1.bf16.msra.mxu0 0
    %2372 = vmatprep.subr.bf16.mxu0 0
    %2373 = vmatpush1.bf16.msra.mxu0 0
    %2374 = vmatprep.subr.bf16.mxu0 0
    %2375 = vmatpush1.bf16.msra.mxu0 0
    %2376 = vmatprep.subr.bf16.mxu0 0
    %2377 = vmatpush1.bf16.msra.mxu0 0
    %2378 = vmatprep.subr.bf16.mxu0 0
    %2379 = vmatpush1.bf16.msra.mxu0 0
    %2380 = vmatprep.subr.bf16.mxu0 0
    %2381 = vmatpush1.bf16.msra.mxu0 0
    %2382 = vmatprep.subr.bf16.mxu0 0
    %2383 = vmatpush1.bf16.msra.mxu0 0
    %2384 = vmatprep.mubr.bf16.mxu0 0
    %2385 = vmatmul.mubr.bf16.gmra.mrb[0].mxu0 %v2306
    %v2386 = vpop.f32.mrb[0].mxu0
    %v2387 = vadd.f32 %v2309, %v2386
    %v2388 = vpop.f32.mrb[0].mxu0
    %v2389 = vadd.f32 %v2310, %v2388
    %v2390 = vpop.f32.mrb[0].mxu0
    %v2391 = vpop.f32.mrb[0].mxu0
    %2392 = vdwg.mxu0
    %v2393 = vxor.u32 %v2346, 2147483648
    %v2394 = vxor.u32 %v2348, 2147483648
    %v2395 = vxor.u32 %v2387, 2147483648
    %v2396 = vmul.f32 %v2393, 1.442695
    %v2397 = vpow.pop %v2396
    %v2398 = vmul.f32 %v2394, 1.442695
    %v2399 = vpow.pop %v2398
    %v2400 = vmul.f32 %v2395, 1.442695
    %v2401 = vpow.pop %v2400
    %v2402 = vadd.f32 %v2397, 1.0
    %v2403 = vadd.f32 %v2399, 1.0
    %v2404 = vadd.f32 %v2401, 1.0
    %v2405 = vrcp.pop %v2402
    %v2406 = vmul.f32 1.0, %v2405
    %v2407 = vrcp.pop %v2403
    %v2408 = vmul.f32 1.0, %v2407
    %v2409 = vrcp.pop %v2404
    %v2410 = vmul.f32 1.0, %v2409
    %v2411 = vtanh.pop %v2389
    %v2412 = vmul.f32 %v2408, %v2299
    %v2413 = vmul.f32 %v2406, %v2411
    %v2414 = vadd.f32 %v2412, %v2413
    %v2415 = vtanh.pop %v2414
    %v2416 = vmul.f32 %v2410, %v2415
    %s2417 = scalar_lea.vmem [#allocation4], 56
    %2418 = vst [vmem:[%s2417] sm:$0xff] %v2416
    %s2419 = scalar_lea.vmem [#allocation5], 200
    %2420 = vst [vmem:[%s2419] sm:$0xff] %v2416
    %v2421 = vpack.c.bf16 %v2416, %v2416
    %v2422 = vld [vmem:[%s1258] sm:$0xff]
    %v2423 = vld [vmem:[%s1258 + $0x8] sm:$0xff]
    %v2424 = vld [vmem:[%s1258 + $0x10] sm:$0xff]
    %v2425 = vld [vmem:[%s1258 + $0x18] sm:$0xff]
    %2426 = vmatprep.subr.bf16.mxu0 %v1444
    %2427 = vmatpush1.bf16.msra.mxu0 %v1443
    %2428 = vmatprep.subr.bf16.mxu0 %v1448
    %2429 = vmatpush1.bf16.msra.mxu0 %v1447
    %2430 = vmatprep.subr.bf16.mxu0 %v1452
    %2431 = vmatpush1.bf16.msra.mxu0 %v1451
    %2432 = vmatprep.subr.bf16.mxu0 %v1456
    %2433 = vmatpush1.bf16.msra.mxu0 %v1455
    %2434 = vmatprep.subr.bf16.mxu0 %v1460
    %2435 = vmatpush1.bf16.msra.mxu0 %v1459
    %2436 = vmatprep.subr.bf16.mxu0 %v1464
    %2437 = vmatpush1.bf16.msra.mxu0 %v1463
    %2438 = vmatprep.subr.bf16.mxu0 %v1468
    %2439 = vmatpush1.bf16.msra.mxu0 %v1467
    %2440 = vmatprep.subr.bf16.mxu0 %v1472
    %2441 = vmatpush1.bf16.msra.mxu0 %v1471
    %2442 = vmatprep.subr.bf16.mxu0 0
    %2443 = vmatpush1.bf16.msra.mxu0 0
    %2444 = vmatprep.subr.bf16.mxu0 0
    %2445 = vmatpush1.bf16.msra.mxu0 0
    %2446 = vmatprep.subr.bf16.mxu0 0
    %2447 = vmatpush1.bf16.msra.mxu0 0
    %2448 = vmatprep.subr.bf16.mxu0 0
    %2449 = vmatpush1.bf16.msra.mxu0 0
    %2450 = vmatprep.subr.bf16.mxu0 0
    %2451 = vmatpush1.bf16.msra.mxu0 0
    %2452 = vmatprep.subr.bf16.mxu0 0
    %2453 = vmatpush1.bf16.msra.mxu0 0
    %2454 = vmatprep.subr.bf16.mxu0 0
    %2455 = vmatpush1.bf16.msra.mxu0 0
    %2456 = vmatprep.subr.bf16.mxu0 0
    %2457 = vmatpush1.bf16.msra.mxu0 0
    %2458 = vmatprep.mubr.bf16.mxu0 0
    %2459 = vmatmul.mubr.bf16.gmra.mrb[0].mxu0 %v2421
    %v2460 = vpop.f32.mrb[0].mxu0
    %v2461 = vadd.f32 %v2422, %v2460
    %v2462 = vpop.f32.mrb[0].mxu0
    %v2463 = vadd.f32 %v2423, %v2462
    %v2464 = vpop.f32.mrb[0].mxu0
    %v2465 = vpop.f32.mrb[0].mxu0
    %2466 = vdwg.mxu0
    %2467 = vmatprep.subr.bf16.mxu0 %v1446
    %2468 = vmatpush1.bf16.msra.mxu0 %v1445
    %2469 = vmatprep.subr.bf16.mxu0 %v1450
    %2470 = vmatpush1.bf16.msra.mxu0 %v1449
    %2471 = vmatprep.subr.bf16.mxu0 %v1454
    %2472 = vmatpush1.bf16.msra.mxu0 %v1453
    %2473 = vmatprep.subr.bf16.mxu0 %v1458
    %2474 = vmatpush1.bf16.msra.mxu0 %v1457
    %2475 = vmatprep.subr.bf16.mxu0 %v1462
    %2476 = vmatpush1.bf16.msra.mxu0 %v1461
    %2477 = vmatprep.subr.bf16.mxu0 %v1466
    %2478 = vmatpush1.bf16.msra.mxu0 %v1465
    %2479 = vmatprep.subr.bf16.mxu0 %v1470
    %2480 = vmatpush1.bf16.msra.mxu0 %v1469
    %2481 = vmatprep.subr.bf16.mxu0 %v1474
    %2482 = vmatpush1.bf16.msra.mxu0 %v1473
    %2483 = vmatprep.subr.bf16.mxu0 0
    %2484 = vmatpush1.bf16.msra.mxu0 0
    %2485 = vmatprep.subr.bf16.mxu0 0
    %2486 = vmatpush1.bf16.msra.mxu0 0
    %2487 = vmatprep.subr.bf16.mxu0 0
    %2488 = vmatpush1.bf16.msra.mxu0 0
    %2489 = vmatprep.subr.bf16.mxu0 0
    %2490 = vmatpush1.bf16.msra.mxu0 0
    %2491 = vmatprep.subr.bf16.mxu0 0
    %2492 = vmatpush1.bf16.msra.mxu0 0
    %2493 = vmatprep.subr.bf16.mxu0 0
    %2494 = vmatpush1.bf16.msra.mxu0 0
    %2495 = vmatprep.subr.bf16.mxu0 0
    %2496 = vmatpush1.bf16.msra.mxu0 0
    %2497 = vmatprep.subr.bf16.mxu0 0
    %2498 = vmatpush1.bf16.msra.mxu0 0
    %2499 = vmatprep.mubr.bf16.mxu0 0
    %2500 = vmatmul.mubr.bf16.gmra.mrb[0].mxu0 %v2421
    %v2501 = vpop.f32.mrb[0].mxu0
    %v2502 = vadd.f32 %v2424, %v2501
    %v2503 = vpop.f32.mrb[0].mxu0
    %v2504 = vadd.f32 %v2425, %v2503
    %v2505 = vpop.f32.mrb[0].mxu0
    %v2506 = vpop.f32.mrb[0].mxu0
    %2507 = vdwg.mxu0
    %v2508 = vxor.u32 %v2461, 2147483648
    %v2509 = vxor.u32 %v2463, 2147483648
    %v2510 = vxor.u32 %v2502, 2147483648
    %v2511 = vmul.f32 %v2508, 1.442695
    %v2512 = vpow.pop %v2511
    %v2513 = vmul.f32 %v2509, 1.442695
    %v2514 = vpow.pop %v2513
    %v2515 = vmul.f32 %v2510, 1.442695
    %v2516 = vpow.pop %v2515
    %v2517 = vadd.f32 %v2512, 1.0
    %v2518 = vadd.f32 %v2514, 1.0
    %v2519 = vadd.f32 %v2516, 1.0
    %v2520 = vrcp.pop %v2517
    %v2521 = vmul.f32 1.0, %v2520
    %v2522 = vrcp.pop %v2518
    %v2523 = vmul.f32 1.0, %v2522
    %v2524 = vrcp.pop %v2519
    %v2525 = vmul.f32 1.0, %v2524
    %v2526 = vtanh.pop %v2504
    %v2527 = vmul.f32 %v2523, %v2414
    %v2528 = vmul.f32 %v2521, %v2526
    %v2529 = vadd.f32 %v2527, %v2528
    %v2530 = vtanh.pop %v2529
    %v2531 = vmul.f32 %v2525, %v2530
    %s2532 = scalar_lea.vmem [#allocation4], 64
    %2533 = vst [vmem:[%s2532] sm:$0xff] %v2531
    %s2534 = scalar_lea.vmem [#allocation5], 192
    %2535 = vst [vmem:[%s2534] sm:$0xff] %v2531
    %v2536 = vpack.c.bf16 %v2531, %v2531
    %v2537 = vld [vmem:[%s1276] sm:$0xff]
    %v2538 = vld [vmem:[%s1276 + $0x8] sm:$0xff]
    %v2539 = vld [vmem:[%s1276 + $0x10] sm:$0xff]
    %v2540 = vld [vmem:[%s1276 + $0x18] sm:$0xff]
    %2541 = vmatprep.subr.bf16.mxu0 %v1444
    %2542 = vmatpush1.bf16.msra.mxu0 %v1443
    %2543 = vmatprep.subr.bf16.mxu0 %v1448
    %2544 = vmatpush1.bf16.msra.mxu0 %v1447
    %2545 = vmatprep.subr.bf16.mxu0 %v1452
    %2546 = vmatpush1.bf16.msra.mxu0 %v1451
    %2547 = vmatprep.subr.bf16.mxu0 %v1456
    %2548 = vmatpush1.bf16.msra.mxu0 %v1455
    %2549 = vmatprep.subr.bf16.mxu0 %v1460
    %2550 = vmatpush1.bf16.msra.mxu0 %v1459
    %2551 = vmatprep.subr.bf16.mxu0 %v1464
    %2552 = vmatpush1.bf16.msra.mxu0 %v1463
    %2553 = vmatprep.subr.bf16.mxu0 %v1468
    %2554 = vmatpush1.bf16.msra.mxu0 %v1467
    %2555 = vmatprep.subr.bf16.mxu0 %v1472
    %2556 = vmatpush1.bf16.msra.mxu0 %v1471
    %2557 = vmatprep.subr.bf16.mxu0 0
    %2558 = vmatpush1.bf16.msra.mxu0 0
    %2559 = vmatprep.subr.bf16.mxu0 0
    %2560 = vmatpush1.bf16.msra.mxu0 0
    %2561 = vmatprep.subr.bf16.mxu0 0
    %2562 = vmatpush1.bf16.msra.mxu0 0
    %2563 = vmatprep.subr.bf16.mxu0 0
    %2564 = vmatpush1.bf16.msra.mxu0 0
    %2565 = vmatprep.subr.bf16.mxu0 0
    %2566 = vmatpush1.bf16.msra.mxu0 0
    %2567 = vmatprep.subr.bf16.mxu0 0
    %2568 = vmatpush1.bf16.msra.mxu0 0
    %2569 = vmatprep.subr.bf16.mxu0 0
    %2570 = vmatpush1.bf16.msra.mxu0 0
    %2571 = vmatprep.subr.bf16.mxu0 0
    %2572 = vmatpush1.bf16.msra.mxu0 0
    %2573 = vmatprep.mubr.bf16.mxu0 0
    %2574 = vmatmul.mubr.bf16.gmra.mrb[0].mxu0 %v2536
    %v2575 = vpop.f32.mrb[0].mxu0
    %v2576 = vadd.f32 %v2537, %v2575
    %v2577 = vpop.f32.mrb[0].mxu0
    %v2578 = vadd.f32 %v2538, %v2577
    %v2579 = vpop.f32.mrb[0].mxu0
    %v2580 = vpop.f32.mrb[0].mxu0
    %2581 = vdwg.mxu0
    %2582 = vmatprep.subr.bf16.mxu0 %v1446
    %2583 = vmatpush1.bf16.msra.mxu0 %v1445
    %2584 = vmatprep.subr.bf16.mxu0 %v1450
    %2585 = vmatpush1.bf16.msra.mxu0 %v1449
    %2586 = vmatprep.subr.bf16.mxu0 %v1454
    %2587 = vmatpush1.bf16.msra.mxu0 %v1453
    %2588 = vmatprep.subr.bf16.mxu0 %v1458
    %2589 = vmatpush1.bf16.msra.mxu0 %v1457
    %2590 = vmatprep.subr.bf16.mxu0 %v1462
    %2591 = vmatpush1.bf16.msra.mxu0 %v1461
    %2592 = vmatprep.subr.bf16.mxu0 %v1466
    %2593 = vmatpush1.bf16.msra.mxu0 %v1465
    %2594 = vmatprep.subr.bf16.mxu0 %v1470
    %2595 = vmatpush1.bf16.msra.mxu0 %v1469
    %2596 = vmatprep.subr.bf16.mxu0 %v1474
    %2597 = vmatpush1.bf16.msra.mxu0 %v1473
    %2598 = vmatprep.subr.bf16.mxu0 0
    %2599 = vmatpush1.bf16.msra.mxu0 0
    %2600 = vmatprep.subr.bf16.mxu0 0
    %2601 = vmatpush1.bf16.msra.mxu0 0
    %2602 = vmatprep.subr.bf16.mxu0 0
    %2603 = vmatpush1.bf16.msra.mxu0 0
    %2604 = vmatprep.subr.bf16.mxu0 0
    %2605 = vmatpush1.bf16.msra.mxu0 0
    %2606 = vmatprep.subr.bf16.mxu0 0
    %2607 = vmatpush1.bf16.msra.mxu0 0
    %2608 = vmatprep.subr.bf16.mxu0 0
    %2609 = vmatpush1.bf16.msra.mxu0 0
    %2610 = vmatprep.subr.bf16.mxu0 0
    %2611 = vmatpush1.bf16.msra.mxu0 0
    %2612 = vmatprep.subr.bf16.mxu0 0
    %2613 = vmatpush1.bf16.msra.mxu0 0
    %2614 = vmatprep.mubr.bf16.mxu0 0
    %2615 = vmatmul.mubr.bf16.gmra.mrb[0].mxu0 %v2536
    %v2616 = vpop.f32.mrb[0].mxu0
    %v2617 = vadd.f32 %v2539, %v2616
    %v2618 = vpop.f32.mrb[0].mxu0
    %v2619 = vadd.f32 %v2540, %v2618
    %v2620 = vpop.f32.mrb[0].mxu0
    %v2621 = vpop.f32.mrb[0].mxu0
    %2622 = vdwg.mxu0
    %v2623 = vxor.u32 %v2576, 2147483648
    %v2624 = vxor.u32 %v2578, 2147483648
    %v2625 = vxor.u32 %v2617, 2147483648
    %v2626 = vmul.f32 %v2623, 1.442695
    %v2627 = vpow.pop %v2626
    %v2628 = vmul.f32 %v2624, 1.442695
    %v2629 = vpow.pop %v2628
    %v2630 = vmul.f32 %v2625, 1.442695
    %v2631 = vpow.pop %v2630
    %v2632 = vadd.f32 %v2627, 1.0
    %v2633 = vadd.f32 %v2629, 1.0
    %v2634 = vadd.f32 %v2631, 1.0
    %v2635 = vrcp.pop %v2632
    %v2636 = vmul.f32 1.0, %v2635
    %v2637 = vrcp.pop %v2633
    %v2638 = vmul.f32 1.0, %v2637
    %v2639 = vrcp.pop %v2634
    %v2640 = vmul.f32 1.0, %v2639
    %v2641 = vtanh.pop %v2619
    %v2642 = vmul.f32 %v2638, %v2529
    %v2643 = vmul.f32 %v2636, %v2641
    %v2644 = vadd.f32 %v2642, %v2643
    %v2645 = vtanh.pop %v2644
    %v2646 = vmul.f32 %v2640, %v2645
    %s2647 = scalar_lea.vmem [#allocation4], 72
    %2648 = vst [vmem:[%s2647] sm:$0xff] %v2646
    %s2649 = scalar_lea.vmem [#allocation5], 184
    %2650 = vst [vmem:[%s2649] sm:$0xff] %v2646
    %v2651 = vpack.c.bf16 %v2646, %v2646
    %v2652 = vld [vmem:[%s1294] sm:$0xff]
    %v2653 = vld [vmem:[%s1294 + $0x8] sm:$0xff]
    %v2654 = vld [vmem:[%s1294 + $0x10] sm:$0xff]
    %v2655 = vld [vmem:[%s1294 + $0x18] sm:$0xff]
    %2656 = vmatprep.subr.bf16.mxu0 %v1444
    %2657 = vmatpush1.bf16.msra.mxu0 %v1443
    %2658 = vmatprep.subr.bf16.mxu0 %v1448
    %2659 = vmatpush1.bf16.msra.mxu0 %v1447
    %2660 = vmatprep.subr.bf16.mxu0 %v1452
    %2661 = vmatpush1.bf16.msra.mxu0 %v1451
    %2662 = vmatprep.subr.bf16.mxu0 %v1456
    %2663 = vmatpush1.bf16.msra.mxu0 %v1455
    %2664 = vmatprep.subr.bf16.mxu0 %v1460
    %2665 = vmatpush1.bf16.msra.mxu0 %v1459
    %2666 = vmatprep.subr.bf16.mxu0 %v1464
    %2667 = vmatpush1.bf16.msra.mxu0 %v1463
    %2668 = vmatprep.subr.bf16.mxu0 %v1468
    %2669 = vmatpush1.bf16.msra.mxu0 %v1467
    %2670 = vmatprep.subr.bf16.mxu0 %v1472
    %2671 = vmatpush1.bf16.msra.mxu0 %v1471
    %2672 = vmatprep.subr.bf16.mxu0 0
    %2673 = vmatpush1.bf16.msra.mxu0 0
    %2674 = vmatprep.subr.bf16.mxu0 0
    %2675 = vmatpush1.bf16.msra.mxu0 0
    %2676 = vmatprep.subr.bf16.mxu0 0
    %2677 = vmatpush1.bf16.msra.mxu0 0
    %2678 = vmatprep.subr.bf16.mxu0 0
    %2679 = vmatpush1.bf16.msra.mxu0 0
    %2680 = vmatprep.subr.bf16.mxu0 0
    %2681 = vmatpush1.bf16.msra.mxu0 0
    %2682 = vmatprep.subr.bf16.mxu0 0
    %2683 = vmatpush1.bf16.msra.mxu0 0
    %2684 = vmatprep.subr.bf16.mxu0 0
    %2685 = vmatpush1.bf16.msra.mxu0 0
    %2686 = vmatprep.subr.bf16.mxu0 0
    %2687 = vmatpush1.bf16.msra.mxu0 0
    %2688 = vmatprep.mubr.bf16.mxu0 0
    %2689 = vmatmul.mubr.bf16.gmra.mrb[0].mxu0 %v2651
    %v2690 = vpop.f32.mrb[0].mxu0
    %v2691 = vadd.f32 %v2652, %v2690
    %v2692 = vpop.f32.mrb[0].mxu0
    %v2693 = vadd.f32 %v2653, %v2692
    %v2694 = vpop.f32.mrb[0].mxu0
    %v2695 = vpop.f32.mrb[0].mxu0
    %2696 = vdwg.mxu0
    %2697 = vmatprep.subr.bf16.mxu0 %v1446
    %2698 = vmatpush1.bf16.msra.mxu0 %v1445
    %2699 = vmatprep.subr.bf16.mxu0 %v1450
    %2700 = vmatpush1.bf16.msra.mxu0 %v1449
    %2701 = vmatprep.subr.bf16.mxu0 %v1454
    %2702 = vmatpush1.bf16.msra.mxu0 %v1453
    %2703 = vmatprep.subr.bf16.mxu0 %v1458
    %2704 = vmatpush1.bf16.msra.mxu0 %v1457
    %2705 = vmatprep.subr.bf16.mxu0 %v1462
    %2706 = vmatpush1.bf16.msra.mxu0 %v1461
    %2707 = vmatprep.subr.bf16.mxu0 %v1466
    %2708 = vmatpush1.bf16.msra.mxu0 %v1465
    %2709 = vmatprep.subr.bf16.mxu0 %v1470
    %2710 = vmatpush1.bf16.msra.mxu0 %v1469
    %2711 = vmatprep.subr.bf16.mxu0 %v1474
    %2712 = vmatpush1.bf16.msra.mxu0 %v1473
    %2713 = vmatprep.subr.bf16.mxu0 0
    %2714 = vmatpush1.bf16.msra.mxu0 0
    %2715 = vmatprep.subr.bf16.mxu0 0
    %2716 = vmatpush1.bf16.msra.mxu0 0
    %2717 = vmatprep.subr.bf16.mxu0 0
    %2718 = vmatpush1.bf16.msra.mxu0 0
    %2719 = vmatprep.subr.bf16.mxu0 0
    %2720 = vmatpush1.bf16.msra.mxu0 0
    %2721 = vmatprep.subr.bf16.mxu0 0
    %2722 = vmatpush1.bf16.msra.mxu0 0
    %2723 = vmatprep.subr.bf16.mxu0 0
    %2724 = vmatpush1.bf16.msra.mxu0 0
    %2725 = vmatprep.subr.bf16.mxu0 0
    %2726 = vmatpush1.bf16.msra.mxu0 0
    %2727 = vmatprep.subr.bf16.mxu0 0
    %2728 = vmatpush1.bf16.msra.mxu0 0
    %2729 = vmatprep.mubr.bf16.mxu0 0
    %2730 = vmatmul.mubr.bf16.gmra.mrb[0].mxu0 %v2651
    %v2731 = vpop.f32.mrb[0].mxu0
    %v2732 = vadd.f32 %v2654, %v2731
    %v2733 = vpop.f32.mrb[0].mxu0
    %v2734 = vadd.f32 %v2655, %v2733
    %v2735 = vpop.f32.mrb[0].mxu0
    %v2736 = vpop.f32.mrb[0].mxu0
    %2737 = vdwg.mxu0
    %v2738 = vxor.u32 %v2691, 2147483648
    %v2739 = vxor.u32 %v2693, 2147483648
    %v2740 = vxor.u32 %v2732, 2147483648
    %v2741 = vmul.f32 %v2738, 1.442695
    %v2742 = vpow.pop %v2741
    %v2743 = vmul.f32 %v2739, 1.442695
    %v2744 = vpow.pop %v2743
    %v2745 = vmul.f32 %v2740, 1.442695
    %v2746 = vpow.pop %v2745
    %v2747 = vadd.f32 %v2742, 1.0
    %v2748 = vadd.f32 %v2744, 1.0
    %v2749 = vadd.f32 %v2746, 1.0
    %v2750 = vrcp.pop %v2747
    %v2751 = vmul.f32 1.0, %v2750
    %v2752 = vrcp.pop %v2748
    %v2753 = vmul.f32 1.0, %v2752
    %v2754 = vrcp.pop %v2749
    %v2755 = vmul.f32 1.0, %v2754
    %v2756 = vtanh.pop %v2734
    %v2757 = vmul.f32 %v2753, %v2644
    %v2758 = vmul.f32 %v2751, %v2756
    %v2759 = vadd.f32 %v2757, %v2758
    %v2760 = vtanh.pop %v2759
    %v2761 = vmul.f32 %v2755, %v2760
    %s2762 = scalar_lea.vmem [#allocation4], 80
    %2763 = vst [vmem:[%s2762] sm:$0xff] %v2761
    %s2764 = scalar_lea.vmem [#allocation5], 176
    %2765 = vst [vmem:[%s2764] sm:$0xff] %v2761
    %v2766 = vpack.c.bf16 %v2761, %v2761
    %v2767 = vld [vmem:[#allocation2] sm:$0xff]
    %v2768 = vld [vmem:[#allocation2 + $0x8] sm:$0xff]
    %v2769 = vld [vmem:[#allocation2 + $0x10] sm:$0xff]
    %v2770 = vld [vmem:[#allocation2 + $0x18] sm:$0xff]
    %2771 = vmatprep.subr.bf16.mxu0 %v1444
    %2772 = vmatpush1.bf16.msra.mxu0 %v1443
    %2773 = vmatprep.subr.bf16.mxu0 %v1448
    %2774 = vmatpush1.bf16.msra.mxu0 %v1447
    %2775 = vmatprep.subr.bf16.mxu0 %v1452
    %2776 = vmatpush1.bf16.msra.mxu0 %v1451
    %2777 = vmatprep.subr.bf16.mxu0 %v1456
    %2778 = vmatpush1.bf16.msra.mxu0 %v1455
    %2779 = vmatprep.subr.bf16.mxu0 %v1460
    %2780 = vmatpush1.bf16.msra.mxu0 %v1459
    %2781 = vmatprep.subr.bf16.mxu0 %v1464
    %2782 = vmatpush1.bf16.msra.mxu0 %v1463
    %2783 = vmatprep.subr.bf16.mxu0 %v1468
    %2784 = vmatpush1.bf16.msra.mxu0 %v1467
    %2785 = vmatprep.subr.bf16.mxu0 %v1472
    %2786 = vmatpush1.bf16.msra.mxu0 %v1471
    %2787 = vmatprep.subr.bf16.mxu0 0
    %2788 = vmatpush1.bf16.msra.mxu0 0
    %2789 = vmatprep.subr.bf16.mxu0 0
    %2790 = vmatpush1.bf16.msra.mxu0 0
    %2791 = vmatprep.subr.bf16.mxu0 0
    %2792 = vmatpush1.bf16.msra.mxu0 0
    %2793 = vmatprep.subr.bf16.mxu0 0
    %2794 = vmatpush1.bf16.msra.mxu0 0
    %2795 = vmatprep.subr.bf16.mxu0 0
    %2796 = vmatpush1.bf16.msra.mxu0 0
    %2797 = vmatprep.subr.bf16.mxu0 0
    %2798 = vmatpush1.bf16.msra.mxu0 0
    %2799 = vmatprep.subr.bf16.mxu0 0
    %2800 = vmatpush1.bf16.msra.mxu0 0
    %2801 = vmatprep.subr.bf16.mxu0 0
    %2802 = vmatpush1.bf16.msra.mxu0 0
    %2803 = vmatprep.mubr.bf16.mxu0 0
    %2804 = vmatmul.mubr.bf16.gmra.mrb[0].mxu0 %v2766
    %v2805 = vpop.f32.mrb[0].mxu0
    %v2806 = vadd.f32 %v2767, %v2805
    %v2807 = vpop.f32.mrb[0].mxu0
    %v2808 = vadd.f32 %v2768, %v2807
    %v2809 = vpop.f32.mrb[0].mxu0
    %v2810 = vpop.f32.mrb[0].mxu0
    %2811 = vdwg.mxu0
    %2812 = vmatprep.subr.bf16.mxu0 %v1446
    %2813 = vmatpush1.bf16.msra.mxu0 %v1445
    %2814 = vmatprep.subr.bf16.mxu0 %v1450
    %2815 = vmatpush1.bf16.msra.mxu0 %v1449
    %2816 = vmatprep.subr.bf16.mxu0 %v1454
    %2817 = vmatpush1.bf16.msra.mxu0 %v1453
    %2818 = vmatprep.subr.bf16.mxu0 %v1458
    %2819 = vmatpush1.bf16.msra.mxu0 %v1457
    %2820 = vmatprep.subr.bf16.mxu0 %v1462
    %2821 = vmatpush1.bf16.msra.mxu0 %v1461
    %2822 = vmatprep.subr.bf16.mxu0 %v1466
    %2823 = vmatpush1.bf16.msra.mxu0 %v1465
    %2824 = vmatprep.subr.bf16.mxu0 %v1470
    %2825 = vmatpush1.bf16.msra.mxu0 %v1469
    %2826 = vmatprep.subr.bf16.mxu0 %v1474
    %2827 = vmatpush1.bf16.msra.mxu0 %v1473
    %2828 = vmatprep.subr.bf16.mxu0 0
    %2829 = vmatpush1.bf16.msra.mxu0 0
    %2830 = vmatprep.subr.bf16.mxu0 0
    %2831 = vmatpush1.bf16.msra.mxu0 0
    %2832 = vmatprep.subr.bf16.mxu0 0
    %2833 = vmatpush1.bf16.msra.mxu0 0
    %2834 = vmatprep.subr.bf16.mxu0 0
    %2835 = vmatpush1.bf16.msra.mxu0 0
    %2836 = vmatprep.subr.bf16.mxu0 0
    %2837 = vmatpush1.bf16.msra.mxu0 0
    %2838 = vmatprep.subr.bf16.mxu0 0
    %2839 = vmatpush1.bf16.msra.mxu0 0
    %2840 = vmatprep.subr.bf16.mxu0 0
    %2841 = vmatpush1.bf16.msra.mxu0 0
    %2842 = vmatprep.subr.bf16.mxu0 0
    %2843 = vmatpush1.bf16.msra.mxu0 0
    %2844 = vmatprep.mubr.bf16.mxu0 0
    %2845 = vmatmul.mubr.bf16.gmra.mrb[0].mxu0 %v2766
    %v2846 = vpop.f32.mrb[0].mxu0
    %v2847 = vadd.f32 %v2769, %v2846
    %v2848 = vpop.f32.mrb[0].mxu0
    %v2849 = vadd.f32 %v2770, %v2848
    %v2850 = vpop.f32.mrb[0].mxu0
    %v2851 = vpop.f32.mrb[0].mxu0
    %2852 = vdwg.mxu0
    %v2853 = vxor.u32 %v2806, 2147483648
    %v2854 = vxor.u32 %v2808, 2147483648
    %v2855 = vxor.u32 %v2847, 2147483648
    %v2856 = vmul.f32 %v2853, 1.442695
    %v2857 = vpow.pop %v2856
    %v2858 = vmul.f32 %v2854, 1.442695
    %v2859 = vpow.pop %v2858
    %v2860 = vmul.f32 %v2855, 1.442695
    %v2861 = vpow.pop %v2860
    %v2862 = vadd.f32 %v2857, 1.0
    %v2863 = vadd.f32 %v2859, 1.0
    %v2864 = vadd.f32 %v2861, 1.0
    %v2865 = vrcp.pop %v2862
    %v2866 = vmul.f32 1.0, %v2865
    %v2867 = vrcp.pop %v2863
    %v2868 = vmul.f32 1.0, %v2867
    %v2869 = vrcp.pop %v2864
    %v2870 = vmul.f32 1.0, %v2869
    %v2871 = vtanh.pop %v2849
    %v2872 = vmul.f32 %v2868, %v2759
    %v2873 = vmul.f32 %v2866, %v2871
    %v2874 = vadd.f32 %v2872, %v2873
    %v2875 = vtanh.pop %v2874
    %v2876 = vmul.f32 %v2870, %v2875
    %s2877 = scalar_lea.vmem [#allocation4], 88
    %2878 = vst [vmem:[%s2877] sm:$0xff] %v2876
    %s2879 = scalar_lea.vmem [#allocation5], 168
    %2880 = vst [vmem:[%s2879] sm:$0xff] %v2876
    %v2881 = vpack.c.bf16 %v2876, %v2876
    %v2882 = vld [vmem:[%s1132] sm:$0xff]
    %v2883 = vld [vmem:[%s1132 + $0x8] sm:$0xff]
    %v2884 = vld [vmem:[%s1132 + $0x10] sm:$0xff]
    %v2885 = vld [vmem:[%s1132 + $0x18] sm:$0xff]
    %2886 = vmatprep.subr.bf16.mxu0 %v1444
    %2887 = vmatpush1.bf16.msra.mxu0 %v1443
    %2888 = vmatprep.subr.bf16.mxu0 %v1448
    %2889 = vmatpush1.bf16.msra.mxu0 %v1447
    %2890 = vmatprep.subr.bf16.mxu0 %v1452
    %2891 = vmatpush1.bf16.msra.mxu0 %v1451
    %2892 = vmatprep.subr.bf16.mxu0 %v1456
    %2893 = vmatpush1.bf16.msra.mxu0 %v1455
    %2894 = vmatprep.subr.bf16.mxu0 %v1460
    %2895 = vmatpush1.bf16.msra.mxu0 %v1459
    %2896 = vmatprep.subr.bf16.mxu0 %v1464
    %2897 = vmatpush1.bf16.msra.mxu0 %v1463
    %2898 = vmatprep.subr.bf16.mxu0 %v1468
    %2899 = vmatpush1.bf16.msra.mxu0 %v1467
    %2900 = vmatprep.subr.bf16.mxu0 %v1472
    %2901 = vmatpush1.bf16.msra.mxu0 %v1471
    %2902 = vmatprep.subr.bf16.mxu0 0
    %2903 = vmatpush1.bf16.msra.mxu0 0
    %2904 = vmatprep.subr.bf16.mxu0 0
    %2905 = vmatpush1.bf16.msra.mxu0 0
    %2906 = vmatprep.subr.bf16.mxu0 0
    %2907 = vmatpush1.bf16.msra.mxu0 0
    %2908 = vmatprep.subr.bf16.mxu0 0
    %2909 = vmatpush1.bf16.msra.mxu0 0
    %2910 = vmatprep.subr.bf16.mxu0 0
    %2911 = vmatpush1.bf16.msra.mxu0 0
    %2912 = vmatprep.subr.bf16.mxu0 0
    %2913 = vmatpush1.bf16.msra.mxu0 0
    %2914 = vmatprep.subr.bf16.mxu0 0
    %2915 = vmatpush1.bf16.msra.mxu0 0
    %2916 = vmatprep.subr.bf16.mxu0 0
    %2917 = vmatpush1.bf16.msra.mxu0 0
    %2918 = vmatprep.mubr.bf16.mxu0 0
    %2919 = vmatmul.mubr.bf16.gmra.mrb[0].mxu0 %v2881
    %v2920 = vpop.f32.mrb[0].mxu0
    %v2921 = vadd.f32 %v2882, %v2920
    %v2922 = vpop.f32.mrb[0].mxu0
    %v2923 = vadd.f32 %v2883, %v2922
    %v2924 = vpop.f32.mrb[0].mxu0
    %v2925 = vpop.f32.mrb[0].mxu0
    %2926 = vdwg.mxu0
    %2927 = vmatprep.subr.bf16.mxu0 %v1446
    %2928 = vmatpush1.bf16.msra.mxu0 %v1445
    %2929 = vmatprep.subr.bf16.mxu0 %v1450
    %2930 = vmatpush1.bf16.msra.mxu0 %v1449
    %2931 = vmatprep.subr.bf16.mxu0 %v1454
    %2932 = vmatpush1.bf16.msra.mxu0 %v1453
    %2933 = vmatprep.subr.bf16.mxu0 %v1458
    %2934 = vmatpush1.bf16.msra.mxu0 %v1457
    %2935 = vmatprep.subr.bf16.mxu0 %v1462
    %2936 = vmatpush1.bf16.msra.mxu0 %v1461
    %2937 = vmatprep.subr.bf16.mxu0 %v1466
    %2938 = vmatpush1.bf16.msra.mxu0 %v1465
    %2939 = vmatprep.subr.bf16.mxu0 %v1470
    %2940 = vmatpush1.bf16.msra.mxu0 %v1469
    %2941 = vmatprep.subr.bf16.mxu0 %v1474
    %2942 = vmatpush1.bf16.msra.mxu0 %v1473
    %2943 = vmatprep.subr.bf16.mxu0 0
    %2944 = vmatpush1.bf16.msra.mxu0 0
    %2945 = vmatprep.subr.bf16.mxu0 0
    %2946 = vmatpush1.bf16.msra.mxu0 0
    %2947 = vmatprep.subr.bf16.mxu0 0
    %2948 = vmatpush1.bf16.msra.mxu0 0
    %2949 = vmatprep.subr.bf16.mxu0 0
    %2950 = vmatpush1.bf16.msra.mxu0 0
    %2951 = vmatprep.subr.bf16.mxu0 0
    %2952 = vmatpush1.bf16.msra.mxu0 0
    %2953 = vmatprep.subr.bf16.mxu0 0
    %2954 = vmatpush1.bf16.msra.mxu0 0
    %2955 = vmatprep.subr.bf16.mxu0 0
    %2956 = vmatpush1.bf16.msra.mxu0 0
    %2957 = vmatprep.subr.bf16.mxu0 0
    %2958 = vmatpush1.bf16.msra.mxu0 0
    %2959 = vmatprep.mubr.bf16.mxu0 0
    %2960 = vmatmul.mubr.bf16.gmra.mrb[0].mxu0 %v2881
    %v2961 = vpop.f32.mrb[0].mxu0
    %v2962 = vadd.f32 %v2884, %v2961
    %v2963 = vpop.f32.mrb[0].mxu0
    %v2964 = vadd.f32 %v2885, %v2963
    %v2965 = vpop.f32.mrb[0].mxu0
    %v2966 = vpop.f32.mrb[0].mxu0
    %2967 = vdwg.mxu0
    %v2968 = vxor.u32 %v2921, 2147483648
    %v2969 = vxor.u32 %v2923, 2147483648
    %v2970 = vxor.u32 %v2962, 2147483648
    %v2971 = vmul.f32 %v2968, 1.442695
    %v2972 = vpow.pop %v2971
    %v2973 = vmul.f32 %v2969, 1.442695
    %v2974 = vpow.pop %v2973
    %v2975 = vmul.f32 %v2970, 1.442695
    %v2976 = vpow.pop %v2975
    %v2977 = vadd.f32 %v2972, 1.0
    %v2978 = vadd.f32 %v2974, 1.0
    %v2979 = vadd.f32 %v2976, 1.0
    %v2980 = vrcp.pop %v2977
    %v2981 = vmul.f32 1.0, %v2980
    %v2982 = vrcp.pop %v2978
    %v2983 = vmul.f32 1.0, %v2982
    %v2984 = vrcp.pop %v2979
    %v2985 = vmul.f32 1.0, %v2984
    %v2986 = vtanh.pop %v2964
    %v2987 = vmul.f32 %v2983, %v2874
    %v2988 = vmul.f32 %v2981, %v2986
    %v2989 = vadd.f32 %v2987, %v2988
    %v2990 = vtanh.pop %v2989
    %v2991 = vmul.f32 %v2985, %v2990
    %s2992 = scalar_lea.vmem [#allocation4], 96
    %2993 = vst [vmem:[%s2992] sm:$0xff] %v2991
    %s2994 = scalar_lea.vmem [#allocation5], 160
    %2995 = vst [vmem:[%s2994] sm:$0xff] %v2991
    %v2996 = vpack.c.bf16 %v2991, %v2991
    %v2997 = vld [vmem:[%s1150] sm:$0xff]
    %v2998 = vld [vmem:[%s1150 + $0x8] sm:$0xff]
    %v2999 = vld [vmem:[%s1150 + $0x10] sm:$0xff]
    %v3000 = vld [vmem:[%s1150 + $0x18] sm:$0xff]
    %3001 = vmatprep.subr.bf16.mxu0 %v1444
    %3002 = vmatpush1.bf16.msra.mxu0 %v1443
    %3003 = vmatprep.subr.bf16.mxu0 %v1448
    %3004 = vmatpush1.bf16.msra.mxu0 %v1447
    %3005 = vmatprep.subr.bf16.mxu0 %v1452
    %3006 = vmatpush1.bf16.msra.mxu0 %v1451
    %3007 = vmatprep.subr.bf16.mxu0 %v1456
    %3008 = vmatpush1.bf16.msra.mxu0 %v1455
    %3009 = vmatprep.subr.bf16.mxu0 %v1460
    %3010 = vmatpush1.bf16.msra.mxu0 %v1459
    %3011 = vmatprep.subr.bf16.mxu0 %v1464
    %3012 = vmatpush1.bf16.msra.mxu0 %v1463
    %3013 = vmatprep.subr.bf16.mxu0 %v1468
    %3014 = vmatpush1.bf16.msra.mxu0 %v1467
    %3015 = vmatprep.subr.bf16.mxu0 %v1472
    %3016 = vmatpush1.bf16.msra.mxu0 %v1471
    %3017 = vmatprep.subr.bf16.mxu0 0
    %3018 = vmatpush1.bf16.msra.mxu0 0
    %3019 = vmatprep.subr.bf16.mxu0 0
    %3020 = vmatpush1.bf16.msra.mxu0 0
    %3021 = vmatprep.subr.bf16.mxu0 0
    %3022 = vmatpush1.bf16.msra.mxu0 0
    %3023 = vmatprep.subr.bf16.mxu0 0
    %3024 = vmatpush1.bf16.msra.mxu0 0
    %3025 = vmatprep.subr.bf16.mxu0 0
    %3026 = vmatpush1.bf16.msra.mxu0 0
    %3027 = vmatprep.subr.bf16.mxu0 0
    %3028 = vmatpush1.bf16.msra.mxu0 0
    %3029 = vmatprep.subr.bf16.mxu0 0
    %3030 = vmatpush1.bf16.msra.mxu0 0
    %3031 = vmatprep.subr.bf16.mxu0 0
    %3032 = vmatpush1.bf16.msra.mxu0 0
    %3033 = vmatprep.mubr.bf16.mxu0 0
    %3034 = vmatmul.mubr.bf16.gmra.mrb[0].mxu0 %v2996
    %v3035 = vpop.f32.mrb[0].mxu0
    %v3036 = vadd.f32 %v2997, %v3035
    %v3037 = vpop.f32.mrb[0].mxu0
    %v3038 = vadd.f32 %v2998, %v3037
    %v3039 = vpop.f32.mrb[0].mxu0
    %v3040 = vpop.f32.mrb[0].mxu0
    %3041 = vdwg.mxu0
    %3042 = vmatprep.subr.bf16.mxu0 %v1446
    %3043 = vmatpush1.bf16.msra.mxu0 %v1445
    %3044 = vmatprep.subr.bf16.mxu0 %v1450
    %3045 = vmatpush1.bf16.msra.mxu0 %v1449
    %3046 = vmatprep.subr.bf16.mxu0 %v1454
    %3047 = vmatpush1.bf16.msra.mxu0 %v1453
    %3048 = vmatprep.subr.bf16.mxu0 %v1458
    %3049 = vmatpush1.bf16.msra.mxu0 %v1457
    %3050 = vmatprep.subr.bf16.mxu0 %v1462
    %3051 = vmatpush1.bf16.msra.mxu0 %v1461
    %3052 = vmatprep.subr.bf16.mxu0 %v1466
    %3053 = vmatpush1.bf16.msra.mxu0 %v1465
    %3054 = vmatprep.subr.bf16.mxu0 %v1470
    %3055 = vmatpush1.bf16.msra.mxu0 %v1469
    %3056 = vmatprep.subr.bf16.mxu0 %v1474
    %3057 = vmatpush1.bf16.msra.mxu0 %v1473
    %3058 = vmatprep.subr.bf16.mxu0 0
    %3059 = vmatpush1.bf16.msra.mxu0 0
    %3060 = vmatprep.subr.bf16.mxu0 0
    %3061 = vmatpush1.bf16.msra.mxu0 0
    %3062 = vmatprep.subr.bf16.mxu0 0
    %3063 = vmatpush1.bf16.msra.mxu0 0
    %3064 = vmatprep.subr.bf16.mxu0 0
    %3065 = vmatpush1.bf16.msra.mxu0 0
    %3066 = vmatprep.subr.bf16.mxu0 0
    %3067 = vmatpush1.bf16.msra.mxu0 0
    %3068 = vmatprep.subr.bf16.mxu0 0
    %3069 = vmatpush1.bf16.msra.mxu0 0
    %3070 = vmatprep.subr.bf16.mxu0 0
    %3071 = vmatpush1.bf16.msra.mxu0 0
    %3072 = vmatprep.subr.bf16.mxu0 0
    %3073 = vmatpush1.bf16.msra.mxu0 0
    %3074 = vmatprep.mubr.bf16.mxu0 0
    %3075 = vmatmul.mubr.bf16.gmra.mrb[0].mxu0 %v2996
    %v3076 = vpop.f32.mrb[0].mxu0
    %v3077 = vadd.f32 %v2999, %v3076
    %v3078 = vpop.f32.mrb[0].mxu0
    %v3079 = vadd.f32 %v3000, %v3078
    %v3080 = vpop.f32.mrb[0].mxu0
    %v3081 = vpop.f32.mrb[0].mxu0
    %3082 = vdwg.mxu0
    %v3083 = vxor.u32 %v3036, 2147483648
    %v3084 = vxor.u32 %v3038, 2147483648
    %v3085 = vxor.u32 %v3077, 2147483648
    %v3086 = vmul.f32 %v3083, 1.442695
    %v3087 = vpow.pop %v3086
    %v3088 = vmul.f32 %v3084, 1.442695
    %v3089 = vpow.pop %v3088
    %v3090 = vmul.f32 %v3085, 1.442695
    %v3091 = vpow.pop %v3090
    %v3092 = vadd.f32 %v3087, 1.0
    %v3093 = vadd.f32 %v3089, 1.0
    %v3094 = vadd.f32 %v3091, 1.0
    %v3095 = vrcp.pop %v3092
    %v3096 = vmul.f32 1.0, %v3095
    %v3097 = vrcp.pop %v3093
    %v3098 = vmul.f32 1.0, %v3097
    %v3099 = vrcp.pop %v3094
    %v3100 = vmul.f32 1.0, %v3099
    %v3101 = vtanh.pop %v3079
    %v3102 = vmul.f32 %v3098, %v2989
    %v3103 = vmul.f32 %v3096, %v3101
    %v3104 = vadd.f32 %v3102, %v3103
    %v3105 = vtanh.pop %v3104
    %v3106 = vmul.f32 %v3100, %v3105
    %s3107 = scalar_lea.vmem [#allocation4], 104
    %3108 = vst [vmem:[%s3107] sm:$0xff] %v3106
    %s3109 = scalar_lea.vmem [#allocation5], 152
    %3110 = vst [vmem:[%s3109] sm:$0xff] %v3106
    %v3111 = vpack.c.bf16 %v3106, %v3106
    %v3112 = vld [vmem:[%s1168] sm:$0xff]
    %v3113 = vld [vmem:[%s1168 + $0x8] sm:$0xff]
    %v3114 = vld [vmem:[%s1168 + $0x10] sm:$0xff]
    %v3115 = vld [vmem:[%s1168 + $0x18] sm:$0xff]
    %3116 = vmatprep.subr.bf16.mxu0 %v1444
    %3117 = vmatpush1.bf16.msra.mxu0 %v1443
    %3118 = vmatprep.subr.bf16.mxu0 %v1448
    %3119 = vmatpush1.bf16.msra.mxu0 %v1447
    %3120 = vmatprep.subr.bf16.mxu0 %v1452
    %3121 = vmatpush1.bf16.msra.mxu0 %v1451
    %3122 = vmatprep.subr.bf16.mxu0 %v1456
    %3123 = vmatpush1.bf16.msra.mxu0 %v1455
    %3124 = vmatprep.subr.bf16.mxu0 %v1460
    %3125 = vmatpush1.bf16.msra.mxu0 %v1459
    %3126 = vmatprep.subr.bf16.mxu0 %v1464
    %3127 = vmatpush1.bf16.msra.mxu0 %v1463
    %3128 = vmatprep.subr.bf16.mxu0 %v1468
    %3129 = vmatpush1.bf16.msra.mxu0 %v1467
    %3130 = vmatprep.subr.bf16.mxu0 %v1472
    %3131 = vmatpush1.bf16.msra.mxu0 %v1471
    %3132 = vmatprep.subr.bf16.mxu0 0
    %3133 = vmatpush1.bf16.msra.mxu0 0
    %3134 = vmatprep.subr.bf16.mxu0 0
    %3135 = vmatpush1.bf16.msra.mxu0 0
    %3136 = vmatprep.subr.bf16.mxu0 0
    %3137 = vmatpush1.bf16.msra.mxu0 0
    %3138 = vmatprep.subr.bf16.mxu0 0
    %3139 = vmatpush1.bf16.msra.mxu0 0
    %3140 = vmatprep.subr.bf16.mxu0 0
    %3141 = vmatpush1.bf16.msra.mxu0 0
    %3142 = vmatprep.subr.bf16.mxu0 0
    %3143 = vmatpush1.bf16.msra.mxu0 0
    %3144 = vmatprep.subr.bf16.mxu0 0
    %3145 = vmatpush1.bf16.msra.mxu0 0
    %3146 = vmatprep.subr.bf16.mxu0 0
    %3147 = vmatpush1.bf16.msra.mxu0 0
    %3148 = vmatprep.mubr.bf16.mxu0 0
    %3149 = vmatmul.mubr.bf16.gmra.mrb[0].mxu0 %v3111
    %v3150 = vpop.f32.mrb[0].mxu0
    %v3151 = vadd.f32 %v3112, %v3150
    %v3152 = vpop.f32.mrb[0].mxu0
    %v3153 = vadd.f32 %v3113, %v3152
    %v3154 = vpop.f32.mrb[0].mxu0
    %v3155 = vpop.f32.mrb[0].mxu0
    %3156 = vdwg.mxu0
    %3157 = vmatprep.subr.bf16.mxu0 %v1446
    %3158 = vmatpush1.bf16.msra.mxu0 %v1445
    %3159 = vmatprep.subr.bf16.mxu0 %v1450
    %3160 = vmatpush1.bf16.msra.mxu0 %v1449
    %3161 = vmatprep.subr.bf16.mxu0 %v1454
    %3162 = vmatpush1.bf16.msra.mxu0 %v1453
    %3163 = vmatprep.subr.bf16.mxu0 %v1458
    %3164 = vmatpush1.bf16.msra.mxu0 %v1457
    %3165 = vmatprep.subr.bf16.mxu0 %v1462
    %3166 = vmatpush1.bf16.msra.mxu0 %v1461
    %3167 = vmatprep.subr.bf16.mxu0 %v1466
    %3168 = vmatpush1.bf16.msra.mxu0 %v1465
    %3169 = vmatprep.subr.bf16.mxu0 %v1470
    %3170 = vmatpush1.bf16.msra.mxu0 %v1469
    %3171 = vmatprep.subr.bf16.mxu0 %v1474
    %3172 = vmatpush1.bf16.msra.mxu0 %v1473
    %3173 = vmatprep.subr.bf16.mxu0 0
    %3174 = vmatpush1.bf16.msra.mxu0 0
    %3175 = vmatprep.subr.bf16.mxu0 0
    %3176 = vmatpush1.bf16.msra.mxu0 0
    %3177 = vmatprep.subr.bf16.mxu0 0
    %3178 = vmatpush1.bf16.msra.mxu0 0
    %3179 = vmatprep.subr.bf16.mxu0 0
    %3180 = vmatpush1.bf16.msra.mxu0 0
    %3181 = vmatprep.subr.bf16.mxu0 0
    %3182 = vmatpush1.bf16.msra.mxu0 0
    %3183 = vmatprep.subr.bf16.mxu0 0
    %3184 = vmatpush1.bf16.msra.mxu0 0
    %3185 = vmatprep.subr.bf16.mxu0 0
    %3186 = vmatpush1.bf16.msra.mxu0 0
    %3187 = vmatprep.subr.bf16.mxu0 0
    %3188 = vmatpush1.bf16.msra.mxu0 0
    %3189 = vmatprep.mubr.bf16.mxu0 0
    %3190 = vmatmul.mubr.bf16.gmra.mrb[0].mxu0 %v3111
    %v3191 = vpop.f32.mrb[0].mxu0
    %v3192 = vadd.f32 %v3114, %v3191
    %v3193 = vpop.f32.mrb[0].mxu0
    %v3194 = vadd.f32 %v3115, %v3193
    %v3195 = vpop.f32.mrb[0].mxu0
    %v3196 = vpop.f32.mrb[0].mxu0
    %3197 = vdwg.mxu0
    %v3198 = vxor.u32 %v3151, 2147483648
    %v3199 = vxor.u32 %v3153, 2147483648
    %v3200 = vxor.u32 %v3192, 2147483648
    %v3201 = vmul.f32 %v3198, 1.442695
    %v3202 = vpow.pop %v3201
    %v3203 = vmul.f32 %v3199, 1.442695
    %v3204 = vpow.pop %v3203
    %v3205 = vmul.f32 %v3200, 1.442695
    %v3206 = vpow.pop %v3205
    %v3207 = vadd.f32 %v3202, 1.0
    %v3208 = vadd.f32 %v3204, 1.0
    %v3209 = vadd.f32 %v3206, 1.0
    %v3210 = vrcp.pop %v3207
    %v3211 = vmul.f32 1.0, %v3210
    %v3212 = vrcp.pop %v3208
    %v3213 = vmul.f32 1.0, %v3212
    %v3214 = vrcp.pop %v3209
    %v3215 = vmul.f32 1.0, %v3214
    %v3216 = vtanh.pop %v3194
    %v3217 = vmul.f32 %v3213, %v3104
    %v3218 = vmul.f32 %v3211, %v3216
    %v3219 = vadd.f32 %v3217, %v3218
    %v3220 = vtanh.pop %v3219
    %v3221 = vmul.f32 %v3215, %v3220
    %s3222 = scalar_lea.vmem [#allocation4], 112
    %3223 = vst [vmem:[%s3222] sm:$0xff] %v3221
    %s3224 = scalar_lea.vmem [#allocation5], 144
    %3225 = vst [vmem:[%s3224] sm:$0xff] %v3221
    %v3226 = vpack.c.bf16 %v3221, %v3221
    %v3227 = vld [vmem:[%s1186] sm:$0xff]
    %v3228 = vld [vmem:[%s1186 + $0x8] sm:$0xff]
    %v3229 = vld [vmem:[%s1186 + $0x10] sm:$0xff]
    %v3230 = vld [vmem:[%s1186 + $0x18] sm:$0xff]
    %3231 = vmatprep.subr.bf16.mxu0 %v1444
    %3232 = vmatpush1.bf16.msra.mxu0 %v1443
    %3233 = vmatprep.subr.bf16.mxu0 %v1448
    %3234 = vmatpush1.bf16.msra.mxu0 %v1447
    %3235 = vmatprep.subr.bf16.mxu0 %v1452
    %3236 = vmatpush1.bf16.msra.mxu0 %v1451
    %3237 = vmatprep.subr.bf16.mxu0 %v1456
    %3238 = vmatpush1.bf16.msra.mxu0 %v1455
    %3239 = vmatprep.subr.bf16.mxu0 %v1460
    %3240 = vmatpush1.bf16.msra.mxu0 %v1459
    %3241 = vmatprep.subr.bf16.mxu0 %v1464
    %3242 = vmatpush1.bf16.msra.mxu0 %v1463
    %3243 = vmatprep.subr.bf16.mxu0 %v1468
    %3244 = vmatpush1.bf16.msra.mxu0 %v1467
    %3245 = vmatprep.subr.bf16.mxu0 %v1472
    %3246 = vmatpush1.bf16.msra.mxu0 %v1471
    %3247 = vmatprep.subr.bf16.mxu0 0
    %3248 = vmatpush1.bf16.msra.mxu0 0
    %3249 = vmatprep.subr.bf16.mxu0 0
    %3250 = vmatpush1.bf16.msra.mxu0 0
    %3251 = vmatprep.subr.bf16.mxu0 0
    %3252 = vmatpush1.bf16.msra.mxu0 0
    %3253 = vmatprep.subr.bf16.mxu0 0
    %3254 = vmatpush1.bf16.msra.mxu0 0
    %3255 = vmatprep.subr.bf16.mxu0 0
    %3256 = vmatpush1.bf16.msra.mxu0 0
    %3257 = vmatprep.subr.bf16.mxu0 0
    %3258 = vmatpush1.bf16.msra.mxu0 0
    %3259 = vmatprep.subr.bf16.mxu0 0
    %3260 = vmatpush1.bf16.msra.mxu0 0
    %3261 = vmatprep.subr.bf16.mxu0 0
    %3262 = vmatpush1.bf16.msra.mxu0 0
    %3263 = vmatprep.mubr.bf16.mxu0 0
    %3264 = vmatmul.mubr.bf16.gmra.mrb[0].mxu0 %v3226
    %v3265 = vpop.f32.mrb[0].mxu0
    %v3266 = vadd.f32 %v3227, %v3265
    %v3267 = vpop.f32.mrb[0].mxu0
    %v3268 = vadd.f32 %v3228, %v3267
    %v3269 = vpop.f32.mrb[0].mxu0
    %v3270 = vpop.f32.mrb[0].mxu0
    %3271 = vdwg.mxu0
    %3272 = vmatprep.subr.bf16.mxu0 %v1446
    %3273 = vmatpush1.bf16.msra.mxu0 %v1445
    %3274 = vmatprep.subr.bf16.mxu0 %v1450
    %3275 = vmatpush1.bf16.msra.mxu0 %v1449
    %3276 = vmatprep.subr.bf16.mxu0 %v1454
    %3277 = vmatpush1.bf16.msra.mxu0 %v1453
    %3278 = vmatprep.subr.bf16.mxu0 %v1458
    %3279 = vmatpush1.bf16.msra.mxu0 %v1457
    %3280 = vmatprep.subr.bf16.mxu0 %v1462
    %3281 = vmatpush1.bf16.msra.mxu0 %v1461
    %3282 = vmatprep.subr.bf16.mxu0 %v1466
    %3283 = vmatpush1.bf16.msra.mxu0 %v1465
    %3284 = vmatprep.subr.bf16.mxu0 %v1470
    %3285 = vmatpush1.bf16.msra.mxu0 %v1469
    %3286 = vmatprep.subr.bf16.mxu0 %v1474
    %3287 = vmatpush1.bf16.msra.mxu0 %v1473
    %3288 = vmatprep.subr.bf16.mxu0 0
    %3289 = vmatpush1.bf16.msra.mxu0 0
    %3290 = vmatprep.subr.bf16.mxu0 0
    %3291 = vmatpush1.bf16.msra.mxu0 0
    %3292 = vmatprep.subr.bf16.mxu0 0
    %3293 = vmatpush1.bf16.msra.mxu0 0
    %3294 = vmatprep.subr.bf16.mxu0 0
    %3295 = vmatpush1.bf16.msra.mxu0 0
    %3296 = vmatprep.subr.bf16.mxu0 0
    %3297 = vmatpush1.bf16.msra.mxu0 0
    %3298 = vmatprep.subr.bf16.mxu0 0
    %3299 = vmatpush1.bf16.msra.mxu0 0
    %3300 = vmatprep.subr.bf16.mxu0 0
    %3301 = vmatpush1.bf16.msra.mxu0 0
    %3302 = vmatprep.subr.bf16.mxu0 0
    %3303 = vmatpush1.bf16.msra.mxu0 0
    %3304 = vmatprep.mubr.bf16.mxu0 0
    %3305 = vmatmul.mubr.bf16.gmra.mrb[0].mxu0 %v3226
    %v3306 = vpop.f32.mrb[0].mxu0
    %v3307 = vadd.f32 %v3229, %v3306
    %v3308 = vpop.f32.mrb[0].mxu0
    %v3309 = vadd.f32 %v3230, %v3308
    %v3310 = vpop.f32.mrb[0].mxu0
    %v3311 = vpop.f32.mrb[0].mxu0
    %3312 = vdwg.mxu0
    %v3313 = vxor.u32 %v3266, 2147483648
    %v3314 = vxor.u32 %v3268, 2147483648
    %v3315 = vxor.u32 %v3307, 2147483648
    %v3316 = vmul.f32 %v3313, 1.442695
    %v3317 = vpow.pop %v3316
    %v3318 = vmul.f32 %v3314, 1.442695
    %v3319 = vpow.pop %v3318
    %v3320 = vmul.f32 %v3315, 1.442695
    %v3321 = vpow.pop %v3320
    %v3322 = vadd.f32 %v3317, 1.0
    %v3323 = vadd.f32 %v3319, 1.0
    %v3324 = vadd.f32 %v3321, 1.0
    %v3325 = vrcp.pop %v3322
    %v3326 = vmul.f32 1.0, %v3325
    %v3327 = vrcp.pop %v3323
    %v3328 = vmul.f32 1.0, %v3327
    %v3329 = vrcp.pop %v3324
    %v3330 = vmul.f32 1.0, %v3329
    %v3331 = vtanh.pop %v3309
    %v3332 = vmul.f32 %v3328, %v3219
    %v3333 = vmul.f32 %v3326, %v3331
    %v3334 = vadd.f32 %v3332, %v3333
    %v3335 = vtanh.pop %v3334
    %v3336 = vmul.f32 %v3330, %v3335
    %s3337 = scalar_lea.vmem [#allocation4], 120
    %3338 = vst [vmem:[%s3337] sm:$0xff] %v3336
    %s3339 = scalar_lea.vmem [#allocation5], 136
    %3340 = vst [vmem:[%s3339] sm:$0xff] %v3336
    %v3341 = vpack.c.bf16 %v3336, %v3336
    %v3342 = vld [vmem:[%s1204] sm:$0xff]
    %v3343 = vld [vmem:[%s1204 + $0x8] sm:$0xff]
    %v3344 = vld [vmem:[%s1204 + $0x10] sm:$0xff]
    %v3345 = vld [vmem:[%s1204 + $0x18] sm:$0xff]
    %3346 = vmatprep.subr.bf16.mxu0 %v1444
    %3347 = vmatpush1.bf16.msra.mxu0 %v1443
    %3348 = vmatprep.subr.bf16.mxu0 %v1448
    %3349 = vmatpush1.bf16.msra.mxu0 %v1447
    %3350 = vmatprep.subr.bf16.mxu0 %v1452
    %3351 = vmatpush1.bf16.msra.mxu0 %v1451
    %3352 = vmatprep.subr.bf16.mxu0 %v1456
    %3353 = vmatpush1.bf16.msra.mxu0 %v1455
    %3354 = vmatprep.subr.bf16.mxu0 %v1460
    %3355 = vmatpush1.bf16.msra.mxu0 %v1459
    %3356 = vmatprep.subr.bf16.mxu0 %v1464
    %3357 = vmatpush1.bf16.msra.mxu0 %v1463
    %3358 = vmatprep.subr.bf16.mxu0 %v1468
    %3359 = vmatpush1.bf16.msra.mxu0 %v1467
    %3360 = vmatprep.subr.bf16.mxu0 %v1472
    %3361 = vmatpush1.bf16.msra.mxu0 %v1471
    %3362 = vmatprep.subr.bf16.mxu0 0
    %3363 = vmatpush1.bf16.msra.mxu0 0
    %3364 = vmatprep.subr.bf16.mxu0 0
    %3365 = vmatpush1.bf16.msra.mxu0 0
    %3366 = vmatprep.subr.bf16.mxu0 0
    %3367 = vmatpush1.bf16.msra.mxu0 0
    %3368 = vmatprep.subr.bf16.mxu0 0
    %3369 = vmatpush1.bf16.msra.mxu0 0
    %3370 = vmatprep.subr.bf16.mxu0 0
    %3371 = vmatpush1.bf16.msra.mxu0 0
    %3372 = vmatprep.subr.bf16.mxu0 0
    %3373 = vmatpush1.bf16.msra.mxu0 0
    %3374 = vmatprep.subr.bf16.mxu0 0
    %3375 = vmatpush1.bf16.msra.mxu0 0
    %3376 = vmatprep.subr.bf16.mxu0 0
    %3377 = vmatpush1.bf16.msra.mxu0 0
    %3378 = vmatprep.mubr.bf16.mxu0 0
    %3379 = vmatmul.mubr.bf16.gmra.mrb[0].mxu0 %v3341
    %v3380 = vpop.f32.mrb[0].mxu0
    %v3381 = vadd.f32 %v3342, %v3380
    %v3382 = vpop.f32.mrb[0].mxu0
    %v3383 = vadd.f32 %v3343, %v3382
    %v3384 = vpop.f32.mrb[0].mxu0
    %v3385 = vpop.f32.mrb[0].mxu0
    %3386 = vdwg.mxu0
    %3387 = vmatprep.subr.bf16.mxu0 %v1446
    %3388 = vmatpush1.bf16.msra.mxu0 %v1445
    %3389 = vmatprep.subr.bf16.mxu0 %v1450
    %3390 = vmatpush1.bf16.msra.mxu0 %v1449
    %3391 = vmatprep.subr.bf16.mxu0 %v1454
    %3392 = vmatpush1.bf16.msra.mxu0 %v1453
    %3393 = vmatprep.subr.bf16.mxu0 %v1458
    %3394 = vmatpush1.bf16.msra.mxu0 %v1457
    %3395 = vmatprep.subr.bf16.mxu0 %v1462
    %3396 = vmatpush1.bf16.msra.mxu0 %v1461
    %3397 = vmatprep.subr.bf16.mxu0 %v1466
    %3398 = vmatpush1.bf16.msra.mxu0 %v1465
    %3399 = vmatprep.subr.bf16.mxu0 %v1470
    %3400 = vmatpush1.bf16.msra.mxu0 %v1469
    %3401 = vmatprep.subr.bf16.mxu0 %v1474
    %3402 = vmatpush1.bf16.msra.mxu0 %v1473
    %3403 = vmatprep.subr.bf16.mxu0 0
    %3404 = vmatpush1.bf16.msra.mxu0 0
    %3405 = vmatprep.subr.bf16.mxu0 0
    %3406 = vmatpush1.bf16.msra.mxu0 0
    %3407 = vmatprep.subr.bf16.mxu0 0
    %3408 = vmatpush1.bf16.msra.mxu0 0
    %3409 = vmatprep.subr.bf16.mxu0 0
    %3410 = vmatpush1.bf16.msra.mxu0 0
    %3411 = vmatprep.subr.bf16.mxu0 0
    %3412 = vmatpush1.bf16.msra.mxu0 0
    %3413 = vmatprep.subr.bf16.mxu0 0
    %3414 = vmatpush1.bf16.msra.mxu0 0
    %3415 = vmatprep.subr.bf16.mxu0 0
    %3416 = vmatpush1.bf16.msra.mxu0 0
    %3417 = vmatprep.subr.bf16.mxu0 0
    %3418 = vmatpush1.bf16.msra.mxu0 0
    %3419 = vmatprep.mubr.bf16.mxu0 0
    %3420 = vmatmul.mubr.bf16.gmra.mrb[0].mxu0 %v3341
    %v3421 = vpop.f32.mrb[0].mxu0
    %v3422 = vadd.f32 %v3344, %v3421
    %v3423 = vpop.f32.mrb[0].mxu0
    %v3424 = vadd.f32 %v3345, %v3423
    %v3425 = vpop.f32.mrb[0].mxu0
    %v3426 = vpop.f32.mrb[0].mxu0
    %3427 = vdwg.mxu0
    %v3428 = vxor.u32 %v3381, 2147483648
    %v3429 = vxor.u32 %v3383, 2147483648
    %v3430 = vxor.u32 %v3422, 2147483648
    %v3431 = vmul.f32 %v3428, 1.442695
    %v3432 = vpow.pop %v3431
    %v3433 = vmul.f32 %v3429, 1.442695
    %v3434 = vpow.pop %v3433
    %v3435 = vmul.f32 %v3430, 1.442695
    %v3436 = vpow.pop %v3435
    %v3437 = vadd.f32 %v3432, 1.0
    %v3438 = vadd.f32 %v3434, 1.0
    %v3439 = vadd.f32 %v3436, 1.0
    %v3440 = vrcp.pop %v3437
    %v3441 = vmul.f32 1.0, %v3440
    %v3442 = vrcp.pop %v3438
    %v3443 = vmul.f32 1.0, %v3442
    %v3444 = vrcp.pop %v3439
    %v3445 = vmul.f32 1.0, %v3444
    %v3446 = vtanh.pop %v3424
    %v3447 = vmul.f32 %v3443, %v3334
    %v3448 = vmul.f32 %v3441, %v3446
    %v3449 = vadd.f32 %v3447, %v3448
    %v3450 = vtanh.pop %v3449
    %v3451 = vmul.f32 %v3445, %v3450
    %s3452 = scalar_lea.vmem [#allocation4], 128
    %3453 = vst [vmem:[%s3452] sm:$0xff] %v3451
    %s3454 = scalar_lea.vmem [#allocation5], 128
    %3455 = vst [vmem:[%s3454] sm:$0xff] %v3451
    %v3456 = vpack.c.bf16 %v3451, %v3451
    %v3457 = vld [vmem:[%s1222] sm:$0xff]
    %v3458 = vld [vmem:[%s1222 + $0x8] sm:$0xff]
    %v3459 = vld [vmem:[%s1222 + $0x10] sm:$0xff]
    %v3460 = vld [vmem:[%s1222 + $0x18] sm:$0xff]
    %3461 = vmatprep.subr.bf16.mxu0 %v1444
    %3462 = vmatpush1.bf16.msra.mxu0 %v1443
    %3463 = vmatprep.subr.bf16.mxu0 %v1448
    %3464 = vmatpush1.bf16.msra.mxu0 %v1447
    %3465 = vmatprep.subr.bf16.mxu0 %v1452
    %3466 = vmatpush1.bf16.msra.mxu0 %v1451
    %3467 = vmatprep.subr.bf16.mxu0 %v1456
    %3468 = vmatpush1.bf16.msra.mxu0 %v1455
    %3469 = vmatprep.subr.bf16.mxu0 %v1460
    %3470 = vmatpush1.bf16.msra.mxu0 %v1459
    %3471 = vmatprep.subr.bf16.mxu0 %v1464
    %3472 = vmatpush1.bf16.msra.mxu0 %v1463
    %3473 = vmatprep.subr.bf16.mxu0 %v1468
    %3474 = vmatpush1.bf16.msra.mxu0 %v1467
    %3475 = vmatprep.subr.bf16.mxu0 %v1472
    %3476 = vmatpush1.bf16.msra.mxu0 %v1471
    %3477 = vmatprep.subr.bf16.mxu0 0
    %3478 = vmatpush1.bf16.msra.mxu0 0
    %3479 = vmatprep.subr.bf16.mxu0 0
    %3480 = vmatpush1.bf16.msra.mxu0 0
    %3481 = vmatprep.subr.bf16.mxu0 0
    %3482 = vmatpush1.bf16.msra.mxu0 0
    %3483 = vmatprep.subr.bf16.mxu0 0
    %3484 = vmatpush1.bf16.msra.mxu0 0
    %3485 = vmatprep.subr.bf16.mxu0 0
    %3486 = vmatpush1.bf16.msra.mxu0 0
    %3487 = vmatprep.subr.bf16.mxu0 0
    %3488 = vmatpush1.bf16.msra.mxu0 0
    %3489 = vmatprep.subr.bf16.mxu0 0
    %3490 = vmatpush1.bf16.msra.mxu0 0
    %3491 = vmatprep.subr.bf16.mxu0 0
    %3492 = vmatpush1.bf16.msra.mxu0 0
    %3493 = vmatprep.mubr.bf16.mxu0 0
    %3494 = vmatmul.mubr.bf16.gmra.mrb[0].mxu0 %v3456
    %v3495 = vpop.f32.mrb[0].mxu0
    %v3496 = vadd.f32 %v3457, %v3495
    %v3497 = vpop.f32.mrb[0].mxu0
    %v3498 = vadd.f32 %v3458, %v3497
    %v3499 = vpop.f32.mrb[0].mxu0
    %v3500 = vpop.f32.mrb[0].mxu0
    %3501 = vdwg.mxu0
    %3502 = vmatprep.subr.bf16.mxu0 %v1446
    %3503 = vmatpush1.bf16.msra.mxu0 %v1445
    %3504 = vmatprep.subr.bf16.mxu0 %v1450
    %3505 = vmatpush1.bf16.msra.mxu0 %v1449
    %3506 = vmatprep.subr.bf16.mxu0 %v1454
    %3507 = vmatpush1.bf16.msra.mxu0 %v1453
    %3508 = vmatprep.subr.bf16.mxu0 %v1458
    %3509 = vmatpush1.bf16.msra.mxu0 %v1457
    %3510 = vmatprep.subr.bf16.mxu0 %v1462
    %3511 = vmatpush1.bf16.msra.mxu0 %v1461
    %3512 = vmatprep.subr.bf16.mxu0 %v1466
    %3513 = vmatpush1.bf16.msra.mxu0 %v1465
    %3514 = vmatprep.subr.bf16.mxu0 %v1470
    %3515 = vmatpush1.bf16.msra.mxu0 %v1469
    %3516 = vmatprep.subr.bf16.mxu0 %v1474
    %3517 = vmatpush1.bf16.msra.mxu0 %v1473
    %3518 = vmatprep.subr.bf16.mxu0 0
    %3519 = vmatpush1.bf16.msra.mxu0 0
    %3520 = vmatprep.subr.bf16.mxu0 0
    %3521 = vmatpush1.bf16.msra.mxu0 0
    %3522 = vmatprep.subr.bf16.mxu0 0
    %3523 = vmatpush1.bf16.msra.mxu0 0
    %3524 = vmatprep.subr.bf16.mxu0 0
    %3525 = vmatpush1.bf16.msra.mxu0 0
    %3526 = vmatprep.subr.bf16.mxu0 0
    %3527 = vmatpush1.bf16.msra.mxu0 0
    %3528 = vmatprep.subr.bf16.mxu0 0
    %3529 = vmatpush1.bf16.msra.mxu0 0
    %3530 = vmatprep.subr.bf16.mxu0 0
    %3531 = vmatpush1.bf16.msra.mxu0 0
    %3532 = vmatprep.subr.bf16.mxu0 0
    %3533 = vmatpush1.bf16.msra.mxu0 0
    %3534 = vmatprep.mubr.bf16.mxu0 0
    %3535 = vmatmul.mubr.bf16.gmra.mrb[0].mxu0 %v3456
    %v3536 = vpop.f32.mrb[0].mxu0
    %v3537 = vadd.f32 %v3459, %v3536
    %v3538 = vpop.f32.mrb[0].mxu0
    %v3539 = vadd.f32 %v3460, %v3538
    %v3540 = vpop.f32.mrb[0].mxu0
    %v3541 = vpop.f32.mrb[0].mxu0
    %3542 = vdwg.mxu0
    %v3543 = vxor.u32 %v3496, 2147483648
    %v3544 = vxor.u32 %v3498, 2147483648
    %v3545 = vxor.u32 %v3537, 2147483648
    %v3546 = vmul.f32 %v3543, 1.442695
    %v3547 = vpow.pop %v3546
    %v3548 = vmul.f32 %v3544, 1.442695
    %v3549 = vpow.pop %v3548
    %v3550 = vmul.f32 %v3545, 1.442695
    %v3551 = vpow.pop %v3550
    %v3552 = vadd.f32 %v3547, 1.0
    %v3553 = vadd.f32 %v3549, 1.0
    %v3554 = vadd.f32 %v3551, 1.0
    %v3555 = vrcp.pop %v3552
    %v3556 = vmul.f32 1.0, %v3555
    %v3557 = vrcp.pop %v3553
    %v3558 = vmul.f32 1.0, %v3557
    %v3559 = vrcp.pop %v3554
    %v3560 = vmul.f32 1.0, %v3559
    %v3561 = vtanh.pop %v3539
    %v3562 = vmul.f32 %v3558, %v3449
    %v3563 = vmul.f32 %v3556, %v3561
    %v3564 = vadd.f32 %v3562, %v3563
    %v3565 = vtanh.pop %v3564
    %v3566 = vmul.f32 %v3560, %v3565
    %s3567 = scalar_lea.vmem [#allocation4], 136
    %3568 = vst [vmem:[%s3567] sm:$0xff] %v3566
    %s3569 = scalar_lea.vmem [#allocation5], 120
    %3570 = vst [vmem:[%s3569] sm:$0xff] %v3566
    %v3571 = vpack.c.bf16 %v3566, %v3566
    %v3572 = vld [vmem:[%s1240] sm:$0xff]
    %v3573 = vld [vmem:[%s1240 + $0x8] sm:$0xff]
    %v3574 = vld [vmem:[%s1240 + $0x10] sm:$0xff]
    %v3575 = vld [vmem:[%s1240 + $0x18] sm:$0xff]
    %3576 = vmatprep.subr.bf16.mxu0 %v1444
    %3577 = vmatpush1.bf16.msra.mxu0 %v1443
    %3578 = vmatprep.subr.bf16.mxu0 %v1448
    %3579 = vmatpush1.bf16.msra.mxu0 %v1447
    %3580 = vmatprep.subr.bf16.mxu0 %v1452
    %3581 = vmatpush1.bf16.msra.mxu0 %v1451
    %3582 = vmatprep.subr.bf16.mxu0 %v1456
    %3583 = vmatpush1.bf16.msra.mxu0 %v1455
    %3584 = vmatprep.subr.bf16.mxu0 %v1460
    %3585 = vmatpush1.bf16.msra.mxu0 %v1459
    %3586 = vmatprep.subr.bf16.mxu0 %v1464
    %3587 = vmatpush1.bf16.msra.mxu0 %v1463
    %3588 = vmatprep.subr.bf16.mxu0 %v1468
    %3589 = vmatpush1.bf16.msra.mxu0 %v1467
    %3590 = vmatprep.subr.bf16.mxu0 %v1472
    %3591 = vmatpush1.bf16.msra.mxu0 %v1471
    %3592 = vmatprep.subr.bf16.mxu0 0
    %3593 = vmatpush1.bf16.msra.mxu0 0
    %3594 = vmatprep.subr.bf16.mxu0 0
    %3595 = vmatpush1.bf16.msra.mxu0 0
    %3596 = vmatprep.subr.bf16.mxu0 0
    %3597 = vmatpush1.bf16.msra.mxu0 0
    %3598 = vmatprep.subr.bf16.mxu0 0
    %3599 = vmatpush1.bf16.msra.mxu0 0
    %3600 = vmatprep.subr.bf16.mxu0 0
    %3601 = vmatpush1.bf16.msra.mxu0 0
    %3602 = vmatprep.subr.bf16.mxu0 0
    %3603 = vmatpush1.bf16.msra.mxu0 0
    %3604 = vmatprep.subr.bf16.mxu0 0
    %3605 = vmatpush1.bf16.msra.mxu0 0
    %3606 = vmatprep.subr.bf16.mxu0 0
    %3607 = vmatpush1.bf16.msra.mxu0 0
    %3608 = vmatprep.mubr.bf16.mxu0 0
    %3609 = vmatmul.mubr.bf16.gmra.mrb[0].mxu0 %v3571
    %v3610 = vpop.f32.mrb[0].mxu0
    %v3611 = vadd.f32 %v3572, %v3610
    %v3612 = vpop.f32.mrb[0].mxu0
    %v3613 = vadd.f32 %v3573, %v3612
    %v3614 = vpop.f32.mrb[0].mxu0
    %v3615 = vpop.f32.mrb[0].mxu0
    %3616 = vdwg.mxu0
    %3617 = vmatprep.subr.bf16.mxu0 %v1446
    %3618 = vmatpush1.bf16.msra.mxu0 %v1445
    %3619 = vmatprep.subr.bf16.mxu0 %v1450
    %3620 = vmatpush1.bf16.msra.mxu0 %v1449
    %3621 = vmatprep.subr.bf16.mxu0 %v1454
    %3622 = vmatpush1.bf16.msra.mxu0 %v1453
    %3623 = vmatprep.subr.bf16.mxu0 %v1458
    %3624 = vmatpush1.bf16.msra.mxu0 %v1457
    %3625 = vmatprep.subr.bf16.mxu0 %v1462
    %3626 = vmatpush1.bf16.msra.mxu0 %v1461
    %3627 = vmatprep.subr.bf16.mxu0 %v1466
    %3628 = vmatpush1.bf16.msra.mxu0 %v1465
    %3629 = vmatprep.subr.bf16.mxu0 %v1470
    %3630 = vmatpush1.bf16.msra.mxu0 %v1469
    %3631 = vmatprep.subr.bf16.mxu0 %v1474
    %3632 = vmatpush1.bf16.msra.mxu0 %v1473
    %3633 = vmatprep.subr.bf16.mxu0 0
    %3634 = vmatpush1.bf16.msra.mxu0 0
    %3635 = vmatprep.subr.bf16.mxu0 0
    %3636 = vmatpush1.bf16.msra.mxu0 0
    %3637 = vmatprep.subr.bf16.mxu0 0
    %3638 = vmatpush1.bf16.msra.mxu0 0
    %3639 = vmatprep.subr.bf16.mxu0 0
    %3640 = vmatpush1.bf16.msra.mxu0 0
    %3641 = vmatprep.subr.bf16.mxu0 0
    %3642 = vmatpush1.bf16.msra.mxu0 0
    %3643 = vmatprep.subr.bf16.mxu0 0
    %3644 = vmatpush1.bf16.msra.mxu0 0
    %3645 = vmatprep.subr.bf16.mxu0 0
    %3646 = vmatpush1.bf16.msra.mxu0 0
    %3647 = vmatprep.subr.bf16.mxu0 0
    %3648 = vmatpush1.bf16.msra.mxu0 0
    %3649 = vmatprep.mubr.bf16.mxu0 0
    %3650 = vmatmul.mubr.bf16.gmra.mrb[0].mxu0 %v3571
    %v3651 = vpop.f32.mrb[0].mxu0
    %v3652 = vadd.f32 %v3574, %v3651
    %v3653 = vpop.f32.mrb[0].mxu0
    %v3654 = vadd.f32 %v3575, %v3653
    %v3655 = vpop.f32.mrb[0].mxu0
    %v3656 = vpop.f32.mrb[0].mxu0
    %3657 = vdwg.mxu0
    %v3658 = vxor.u32 %v3611, 2147483648
    %v3659 = vxor.u32 %v3613, 2147483648
    %v3660 = vxor.u32 %v3652, 2147483648
    %v3661 = vmul.f32 %v3658, 1.442695
    %v3662 = vpow.pop %v3661
    %v3663 = vmul.f32 %v3659, 1.442695
    %v3664 = vpow.pop %v3663
    %v3665 = vmul.f32 %v3660, 1.442695
    %v3666 = vpow.pop %v3665
    %v3667 = vadd.f32 %v3662, 1.0
    %v3668 = vadd.f32 %v3664, 1.0
    %v3669 = vadd.f32 %v3666, 1.0
    %v3670 = vrcp.pop %v3667
    %v3671 = vmul.f32 1.0, %v3670
    %v3672 = vrcp.pop %v3668
    %v3673 = vmul.f32 1.0, %v3672
    %v3674 = vrcp.pop %v3669
    %v3675 = vmul.f32 1.0, %v3674
    %v3676 = vtanh.pop %v3654
    %v3677 = vmul.f32 %v3673, %v3564
    %v3678 = vmul.f32 %v3671, %v3676
    %v3679 = vadd.f32 %v3677, %v3678
    %v3680 = vtanh.pop %v3679
    %v3681 = vmul.f32 %v3675, %v3680
    %s3682 = scalar_lea.vmem [#allocation4], 144
    %3683 = vst [vmem:[%s3682] sm:$0xff] %v3681
    %s3684 = scalar_lea.vmem [#allocation5], 112
    %3685 = vst [vmem:[%s3684] sm:$0xff] %v3681
    %v3686 = vpack.c.bf16 %v3681, %v3681
    %v3687 = vld [vmem:[%s1258] sm:$0xff]
    %v3688 = vld [vmem:[%s1258 + $0x8] sm:$0xff]
    %v3689 = vld [vmem:[%s1258 + $0x10] sm:$0xff]
    %v3690 = vld [vmem:[%s1258 + $0x18] sm:$0xff]
    %3691 = vmatprep.subr.bf16.mxu0 %v1444
    %3692 = vmatpush1.bf16.msra.mxu0 %v1443
    %3693 = vmatprep.subr.bf16.mxu0 %v1448
    %3694 = vmatpush1.bf16.msra.mxu0 %v1447
    %3695 = vmatprep.subr.bf16.mxu0 %v1452
    %3696 = vmatpush1.bf16.msra.mxu0 %v1451
    %3697 = vmatprep.subr.bf16.mxu0 %v1456
    %3698 = vmatpush1.bf16.msra.mxu0 %v1455
    %3699 = vmatprep.subr.bf16.mxu0 %v1460
    %3700 = vmatpush1.bf16.msra.mxu0 %v1459
    %3701 = vmatprep.subr.bf16.mxu0 %v1464
    %3702 = vmatpush1.bf16.msra.mxu0 %v1463
    %3703 = vmatprep.subr.bf16.mxu0 %v1468
    %3704 = vmatpush1.bf16.msra.mxu0 %v1467
    %3705 = vmatprep.subr.bf16.mxu0 %v1472
    %3706 = vmatpush1.bf16.msra.mxu0 %v1471
    %3707 = vmatprep.subr.bf16.mxu0 0
    %3708 = vmatpush1.bf16.msra.mxu0 0
    %3709 = vmatprep.subr.bf16.mxu0 0
    %3710 = vmatpush1.bf16.msra.mxu0 0
    %3711 = vmatprep.subr.bf16.mxu0 0
    %3712 = vmatpush1.bf16.msra.mxu0 0
    %3713 = vmatprep.subr.bf16.mxu0 0
    %3714 = vmatpush1.bf16.msra.mxu0 0
    %3715 = vmatprep.subr.bf16.mxu0 0
    %3716 = vmatpush1.bf16.msra.mxu0 0
    %3717 = vmatprep.subr.bf16.mxu0 0
    %3718 = vmatpush1.bf16.msra.mxu0 0
    %3719 = vmatprep.subr.bf16.mxu0 0
    %3720 = vmatpush1.bf16.msra.mxu0 0
    %3721 = vmatprep.subr.bf16.mxu0 0
    %3722 = vmatpush1.bf16.msra.mxu0 0
    %3723 = vmatprep.mubr.bf16.mxu0 0
    %3724 = vmatmul.mubr.bf16.gmra.mrb[0].mxu0 %v3686
    %v3725 = vpop.f32.mrb[0].mxu0
    %v3726 = vadd.f32 %v3687, %v3725
    %v3727 = vpop.f32.mrb[0].mxu0
    %v3728 = vadd.f32 %v3688, %v3727
    %v3729 = vpop.f32.mrb[0].mxu0
    %v3730 = vpop.f32.mrb[0].mxu0
    %3731 = vdwg.mxu0
    %3732 = vmatprep.subr.bf16.mxu0 %v1446
    %3733 = vmatpush1.bf16.msra.mxu0 %v1445
    %3734 = vmatprep.subr.bf16.mxu0 %v1450
    %3735 = vmatpush1.bf16.msra.mxu0 %v1449
    %3736 = vmatprep.subr.bf16.mxu0 %v1454
    %3737 = vmatpush1.bf16.msra.mxu0 %v1453
    %3738 = vmatprep.subr.bf16.mxu0 %v1458
    %3739 = vmatpush1.bf16.msra.mxu0 %v1457
    %3740 = vmatprep.subr.bf16.mxu0 %v1462
    %3741 = vmatpush1.bf16.msra.mxu0 %v1461
    %3742 = vmatprep.subr.bf16.mxu0 %v1466
    %3743 = vmatpush1.bf16.msra.mxu0 %v1465
    %3744 = vmatprep.subr.bf16.mxu0 %v1470
    %3745 = vmatpush1.bf16.msra.mxu0 %v1469
    %3746 = vmatprep.subr.bf16.mxu0 %v1474
    %3747 = vmatpush1.bf16.msra.mxu0 %v1473
    %3748 = vmatprep.subr.bf16.mxu0 0
    %3749 = vmatpush1.bf16.msra.mxu0 0
    %3750 = vmatprep.subr.bf16.mxu0 0
    %3751 = vmatpush1.bf16.msra.mxu0 0
    %3752 = vmatprep.subr.bf16.mxu0 0
    %3753 = vmatpush1.bf16.msra.mxu0 0
    %3754 = vmatprep.subr.bf16.mxu0 0
    %3755 = vmatpush1.bf16.msra.mxu0 0
    %3756 = vmatprep.subr.bf16.mxu0 0
    %3757 = vmatpush1.bf16.msra.mxu0 0
    %3758 = vmatprep.subr.bf16.mxu0 0
    %3759 = vmatpush1.bf16.msra.mxu0 0
    %3760 = vmatprep.subr.bf16.mxu0 0
    %3761 = vmatpush1.bf16.msra.mxu0 0
    %3762 = vmatprep.subr.bf16.mxu0 0
    %3763 = vmatpush1.bf16.msra.mxu0 0
    %3764 = vmatprep.mubr.bf16.mxu0 0
    %3765 = vmatmul.mubr.bf16.gmra.mrb[0].mxu0 %v3686
    %v3766 = vpop.f32.mrb[0].mxu0
    %v3767 = vadd.f32 %v3689, %v3766
    %v3768 = vpop.f32.mrb[0].mxu0
    %v3769 = vadd.f32 %v3690, %v3768
    %v3770 = vpop.f32.mrb[0].mxu0
    %v3771 = vpop.f32.mrb[0].mxu0
    %3772 = vdwg.mxu0
    %v3773 = vxor.u32 %v3726, 2147483648
    %v3774 = vxor.u32 %v3728, 2147483648
    %v3775 = vxor.u32 %v3767, 2147483648
    %v3776 = vmul.f32 %v3773, 1.442695
    %v3777 = vpow.pop %v3776
    %v3778 = vmul.f32 %v3774, 1.442695
    %v3779 = vpow.pop %v3778
    %v3780 = vmul.f32 %v3775, 1.442695
    %v3781 = vpow.pop %v3780
    %v3782 = vadd.f32 %v3777, 1.0
    %v3783 = vadd.f32 %v3779, 1.0
    %v3784 = vadd.f32 %v3781, 1.0
    %v3785 = vrcp.pop %v3782
    %v3786 = vmul.f32 1.0, %v3785
    %v3787 = vrcp.pop %v3783
    %v3788 = vmul.f32 1.0, %v3787
    %v3789 = vrcp.pop %v3784
    %v3790 = vmul.f32 1.0, %v3789
    %v3791 = vtanh.pop %v3769
    %v3792 = vmul.f32 %v3788, %v3679
    %v3793 = vmul.f32 %v3786, %v3791
    %v3794 = vadd.f32 %v3792, %v3793
    %v3795 = vtanh.pop %v3794
    %v3796 = vmul.f32 %v3790, %v3795
    %s3797 = scalar_lea.vmem [#allocation4], 152
    %3798 = vst [vmem:[%s3797] sm:$0xff] %v3796
    %s3799 = scalar_lea.vmem [#allocation5], 104
    %3800 = vst [vmem:[%s3799] sm:$0xff] %v3796
    %v3801 = vpack.c.bf16 %v3796, %v3796
    %v3802 = vld [vmem:[%s1276] sm:$0xff]
    %v3803 = vld [vmem:[%s1276 + $0x8] sm:$0xff]
    %v3804 = vld [vmem:[%s1276 + $0x10] sm:$0xff]
    %v3805 = vld [vmem:[%s1276 + $0x18] sm:$0xff]
    %3806 = vmatprep.subr.bf16.mxu0 %v1444
    %3807 = vmatpush1.bf16.msra.mxu0 %v1443
    %3808 = vmatprep.subr.bf16.mxu0 %v1448
    %3809 = vmatpush1.bf16.msra.mxu0 %v1447
    %3810 = vmatprep.subr.bf16.mxu0 %v1452
    %3811 = vmatpush1.bf16.msra.mxu0 %v1451
    %3812 = vmatprep.subr.bf16.mxu0 %v1456
    %3813 = vmatpush1.bf16.msra.mxu0 %v1455
    %3814 = vmatprep.subr.bf16.mxu0 %v1460
    %3815 = vmatpush1.bf16.msra.mxu0 %v1459
    %3816 = vmatprep.subr.bf16.mxu0 %v1464
    %3817 = vmatpush1.bf16.msra.mxu0 %v1463
    %3818 = vmatprep.subr.bf16.mxu0 %v1468
    %3819 = vmatpush1.bf16.msra.mxu0 %v1467
    %3820 = vmatprep.subr.bf16.mxu0 %v1472
    %3821 = vmatpush1.bf16.msra.mxu0 %v1471
    %3822 = vmatprep.subr.bf16.mxu0 0
    %3823 = vmatpush1.bf16.msra.mxu0 0
    %3824 = vmatprep.subr.bf16.mxu0 0
    %3825 = vmatpush1.bf16.msra.mxu0 0
    %3826 = vmatprep.subr.bf16.mxu0 0
    %3827 = vmatpush1.bf16.msra.mxu0 0
    %3828 = vmatprep.subr.bf16.mxu0 0
    %3829 = vmatpush1.bf16.msra.mxu0 0
    %3830 = vmatprep.subr.bf16.mxu0 0
    %3831 = vmatpush1.bf16.msra.mxu0 0
    %3832 = vmatprep.subr.bf16.mxu0 0
    %3833 = vmatpush1.bf16.msra.mxu0 0
    %3834 = vmatprep.subr.bf16.mxu0 0
    %3835 = vmatpush1.bf16.msra.mxu0 0
    %3836 = vmatprep.subr.bf16.mxu0 0
    %3837 = vmatpush1.bf16.msra.mxu0 0
    %3838 = vmatprep.mubr.bf16.mxu0 0
    %3839 = vmatmul.mubr.bf16.gmra.mrb[0].mxu0 %v3801
    %v3840 = vpop.f32.mrb[0].mxu0
    %v3841 = vadd.f32 %v3802, %v3840
    %v3842 = vpop.f32.mrb[0].mxu0
    %v3843 = vadd.f32 %v3803, %v3842
    %v3844 = vpop.f32.mrb[0].mxu0
    %v3845 = vpop.f32.mrb[0].mxu0
    %3846 = vdwg.mxu0
    %3847 = vmatprep.subr.bf16.mxu0 %v1446
    %3848 = vmatpush1.bf16.msra.mxu0 %v1445
    %3849 = vmatprep.subr.bf16.mxu0 %v1450
    %3850 = vmatpush1.bf16.msra.mxu0 %v1449
    %3851 = vmatprep.subr.bf16.mxu0 %v1454
    %3852 = vmatpush1.bf16.msra.mxu0 %v1453
    %3853 = vmatprep.subr.bf16.mxu0 %v1458
    %3854 = vmatpush1.bf16.msra.mxu0 %v1457
    %3855 = vmatprep.subr.bf16.mxu0 %v1462
    %3856 = vmatpush1.bf16.msra.mxu0 %v1461
    %3857 = vmatprep.subr.bf16.mxu0 %v1466
    %3858 = vmatpush1.bf16.msra.mxu0 %v1465
    %3859 = vmatprep.subr.bf16.mxu0 %v1470
    %3860 = vmatpush1.bf16.msra.mxu0 %v1469
    %3861 = vmatprep.subr.bf16.mxu0 %v1474
    %3862 = vmatpush1.bf16.msra.mxu0 %v1473
    %3863 = vmatprep.subr.bf16.mxu0 0
    %3864 = vmatpush1.bf16.msra.mxu0 0
    %3865 = vmatprep.subr.bf16.mxu0 0
    %3866 = vmatpush1.bf16.msra.mxu0 0
    %3867 = vmatprep.subr.bf16.mxu0 0
    %3868 = vmatpush1.bf16.msra.mxu0 0
    %3869 = vmatprep.subr.bf16.mxu0 0
    %3870 = vmatpush1.bf16.msra.mxu0 0
    %3871 = vmatprep.subr.bf16.mxu0 0
    %3872 = vmatpush1.bf16.msra.mxu0 0
    %3873 = vmatprep.subr.bf16.mxu0 0
    %3874 = vmatpush1.bf16.msra.mxu0 0
    %3875 = vmatprep.subr.bf16.mxu0 0
    %3876 = vmatpush1.bf16.msra.mxu0 0
    %3877 = vmatprep.subr.bf16.mxu0 0
    %3878 = vmatpush1.bf16.msra.mxu0 0
    %3879 = vmatprep.mubr.bf16.mxu0 0
    %3880 = vmatmul.mubr.bf16.gmra.mrb[0].mxu0 %v3801
    %v3881 = vpop.f32.mrb[0].mxu0
    %v3882 = vadd.f32 %v3804, %v3881
    %v3883 = vpop.f32.mrb[0].mxu0
    %v3884 = vadd.f32 %v3805, %v3883
    %v3885 = vpop.f32.mrb[0].mxu0
    %v3886 = vpop.f32.mrb[0].mxu0
    %3887 = vdwg.mxu0
    %v3888 = vxor.u32 %v3841, 2147483648
    %v3889 = vxor.u32 %v3843, 2147483648
    %v3890 = vxor.u32 %v3882, 2147483648
    %v3891 = vmul.f32 %v3888, 1.442695
    %v3892 = vpow.pop %v3891
    %v3893 = vmul.f32 %v3889, 1.442695
    %v3894 = vpow.pop %v3893
    %v3895 = vmul.f32 %v3890, 1.442695
    %v3896 = vpow.pop %v3895
    %v3897 = vadd.f32 %v3892, 1.0
    %v3898 = vadd.f32 %v3894, 1.0
    %v3899 = vadd.f32 %v3896, 1.0
    %v3900 = vrcp.pop %v3897
    %v3901 = vmul.f32 1.0, %v3900
    %v3902 = vrcp.pop %v3898
    %v3903 = vmul.f32 1.0, %v3902
    %v3904 = vrcp.pop %v3899
    %v3905 = vmul.f32 1.0, %v3904
    %v3906 = vtanh.pop %v3884
    %v3907 = vmul.f32 %v3903, %v3794
    %v3908 = vmul.f32 %v3901, %v3906
    %v3909 = vadd.f32 %v3907, %v3908
    %v3910 = vtanh.pop %v3909
    %v3911 = vmul.f32 %v3905, %v3910
    %s3912 = scalar_lea.vmem [#allocation4], 160
    %3913 = vst [vmem:[%s3912] sm:$0xff] %v3911
    %s3914 = scalar_lea.vmem [#allocation5], 96
    %3915 = vst [vmem:[%s3914] sm:$0xff] %v3911
    %v3916 = vpack.c.bf16 %v3911, %v3911
    %v3917 = vld [vmem:[%s1294] sm:$0xff]
    %v3918 = vld [vmem:[%s1294 + $0x8] sm:$0xff]
    %v3919 = vld [vmem:[%s1294 + $0x10] sm:$0xff]
    %v3920 = vld [vmem:[%s1294 + $0x18] sm:$0xff]
    %3921 = vmatprep.subr.bf16.mxu0 %v1444
    %3922 = vmatpush1.bf16.msra.mxu0 %v1443
    %3923 = vmatprep.subr.bf16.mxu0 %v1448
    %3924 = vmatpush1.bf16.msra.mxu0 %v1447
    %3925 = vmatprep.subr.bf16.mxu0 %v1452
    %3926 = vmatpush1.bf16.msra.mxu0 %v1451
    %3927 = vmatprep.subr.bf16.mxu0 %v1456
    %3928 = vmatpush1.bf16.msra.mxu0 %v1455
    %3929 = vmatprep.subr.bf16.mxu0 %v1460
    %3930 = vmatpush1.bf16.msra.mxu0 %v1459
    %3931 = vmatprep.subr.bf16.mxu0 %v1464
    %3932 = vmatpush1.bf16.msra.mxu0 %v1463
    %3933 = vmatprep.subr.bf16.mxu0 %v1468
    %3934 = vmatpush1.bf16.msra.mxu0 %v1467
    %3935 = vmatprep.subr.bf16.mxu0 %v1472
    %3936 = vmatpush1.bf16.msra.mxu0 %v1471
    %3937 = vmatprep.subr.bf16.mxu0 0
    %3938 = vmatpush1.bf16.msra.mxu0 0
    %3939 = vmatprep.subr.bf16.mxu0 0
    %3940 = vmatpush1.bf16.msra.mxu0 0
    %3941 = vmatprep.subr.bf16.mxu0 0
    %3942 = vmatpush1.bf16.msra.mxu0 0
    %3943 = vmatprep.subr.bf16.mxu0 0
    %3944 = vmatpush1.bf16.msra.mxu0 0
    %3945 = vmatprep.subr.bf16.mxu0 0
    %3946 = vmatpush1.bf16.msra.mxu0 0
    %3947 = vmatprep.subr.bf16.mxu0 0
    %3948 = vmatpush1.bf16.msra.mxu0 0
    %3949 = vmatprep.subr.bf16.mxu0 0
    %3950 = vmatpush1.bf16.msra.mxu0 0
    %3951 = vmatprep.subr.bf16.mxu0 0
    %3952 = vmatpush1.bf16.msra.mxu0 0
    %3953 = vmatprep.mubr.bf16.mxu0 0
    %3954 = vmatmul.mubr.bf16.gmra.mrb[0].mxu0 %v3916
    %v3955 = vpop.f32.mrb[0].mxu0
    %v3956 = vadd.f32 %v3917, %v3955
    %v3957 = vpop.f32.mrb[0].mxu0
    %v3958 = vadd.f32 %v3918, %v3957
    %v3959 = vpop.f32.mrb[0].mxu0
    %v3960 = vpop.f32.mrb[0].mxu0
    %3961 = vdwg.mxu0
    %3962 = vmatprep.subr.bf16.mxu0 %v1446
    %3963 = vmatpush1.bf16.msra.mxu0 %v1445
    %3964 = vmatprep.subr.bf16.mxu0 %v1450
    %3965 = vmatpush1.bf16.msra.mxu0 %v1449
    %3966 = vmatprep.subr.bf16.mxu0 %v1454
    %3967 = vmatpush1.bf16.msra.mxu0 %v1453
    %3968 = vmatprep.subr.bf16.mxu0 %v1458
    %3969 = vmatpush1.bf16.msra.mxu0 %v1457
    %3970 = vmatprep.subr.bf16.mxu0 %v1462
    %3971 = vmatpush1.bf16.msra.mxu0 %v1461
    %3972 = vmatprep.subr.bf16.mxu0 %v1466
    %3973 = vmatpush1.bf16.msra.mxu0 %v1465
    %3974 = vmatprep.subr.bf16.mxu0 %v1470
    %3975 = vmatpush1.bf16.msra.mxu0 %v1469
    %3976 = vmatprep.subr.bf16.mxu0 %v1474
    %3977 = vmatpush1.bf16.msra.mxu0 %v1473
    %3978 = vmatprep.subr.bf16.mxu0 0
    %3979 = vmatpush1.bf16.msra.mxu0 0
    %3980 = vmatprep.subr.bf16.mxu0 0
    %3981 = vmatpush1.bf16.msra.mxu0 0
    %3982 = vmatprep.subr.bf16.mxu0 0
    %3983 = vmatpush1.bf16.msra.mxu0 0
    %3984 = vmatprep.subr.bf16.mxu0 0
    %3985 = vmatpush1.bf16.msra.mxu0 0
    %3986 = vmatprep.subr.bf16.mxu0 0
    %3987 = vmatpush1.bf16.msra.mxu0 0
    %3988 = vmatprep.subr.bf16.mxu0 0
    %3989 = vmatpush1.bf16.msra.mxu0 0
    %3990 = vmatprep.subr.bf16.mxu0 0
    %3991 = vmatpush1.bf16.msra.mxu0 0
    %3992 = vmatprep.subr.bf16.mxu0 0
    %3993 = vmatpush1.bf16.msra.mxu0 0
    %3994 = vmatprep.mubr.bf16.mxu0 0
    %3995 = vmatmul.mubr.bf16.gmra.mrb[0].mxu0 %v3916
    %v3996 = vpop.f32.mrb[0].mxu0
    %v3997 = vadd.f32 %v3919, %v3996
    %v3998 = vpop.f32.mrb[0].mxu0
    %v3999 = vadd.f32 %v3920, %v3998
    %v4000 = vpop.f32.mrb[0].mxu0
    %v4001 = vpop.f32.mrb[0].mxu0
    %4002 = vdwg.mxu0
    %v4003 = vxor.u32 %v3956, 2147483648
    %v4004 = vxor.u32 %v3958, 2147483648
    %v4005 = vxor.u32 %v3997, 2147483648
    %v4006 = vmul.f32 %v4003, 1.442695
    %v4007 = vpow.pop %v4006
    %v4008 = vmul.f32 %v4004, 1.442695
    %v4009 = vpow.pop %v4008
    %v4010 = vmul.f32 %v4005, 1.442695
    %v4011 = vpow.pop %v4010
    %v4012 = vadd.f32 %v4007, 1.0
    %v4013 = vadd.f32 %v4009, 1.0
    %v4014 = vadd.f32 %v4011, 1.0
    %v4015 = vrcp.pop %v4012
    %v4016 = vmul.f32 1.0, %v4015
    %v4017 = vrcp.pop %v4013
    %v4018 = vmul.f32 1.0, %v4017
    %v4019 = vrcp.pop %v4014
    %v4020 = vmul.f32 1.0, %v4019
    %v4021 = vtanh.pop %v3999
    %v4022 = vmul.f32 %v4018, %v3909
    %v4023 = vmul.f32 %v4016, %v4021
    %v4024 = vadd.f32 %v4022, %v4023
    %v4025 = vtanh.pop %v4024
    %v4026 = vmul.f32 %v4020, %v4025
    %s4027 = scalar_lea.vmem [#allocation4], 168
    %4028 = vst [vmem:[%s4027] sm:$0xff] %v4026
    %s4029 = scalar_lea.vmem [#allocation5], 88
    %4030 = vst [vmem:[%s4029] sm:$0xff] %v4026
    %v4031 = vpack.c.bf16 %v4026, %v4026
    %v4032 = vld [vmem:[#allocation2] sm:$0xff]
    %v4033 = vld [vmem:[#allocation2 + $0x8] sm:$0xff]
    %v4034 = vld [vmem:[#allocation2 + $0x10] sm:$0xff]
    %v4035 = vld [vmem:[#allocation2 + $0x18] sm:$0xff]
    %4036 = vmatprep.subr.bf16.mxu0 %v1444
    %4037 = vmatpush1.bf16.msra.mxu0 %v1443
    %4038 = vmatprep.subr.bf16.mxu0 %v1448
    %4039 = vmatpush1.bf16.msra.mxu0 %v1447
    %4040 = vmatprep.subr.bf16.mxu0 %v1452
    %4041 = vmatpush1.bf16.msra.mxu0 %v1451
    %4042 = vmatprep.subr.bf16.mxu0 %v1456
    %4043 = vmatpush1.bf16.msra.mxu0 %v1455
    %4044 = vmatprep.subr.bf16.mxu0 %v1460
    %4045 = vmatpush1.bf16.msra.mxu0 %v1459
    %4046 = vmatprep.subr.bf16.mxu0 %v1464
    %4047 = vmatpush1.bf16.msra.mxu0 %v1463
    %4048 = vmatprep.subr.bf16.mxu0 %v1468
    %4049 = vmatpush1.bf16.msra.mxu0 %v1467
    %4050 = vmatprep.subr.bf16.mxu0 %v1472
    %4051 = vmatpush1.bf16.msra.mxu0 %v1471
    %4052 = vmatprep.subr.bf16.mxu0 0
    %4053 = vmatpush1.bf16.msra.mxu0 0
    %4054 = vmatprep.subr.bf16.mxu0 0
    %4055 = vmatpush1.bf16.msra.mxu0 0
    %4056 = vmatprep.subr.bf16.mxu0 0
    %4057 = vmatpush1.bf16.msra.mxu0 0
    %4058 = vmatprep.subr.bf16.mxu0 0
    %4059 = vmatpush1.bf16.msra.mxu0 0
    %4060 = vmatprep.subr.bf16.mxu0 0
    %4061 = vmatpush1.bf16.msra.mxu0 0
    %4062 = vmatprep.subr.bf16.mxu0 0
    %4063 = vmatpush1.bf16.msra.mxu0 0
    %4064 = vmatprep.subr.bf16.mxu0 0
    %4065 = vmatpush1.bf16.msra.mxu0 0
    %4066 = vmatprep.subr.bf16.mxu0 0
    %4067 = vmatpush1.bf16.msra.mxu0 0
    %4068 = vmatprep.mubr.bf16.mxu0 0
    %4069 = vmatmul.mubr.bf16.gmra.mrb[0].mxu0 %v4031
    %v4070 = vpop.f32.mrb[0].mxu0
    %v4071 = vadd.f32 %v4032, %v4070
    %v4072 = vpop.f32.mrb[0].mxu0
    %v4073 = vadd.f32 %v4033, %v4072
    %v4074 = vpop.f32.mrb[0].mxu0
    %v4075 = vpop.f32.mrb[0].mxu0
    %4076 = vdwg.mxu0
    %4077 = vmatprep.subr.bf16.mxu0 %v1446
    %4078 = vmatpush1.bf16.msra.mxu0 %v1445
    %4079 = vmatprep.subr.bf16.mxu0 %v1450
    %4080 = vmatpush1.bf16.msra.mxu0 %v1449
    %4081 = vmatprep.subr.bf16.mxu0 %v1454
    %4082 = vmatpush1.bf16.msra.mxu0 %v1453
    %4083 = vmatprep.subr.bf16.mxu0 %v1458
    %4084 = vmatpush1.bf16.msra.mxu0 %v1457
    %4085 = vmatprep.subr.bf16.mxu0 %v1462
    %4086 = vmatpush1.bf16.msra.mxu0 %v1461
    %4087 = vmatprep.subr.bf16.mxu0 %v1466
    %4088 = vmatpush1.bf16.msra.mxu0 %v1465
    %4089 = vmatprep.subr.bf16.mxu0 %v1470
    %4090 = vmatpush1.bf16.msra.mxu0 %v1469
    %4091 = vmatprep.subr.bf16.mxu0 %v1474
    %4092 = vmatpush1.bf16.msra.mxu0 %v1473
    %4093 = vmatprep.subr.bf16.mxu0 0
    %4094 = vmatpush1.bf16.msra.mxu0 0
    %4095 = vmatprep.subr.bf16.mxu0 0
    %4096 = vmatpush1.bf16.msra.mxu0 0
    %4097 = vmatprep.subr.bf16.mxu0 0
    %4098 = vmatpush1.bf16.msra.mxu0 0
    %4099 = vmatprep.subr.bf16.mxu0 0
    %4100 = vmatpush1.bf16.msra.mxu0 0
    %4101 = vmatprep.subr.bf16.mxu0 0
    %4102 = vmatpush1.bf16.msra.mxu0 0
    %4103 = vmatprep.subr.bf16.mxu0 0
    %4104 = vmatpush1.bf16.msra.mxu0 0
    %4105 = vmatprep.subr.bf16.mxu0 0
    %4106 = vmatpush1.bf16.msra.mxu0 0
    %4107 = vmatprep.subr.bf16.mxu0 0
    %4108 = vmatpush1.bf16.msra.mxu0 0
    %4109 = vmatprep.mubr.bf16.mxu0 0
    %4110 = vmatmul.mubr.bf16.gmra.mrb[0].mxu0 %v4031
    %v4111 = vpop.f32.mrb[0].mxu0
    %v4112 = vadd.f32 %v4034, %v4111
    %v4113 = vpop.f32.mrb[0].mxu0
    %v4114 = vadd.f32 %v4035, %v4113
    %v4115 = vpop.f32.mrb[0].mxu0
    %v4116 = vpop.f32.mrb[0].mxu0
    %4117 = vdwg.mxu0
    %v4118 = vxor.u32 %v4071, 2147483648
    %v4119 = vxor.u32 %v4073, 2147483648
    %v4120 = vxor.u32 %v4112, 2147483648
    %v4121 = vmul.f32 %v4118, 1.442695
    %v4122 = vpow.pop %v4121
    %v4123 = vmul.f32 %v4119, 1.442695
    %v4124 = vpow.pop %v4123
    %v4125 = vmul.f32 %v4120, 1.442695
    %v4126 = vpow.pop %v4125
    %v4127 = vadd.f32 %v4122, 1.0
    %v4128 = vadd.f32 %v4124, 1.0
    %v4129 = vadd.f32 %v4126, 1.0
    %v4130 = vrcp.pop %v4127
    %v4131 = vmul.f32 1.0, %v4130
    %v4132 = vrcp.pop %v4128
    %v4133 = vmul.f32 1.0, %v4132
    %v4134 = vrcp.pop %v4129
    %v4135 = vmul.f32 1.0, %v4134
    %v4136 = vtanh.pop %v4114
    %v4137 = vmul.f32 %v4133, %v4024
    %v4138 = vmul.f32 %v4131, %v4136
    %v4139 = vadd.f32 %v4137, %v4138
    %v4140 = vtanh.pop %v4139
    %v4141 = vmul.f32 %v4135, %v4140
    %s4142 = scalar_lea.vmem [#allocation4], 176
    %4143 = vst [vmem:[%s4142] sm:$0xff] %v4141
    %s4144 = scalar_lea.vmem [#allocation5], 80
    %4145 = vst [vmem:[%s4144] sm:$0xff] %v4141
    %v4146 = vpack.c.bf16 %v4141, %v4141
    %v4147 = vld [vmem:[%s1132] sm:$0xff]
    %v4148 = vld [vmem:[%s1132 + $0x8] sm:$0xff]
    %v4149 = vld [vmem:[%s1132 + $0x10] sm:$0xff]
    %v4150 = vld [vmem:[%s1132 + $0x18] sm:$0xff]
    %4151 = vmatprep.subr.bf16.mxu0 %v1444
    %4152 = vmatpush1.bf16.msra.mxu0 %v1443
    %4153 = vmatprep.subr.bf16.mxu0 %v1448
    %4154 = vmatpush1.bf16.msra.mxu0 %v1447
    %4155 = vmatprep.subr.bf16.mxu0 %v1452
    %4156 = vmatpush1.bf16.msra.mxu0 %v1451
    %4157 = vmatprep.subr.bf16.mxu0 %v1456
    %4158 = vmatpush1.bf16.msra.mxu0 %v1455
    %4159 = vmatprep.subr.bf16.mxu0 %v1460
    %4160 = vmatpush1.bf16.msra.mxu0 %v1459
    %4161 = vmatprep.subr.bf16.mxu0 %v1464
    %4162 = vmatpush1.bf16.msra.mxu0 %v1463
    %4163 = vmatprep.subr.bf16.mxu0 %v1468
    %4164 = vmatpush1.bf16.msra.mxu0 %v1467
    %4165 = vmatprep.subr.bf16.mxu0 %v1472
    %4166 = vmatpush1.bf16.msra.mxu0 %v1471
    %4167 = vmatprep.subr.bf16.mxu0 0
    %4168 = vmatpush1.bf16.msra.mxu0 0
    %4169 = vmatprep.subr.bf16.mxu0 0
    %4170 = vmatpush1.bf16.msra.mxu0 0
    %4171 = vmatprep.subr.bf16.mxu0 0
    %4172 = vmatpush1.bf16.msra.mxu0 0
    %4173 = vmatprep.subr.bf16.mxu0 0
    %4174 = vmatpush1.bf16.msra.mxu0 0
    %4175 = vmatprep.subr.bf16.mxu0 0
    %4176 = vmatpush1.bf16.msra.mxu0 0
    %4177 = vmatprep.subr.bf16.mxu0 0
    %4178 = vmatpush1.bf16.msra.mxu0 0
    %4179 = vmatprep.subr.bf16.mxu0 0
    %4180 = vmatpush1.bf16.msra.mxu0 0
    %4181 = vmatprep.subr.bf16.mxu0 0
    %4182 = vmatpush1.bf16.msra.mxu0 0
    %4183 = vmatprep.mubr.bf16.mxu0 0
    %4184 = vmatmul.mubr.bf16.gmra.mrb[0].mxu0 %v4146
    %v4185 = vpop.f32.mrb[0].mxu0
    %v4186 = vadd.f32 %v4147, %v4185
    %v4187 = vpop.f32.mrb[0].mxu0
    %v4188 = vadd.f32 %v4148, %v4187
    %v4189 = vpop.f32.mrb[0].mxu0
    %v4190 = vpop.f32.mrb[0].mxu0
    %4191 = vdwg.mxu0
    %4192 = vmatprep.subr.bf16.mxu0 %v1446
    %4193 = vmatpush1.bf16.msra.mxu0 %v1445
    %4194 = vmatprep.subr.bf16.mxu0 %v1450
    %4195 = vmatpush1.bf16.msra.mxu0 %v1449
    %4196 = vmatprep.subr.bf16.mxu0 %v1454
    %4197 = vmatpush1.bf16.msra.mxu0 %v1453
    %4198 = vmatprep.subr.bf16.mxu0 %v1458
    %4199 = vmatpush1.bf16.msra.mxu0 %v1457
    %4200 = vmatprep.subr.bf16.mxu0 %v1462
    %4201 = vmatpush1.bf16.msra.mxu0 %v1461
    %4202 = vmatprep.subr.bf16.mxu0 %v1466
    %4203 = vmatpush1.bf16.msra.mxu0 %v1465
    %4204 = vmatprep.subr.bf16.mxu0 %v1470
    %4205 = vmatpush1.bf16.msra.mxu0 %v1469
    %4206 = vmatprep.subr.bf16.mxu0 %v1474
    %4207 = vmatpush1.bf16.msra.mxu0 %v1473
    %4208 = vmatprep.subr.bf16.mxu0 0
    %4209 = vmatpush1.bf16.msra.mxu0 0
    %4210 = vmatprep.subr.bf16.mxu0 0
    %4211 = vmatpush1.bf16.msra.mxu0 0
    %4212 = vmatprep.subr.bf16.mxu0 0
    %4213 = vmatpush1.bf16.msra.mxu0 0
    %4214 = vmatprep.subr.bf16.mxu0 0
    %4215 = vmatpush1.bf16.msra.mxu0 0
    %4216 = vmatprep.subr.bf16.mxu0 0
    %4217 = vmatpush1.bf16.msra.mxu0 0
    %4218 = vmatprep.subr.bf16.mxu0 0
    %4219 = vmatpush1.bf16.msra.mxu0 0
    %4220 = vmatprep.subr.bf16.mxu0 0
    %4221 = vmatpush1.bf16.msra.mxu0 0
    %4222 = vmatprep.subr.bf16.mxu0 0
    %4223 = vmatpush1.bf16.msra.mxu0 0
    %4224 = vmatprep.mubr.bf16.mxu0 0
    %4225 = vmatmul.mubr.bf16.gmra.mrb[0].mxu0 %v4146
    %v4226 = vpop.f32.mrb[0].mxu0
    %v4227 = vadd.f32 %v4149, %v4226
    %v4228 = vpop.f32.mrb[0].mxu0
    %v4229 = vadd.f32 %v4150, %v4228
    %v4230 = vpop.f32.mrb[0].mxu0
    %v4231 = vpop.f32.mrb[0].mxu0
    %4232 = vdwg.mxu0
    %v4233 = vxor.u32 %v4186, 2147483648
    %v4234 = vxor.u32 %v4188, 2147483648
    %v4235 = vxor.u32 %v4227, 2147483648
    %v4236 = vmul.f32 %v4233, 1.442695
    %v4237 = vpow.pop %v4236
    %v4238 = vmul.f32 %v4234, 1.442695
    %v4239 = vpow.pop %v4238
    %v4240 = vmul.f32 %v4235, 1.442695
    %v4241 = vpow.pop %v4240
    %v4242 = vadd.f32 %v4237, 1.0
    %v4243 = vadd.f32 %v4239, 1.0
    %v4244 = vadd.f32 %v4241, 1.0
    %v4245 = vrcp.pop %v4242
    %v4246 = vmul.f32 1.0, %v4245
    %v4247 = vrcp.pop %v4243
    %v4248 = vmul.f32 1.0, %v4247
    %v4249 = vrcp.pop %v4244
    %v4250 = vmul.f32 1.0, %v4249
    %v4251 = vtanh.pop %v4229
    %v4252 = vmul.f32 %v4248, %v4139
    %v4253 = vmul.f32 %v4246, %v4251
    %v4254 = vadd.f32 %v4252, %v4253
    %v4255 = vtanh.pop %v4254
    %v4256 = vmul.f32 %v4250, %v4255
    %s4257 = scalar_lea.vmem [#allocation4], 184
    %4258 = vst [vmem:[%s4257] sm:$0xff] %v4256
    %s4259 = scalar_lea.vmem [#allocation5], 72
    %4260 = vst [vmem:[%s4259] sm:$0xff] %v4256
    %v4261 = vpack.c.bf16 %v4256, %v4256
    %v4262 = vld [vmem:[%s1150] sm:$0xff]
    %v4263 = vld [vmem:[%s1150 + $0x8] sm:$0xff]
    %v4264 = vld [vmem:[%s1150 + $0x10] sm:$0xff]
    %v4265 = vld [vmem:[%s1150 + $0x18] sm:$0xff]
    %4266 = vmatprep.subr.bf16.mxu0 %v1444
    %4267 = vmatpush1.bf16.msra.mxu0 %v1443
    %4268 = vmatprep.subr.bf16.mxu0 %v1448
    %4269 = vmatpush1.bf16.msra.mxu0 %v1447
    %4270 = vmatprep.subr.bf16.mxu0 %v1452
    %4271 = vmatpush1.bf16.msra.mxu0 %v1451
    %4272 = vmatprep.subr.bf16.mxu0 %v1456
    %4273 = vmatpush1.bf16.msra.mxu0 %v1455
    %4274 = vmatprep.subr.bf16.mxu0 %v1460
    %4275 = vmatpush1.bf16.msra.mxu0 %v1459
    %4276 = vmatprep.subr.bf16.mxu0 %v1464
    %4277 = vmatpush1.bf16.msra.mxu0 %v1463
    %4278 = vmatprep.subr.bf16.mxu0 %v1468
    %4279 = vmatpush1.bf16.msra.mxu0 %v1467
    %4280 = vmatprep.subr.bf16.mxu0 %v1472
    %4281 = vmatpush1.bf16.msra.mxu0 %v1471
    %4282 = vmatprep.subr.bf16.mxu0 0
    %4283 = vmatpush1.bf16.msra.mxu0 0
    %4284 = vmatprep.subr.bf16.mxu0 0
    %4285 = vmatpush1.bf16.msra.mxu0 0
    %4286 = vmatprep.subr.bf16.mxu0 0
    %4287 = vmatpush1.bf16.msra.mxu0 0
    %4288 = vmatprep.subr.bf16.mxu0 0
    %4289 = vmatpush1.bf16.msra.mxu0 0
    %4290 = vmatprep.subr.bf16.mxu0 0
    %4291 = vmatpush1.bf16.msra.mxu0 0
    %4292 = vmatprep.subr.bf16.mxu0 0
    %4293 = vmatpush1.bf16.msra.mxu0 0
    %4294 = vmatprep.subr.bf16.mxu0 0
    %4295 = vmatpush1.bf16.msra.mxu0 0
    %4296 = vmatprep.subr.bf16.mxu0 0
    %4297 = vmatpush1.bf16.msra.mxu0 0
    %4298 = vmatprep.mubr.bf16.mxu0 0
    %4299 = vmatmul.mubr.bf16.gmra.mrb[0].mxu0 %v4261
    %v4300 = vpop.f32.mrb[0].mxu0
    %v4301 = vadd.f32 %v4262, %v4300
    %v4302 = vpop.f32.mrb[0].mxu0
    %v4303 = vadd.f32 %v4263, %v4302
    %v4304 = vpop.f32.mrb[0].mxu0
    %v4305 = vpop.f32.mrb[0].mxu0
    %4306 = vdwg.mxu0
    %4307 = vmatprep.subr.bf16.mxu0 %v1446
    %4308 = vmatpush1.bf16.msra.mxu0 %v1445
    %4309 = vmatprep.subr.bf16.mxu0 %v1450
    %4310 = vmatpush1.bf16.msra.mxu0 %v1449
    %4311 = vmatprep.subr.bf16.mxu0 %v1454
    %4312 = vmatpush1.bf16.msra.mxu0 %v1453
    %4313 = vmatprep.subr.bf16.mxu0 %v1458
    %4314 = vmatpush1.bf16.msra.mxu0 %v1457
    %4315 = vmatprep.subr.bf16.mxu0 %v1462
    %4316 = vmatpush1.bf16.msra.mxu0 %v1461
    %4317 = vmatprep.subr.bf16.mxu0 %v1466
    %4318 = vmatpush1.bf16.msra.mxu0 %v1465
    %4319 = vmatprep.subr.bf16.mxu0 %v1470
    %4320 = vmatpush1.bf16.msra.mxu0 %v1469
    %4321 = vmatprep.subr.bf16.mxu0 %v1474
    %4322 = vmatpush1.bf16.msra.mxu0 %v1473
    %4323 = vmatprep.subr.bf16.mxu0 0
    %4324 = vmatpush1.bf16.msra.mxu0 0
    %4325 = vmatprep.subr.bf16.mxu0 0
    %4326 = vmatpush1.bf16.msra.mxu0 0
    %4327 = vmatprep.subr.bf16.mxu0 0
    %4328 = vmatpush1.bf16.msra.mxu0 0
    %4329 = vmatprep.subr.bf16.mxu0 0
    %4330 = vmatpush1.bf16.msra.mxu0 0
    %4331 = vmatprep.subr.bf16.mxu0 0
    %4332 = vmatpush1.bf16.msra.mxu0 0
    %4333 = vmatprep.subr.bf16.mxu0 0
    %4334 = vmatpush1.bf16.msra.mxu0 0
    %4335 = vmatprep.subr.bf16.mxu0 0
    %4336 = vmatpush1.bf16.msra.mxu0 0
    %4337 = vmatprep.subr.bf16.mxu0 0
    %4338 = vmatpush1.bf16.msra.mxu0 0
    %4339 = vmatprep.mubr.bf16.mxu0 0
    %4340 = vmatmul.mubr.bf16.gmra.mrb[0].mxu0 %v4261
    %v4341 = vpop.f32.mrb[0].mxu0
    %v4342 = vadd.f32 %v4264, %v4341
    %v4343 = vpop.f32.mrb[0].mxu0
    %v4344 = vadd.f32 %v4265, %v4343
    %v4345 = vpop.f32.mrb[0].mxu0
    %v4346 = vpop.f32.mrb[0].mxu0
    %4347 = vdwg.mxu0
    %v4348 = vxor.u32 %v4301, 2147483648
    %v4349 = vxor.u32 %v4303, 2147483648
    %v4350 = vxor.u32 %v4342, 2147483648
    %v4351 = vmul.f32 %v4348, 1.442695
    %v4352 = vpow.pop %v4351
    %v4353 = vmul.f32 %v4349, 1.442695
    %v4354 = vpow.pop %v4353
    %v4355 = vmul.f32 %v4350, 1.442695
    %v4356 = vpow.pop %v4355
    %v4357 = vadd.f32 %v4352, 1.0
    %v4358 = vadd.f32 %v4354, 1.0
    %v4359 = vadd.f32 %v4356, 1.0
    %v4360 = vrcp.pop %v4357
    %v4361 = vmul.f32 1.0, %v4360
    %v4362 = vrcp.pop %v4358
    %v4363 = vmul.f32 1.0, %v4362
    %v4364 = vrcp.pop %v4359
    %v4365 = vmul.f32 1.0, %v4364
    %v4366 = vtanh.pop %v4344
    %v4367 = vmul.f32 %v4363, %v4254
    %v4368 = vmul.f32 %v4361, %v4366
    %v4369 = vadd.f32 %v4367, %v4368
    %v4370 = vtanh.pop %v4369
    %v4371 = vmul.f32 %v4365, %v4370
    %s4372 = scalar_lea.vmem [#allocation4], 192
    %4373 = vst [vmem:[%s4372] sm:$0xff] %v4371
    %s4374 = scalar_lea.vmem [#allocation5], 64
    %4375 = vst [vmem:[%s4374] sm:$0xff] %v4371
    %v4376 = vpack.c.bf16 %v4371, %v4371
    %v4377 = vld [vmem:[%s1168] sm:$0xff]
    %v4378 = vld [vmem:[%s1168 + $0x8] sm:$0xff]
    %v4379 = vld [vmem:[%s1168 + $0x10] sm:$0xff]
    %v4380 = vld [vmem:[%s1168 + $0x18] sm:$0xff]
    %4381 = vmatprep.subr.bf16.mxu0 %v1444
    %4382 = vmatpush1.bf16.msra.mxu0 %v1443
    %4383 = vmatprep.subr.bf16.mxu0 %v1448
    %4384 = vmatpush1.bf16.msra.mxu0 %v1447
    %4385 = vmatprep.subr.bf16.mxu0 %v1452
    %4386 = vmatpush1.bf16.msra.mxu0 %v1451
    %4387 = vmatprep.subr.bf16.mxu0 %v1456
    %4388 = vmatpush1.bf16.msra.mxu0 %v1455
    %4389 = vmatprep.subr.bf16.mxu0 %v1460
    %4390 = vmatpush1.bf16.msra.mxu0 %v1459
    %4391 = vmatprep.subr.bf16.mxu0 %v1464
    %4392 = vmatpush1.bf16.msra.mxu0 %v1463
    %4393 = vmatprep.subr.bf16.mxu0 %v1468
    %4394 = vmatpush1.bf16.msra.mxu0 %v1467
    %4395 = vmatprep.subr.bf16.mxu0 %v1472
    %4396 = vmatpush1.bf16.msra.mxu0 %v1471
    %4397 = vmatprep.subr.bf16.mxu0 0
    %4398 = vmatpush1.bf16.msra.mxu0 0
    %4399 = vmatprep.subr.bf16.mxu0 0
    %4400 = vmatpush1.bf16.msra.mxu0 0
    %4401 = vmatprep.subr.bf16.mxu0 0
    %4402 = vmatpush1.bf16.msra.mxu0 0
    %4403 = vmatprep.subr.bf16.mxu0 0
    %4404 = vmatpush1.bf16.msra.mxu0 0
    %4405 = vmatprep.subr.bf16.mxu0 0
    %4406 = vmatpush1.bf16.msra.mxu0 0
    %4407 = vmatprep.subr.bf16.mxu0 0
    %4408 = vmatpush1.bf16.msra.mxu0 0
    %4409 = vmatprep.subr.bf16.mxu0 0
    %4410 = vmatpush1.bf16.msra.mxu0 0
    %4411 = vmatprep.subr.bf16.mxu0 0
    %4412 = vmatpush1.bf16.msra.mxu0 0
    %4413 = vmatprep.mubr.bf16.mxu0 0
    %4414 = vmatmul.mubr.bf16.gmra.mrb[0].mxu0 %v4376
    %v4415 = vpop.f32.mrb[0].mxu0
    %v4416 = vadd.f32 %v4377, %v4415
    %v4417 = vpop.f32.mrb[0].mxu0
    %v4418 = vadd.f32 %v4378, %v4417
    %v4419 = vpop.f32.mrb[0].mxu0
    %v4420 = vpop.f32.mrb[0].mxu0
    %4421 = vdwg.mxu0
    %4422 = vmatprep.subr.bf16.mxu0 %v1446
    %4423 = vmatpush1.bf16.msra.mxu0 %v1445
    %4424 = vmatprep.subr.bf16.mxu0 %v1450
    %4425 = vmatpush1.bf16.msra.mxu0 %v1449
    %4426 = vmatprep.subr.bf16.mxu0 %v1454
    %4427 = vmatpush1.bf16.msra.mxu0 %v1453
    %4428 = vmatprep.subr.bf16.mxu0 %v1458
    %4429 = vmatpush1.bf16.msra.mxu0 %v1457
    %4430 = vmatprep.subr.bf16.mxu0 %v1462
    %4431 = vmatpush1.bf16.msra.mxu0 %v1461
    %4432 = vmatprep.subr.bf16.mxu0 %v1466
    %4433 = vmatpush1.bf16.msra.mxu0 %v1465
    %4434 = vmatprep.subr.bf16.mxu0 %v1470
    %4435 = vmatpush1.bf16.msra.mxu0 %v1469
    %4436 = vmatprep.subr.bf16.mxu0 %v1474
    %4437 = vmatpush1.bf16.msra.mxu0 %v1473
    %4438 = vmatprep.subr.bf16.mxu0 0
    %4439 = vmatpush1.bf16.msra.mxu0 0
    %4440 = vmatprep.subr.bf16.mxu0 0
    %4441 = vmatpush1.bf16.msra.mxu0 0
    %4442 = vmatprep.subr.bf16.mxu0 0
    %4443 = vmatpush1.bf16.msra.mxu0 0
    %4444 = vmatprep.subr.bf16.mxu0 0
    %4445 = vmatpush1.bf16.msra.mxu0 0
    %4446 = vmatprep.subr.bf16.mxu0 0
    %4447 = vmatpush1.bf16.msra.mxu0 0
    %4448 = vmatprep.subr.bf16.mxu0 0
    %4449 = vmatpush1.bf16.msra.mxu0 0
    %4450 = vmatprep.subr.bf16.mxu0 0
    %4451 = vmatpush1.bf16.msra.mxu0 0
    %4452 = vmatprep.subr.bf16.mxu0 0
    %4453 = vmatpush1.bf16.msra.mxu0 0
    %4454 = vmatprep.mubr.bf16.mxu0 0
    %4455 = vmatmul.mubr.bf16.gmra.mrb[0].mxu0 %v4376
    %v4456 = vpop.f32.mrb[0].mxu0
    %v4457 = vadd.f32 %v4379, %v4456
    %v4458 = vpop.f32.mrb[0].mxu0
    %v4459 = vadd.f32 %v4380, %v4458
    %v4460 = vpop.f32.mrb[0].mxu0
    %v4461 = vpop.f32.mrb[0].mxu0
    %4462 = vdwg.mxu0
    %v4463 = vxor.u32 %v4416, 2147483648
    %v4464 = vxor.u32 %v4418, 2147483648
    %v4465 = vxor.u32 %v4457, 2147483648
    %v4466 = vmul.f32 %v4463, 1.442695
    %v4467 = vpow.pop %v4466
    %v4468 = vmul.f32 %v4464, 1.442695
    %v4469 = vpow.pop %v4468
    %v4470 = vmul.f32 %v4465, 1.442695
    %v4471 = vpow.pop %v4470
    %v4472 = vadd.f32 %v4467, 1.0
    %v4473 = vadd.f32 %v4469, 1.0
    %v4474 = vadd.f32 %v4471, 1.0
    %v4475 = vrcp.pop %v4472
    %v4476 = vmul.f32 1.0, %v4475
    %v4477 = vrcp.pop %v4473
    %v4478 = vmul.f32 1.0, %v4477
    %v4479 = vrcp.pop %v4474
    %v4480 = vmul.f32 1.0, %v4479
    %v4481 = vtanh.pop %v4459
    %v4482 = vmul.f32 %v4478, %v4369
    %v4483 = vmul.f32 %v4476, %v4481
    %v4484 = vadd.f32 %v4482, %v4483
    %v4485 = vtanh.pop %v4484
    %v4486 = vmul.f32 %v4480, %v4485
    %s4487 = scalar_lea.vmem [#allocation4], 200
    %4488 = vst [vmem:[%s4487] sm:$0xff] %v4486
    %s4489 = scalar_lea.vmem [#allocation5], 56
    %4490 = vst [vmem:[%s4489] sm:$0xff] %v4486
    %v4491 = vpack.c.bf16 %v4486, %v4486
    %v4492 = vld [vmem:[%s1186] sm:$0xff]
    %v4493 = vld [vmem:[%s1186 + $0x8] sm:$0xff]
    %v4494 = vld [vmem:[%s1186 + $0x10] sm:$0xff]
    %v4495 = vld [vmem:[%s1186 + $0x18] sm:$0xff]
    %4496 = vmatprep.subr.bf16.mxu0 %v1444
    %4497 = vmatpush1.bf16.msra.mxu0 %v1443
    %4498 = vmatprep.subr.bf16.mxu0 %v1448
    %4499 = vmatpush1.bf16.msra.mxu0 %v1447
    %4500 = vmatprep.subr.bf16.mxu0 %v1452
    %4501 = vmatpush1.bf16.msra.mxu0 %v1451
    %4502 = vmatprep.subr.bf16.mxu0 %v1456
    %4503 = vmatpush1.bf16.msra.mxu0 %v1455
    %4504 = vmatprep.subr.bf16.mxu0 %v1460
    %4505 = vmatpush1.bf16.msra.mxu0 %v1459
    %4506 = vmatprep.subr.bf16.mxu0 %v1464
    %4507 = vmatpush1.bf16.msra.mxu0 %v1463
    %4508 = vmatprep.subr.bf16.mxu0 %v1468
    %4509 = vmatpush1.bf16.msra.mxu0 %v1467
    %4510 = vmatprep.subr.bf16.mxu0 %v1472
    %4511 = vmatpush1.bf16.msra.mxu0 %v1471
    %4512 = vmatprep.subr.bf16.mxu0 0
    %4513 = vmatpush1.bf16.msra.mxu0 0
    %4514 = vmatprep.subr.bf16.mxu0 0
    %4515 = vmatpush1.bf16.msra.mxu0 0
    %4516 = vmatprep.subr.bf16.mxu0 0
    %4517 = vmatpush1.bf16.msra.mxu0 0
    %4518 = vmatprep.subr.bf16.mxu0 0
    %4519 = vmatpush1.bf16.msra.mxu0 0
    %4520 = vmatprep.subr.bf16.mxu0 0
    %4521 = vmatpush1.bf16.msra.mxu0 0
    %4522 = vmatprep.subr.bf16.mxu0 0
    %4523 = vmatpush1.bf16.msra.mxu0 0
    %4524 = vmatprep.subr.bf16.mxu0 0
    %4525 = vmatpush1.bf16.msra.mxu0 0
    %4526 = vmatprep.subr.bf16.mxu0 0
    %4527 = vmatpush1.bf16.msra.mxu0 0
    %4528 = vmatprep.mubr.bf16.mxu0 0
    %4529 = vmatmul.mubr.bf16.gmra.mrb[0].mxu0 %v4491
    %v4530 = vpop.f32.mrb[0].mxu0
    %v4531 = vadd.f32 %v4492, %v4530
    %v4532 = vpop.f32.mrb[0].mxu0
    %v4533 = vadd.f32 %v4493, %v4532
    %v4534 = vpop.f32.mrb[0].mxu0
    %v4535 = vpop.f32.mrb[0].mxu0
    %4536 = vdwg.mxu0
    %4537 = vmatprep.subr.bf16.mxu0 %v1446
    %4538 = vmatpush1.bf16.msra.mxu0 %v1445
    %4539 = vmatprep.subr.bf16.mxu0 %v1450
    %4540 = vmatpush1.bf16.msra.mxu0 %v1449
    %4541 = vmatprep.subr.bf16.mxu0 %v1454
    %4542 = vmatpush1.bf16.msra.mxu0 %v1453
    %4543 = vmatprep.subr.bf16.mxu0 %v1458
    %4544 = vmatpush1.bf16.msra.mxu0 %v1457
    %4545 = vmatprep.subr.bf16.mxu0 %v1462
    %4546 = vmatpush1.bf16.msra.mxu0 %v1461
    %4547 = vmatprep.subr.bf16.mxu0 %v1466
    %4548 = vmatpush1.bf16.msra.mxu0 %v1465
    %4549 = vmatprep.subr.bf16.mxu0 %v1470
    %4550 = vmatpush1.bf16.msra.mxu0 %v1469
    %4551 = vmatprep.subr.bf16.mxu0 %v1474
    %4552 = vmatpush1.bf16.msra.mxu0 %v1473
    %4553 = vmatprep.subr.bf16.mxu0 0
    %4554 = vmatpush1.bf16.msra.mxu0 0
    %4555 = vmatprep.subr.bf16.mxu0 0
    %4556 = vmatpush1.bf16.msra.mxu0 0
    %4557 = vmatprep.subr.bf16.mxu0 0
    %4558 = vmatpush1.bf16.msra.mxu0 0
    %4559 = vmatprep.subr.bf16.mxu0 0
    %4560 = vmatpush1.bf16.msra.mxu0 0
    %4561 = vmatprep.subr.bf16.mxu0 0
    %4562 = vmatpush1.bf16.msra.mxu0 0
    %4563 = vmatprep.subr.bf16.mxu0 0
    %4564 = vmatpush1.bf16.msra.mxu0 0
    %4565 = vmatprep.subr.bf16.mxu0 0
    %4566 = vmatpush1.bf16.msra.mxu0 0
    %4567 = vmatprep.subr.bf16.mxu0 0
    %4568 = vmatpush1.bf16.msra.mxu0 0
    %4569 = vmatprep.mubr.bf16.mxu0 0
    %4570 = vmatmul.mubr.bf16.gmra.mrb[0].mxu0 %v4491
    %v4571 = vpop.f32.mrb[0].mxu0
    %v4572 = vadd.f32 %v4494, %v4571
    %v4573 = vpop.f32.mrb[0].mxu0
    %v4574 = vadd.f32 %v4495, %v4573
    %v4575 = vpop.f32.mrb[0].mxu0
    %v4576 = vpop.f32.mrb[0].mxu0
    %4577 = vdwg.mxu0
    %v4578 = vxor.u32 %v4531, 2147483648
    %v4579 = vxor.u32 %v4533, 2147483648
    %v4580 = vxor.u32 %v4572, 2147483648
    %v4581 = vmul.f32 %v4578, 1.442695
    %v4582 = vpow.pop %v4581
    %v4583 = vmul.f32 %v4579, 1.442695
    %v4584 = vpow.pop %v4583
    %v4585 = vmul.f32 %v4580, 1.442695
    %v4586 = vpow.pop %v4585
    %v4587 = vadd.f32 %v4582, 1.0
    %v4588 = vadd.f32 %v4584, 1.0
    %v4589 = vadd.f32 %v4586, 1.0
    %v4590 = vrcp.pop %v4587
    %v4591 = vmul.f32 1.0, %v4590
    %v4592 = vrcp.pop %v4588
    %v4593 = vmul.f32 1.0, %v4592
    %v4594 = vrcp.pop %v4589
    %v4595 = vmul.f32 1.0, %v4594
    %v4596 = vtanh.pop %v4574
    %v4597 = vmul.f32 %v4593, %v4484
    %v4598 = vmul.f32 %v4591, %v4596
    %v4599 = vadd.f32 %v4597, %v4598
    %v4600 = vtanh.pop %v4599
    %v4601 = vmul.f32 %v4595, %v4600
    %s4602 = scalar_lea.vmem [#allocation4], 208
    %4603 = vst [vmem:[%s4602] sm:$0xff] %v4601
    %s4604 = scalar_lea.vmem [#allocation5], 48
    %4605 = vst [vmem:[%s4604] sm:$0xff] %v4601
    %v4606 = vpack.c.bf16 %v4601, %v4601
    %v4607 = vld [vmem:[%s1204] sm:$0xff]
    %v4608 = vld [vmem:[%s1204 + $0x8] sm:$0xff]
    %v4609 = vld [vmem:[%s1204 + $0x10] sm:$0xff]
    %v4610 = vld [vmem:[%s1204 + $0x18] sm:$0xff]
    %4611 = vmatprep.subr.bf16.mxu0 %v1444
    %4612 = vmatpush1.bf16.msra.mxu0 %v1443
    %4613 = vmatprep.subr.bf16.mxu0 %v1448
    %4614 = vmatpush1.bf16.msra.mxu0 %v1447
    %4615 = vmatprep.subr.bf16.mxu0 %v1452
    %4616 = vmatpush1.bf16.msra.mxu0 %v1451
    %4617 = vmatprep.subr.bf16.mxu0 %v1456
    %4618 = vmatpush1.bf16.msra.mxu0 %v1455
    %4619 = vmatprep.subr.bf16.mxu0 %v1460
    %4620 = vmatpush1.bf16.msra.mxu0 %v1459
    %4621 = vmatprep.subr.bf16.mxu0 %v1464
    %4622 = vmatpush1.bf16.msra.mxu0 %v1463
    %4623 = vmatprep.subr.bf16.mxu0 %v1468
    %4624 = vmatpush1.bf16.msra.mxu0 %v1467
    %4625 = vmatprep.subr.bf16.mxu0 %v1472
    %4626 = vmatpush1.bf16.msra.mxu0 %v1471
    %4627 = vmatprep.subr.bf16.mxu0 0
    %4628 = vmatpush1.bf16.msra.mxu0 0
    %4629 = vmatprep.subr.bf16.mxu0 0
    %4630 = vmatpush1.bf16.msra.mxu0 0
    %4631 = vmatprep.subr.bf16.mxu0 0
    %4632 = vmatpush1.bf16.msra.mxu0 0
    %4633 = vmatprep.subr.bf16.mxu0 0
    %4634 = vmatpush1.bf16.msra.mxu0 0
    %4635 = vmatprep.subr.bf16.mxu0 0
    %4636 = vmatpush1.bf16.msra.mxu0 0
    %4637 = vmatprep.subr.bf16.mxu0 0
    %4638 = vmatpush1.bf16.msra.mxu0 0
    %4639 = vmatprep.subr.bf16.mxu0 0
    %4640 = vmatpush1.bf16.msra.mxu0 0
    %4641 = vmatprep.subr.bf16.mxu0 0
    %4642 = vmatpush1.bf16.msra.mxu0 0
    %4643 = vmatprep.mubr.bf16.mxu0 0
    %4644 = vmatmul.mubr.bf16.gmra.mrb[0].mxu0 %v4606
    %v4645 = vpop.f32.mrb[0].mxu0
    %v4646 = vadd.f32 %v4607, %v4645
    %v4647 = vpop.f32.mrb[0].mxu0
    %v4648 = vadd.f32 %v4608, %v4647
    %v4649 = vpop.f32.mrb[0].mxu0
    %v4650 = vpop.f32.mrb[0].mxu0
    %4651 = vdwg.mxu0
    %4652 = vmatprep.subr.bf16.mxu0 %v1446
    %4653 = vmatpush1.bf16.msra.mxu0 %v1445
    %4654 = vmatprep.subr.bf16.mxu0 %v1450
    %4655 = vmatpush1.bf16.msra.mxu0 %v1449
    %4656 = vmatprep.subr.bf16.mxu0 %v1454
    %4657 = vmatpush1.bf16.msra.mxu0 %v1453
    %4658 = vmatprep.subr.bf16.mxu0 %v1458
    %4659 = vmatpush1.bf16.msra.mxu0 %v1457
    %4660 = vmatprep.subr.bf16.mxu0 %v1462
    %4661 = vmatpush1.bf16.msra.mxu0 %v1461
    %4662 = vmatprep.subr.bf16.mxu0 %v1466
    %4663 = vmatpush1.bf16.msra.mxu0 %v1465
    %4664 = vmatprep.subr.bf16.mxu0 %v1470
    %4665 = vmatpush1.bf16.msra.mxu0 %v1469
    %4666 = vmatprep.subr.bf16.mxu0 %v1474
    %4667 = vmatpush1.bf16.msra.mxu0 %v1473
    %4668 = vmatprep.subr.bf16.mxu0 0
    %4669 = vmatpush1.bf16.msra.mxu0 0
    %4670 = vmatprep.subr.bf16.mxu0 0
    %4671 = vmatpush1.bf16.msra.mxu0 0
    %4672 = vmatprep.subr.bf16.mxu0 0
    %4673 = vmatpush1.bf16.msra.mxu0 0
    %4674 = vmatprep.subr.bf16.mxu0 0
    %4675 = vmatpush1.bf16.msra.mxu0 0
    %4676 = vmatprep.subr.bf16.mxu0 0
    %4677 = vmatpush1.bf16.msra.mxu0 0
    %4678 = vmatprep.subr.bf16.mxu0 0
    %4679 = vmatpush1.bf16.msra.mxu0 0
    %4680 = vmatprep.subr.bf16.mxu0 0
    %4681 = vmatpush1.bf16.msra.mxu0 0
    %4682 = vmatprep.subr.bf16.mxu0 0
    %4683 = vmatpush1.bf16.msra.mxu0 0
    %4684 = vmatprep.mubr.bf16.mxu0 0
    %4685 = vmatmul.mubr.bf16.gmra.mrb[0].mxu0 %v4606
    %v4686 = vpop.f32.mrb[0].mxu0
    %v4687 = vadd.f32 %v4609, %v4686
    %v4688 = vpop.f32.mrb[0].mxu0
    %v4689 = vadd.f32 %v4610, %v4688
    %v4690 = vpop.f32.mrb[0].mxu0
    %v4691 = vpop.f32.mrb[0].mxu0
    %4692 = vdwg.mxu0
    %v4693 = vxor.u32 %v4646, 2147483648
    %v4694 = vxor.u32 %v4648, 2147483648
    %v4695 = vxor.u32 %v4687, 2147483648
    %v4696 = vmul.f32 %v4693, 1.442695
    %v4697 = vpow.pop %v4696
    %v4698 = vmul.f32 %v4694, 1.442695
    %v4699 = vpow.pop %v4698
    %v4700 = vmul.f32 %v4695, 1.442695
    %v4701 = vpow.pop %v4700
    %v4702 = vadd.f32 %v4697, 1.0
    %v4703 = vadd.f32 %v4699, 1.0
    %v4704 = vadd.f32 %v4701, 1.0
    %v4705 = vrcp.pop %v4702
    %v4706 = vmul.f32 1.0, %v4705
    %v4707 = vrcp.pop %v4703
    %v4708 = vmul.f32 1.0, %v4707
    %v4709 = vrcp.pop %v4704
    %v4710 = vmul.f32 1.0, %v4709
    %v4711 = vtanh.pop %v4689
    %v4712 = vmul.f32 %v4708, %v4599
    %v4713 = vmul.f32 %v4706, %v4711
    %v4714 = vadd.f32 %v4712, %v4713
    %v4715 = vtanh.pop %v4714
    %v4716 = vmul.f32 %v4710, %v4715
    %s4717 = scalar_lea.vmem [#allocation4], 216
    %4718 = vst [vmem:[%s4717] sm:$0xff] %v4716
    %s4719 = scalar_lea.vmem [#allocation5], 40
    %4720 = vst [vmem:[%s4719] sm:$0xff] %v4716
    %v4721 = vpack.c.bf16 %v4716, %v4716
    %v4722 = vld [vmem:[%s1222] sm:$0xff]
    %v4723 = vld [vmem:[%s1222 + $0x8] sm:$0xff]
    %v4724 = vld [vmem:[%s1222 + $0x10] sm:$0xff]
    %v4725 = vld [vmem:[%s1222 + $0x18] sm:$0xff]
    %4726 = vmatprep.subr.bf16.mxu0 %v1444
    %4727 = vmatpush1.bf16.msra.mxu0 %v1443
    %4728 = vmatprep.subr.bf16.mxu0 %v1448
    %4729 = vmatpush1.bf16.msra.mxu0 %v1447
    %4730 = vmatprep.subr.bf16.mxu0 %v1452
    %4731 = vmatpush1.bf16.msra.mxu0 %v1451
    %4732 = vmatprep.subr.bf16.mxu0 %v1456
    %4733 = vmatpush1.bf16.msra.mxu0 %v1455
    %4734 = vmatprep.subr.bf16.mxu0 %v1460
    %4735 = vmatpush1.bf16.msra.mxu0 %v1459
    %4736 = vmatprep.subr.bf16.mxu0 %v1464
    %4737 = vmatpush1.bf16.msra.mxu0 %v1463
    %4738 = vmatprep.subr.bf16.mxu0 %v1468
    %4739 = vmatpush1.bf16.msra.mxu0 %v1467
    %4740 = vmatprep.subr.bf16.mxu0 %v1472
    %4741 = vmatpush1.bf16.msra.mxu0 %v1471
    %4742 = vmatprep.subr.bf16.mxu0 0
    %4743 = vmatpush1.bf16.msra.mxu0 0
    %4744 = vmatprep.subr.bf16.mxu0 0
    %4745 = vmatpush1.bf16.msra.mxu0 0
    %4746 = vmatprep.subr.bf16.mxu0 0
    %4747 = vmatpush1.bf16.msra.mxu0 0
    %4748 = vmatprep.subr.bf16.mxu0 0
    %4749 = vmatpush1.bf16.msra.mxu0 0
    %4750 = vmatprep.subr.bf16.mxu0 0
    %4751 = vmatpush1.bf16.msra.mxu0 0
    %4752 = vmatprep.subr.bf16.mxu0 0
    %4753 = vmatpush1.bf16.msra.mxu0 0
    %4754 = vmatprep.subr.bf16.mxu0 0
    %4755 = vmatpush1.bf16.msra.mxu0 0
    %4756 = vmatprep.subr.bf16.mxu0 0
    %4757 = vmatpush1.bf16.msra.mxu0 0
    %4758 = vmatprep.mubr.bf16.mxu0 0
    %4759 = vmatmul.mubr.bf16.gmra.mrb[0].mxu0 %v4721
    %v4760 = vpop.f32.mrb[0].mxu0
    %v4761 = vadd.f32 %v4722, %v4760
    %v4762 = vpop.f32.mrb[0].mxu0
    %v4763 = vadd.f32 %v4723, %v4762
    %v4764 = vpop.f32.mrb[0].mxu0
    %v4765 = vpop.f32.mrb[0].mxu0
    %4766 = vdwg.mxu0
    %4767 = vmatprep.subr.bf16.mxu0 %v1446
    %4768 = vmatpush1.bf16.msra.mxu0 %v1445
    %4769 = vmatprep.subr.bf16.mxu0 %v1450
    %4770 = vmatpush1.bf16.msra.mxu0 %v1449
    %4771 = vmatprep.subr.bf16.mxu0 %v1454
    %4772 = vmatpush1.bf16.msra.mxu0 %v1453
    %4773 = vmatprep.subr.bf16.mxu0 %v1458
    %4774 = vmatpush1.bf16.msra.mxu0 %v1457
    %4775 = vmatprep.subr.bf16.mxu0 %v1462
    %4776 = vmatpush1.bf16.msra.mxu0 %v1461
    %4777 = vmatprep.subr.bf16.mxu0 %v1466
    %4778 = vmatpush1.bf16.msra.mxu0 %v1465
    %4779 = vmatprep.subr.bf16.mxu0 %v1470
    %4780 = vmatpush1.bf16.msra.mxu0 %v1469
    %4781 = vmatprep.subr.bf16.mxu0 %v1474
    %4782 = vmatpush1.bf16.msra.mxu0 %v1473
    %4783 = vmatprep.subr.bf16.mxu0 0
    %4784 = vmatpush1.bf16.msra.mxu0 0
    %4785 = vmatprep.subr.bf16.mxu0 0
    %4786 = vmatpush1.bf16.msra.mxu0 0
    %4787 = vmatprep.subr.bf16.mxu0 0
    %4788 = vmatpush1.bf16.msra.mxu0 0
    %4789 = vmatprep.subr.bf16.mxu0 0
    %4790 = vmatpush1.bf16.msra.mxu0 0
    %4791 = vmatprep.subr.bf16.mxu0 0
    %4792 = vmatpush1.bf16.msra.mxu0 0
    %4793 = vmatprep.subr.bf16.mxu0 0
    %4794 = vmatpush1.bf16.msra.mxu0 0
    %4795 = vmatprep.subr.bf16.mxu0 0
    %4796 = vmatpush1.bf16.msra.mxu0 0
    %4797 = vmatprep.subr.bf16.mxu0 0
    %4798 = vmatpush1.bf16.msra.mxu0 0
    %4799 = vmatprep.mubr.bf16.mxu0 0
    %4800 = vmatmul.mubr.bf16.gmra.mrb[0].mxu0 %v4721
    %v4801 = vpop.f32.mrb[0].mxu0
    %v4802 = vadd.f32 %v4724, %v4801
    %v4803 = vpop.f32.mrb[0].mxu0
    %v4804 = vadd.f32 %v4725, %v4803
    %v4805 = vpop.f32.mrb[0].mxu0
    %v4806 = vpop.f32.mrb[0].mxu0
    %4807 = vdwg.mxu0
    %v4808 = vxor.u32 %v4761, 2147483648
    %v4809 = vxor.u32 %v4763, 2147483648
    %v4810 = vxor.u32 %v4802, 2147483648
    %v4811 = vmul.f32 %v4808, 1.442695
    %v4812 = vpow.pop %v4811
    %v4813 = vmul.f32 %v4809, 1.442695
    %v4814 = vpow.pop %v4813
    %v4815 = vmul.f32 %v4810, 1.442695
    %v4816 = vpow.pop %v4815
    %v4817 = vadd.f32 %v4812, 1.0
    %v4818 = vadd.f32 %v4814, 1.0
    %v4819 = vadd.f32 %v4816, 1.0
    %v4820 = vrcp.pop %v4817
    %v4821 = vmul.f32 1.0, %v4820
    %v4822 = vrcp.pop %v4818
    %v4823 = vmul.f32 1.0, %v4822
    %v4824 = vrcp.pop %v4819
    %v4825 = vmul.f32 1.0, %v4824
    %v4826 = vtanh.pop %v4804
    %v4827 = vmul.f32 %v4823, %v4714
    %v4828 = vmul.f32 %v4821, %v4826
    %v4829 = vadd.f32 %v4827, %v4828
    %v4830 = vtanh.pop %v4829
    %v4831 = vmul.f32 %v4825, %v4830
    %s4832 = scalar_lea.vmem [#allocation4], 224
    %4833 = vst [vmem:[%s4832] sm:$0xff] %v4831
    %s4834 = scalar_lea.vmem [#allocation5], 32
    %4835 = vst [vmem:[%s4834] sm:$0xff] %v4831
    %v4836 = vpack.c.bf16 %v4831, %v4831
    %v4837 = vld [vmem:[%s1240] sm:$0xff]
    %v4838 = vld [vmem:[%s1240 + $0x8] sm:$0xff]
    %v4839 = vld [vmem:[%s1240 + $0x10] sm:$0xff]
    %v4840 = vld [vmem:[%s1240 + $0x18] sm:$0xff]
    %4841 = vmatprep.subr.bf16.mxu0 %v1444
    %4842 = vmatpush1.bf16.msra.mxu0 %v1443
    %4843 = vmatprep.subr.bf16.mxu0 %v1448
    %4844 = vmatpush1.bf16.msra.mxu0 %v1447
    %4845 = vmatprep.subr.bf16.mxu0 %v1452
    %4846 = vmatpush1.bf16.msra.mxu0 %v1451
    %4847 = vmatprep.subr.bf16.mxu0 %v1456
    %4848 = vmatpush1.bf16.msra.mxu0 %v1455
    %4849 = vmatprep.subr.bf16.mxu0 %v1460
    %4850 = vmatpush1.bf16.msra.mxu0 %v1459
    %4851 = vmatprep.subr.bf16.mxu0 %v1464
    %4852 = vmatpush1.bf16.msra.mxu0 %v1463
    %4853 = vmatprep.subr.bf16.mxu0 %v1468
    %4854 = vmatpush1.bf16.msra.mxu0 %v1467
    %4855 = vmatprep.subr.bf16.mxu0 %v1472
    %4856 = vmatpush1.bf16.msra.mxu0 %v1471
    %4857 = vmatprep.subr.bf16.mxu0 0
    %4858 = vmatpush1.bf16.msra.mxu0 0
    %4859 = vmatprep.subr.bf16.mxu0 0
    %4860 = vmatpush1.bf16.msra.mxu0 0
    %4861 = vmatprep.subr.bf16.mxu0 0
    %4862 = vmatpush1.bf16.msra.mxu0 0
    %4863 = vmatprep.subr.bf16.mxu0 0
    %4864 = vmatpush1.bf16.msra.mxu0 0
    %4865 = vmatprep.subr.bf16.mxu0 0
    %4866 = vmatpush1.bf16.msra.mxu0 0
    %4867 = vmatprep.subr.bf16.mxu0 0
    %4868 = vmatpush1.bf16.msra.mxu0 0
    %4869 = vmatprep.subr.bf16.mxu0 0
    %4870 = vmatpush1.bf16.msra.mxu0 0
    %4871 = vmatprep.subr.bf16.mxu0 0
    %4872 = vmatpush1.bf16.msra.mxu0 0
    %4873 = vmatprep.mubr.bf16.mxu0 0
    %4874 = vmatmul.mubr.bf16.gmra.mrb[0].mxu0 %v4836
    %v4875 = vpop.f32.mrb[0].mxu0
    %v4876 = vadd.f32 %v4837, %v4875
    %v4877 = vpop.f32.mrb[0].mxu0
    %v4878 = vadd.f32 %v4838, %v4877
    %v4879 = vpop.f32.mrb[0].mxu0
    %v4880 = vpop.f32.mrb[0].mxu0
    %4881 = vdwg.mxu0
    %4882 = vmatprep.subr.bf16.mxu0 %v1446
    %4883 = vmatpush1.bf16.msra.mxu0 %v1445
    %4884 = vmatprep.subr.bf16.mxu0 %v1450
    %4885 = vmatpush1.bf16.msra.mxu0 %v1449
    %4886 = vmatprep.subr.bf16.mxu0 %v1454
    %4887 = vmatpush1.bf16.msra.mxu0 %v1453
    %4888 = vmatprep.subr.bf16.mxu0 %v1458
    %4889 = vmatpush1.bf16.msra.mxu0 %v1457
    %4890 = vmatprep.subr.bf16.mxu0 %v1462
    %4891 = vmatpush1.bf16.msra.mxu0 %v1461
    %4892 = vmatprep.subr.bf16.mxu0 %v1466
    %4893 = vmatpush1.bf16.msra.mxu0 %v1465
    %4894 = vmatprep.subr.bf16.mxu0 %v1470
    %4895 = vmatpush1.bf16.msra.mxu0 %v1469
    %4896 = vmatprep.subr.bf16.mxu0 %v1474
    %4897 = vmatpush1.bf16.msra.mxu0 %v1473
    %4898 = vmatprep.subr.bf16.mxu0 0
    %4899 = vmatpush1.bf16.msra.mxu0 0
    %4900 = vmatprep.subr.bf16.mxu0 0
    %4901 = vmatpush1.bf16.msra.mxu0 0
    %4902 = vmatprep.subr.bf16.mxu0 0
    %4903 = vmatpush1.bf16.msra.mxu0 0
    %4904 = vmatprep.subr.bf16.mxu0 0
    %4905 = vmatpush1.bf16.msra.mxu0 0
    %4906 = vmatprep.subr.bf16.mxu0 0
    %4907 = vmatpush1.bf16.msra.mxu0 0
    %4908 = vmatprep.subr.bf16.mxu0 0
    %4909 = vmatpush1.bf16.msra.mxu0 0
    %4910 = vmatprep.subr.bf16.mxu0 0
    %4911 = vmatpush1.bf16.msra.mxu0 0
    %4912 = vmatprep.subr.bf16.mxu0 0
    %4913 = vmatpush1.bf16.msra.mxu0 0
    %4914 = vmatprep.mubr.bf16.mxu0 0
    %4915 = vmatmul.mubr.bf16.gmra.mrb[0].mxu0 %v4836
    %v4916 = vpop.f32.mrb[0].mxu0
    %v4917 = vadd.f32 %v4839, %v4916
    %v4918 = vpop.f32.mrb[0].mxu0
    %v4919 = vadd.f32 %v4840, %v4918
    %v4920 = vpop.f32.mrb[0].mxu0
    %v4921 = vpop.f32.mrb[0].mxu0
    %4922 = vdwg.mxu0
    %v4923 = vxor.u32 %v4876, 2147483648
    %v4924 = vxor.u32 %v4878, 2147483648
    %v4925 = vxor.u32 %v4917, 2147483648
    %v4926 = vmul.f32 %v4923, 1.442695
    %v4927 = vpow.pop %v4926
    %v4928 = vmul.f32 %v4924, 1.442695
    %v4929 = vpow.pop %v4928
    %v4930 = vmul.f32 %v4925, 1.442695
    %v4931 = vpow.pop %v4930
    %v4932 = vadd.f32 %v4927, 1.0
    %v4933 = vadd.f32 %v4929, 1.0
    %v4934 = vadd.f32 %v4931, 1.0
    %v4935 = vrcp.pop %v4932
    %v4936 = vmul.f32 1.0, %v4935
    %v4937 = vrcp.pop %v4933
    %v4938 = vmul.f32 1.0, %v4937
    %v4939 = vrcp.pop %v4934
    %v4940 = vmul.f32 1.0, %v4939
    %v4941 = vtanh.pop %v4919
    %v4942 = vmul.f32 %v4938, %v4829
    %v4943 = vmul.f32 %v4936, %v4941
    %v4944 = vadd.f32 %v4942, %v4943
    %v4945 = vtanh.pop %v4944
    %v4946 = vmul.f32 %v4940, %v4945
    %s4947 = scalar_lea.vmem [#allocation4], 232
    %4948 = vst [vmem:[%s4947] sm:$0xff] %v4946
    %s4949 = scalar_lea.vmem [#allocation5], 24
    %4950 = vst [vmem:[%s4949] sm:$0xff] %v4946
    %v4951 = vpack.c.bf16 %v4946, %v4946
    %v4952 = vld [vmem:[%s1258] sm:$0xff]
    %v4953 = vld [vmem:[%s1258 + $0x8] sm:$0xff]
    %v4954 = vld [vmem:[%s1258 + $0x10] sm:$0xff]
    %v4955 = vld [vmem:[%s1258 + $0x18] sm:$0xff]
    %4956 = vmatprep.subr.bf16.mxu0 %v1444
    %4957 = vmatpush1.bf16.msra.mxu0 %v1443
    %4958 = vmatprep.subr.bf16.mxu0 %v1448
    %4959 = vmatpush1.bf16.msra.mxu0 %v1447
    %4960 = vmatprep.subr.bf16.mxu0 %v1452
    %4961 = vmatpush1.bf16.msra.mxu0 %v1451
    %4962 = vmatprep.subr.bf16.mxu0 %v1456
    %4963 = vmatpush1.bf16.msra.mxu0 %v1455
    %4964 = vmatprep.subr.bf16.mxu0 %v1460
    %4965 = vmatpush1.bf16.msra.mxu0 %v1459
    %4966 = vmatprep.subr.bf16.mxu0 %v1464
    %4967 = vmatpush1.bf16.msra.mxu0 %v1463
    %4968 = vmatprep.subr.bf16.mxu0 %v1468
    %4969 = vmatpush1.bf16.msra.mxu0 %v1467
    %4970 = vmatprep.subr.bf16.mxu0 %v1472
    %4971 = vmatpush1.bf16.msra.mxu0 %v1471
    %4972 = vmatprep.subr.bf16.mxu0 0
    %4973 = vmatpush1.bf16.msra.mxu0 0
    %4974 = vmatprep.subr.bf16.mxu0 0
    %4975 = vmatpush1.bf16.msra.mxu0 0
    %4976 = vmatprep.subr.bf16.mxu0 0
    %4977 = vmatpush1.bf16.msra.mxu0 0
    %4978 = vmatprep.subr.bf16.mxu0 0
    %4979 = vmatpush1.bf16.msra.mxu0 0
    %4980 = vmatprep.subr.bf16.mxu0 0
    %4981 = vmatpush1.bf16.msra.mxu0 0
    %4982 = vmatprep.subr.bf16.mxu0 0
    %4983 = vmatpush1.bf16.msra.mxu0 0
    %4984 = vmatprep.subr.bf16.mxu0 0
    %4985 = vmatpush1.bf16.msra.mxu0 0
    %4986 = vmatprep.subr.bf16.mxu0 0
    %4987 = vmatpush1.bf16.msra.mxu0 0
    %4988 = vmatprep.mubr.bf16.mxu0 0
    %4989 = vmatmul.mubr.bf16.gmra.mrb[0].mxu0 %v4951
    %v4990 = vpop.f32.mrb[0].mxu0
    %v4991 = vadd.f32 %v4952, %v4990
    %v4992 = vpop.f32.mrb[0].mxu0
    %v4993 = vadd.f32 %v4953, %v4992
    %v4994 = vpop.f32.mrb[0].mxu0
    %v4995 = vpop.f32.mrb[0].mxu0
    %4996 = vdwg.mxu0
    %4997 = vmatprep.subr.bf16.mxu0 %v1446
    %4998 = vmatpush1.bf16.msra.mxu0 %v1445
    %4999 = vmatprep.subr.bf16.mxu0 %v1450
    %5000 = vmatpush1.bf16.msra.mxu0 %v1449
    %5001 = vmatprep.subr.bf16.mxu0 %v1454
    %5002 = vmatpush1.bf16.msra.mxu0 %v1453
    %5003 = vmatprep.subr.bf16.mxu0 %v1458
    %5004 = vmatpush1.bf16.msra.mxu0 %v1457
    %5005 = vmatprep.subr.bf16.mxu0 %v1462
    %5006 = vmatpush1.bf16.msra.mxu0 %v1461
    %5007 = vmatprep.subr.bf16.mxu0 %v1466
    %5008 = vmatpush1.bf16.msra.mxu0 %v1465
    %5009 = vmatprep.subr.bf16.mxu0 %v1470
    %5010 = vmatpush1.bf16.msra.mxu0 %v1469
    %5011 = vmatprep.subr.bf16.mxu0 %v1474
    %5012 = vmatpush1.bf16.msra.mxu0 %v1473
    %5013 = vmatprep.subr.bf16.mxu0 0
    %5014 = vmatpush1.bf16.msra.mxu0 0
    %5015 = vmatprep.subr.bf16.mxu0 0
    %5016 = vmatpush1.bf16.msra.mxu0 0
    %5017 = vmatprep.subr.bf16.mxu0 0
    %5018 = vmatpush1.bf16.msra.mxu0 0
    %5019 = vmatprep.subr.bf16.mxu0 0
    %5020 = vmatpush1.bf16.msra.mxu0 0
    %5021 = vmatprep.subr.bf16.mxu0 0
    %5022 = vmatpush1.bf16.msra.mxu0 0
    %5023 = vmatprep.subr.bf16.mxu0 0
    %5024 = vmatpush1.bf16.msra.mxu0 0
    %5025 = vmatprep.subr.bf16.mxu0 0
    %5026 = vmatpush1.bf16.msra.mxu0 0
    %5027 = vmatprep.subr.bf16.mxu0 0
    %5028 = vmatpush1.bf16.msra.mxu0 0
    %5029 = vmatprep.mubr.bf16.mxu0 0
    %5030 = vmatmul.mubr.bf16.gmra.mrb[0].mxu0 %v4951
    %v5031 = vpop.f32.mrb[0].mxu0
    %v5032 = vadd.f32 %v4954, %v5031
    %v5033 = vpop.f32.mrb[0].mxu0
    %v5034 = vadd.f32 %v4955, %v5033
    %v5035 = vpop.f32.mrb[0].mxu0
    %v5036 = vpop.f32.mrb[0].mxu0
    %5037 = vdwg.mxu0
    %v5038 = vxor.u32 %v4991, 2147483648
    %v5039 = vxor.u32 %v4993, 2147483648
    %v5040 = vxor.u32 %v5032, 2147483648
    %v5041 = vmul.f32 %v5038, 1.442695
    %v5042 = vpow.pop %v5041
    %v5043 = vmul.f32 %v5039, 1.442695
    %v5044 = vpow.pop %v5043
    %v5045 = vmul.f32 %v5040, 1.442695
    %v5046 = vpow.pop %v5045
    %v5047 = vadd.f32 %v5042, 1.0
    %v5048 = vadd.f32 %v5044, 1.0
    %v5049 = vadd.f32 %v5046, 1.0
    %v5050 = vrcp.pop %v5047
    %v5051 = vmul.f32 1.0, %v5050
    %v5052 = vrcp.pop %v5048
    %v5053 = vmul.f32 1.0, %v5052
    %v5054 = vrcp.pop %v5049
    %v5055 = vmul.f32 1.0, %v5054
    %v5056 = vtanh.pop %v5034
    %v5057 = vmul.f32 %v5053, %v4944
    %v5058 = vmul.f32 %v5051, %v5056
    %v5059 = vadd.f32 %v5057, %v5058
    %v5060 = vtanh.pop %v5059
    %v5061 = vmul.f32 %v5055, %v5060
    %s5062 = scalar_lea.vmem [#allocation4], 240
    %5063 = vst [vmem:[%s5062] sm:$0xff] %v5061
    %s5064 = scalar_lea.vmem [#allocation5], 16
    %5065 = vst [vmem:[%s5064] sm:$0xff] %v5061
    %v5066 = vpack.c.bf16 %v5061, %v5061
    %v5067 = vld [vmem:[%s1276] sm:$0xff]
    %v5068 = vld [vmem:[%s1276 + $0x8] sm:$0xff]
    %v5069 = vld [vmem:[%s1276 + $0x10] sm:$0xff]
    %v5070 = vld [vmem:[%s1276 + $0x18] sm:$0xff]
    %5071 = vmatprep.subr.bf16.mxu0 %v1444
    %5072 = vmatpush1.bf16.msra.mxu0 %v1443
    %5073 = vmatprep.subr.bf16.mxu0 %v1448
    %5074 = vmatpush1.bf16.msra.mxu0 %v1447
    %5075 = vmatprep.subr.bf16.mxu0 %v1452
    %5076 = vmatpush1.bf16.msra.mxu0 %v1451
    %5077 = vmatprep.subr.bf16.mxu0 %v1456
    %5078 = vmatpush1.bf16.msra.mxu0 %v1455
    %5079 = vmatprep.subr.bf16.mxu0 %v1460
    %5080 = vmatpush1.bf16.msra.mxu0 %v1459
    %5081 = vmatprep.subr.bf16.mxu0 %v1464
    %5082 = vmatpush1.bf16.msra.mxu0 %v1463
    %5083 = vmatprep.subr.bf16.mxu0 %v1468
    %5084 = vmatpush1.bf16.msra.mxu0 %v1467
    %5085 = vmatprep.subr.bf16.mxu0 %v1472
    %5086 = vmatpush1.bf16.msra.mxu0 %v1471
    %5087 = vmatprep.subr.bf16.mxu0 0
    %5088 = vmatpush1.bf16.msra.mxu0 0
    %5089 = vmatprep.subr.bf16.mxu0 0
    %5090 = vmatpush1.bf16.msra.mxu0 0
    %5091 = vmatprep.subr.bf16.mxu0 0
    %5092 = vmatpush1.bf16.msra.mxu0 0
    %5093 = vmatprep.subr.bf16.mxu0 0
    %5094 = vmatpush1.bf16.msra.mxu0 0
    %5095 = vmatprep.subr.bf16.mxu0 0
    %5096 = vmatpush1.bf16.msra.mxu0 0
    %5097 = vmatprep.subr.bf16.mxu0 0
    %5098 = vmatpush1.bf16.msra.mxu0 0
    %5099 = vmatprep.subr.bf16.mxu0 0
    %5100 = vmatpush1.bf16.msra.mxu0 0
    %5101 = vmatprep.subr.bf16.mxu0 0
    %5102 = vmatpush1.bf16.msra.mxu0 0
    %5103 = vmatprep.mubr.bf16.mxu0 0
    %5104 = vmatmul.mubr.bf16.gmra.mrb[0].mxu0 %v5066
    %v5105 = vpop.f32.mrb[0].mxu0
    %v5106 = vadd.f32 %v5067, %v5105
    %v5107 = vpop.f32.mrb[0].mxu0
    %v5108 = vadd.f32 %v5068, %v5107
    %v5109 = vpop.f32.mrb[0].mxu0
    %v5110 = vpop.f32.mrb[0].mxu0
    %5111 = vdwg.mxu0
    %5112 = vmatprep.subr.bf16.mxu0 %v1446
    %5113 = vmatpush1.bf16.msra.mxu0 %v1445
    %5114 = vmatprep.subr.bf16.mxu0 %v1450
    %5115 = vmatpush1.bf16.msra.mxu0 %v1449
    %5116 = vmatprep.subr.bf16.mxu0 %v1454
    %5117 = vmatpush1.bf16.msra.mxu0 %v1453
    %5118 = vmatprep.subr.bf16.mxu0 %v1458
    %5119 = vmatpush1.bf16.msra.mxu0 %v1457
    %5120 = vmatprep.subr.bf16.mxu0 %v1462
    %5121 = vmatpush1.bf16.msra.mxu0 %v1461
    %5122 = vmatprep.subr.bf16.mxu0 %v1466
    %5123 = vmatpush1.bf16.msra.mxu0 %v1465
    %5124 = vmatprep.subr.bf16.mxu0 %v1470
    %5125 = vmatpush1.bf16.msra.mxu0 %v1469
    %5126 = vmatprep.subr.bf16.mxu0 %v1474
    %5127 = vmatpush1.bf16.msra.mxu0 %v1473
    %5128 = vmatprep.subr.bf16.mxu0 0
    %5129 = vmatpush1.bf16.msra.mxu0 0
    %5130 = vmatprep.subr.bf16.mxu0 0
    %5131 = vmatpush1.bf16.msra.mxu0 0
    %5132 = vmatprep.subr.bf16.mxu0 0
    %5133 = vmatpush1.bf16.msra.mxu0 0
    %5134 = vmatprep.subr.bf16.mxu0 0
    %5135 = vmatpush1.bf16.msra.mxu0 0
    %5136 = vmatprep.subr.bf16.mxu0 0
    %5137 = vmatpush1.bf16.msra.mxu0 0
    %5138 = vmatprep.subr.bf16.mxu0 0
    %5139 = vmatpush1.bf16.msra.mxu0 0
    %5140 = vmatprep.subr.bf16.mxu0 0
    %5141 = vmatpush1.bf16.msra.mxu0 0
    %5142 = vmatprep.subr.bf16.mxu0 0
    %5143 = vmatpush1.bf16.msra.mxu0 0
    %5144 = vmatprep.mubr.bf16.mxu0 0
    %5145 = vmatmul.mubr.bf16.gmra.mrb[0].mxu0 %v5066
    %v5146 = vpop.f32.mrb[0].mxu0
    %v5147 = vadd.f32 %v5069, %v5146
    %v5148 = vpop.f32.mrb[0].mxu0
    %v5149 = vadd.f32 %v5070, %v5148
    %v5150 = vpop.f32.mrb[0].mxu0
    %v5151 = vpop.f32.mrb[0].mxu0
    %5152 = vdwg.mxu0
    %v5153 = vxor.u32 %v5106, 2147483648
    %v5154 = vxor.u32 %v5108, 2147483648
    %v5155 = vxor.u32 %v5147, 2147483648
    %v5156 = vmul.f32 %v5153, 1.442695
    %v5157 = vpow.pop %v5156
    %v5158 = vmul.f32 %v5154, 1.442695
    %v5159 = vpow.pop %v5158
    %v5160 = vmul.f32 %v5155, 1.442695
    %v5161 = vpow.pop %v5160
    %v5162 = vadd.f32 %v5157, 1.0
    %v5163 = vadd.f32 %v5159, 1.0
    %v5164 = vadd.f32 %v5161, 1.0
    %v5165 = vrcp.pop %v5162
    %v5166 = vmul.f32 1.0, %v5165
    %v5167 = vrcp.pop %v5163
    %v5168 = vmul.f32 1.0, %v5167
    %v5169 = vrcp.pop %v5164
    %v5170 = vmul.f32 1.0, %v5169
    %v5171 = vtanh.pop %v5149
    %v5172 = vmul.f32 %v5168, %v5059
    %v5173 = vmul.f32 %v5166, %v5171
    %v5174 = vadd.f32 %v5172, %v5173
    %v5175 = vtanh.pop %v5174
    %v5176 = vmul.f32 %v5170, %v5175
    %s5177 = scalar_lea.vmem [#allocation4], 248
    %5178 = vst [vmem:[%s5177] sm:$0xff] %v5176
    %s5179 = scalar_lea.vmem [#allocation5], 8
    %5180 = vst [vmem:[%s5179] sm:$0xff] %v5176
    %v5181 = vpack.c.bf16 %v5176, %v5176
    %v5182 = vld [vmem:[%s1294] sm:$0xff]
    %v5183 = vld [vmem:[%s1294 + $0x8] sm:$0xff]
    %v5184 = vld [vmem:[%s1294 + $0x10] sm:$0xff]
    %v5185 = vld [vmem:[%s1294 + $0x18] sm:$0xff]
    %5186 = vmatprep.subr.bf16.mxu0 %v1444
    %5187 = vmatpush1.bf16.msra.mxu0 %v1443
    %5188 = vmatprep.subr.bf16.mxu0 %v1448
    %5189 = vmatpush1.bf16.msra.mxu0 %v1447
    %5190 = vmatprep.subr.bf16.mxu0 %v1452
    %5191 = vmatpush1.bf16.msra.mxu0 %v1451
    %5192 = vmatprep.subr.bf16.mxu0 %v1456
    %5193 = vmatpush1.bf16.msra.mxu0 %v1455
    %5194 = vmatprep.subr.bf16.mxu0 %v1460
    %5195 = vmatpush1.bf16.msra.mxu0 %v1459
    %5196 = vmatprep.subr.bf16.mxu0 %v1464
    %5197 = vmatpush1.bf16.msra.mxu0 %v1463
    %5198 = vmatprep.subr.bf16.mxu0 %v1468
    %5199 = vmatpush1.bf16.msra.mxu0 %v1467
    %5200 = vmatprep.subr.bf16.mxu0 %v1472
    %5201 = vmatpush1.bf16.msra.mxu0 %v1471
    %5202 = vmatprep.subr.bf16.mxu0 0
    %5203 = vmatpush1.bf16.msra.mxu0 0
    %5204 = vmatprep.subr.bf16.mxu0 0
    %5205 = vmatpush1.bf16.msra.mxu0 0
    %5206 = vmatprep.subr.bf16.mxu0 0
    %5207 = vmatpush1.bf16.msra.mxu0 0
    %5208 = vmatprep.subr.bf16.mxu0 0
    %5209 = vmatpush1.bf16.msra.mxu0 0
    %5210 = vmatprep.subr.bf16.mxu0 0
    %5211 = vmatpush1.bf16.msra.mxu0 0
    %5212 = vmatprep.subr.bf16.mxu0 0
    %5213 = vmatpush1.bf16.msra.mxu0 0
    %5214 = vmatprep.subr.bf16.mxu0 0
    %5215 = vmatpush1.bf16.msra.mxu0 0
    %5216 = vmatprep.subr.bf16.mxu0 0
    %5217 = vmatpush1.bf16.msra.mxu0 0
    %5218 = vmatprep.mubr.bf16.mxu0 0
    %5219 = vmatmul.mubr.bf16.gmra.mrb[0].mxu0 %v5181
    %v5220 = vpop.f32.mrb[0].mxu0
    %v5221 = vadd.f32 %v5182, %v5220
    %v5222 = vpop.f32.mrb[0].mxu0
    %v5223 = vadd.f32 %v5183, %v5222
    %v5224 = vpop.f32.mrb[0].mxu0
    %v5225 = vpop.f32.mrb[0].mxu0
    %5226 = vdwg.mxu0
    %5227 = vmatprep.subr.bf16.mxu0 %v1446
    %5228 = vmatpush1.bf16.msra.mxu0 %v1445
    %5229 = vmatprep.subr.bf16.mxu0 %v1450
    %5230 = vmatpush1.bf16.msra.mxu0 %v1449
    %5231 = vmatprep.subr.bf16.mxu0 %v1454
    %5232 = vmatpush1.bf16.msra.mxu0 %v1453
    %5233 = vmatprep.subr.bf16.mxu0 %v1458
    %5234 = vmatpush1.bf16.msra.mxu0 %v1457
    %5235 = vmatprep.subr.bf16.mxu0 %v1462
    %5236 = vmatpush1.bf16.msra.mxu0 %v1461
    %5237 = vmatprep.subr.bf16.mxu0 %v1466
    %5238 = vmatpush1.bf16.msra.mxu0 %v1465
    %5239 = vmatprep.subr.bf16.mxu0 %v1470
    %5240 = vmatpush1.bf16.msra.mxu0 %v1469
    %5241 = vmatprep.subr.bf16.mxu0 %v1474
    %5242 = vmatpush1.bf16.msra.mxu0 %v1473
    %5243 = vmatprep.subr.bf16.mxu0 0
    %5244 = vmatpush1.bf16.msra.mxu0 0
    %5245 = vmatprep.subr.bf16.mxu0 0
    %5246 = vmatpush1.bf16.msra.mxu0 0
    %5247 = vmatprep.subr.bf16.mxu0 0
    %5248 = vmatpush1.bf16.msra.mxu0 0
    %5249 = vmatprep.subr.bf16.mxu0 0
    %5250 = vmatpush1.bf16.msra.mxu0 0
    %5251 = vmatprep.subr.bf16.mxu0 0
    %5252 = vmatpush1.bf16.msra.mxu0 0
    %5253 = vmatprep.subr.bf16.mxu0 0
    %5254 = vmatpush1.bf16.msra.mxu0 0
    %5255 = vmatprep.subr.bf16.mxu0 0
    %5256 = vmatpush1.bf16.msra.mxu0 0
    %5257 = vmatprep.subr.bf16.mxu0 0
    %5258 = vmatpush1.bf16.msra.mxu0 0
    %5259 = vmatprep.mubr.bf16.mxu0 0
    %5260 = vmatmul.mubr.bf16.gmra.mrb[0].mxu0 %v5181
    %v5261 = vpop.f32.mrb[0].mxu0
    %v5262 = vadd.f32 %v5184, %v5261
    %v5263 = vpop.f32.mrb[0].mxu0
    %v5264 = vadd.f32 %v5185, %v5263
    %v5265 = vpop.f32.mrb[0].mxu0
    %v5266 = vpop.f32.mrb[0].mxu0
    %5267 = vdwg.mxu0
    %v5268 = vxor.u32 %v5221, 2147483648
    %v5269 = vxor.u32 %v5223, 2147483648
    %v5270 = vxor.u32 %v5262, 2147483648
    %v5271 = vmul.f32 %v5268, 1.442695
    %v5272 = vpow.pop %v5271
    %v5273 = vmul.f32 %v5269, 1.442695
    %v5274 = vpow.pop %v5273
    %v5275 = vmul.f32 %v5270, 1.442695
    %v5276 = vpow.pop %v5275
    %v5277 = vadd.f32 %v5272, 1.0
    %v5278 = vadd.f32 %v5274, 1.0
    %v5279 = vadd.f32 %v5276, 1.0
    %v5280 = vrcp.pop %v5277
    %v5281 = vmul.f32 1.0, %v5280
    %v5282 = vrcp.pop %v5278
    %v5283 = vmul.f32 1.0, %v5282
    %v5284 = vrcp.pop %v5279
    %v5285 = vmul.f32 1.0, %v5284
    %v5286 = vtanh.pop %v5264
    %v5287 = vmul.f32 %v5283, %v5174
    %v5288 = vmul.f32 %v5281, %v5286
    %v5289 = vadd.f32 %v5287, %v5288
    %v5290 = vtanh.pop %v5289
    %v5291 = vmul.f32 %v5285, %v5290
    %s5292 = scalar_lea.vmem [#allocation4], 256
    %5293 = vst [vmem:[%s5292] sm:$0xff] %v5291
    %5294 = vst [vmem:[#allocation5] sm:$0xff] %v5291
    %v5295 = vlaneseq
    %v5296 = vand.u32 %v5295, 127
    %vm5297 = vcmp.lt.s32.totalorder %v5296, 64
    %v5298 = vld [vmem:[#allocation4] sm:$0xff]
    %v5299 = vld [vmem:[#allocation4 + $0x8] sm:$0xff]
    %v5300 = vld [vmem:[#allocation4 + $0x10] sm:$0xff]
    %v5301 = vld [vmem:[#allocation4 + $0x18] sm:$0xff]
    %v5302 = vld [vmem:[#allocation4 + $0x20] sm:$0xff]
    %v5303 = vld [vmem:[#allocation4 + $0x28] sm:$0xff]
    %v5304 = vld [vmem:[#allocation4 + $0x30] sm:$0xff]
    %v5305 = vld [vmem:[#allocation4 + $0x38] sm:$0xff]
    %v5306 = vld [vmem:[#allocation4 + $0x40] sm:$0xff]
    %v5307 = vld [vmem:[#allocation4 + $0x48] sm:$0xff]
    %v5308 = vld [vmem:[#allocation4 + $0x50] sm:$0xff]
    %v5309 = vld [vmem:[#allocation4 + $0x58] sm:$0xff]
    %v5310 = vld [vmem:[#allocation4 + $0x60] sm:$0xff]
    %v5311 = vld [vmem:[#allocation4 + $0x68] sm:$0xff]
    %v5312 = vld [vmem:[#allocation4 + $0x70] sm:$0xff]
    %v5313 = vld [vmem:[#allocation4 + $0x78] sm:$0xff]
    %v5314 = vld [vmem:[#allocation4 + $0x80] sm:$0xff]
    %v5315 = vld [vmem:[#allocation4 + $0x88] sm:$0xff]
    %v5316 = vld [vmem:[#allocation4 + $0x90] sm:$0xff]
    %v5317 = vld [vmem:[#allocation4 + $0x98] sm:$0xff]
    %v5318 = vld [vmem:[#allocation4 + $0xa0] sm:$0xff]
    %v5319 = vld [vmem:[#allocation4 + $0xa8] sm:$0xff]
    %v5320 = vld [vmem:[#allocation4 + $0xb0] sm:$0xff]
    %v5321 = vld [vmem:[#allocation4 + $0xb8] sm:$0xff]
    %v5322 = vld [vmem:[#allocation4 + $0xc0] sm:$0xff]
    %v5323 = vld [vmem:[#allocation4 + $0xc8] sm:$0xff]
    %v5324 = vld [vmem:[#allocation4 + $0xd0] sm:$0xff]
    %v5325 = vld [vmem:[#allocation4 + $0xd8] sm:$0xff]
    %v5326 = vld [vmem:[#allocation4 + $0xe0] sm:$0xff]
    %v5327 = vld [vmem:[#allocation4 + $0xe8] sm:$0xff]
    %v5328 = vld [vmem:[#allocation4 + $0xf0] sm:$0xff]
    %v5329 = vld [vmem:[#allocation4 + $0xf8] sm:$0xff]
    %v5330 = vld [vmem:[#allocation4 + $0x100] sm:$0xff]
    %v5331 = vld [vmem:[#allocation5] sm:$0xff]
    %v5332 = vld [vmem:[#allocation5 + $0x8] sm:$0xff]
    %v5333 = vld [vmem:[#allocation5 + $0x10] sm:$0xff]
    %v5334 = vld [vmem:[#allocation5 + $0x18] sm:$0xff]
    %v5335 = vld [vmem:[#allocation5 + $0x20] sm:$0xff]
    %v5336 = vld [vmem:[#allocation5 + $0x28] sm:$0xff]
    %v5337 = vld [vmem:[#allocation5 + $0x30] sm:$0xff]
    %v5338 = vld [vmem:[#allocation5 + $0x38] sm:$0xff]
    %v5339 = vld [vmem:[#allocation5 + $0x40] sm:$0xff]
    %v5340 = vld [vmem:[#allocation5 + $0x48] sm:$0xff]
    %v5341 = vld [vmem:[#allocation5 + $0x50] sm:$0xff]
    %v5342 = vld [vmem:[#allocation5 + $0x58] sm:$0xff]
    %v5343 = vld [vmem:[#allocation5 + $0x60] sm:$0xff]
    %v5344 = vld [vmem:[#allocation5 + $0x68] sm:$0xff]
    %v5345 = vld [vmem:[#allocation5 + $0x70] sm:$0xff]
    %v5346 = vld [vmem:[#allocation5 + $0x78] sm:$0xff]
    %v5347 = vld [vmem:[#allocation5 + $0x80] sm:$0xff]
    %v5348 = vld [vmem:[#allocation5 + $0x88] sm:$0xff]
    %v5349 = vld [vmem:[#allocation5 + $0x90] sm:$0xff]
    %v5350 = vld [vmem:[#allocation5 + $0x98] sm:$0xff]
    %v5351 = vld [vmem:[#allocation5 + $0xa0] sm:$0xff]
    %v5352 = vld [vmem:[#allocation5 + $0xa8] sm:$0xff]
    %v5353 = vld [vmem:[#allocation5 + $0xb0] sm:$0xff]
    %v5354 = vld [vmem:[#allocation5 + $0xb8] sm:$0xff]
    %v5355 = vld [vmem:[#allocation5 + $0xc0] sm:$0xff]
    %v5356 = vld [vmem:[#allocation5 + $0xc8] sm:$0xff]
    %v5357 = vld [vmem:[#allocation5 + $0xd0] sm:$0xff]
    %v5358 = vld [vmem:[#allocation5 + $0xd8] sm:$0xff]
    %v5359 = vld [vmem:[#allocation5 + $0xe0] sm:$0xff]
    %v5360 = vld [vmem:[#allocation5 + $0xe8] sm:$0xff]
    %v5361 = vld [vmem:[#allocation5 + $0xf0] sm:$0xff]
    %v5362 = vld [vmem:[#allocation5 + $0xf8] sm:$0xff]
    %v5363 = vld [vmem:[#allocation5 + $0x100] sm:$0xff]
    %v5364 = vsel %vm5297, %v5298, %v5331
    %v5365 = vsel %vm5297, %v5299, %v5332
    %v5366 = vsel %vm5297, %v5300, %v5333
    %v5367 = vsel %vm5297, %v5301, %v5334
    %v5368 = vsel %vm5297, %v5302, %v5335
    %v5369 = vsel %vm5297, %v5303, %v5336
    %v5370 = vsel %vm5297, %v5304, %v5337
    %v5371 = vsel %vm5297, %v5305, %v5338
    %v5372 = vsel %vm5297, %v5306, %v5339
    %v5373 = vsel %vm5297, %v5307, %v5340
    %v5374 = vsel %vm5297, %v5308, %v5341
    %v5375 = vsel %vm5297, %v5309, %v5342
    %v5376 = vsel %vm5297, %v5310, %v5343
    %v5377 = vsel %vm5297, %v5311, %v5344
    %v5378 = vsel %vm5297, %v5312, %v5345
    %v5379 = vsel %vm5297, %v5313, %v5346
    %v5380 = vsel %vm5297, %v5314, %v5347
    %v5381 = vsel %vm5297, %v5315, %v5348
    %v5382 = vsel %vm5297, %v5316, %v5349
    %v5383 = vsel %vm5297, %v5317, %v5350
    %v5384 = vsel %vm5297, %v5318, %v5351
    %v5385 = vsel %vm5297, %v5319, %v5352
    %v5386 = vsel %vm5297, %v5320, %v5353
    %v5387 = vsel %vm5297, %v5321, %v5354
    %v5388 = vsel %vm5297, %v5322, %v5355
    %v5389 = vsel %vm5297, %v5323, %v5356
    %v5390 = vsel %vm5297, %v5324, %v5357
    %v5391 = vsel %vm5297, %v5325, %v5358
    %v5392 = vsel %vm5297, %v5326, %v5359
    %v5393 = vsel %vm5297, %v5327, %v5360
    %v5394 = vsel %vm5297, %v5328, %v5361
    %v5395 = vsel %vm5297, %v5329, %v5362
    %v5396 = vsel %vm5297, %v5330, %v5363
    %v5397 = vpack.c.bf16 %v5365, %v5364
    %v5398 = vpack.c.bf16 %v5367, %v5366
    %v5399 = vpack.c.bf16 %v5369, %v5368
    %v5400 = vpack.c.bf16 %v5371, %v5370
    %v5401 = vpack.c.bf16 %v5373, %v5372
    %v5402 = vpack.c.bf16 %v5375, %v5374
    %v5403 = vpack.c.bf16 %v5377, %v5376
    %v5404 = vpack.c.bf16 %v5379, %v5378
    %v5405 = vpack.c.bf16 %v5381, %v5380
    %v5406 = vpack.c.bf16 %v5383, %v5382
    %v5407 = vpack.c.bf16 %v5385, %v5384
    %v5408 = vpack.c.bf16 %v5387, %v5386
    %v5409 = vpack.c.bf16 %v5389, %v5388
    %v5410 = vpack.c.bf16 %v5391, %v5390
    %v5411 = vpack.c.bf16 %v5393, %v5392
    %v5412 = vpack.c.bf16 %v5395, %v5394
    %v5413 = vpack.c.bf16 %v5396, %v5396
    %v5414 = vld [vmem:[%s7] sm:$0xf]
    %v5415 = vld [vmem:[%s7 + $0x4] sm:$0xf]
    %v5416 = vld [vmem:[%s7 + $0x8] sm:$0xf]
    %v5417 = vld [vmem:[%s7 + $0xc] sm:$0xf]
    %v5418 = vld [vmem:[%s7 + $0x10] sm:$0xf]
    %v5419 = vld [vmem:[%s7 + $0x14] sm:$0xf]
    %v5420 = vld [vmem:[%s7 + $0x18] sm:$0xf]
    %v5421 = vld [vmem:[%s7 + $0x1c] sm:$0xf]
    %v5422 = vld [vmem:[%s7 + $0x20] sm:$0xf]
    %v5423 = vld [vmem:[%s7 + $0x24] sm:$0xf]
    %v5424 = vld [vmem:[%s7 + $0x28] sm:$0xf]
    %v5425 = vld [vmem:[%s7 + $0x2c] sm:$0xf]
    %v5426 = vld [vmem:[%s7 + $0x30] sm:$0xf]
    %v5427 = vld [vmem:[%s7 + $0x34] sm:$0xf]
    %v5428 = vld [vmem:[%s7 + $0x38] sm:$0xf]
    %v5429 = vld [vmem:[%s7 + $0x3c] sm:$0xf]
    %v5430 = vld [vmem:[%s8] sm:$0x1]
    %v5432 = vlaneseq
    %v5433 = vshrl.u32 %v5432, 7
    %v5434 = vsub.s32 0, %v5433
    %v5435 = vrot.slane %v5430, %v5434
    %v5453 = vunpack.c.l.b16 %v5414
    %v5454 = vunpack.c.l.b16 %v5415
    %v5455 = vunpack.c.l.b16 %v5416
    %v5456 = vunpack.c.l.b16 %v5417
    %v5457 = vunpack.c.l.b16 %v5418
    %v5458 = vunpack.c.l.b16 %v5419
    %v5459 = vunpack.c.l.b16 %v5420
    %v5460 = vunpack.c.l.b16 %v5421
    %v5461 = vunpack.c.l.b16 %v5422
    %v5462 = vunpack.c.l.b16 %v5423
    %v5463 = vunpack.c.l.b16 %v5424
    %v5464 = vunpack.c.l.b16 %v5425
    %v5465 = vunpack.c.l.b16 %v5426
    %v5466 = vunpack.c.l.b16 %v5427
    %v5467 = vunpack.c.l.b16 %v5428
    %v5468 = vunpack.c.l.b16 %v5429
    %v5469 = vpack.c.b16 %v5454, %v5453
    %v5470 = vpack.c.b16 %v5456, %v5455
    %v5471 = vpack.c.b16 %v5458, %v5457
    %v5472 = vpack.c.b16 %v5460, %v5459
    %v5473 = vpack.c.b16 %v5462, %v5461
    %v5474 = vpack.c.b16 %v5464, %v5463
    %v5475 = vpack.c.b16 %v5466, %v5465
    %v5476 = vpack.c.b16 %v5468, %v5467
    %5485 = vmatprep.subr.bf16.mxu0 0
    %5486 = vmatpush1.bf16.msra.mxu0 %v5469
    %5487 = vmatprep.subr.bf16.mxu0 0
    %5488 = vmatpush1.bf16.msra.mxu0 %v5470
    %5489 = vmatprep.subr.bf16.mxu0 0
    %5490 = vmatpush1.bf16.msra.mxu0 %v5471
    %5491 = vmatprep.subr.bf16.mxu0 0
    %5492 = vmatpush1.bf16.msra.mxu0 %v5472
    %5493 = vmatprep.subr.bf16.mxu0 0
    %5494 = vmatpush1.bf16.msra.mxu0 %v5473
    %5495 = vmatprep.subr.bf16.mxu0 0
    %5496 = vmatpush1.bf16.msra.mxu0 %v5474
    %5497 = vmatprep.subr.bf16.mxu0 0
    %5498 = vmatpush1.bf16.msra.mxu0 %v5475
    %5499 = vmatprep.subr.bf16.mxu0 0
    %5500 = vmatpush1.bf16.msra.mxu0 %v5476
    %5501 = vmatprep.subr.bf16.mxu0 0
    %5502 = vmatpush1.bf16.msra.mxu0 0
    %5503 = vmatprep.subr.bf16.mxu0 0
    %5504 = vmatpush1.bf16.msra.mxu0 0
    %5505 = vmatprep.subr.bf16.mxu0 0
    %5506 = vmatpush1.bf16.msra.mxu0 0
    %5507 = vmatprep.subr.bf16.mxu0 0
    %5508 = vmatpush1.bf16.msra.mxu0 0
    %5509 = vmatprep.subr.bf16.mxu0 0
    %5510 = vmatpush1.bf16.msra.mxu0 0
    %5511 = vmatprep.subr.bf16.mxu0 0
    %5512 = vmatpush1.bf16.msra.mxu0 0
    %5513 = vmatprep.subr.bf16.mxu0 0
    %5514 = vmatpush1.bf16.msra.mxu0 0
    %5515 = vmatprep.subr.bf16.mxu0 0
    %5516 = vmatpush1.bf16.msra.mxu0 0
    %5517 = vmatprep.mubr.bf16.mxu0 0
    %5518 = vmatmul.mubr.bf16.gmra.mrb[0].mxu0 %v5397
    %v5519 = vpop.f32.mrb[0].mxu0
    %v5520 = vadd.f32 %v5435, %v5519
    %v5521 = vpop.f32.mrb[0].mxu0
    %v5522 = vpop.f32.mrb[0].mxu0
    %v5523 = vadd.f32 %v5435, %v5522
    %v5524 = vpop.f32.mrb[0].mxu0
    %5525 = vmatprep.mubr.bf16.mxu0 0
    %5526 = vmatmul.mubr.bf16.gmra.mrb[0].mxu0 %v5398
    %v5527 = vpop.f32.mrb[0].mxu0
    %v5528 = vadd.f32 %v5435, %v5527
    %v5529 = vpop.f32.mrb[0].mxu0
    %v5530 = vpop.f32.mrb[0].mxu0
    %v5531 = vadd.f32 %v5435, %v5530
    %v5532 = vpop.f32.mrb[0].mxu0
    %5533 = vmatprep.mubr.bf16.mxu0 0
    %5534 = vmatmul.mubr.bf16.gmra.mrb[0].mxu0 %v5399
    %v5535 = vpop.f32.mrb[0].mxu0
    %v5536 = vadd.f32 %v5435, %v5535
    %v5537 = vpop.f32.mrb[0].mxu0
    %v5538 = vpop.f32.mrb[0].mxu0
    %v5539 = vadd.f32 %v5435, %v5538
    %v5540 = vpop.f32.mrb[0].mxu0
    %5541 = vmatprep.mubr.bf16.mxu0 0
    %5542 = vmatmul.mubr.bf16.gmra.mrb[0].mxu0 %v5400
    %v5543 = vpop.f32.mrb[0].mxu0
    %v5544 = vadd.f32 %v5435, %v5543
    %v5545 = vpop.f32.mrb[0].mxu0
    %v5546 = vpop.f32.mrb[0].mxu0
    %v5547 = vadd.f32 %v5435, %v5546
    %v5548 = vpop.f32.mrb[0].mxu0
    %5549 = vmatprep.mubr.bf16.mxu0 0
    %5550 = vmatmul.mubr.bf16.gmra.mrb[0].mxu0 %v5401
    %v5551 = vpop.f32.mrb[0].mxu0
    %v5552 = vadd.f32 %v5435, %v5551
    %v5553 = vpop.f32.mrb[0].mxu0
    %v5554 = vpop.f32.mrb[0].mxu0
    %v5555 = vadd.f32 %v5435, %v5554
    %v5556 = vpop.f32.mrb[0].mxu0
    %5557 = vmatprep.mubr.bf16.mxu0 0
    %5558 = vmatmul.mubr.bf16.gmra.mrb[0].mxu0 %v5402
    %v5559 = vpop.f32.mrb[0].mxu0
    %v5560 = vadd.f32 %v5435, %v5559
    %v5561 = vpop.f32.mrb[0].mxu0
    %v5562 = vpop.f32.mrb[0].mxu0
    %v5563 = vadd.f32 %v5435, %v5562
    %v5564 = vpop.f32.mrb[0].mxu0
    %5565 = vmatprep.mubr.bf16.mxu0 0
    %5566 = vmatmul.mubr.bf16.gmra.mrb[0].mxu0 %v5403
    %v5567 = vpop.f32.mrb[0].mxu0
    %v5568 = vadd.f32 %v5435, %v5567
    %v5569 = vpop.f32.mrb[0].mxu0
    %v5570 = vpop.f32.mrb[0].mxu0
    %v5571 = vadd.f32 %v5435, %v5570
    %v5572 = vpop.f32.mrb[0].mxu0
    %5573 = vmatprep.mubr.bf16.mxu0 0
    %5574 = vmatmul.mubr.bf16.gmra.mrb[0].mxu0 %v5404
    %v5575 = vpop.f32.mrb[0].mxu0
    %v5576 = vadd.f32 %v5435, %v5575
    %v5577 = vpop.f32.mrb[0].mxu0
    %v5578 = vpop.f32.mrb[0].mxu0
    %v5579 = vadd.f32 %v5435, %v5578
    %v5580 = vpop.f32.mrb[0].mxu0
    %5581 = vmatprep.mubr.bf16.mxu0 0
    %5582 = vmatmul.mubr.bf16.gmra.mrb[0].mxu0 %v5405
    %v5583 = vpop.f32.mrb[0].mxu0
    %v5584 = vadd.f32 %v5435, %v5583
    %v5585 = vpop.f32.mrb[0].mxu0
    %v5586 = vpop.f32.mrb[0].mxu0
    %v5587 = vadd.f32 %v5435, %v5586
    %v5588 = vpop.f32.mrb[0].mxu0
    %5589 = vmatprep.mubr.bf16.mxu0 0
    %5590 = vmatmul.mubr.bf16.gmra.mrb[0].mxu0 %v5406
    %v5591 = vpop.f32.mrb[0].mxu0
    %v5592 = vadd.f32 %v5435, %v5591
    %v5593 = vpop.f32.mrb[0].mxu0
    %v5594 = vpop.f32.mrb[0].mxu0
    %v5595 = vadd.f32 %v5435, %v5594
    %v5596 = vpop.f32.mrb[0].mxu0
    %5597 = vmatprep.mubr.bf16.mxu0 0
    %5598 = vmatmul.mubr.bf16.gmra.mrb[0].mxu0 %v5407
    %v5599 = vpop.f32.mrb[0].mxu0
    %v5600 = vadd.f32 %v5435, %v5599
    %v5601 = vpop.f32.mrb[0].mxu0
    %v5602 = vpop.f32.mrb[0].mxu0
    %v5603 = vadd.f32 %v5435, %v5602
    %v5604 = vpop.f32.mrb[0].mxu0
    %5605 = vmatprep.mubr.bf16.mxu0 0
    %5606 = vmatmul.mubr.bf16.gmra.mrb[0].mxu0 %v5408
    %v5607 = vpop.f32.mrb[0].mxu0
    %v5608 = vadd.f32 %v5435, %v5607
    %v5609 = vpop.f32.mrb[0].mxu0
    %v5610 = vpop.f32.mrb[0].mxu0
    %v5611 = vadd.f32 %v5435, %v5610
    %v5612 = vpop.f32.mrb[0].mxu0
    %5613 = vmatprep.mubr.bf16.mxu0 0
    %5614 = vmatmul.mubr.bf16.gmra.mrb[0].mxu0 %v5409
    %v5615 = vpop.f32.mrb[0].mxu0
    %v5616 = vadd.f32 %v5435, %v5615
    %v5617 = vpop.f32.mrb[0].mxu0
    %v5618 = vpop.f32.mrb[0].mxu0
    %v5619 = vadd.f32 %v5435, %v5618
    %v5620 = vpop.f32.mrb[0].mxu0
    %5621 = vmatprep.mubr.bf16.mxu0 0
    %5622 = vmatmul.mubr.bf16.gmra.mrb[0].mxu0 %v5410
    %v5623 = vpop.f32.mrb[0].mxu0
    %v5624 = vadd.f32 %v5435, %v5623
    %v5625 = vpop.f32.mrb[0].mxu0
    %v5626 = vpop.f32.mrb[0].mxu0
    %v5627 = vadd.f32 %v5435, %v5626
    %v5628 = vpop.f32.mrb[0].mxu0
    %5629 = vmatprep.mubr.bf16.mxu0 0
    %5630 = vmatmul.mubr.bf16.gmra.mrb[0].mxu0 %v5411
    %v5631 = vpop.f32.mrb[0].mxu0
    %v5632 = vadd.f32 %v5435, %v5631
    %v5633 = vpop.f32.mrb[0].mxu0
    %v5634 = vpop.f32.mrb[0].mxu0
    %v5635 = vadd.f32 %v5435, %v5634
    %v5636 = vpop.f32.mrb[0].mxu0
    %5637 = vmatprep.mubr.bf16.mxu0 0
    %5638 = vmatmul.mubr.bf16.gmra.mrb[0].mxu0 %v5412
    %v5639 = vpop.f32.mrb[0].mxu0
    %v5640 = vadd.f32 %v5435, %v5639
    %v5641 = vpop.f32.mrb[0].mxu0
    %v5642 = vpop.f32.mrb[0].mxu0
    %v5643 = vadd.f32 %v5435, %v5642
    %v5644 = vpop.f32.mrb[0].mxu0
    %5645 = vmatprep.mubr.bf16.mxu0 0
    %5646 = vmatmul.mubr.bf16.gmra.mrb[0].mxu0 %v5413
    %v5647 = vpop.f32.mrb[0].mxu0
    %v5648 = vadd.f32 %v5435, %v5647
    %v5649 = vpop.f32.mrb[0].mxu0
    %v5650 = vpop.f32.mrb[0].mxu0
    %v5651 = vpop.f32.mrb[0].mxu0
    %5652 = vdwg.mxu0
    %v5653 = vtanh.pop %v5520
    %v5654 = vtanh.pop %v5523
    %v5655 = vtanh.pop %v5528
    %v5656 = vtanh.pop %v5531
    %v5657 = vtanh.pop %v5536
    %v5658 = vtanh.pop %v5539
    %v5659 = vtanh.pop %v5544
    %v5660 = vtanh.pop %v5547
    %v5661 = vtanh.pop %v5552
    %v5662 = vtanh.pop %v5555
    %v5663 = vtanh.pop %v5560
    %v5664 = vtanh.pop %v5563
    %v5665 = vtanh.pop %v5568
    %v5666 = vtanh.pop %v5571
    %v5667 = vtanh.pop %v5576
    %v5668 = vtanh.pop %v5579
    %v5669 = vtanh.pop %v5584
    %v5670 = vtanh.pop %v5587
    %v5671 = vtanh.pop %v5592
    %v5672 = vtanh.pop %v5595
    %v5673 = vtanh.pop %v5600
    %v5674 = vtanh.pop %v5603
    %v5675 = vtanh.pop %v5608
    %v5676 = vtanh.pop %v5611
    %v5677 = vtanh.pop %v5616
    %v5678 = vtanh.pop %v5619
    %v5679 = vtanh.pop %v5624
    %v5680 = vtanh.pop %v5627
    %v5681 = vtanh.pop %v5632
    %v5682 = vtanh.pop %v5635
    %v5683 = vtanh.pop %v5640
    %v5684 = vtanh.pop %v5643
    %v5685 = vtanh.pop %v5648
    %v5686 = vld [vmem:[%s9] sm:$0x1]
    %v5688 = vlaneseq
    %v5689 = vshrl.u32 %v5688, 7
    %v5690 = vsub.s32 0, %v5689
    %v5691 = vrot.slane %v5686, %v5690
    %v5693 = vmul.f32 %v5653, %v5691
    %v5694 = vmul.f32 %v5654, %v5691
    %v5695 = vmul.f32 %v5655, %v5691
    %v5696 = vmul.f32 %v5656, %v5691
    %v5697 = vmul.f32 %v5657, %v5691
    %v5698 = vmul.f32 %v5658, %v5691
    %v5699 = vmul.f32 %v5659, %v5691
    %v5700 = vmul.f32 %v5660, %v5691
    %v5701 = vmul.f32 %v5661, %v5691
    %v5702 = vmul.f32 %v5662, %v5691
    %v5703 = vmul.f32 %v5663, %v5691
    %v5704 = vmul.f32 %v5664, %v5691
    %v5705 = vmul.f32 %v5665, %v5691
    %v5706 = vmul.f32 %v5666, %v5691
    %v5707 = vmul.f32 %v5667, %v5691
    %v5708 = vmul.f32 %v5668, %v5691
    %v5709 = vmul.f32 %v5669, %v5691
    %v5710 = vmul.f32 %v5670, %v5691
    %v5711 = vmul.f32 %v5671, %v5691
    %v5712 = vmul.f32 %v5672, %v5691
    %v5713 = vmul.f32 %v5673, %v5691
    %v5714 = vmul.f32 %v5674, %v5691
    %v5715 = vmul.f32 %v5675, %v5691
    %v5716 = vmul.f32 %v5676, %v5691
    %v5717 = vmul.f32 %v5677, %v5691
    %v5718 = vmul.f32 %v5678, %v5691
    %v5719 = vmul.f32 %v5679, %v5691
    %v5720 = vmul.f32 %v5680, %v5691
    %v5721 = vmul.f32 %v5681, %v5691
    %v5722 = vmul.f32 %v5682, %v5691
    %v5723 = vmul.f32 %v5683, %v5691
    %v5724 = vmul.f32 %v5684, %v5691
    %v5725 = vmul.f32 %v5685, %v5691
    %5726 = vadd.xlane.f32.xlu0 %v5693
    %v5727 = vpop.xlane.xlu0 %5726
    %5728 = vadd.xlane.f32.xlu0 %v5694
    %v5729 = vpop.xlane.xlu0 %5728
    %5730 = vadd.xlane.f32.xlu0 %v5695
    %v5731 = vpop.xlane.xlu0 %5730
    %5732 = vadd.xlane.f32.xlu0 %v5696
    %v5733 = vpop.xlane.xlu0 %5732
    %5734 = vadd.xlane.f32.xlu0 %v5697
    %v5735 = vpop.xlane.xlu0 %5734
    %5736 = vadd.xlane.f32.xlu0 %v5698
    %v5737 = vpop.xlane.xlu0 %5736
    %5738 = vadd.xlane.f32.xlu0 %v5699
    %v5739 = vpop.xlane.xlu0 %5738
    %5740 = vadd.xlane.f32.xlu0 %v5700
    %v5741 = vpop.xlane.xlu0 %5740
    %5742 = vadd.xlane.f32.xlu0 %v5701
    %v5743 = vpop.xlane.xlu0 %5742
    %5744 = vadd.xlane.f32.xlu0 %v5702
    %v5745 = vpop.xlane.xlu0 %5744
    %5746 = vadd.xlane.f32.xlu0 %v5703
    %v5747 = vpop.xlane.xlu0 %5746
    %5748 = vadd.xlane.f32.xlu0 %v5704
    %v5749 = vpop.xlane.xlu0 %5748
    %5750 = vadd.xlane.f32.xlu0 %v5705
    %v5751 = vpop.xlane.xlu0 %5750
    %5752 = vadd.xlane.f32.xlu0 %v5706
    %v5753 = vpop.xlane.xlu0 %5752
    %5754 = vadd.xlane.f32.xlu0 %v5707
    %v5755 = vpop.xlane.xlu0 %5754
    %5756 = vadd.xlane.f32.xlu0 %v5708
    %v5757 = vpop.xlane.xlu0 %5756
    %5758 = vadd.xlane.f32.xlu0 %v5709
    %v5759 = vpop.xlane.xlu0 %5758
    %5760 = vadd.xlane.f32.xlu0 %v5710
    %v5761 = vpop.xlane.xlu0 %5760
    %5762 = vadd.xlane.f32.xlu0 %v5711
    %v5763 = vpop.xlane.xlu0 %5762
    %5764 = vadd.xlane.f32.xlu0 %v5712
    %v5765 = vpop.xlane.xlu0 %5764
    %5766 = vadd.xlane.f32.xlu0 %v5713
    %v5767 = vpop.xlane.xlu0 %5766
    %5768 = vadd.xlane.f32.xlu0 %v5714
    %v5769 = vpop.xlane.xlu0 %5768
    %5770 = vadd.xlane.f32.xlu0 %v5715
    %v5771 = vpop.xlane.xlu0 %5770
    %5772 = vadd.xlane.f32.xlu0 %v5716
    %v5773 = vpop.xlane.xlu0 %5772
    %5774 = vadd.xlane.f32.xlu0 %v5717
    %v5775 = vpop.xlane.xlu0 %5774
    %5776 = vadd.xlane.f32.xlu0 %v5718
    %v5777 = vpop.xlane.xlu0 %5776
    %5778 = vadd.xlane.f32.xlu0 %v5719
    %v5779 = vpop.xlane.xlu0 %5778
    %5780 = vadd.xlane.f32.xlu0 %v5720
    %v5781 = vpop.xlane.xlu0 %5780
    %5782 = vadd.xlane.f32.xlu0 %v5721
    %v5783 = vpop.xlane.xlu0 %5782
    %5784 = vadd.xlane.f32.xlu0 %v5722
    %v5785 = vpop.xlane.xlu0 %5784
    %5786 = vadd.xlane.f32.xlu0 %v5723
    %v5787 = vpop.xlane.xlu0 %5786
    %5788 = vadd.xlane.f32.xlu0 %v5724
    %v5789 = vpop.xlane.xlu0 %5788
    %5790 = vadd.xlane.f32.xlu0 %v5725
    %v5791 = vpop.xlane.xlu0 %5790
    %v5792 = vld [vmem:[#allocation6] sm:$0x1]
    %v5794 = vlaneseq
    %v5795 = vshrl.u32 %v5794, 7
    %v5796 = vsub.s32 0, %v5795
    %v5797 = vrot.slane %v5792, %v5796
    %v5799 = vadd.f32 %v5727, %v5797
    %v5800 = vadd.f32 %v5729, %v5797
    %v5801 = vadd.f32 %v5731, %v5797
    %v5802 = vadd.f32 %v5733, %v5797
    %v5803 = vadd.f32 %v5735, %v5797
    %v5804 = vadd.f32 %v5737, %v5797
    %v5805 = vadd.f32 %v5739, %v5797
    %v5806 = vadd.f32 %v5741, %v5797
    %v5807 = vadd.f32 %v5743, %v5797
    %v5808 = vadd.f32 %v5745, %v5797
    %v5809 = vadd.f32 %v5747, %v5797
    %v5810 = vadd.f32 %v5749, %v5797
    %v5811 = vadd.f32 %v5751, %v5797
    %v5812 = vadd.f32 %v5753, %v5797
    %v5813 = vadd.f32 %v5755, %v5797
    %v5814 = vadd.f32 %v5757, %v5797
    %v5815 = vadd.f32 %v5759, %v5797
    %v5816 = vadd.f32 %v5761, %v5797
    %v5817 = vadd.f32 %v5763, %v5797
    %v5818 = vadd.f32 %v5765, %v5797
    %v5819 = vadd.f32 %v5767, %v5797
    %v5820 = vadd.f32 %v5769, %v5797
    %v5821 = vadd.f32 %v5771, %v5797
    %v5822 = vadd.f32 %v5773, %v5797
    %v5823 = vadd.f32 %v5775, %v5797
    %v5824 = vadd.f32 %v5777, %v5797
    %v5825 = vadd.f32 %v5779, %v5797
    %v5826 = vadd.f32 %v5781, %v5797
    %v5827 = vadd.f32 %v5783, %v5797
    %v5828 = vadd.f32 %v5785, %v5797
    %v5829 = vadd.f32 %v5787, %v5797
    %v5830 = vadd.f32 %v5789, %v5797
    %v5831 = vadd.f32 %v5791, %v5797
    %v5832 = vlaneseq
    %v5833 = vshrl.u32 %v5832, 7
    %v5834 = vadd.s32 %v5833, 8
    %v5835 = vadd.s32 %v5833, 16
    %v5836 = vadd.s32 %v5833, 24
    %v5837 = vadd.s32 %v5833, 32
    %v5838 = vadd.s32 %v5833, 40
    %v5839 = vadd.s32 %v5833, 48
    %v5840 = vadd.s32 %v5833, 56
    %v5841 = vadd.s32 %v5833, 64
    %v5842 = vadd.s32 %v5833, 72
    %v5843 = vadd.s32 %v5833, 80
    %v5844 = vadd.s32 %v5833, 88
    %v5845 = vadd.s32 %v5833, 96
    %v5846 = vadd.s32 %v5833, 104
    %v5847 = vadd.s32 %v5833, 112
    %v5848 = vadd.s32 %v5833, 120
    %v5849 = vadd.s32 %v5833, 128
    %v5850 = vadd.s32 %v5833, 136
    %v5851 = vadd.s32 %v5833, 144
    %v5852 = vadd.s32 %v5833, 152
    %v5853 = vadd.s32 %v5833, 160
    %v5854 = vadd.s32 %v5833, 168
    %v5855 = vadd.s32 %v5833, 176
    %v5856 = vadd.s32 %v5833, 184
    %v5857 = vadd.s32 %v5833, 192
    %v5858 = vadd.s32 %v5833, 200
    %v5859 = vadd.s32 %v5833, 208
    %v5860 = vadd.s32 %v5833, 216
    %v5861 = vadd.s32 %v5833, 224
    %v5862 = vadd.s32 %v5833, 232
    %v5863 = vadd.s32 %v5833, 240
    %v5864 = vadd.s32 %v5833, 248
    %v5865 = vadd.s32 %v5833, 256
    %vm5866 = vcmp.lt.s32.totalorder %v5833, 0
    %v5867 = vsub.s32 0, %v5833
    %v5868 = vsel %vm5866, %v5867, %v5833
    %v5869 = vshrl.u32 %v5868, 3
    %v5870 = vand.u32 %v5868, 7
    %v5871 = vsub.s32 0, %v5870
    %v5872 = vsel %vm5866, %v5871, %v5870
    %vm5873 = vcmp.lt.s32.totalorder %v5834, 0
    %v5874 = vsub.s32 0, %v5834
    %v5875 = vsel %vm5873, %v5874, %v5834
    %v5876 = vshrl.u32 %v5875, 3
    %v5877 = vand.u32 %v5875, 7
    %v5878 = vsub.s32 0, %v5877
    %v5879 = vsel %vm5873, %v5878, %v5877
    %vm5880 = vcmp.lt.s32.totalorder %v5835, 0
    %v5881 = vsub.s32 0, %v5835
    %v5882 = vsel %vm5880, %v5881, %v5835
    %v5883 = vshrl.u32 %v5882, 3
    %v5884 = vand.u32 %v5882, 7
    %v5885 = vsub.s32 0, %v5884
    %v5886 = vsel %vm5880, %v5885, %v5884
    %vm5887 = vcmp.lt.s32.totalorder %v5836, 0
    %v5888 = vsub.s32 0, %v5836
    %v5889 = vsel %vm5887, %v5888, %v5836
    %v5890 = vshrl.u32 %v5889, 3
    %v5891 = vand.u32 %v5889, 7
    %v5892 = vsub.s32 0, %v5891
    %v5893 = vsel %vm5887, %v5892, %v5891
    %vm5894 = vcmp.lt.s32.totalorder %v5837, 0
    %v5895 = vsub.s32 0, %v5837
    %v5896 = vsel %vm5894, %v5895, %v5837
    %v5897 = vshrl.u32 %v5896, 3
    %v5898 = vand.u32 %v5896, 7
    %v5899 = vsub.s32 0, %v5898
    %v5900 = vsel %vm5894, %v5899, %v5898
    %vm5901 = vcmp.lt.s32.totalorder %v5838, 0
    %v5902 = vsub.s32 0, %v5838
    %v5903 = vsel %vm5901, %v5902, %v5838
    %v5904 = vshrl.u32 %v5903, 3
    %v5905 = vand.u32 %v5903, 7
    %v5906 = vsub.s32 0, %v5905
    %v5907 = vsel %vm5901, %v5906, %v5905
    %vm5908 = vcmp.lt.s32.totalorder %v5839, 0
    %v5909 = vsub.s32 0, %v5839
    %v5910 = vsel %vm5908, %v5909, %v5839
    %v5911 = vshrl.u32 %v5910, 3
    %v5912 = vand.u32 %v5910, 7
    %v5913 = vsub.s32 0, %v5912
    %v5914 = vsel %vm5908, %v5913, %v5912
    %vm5915 = vcmp.lt.s32.totalorder %v5840, 0
    %v5916 = vsub.s32 0, %v5840
    %v5917 = vsel %vm5915, %v5916, %v5840
    %v5918 = vshrl.u32 %v5917, 3
    %v5919 = vand.u32 %v5917, 7
    %v5920 = vsub.s32 0, %v5919
    %v5921 = vsel %vm5915, %v5920, %v5919
    %vm5922 = vcmp.lt.s32.totalorder %v5841, 0
    %v5923 = vsub.s32 0, %v5841
    %v5924 = vsel %vm5922, %v5923, %v5841
    %v5925 = vshrl.u32 %v5924, 3
    %v5926 = vand.u32 %v5924, 7
    %v5927 = vsub.s32 0, %v5926
    %v5928 = vsel %vm5922, %v5927, %v5926
    %vm5929 = vcmp.lt.s32.totalorder %v5842, 0
    %v5930 = vsub.s32 0, %v5842
    %v5931 = vsel %vm5929, %v5930, %v5842
    %v5932 = vshrl.u32 %v5931, 3
    %v5933 = vand.u32 %v5931, 7
    %v5934 = vsub.s32 0, %v5933
    %v5935 = vsel %vm5929, %v5934, %v5933
    %vm5936 = vcmp.lt.s32.totalorder %v5843, 0
    %v5937 = vsub.s32 0, %v5843
    %v5938 = vsel %vm5936, %v5937, %v5843
    %v5939 = vshrl.u32 %v5938, 3
    %v5940 = vand.u32 %v5938, 7
    %v5941 = vsub.s32 0, %v5940
    %v5942 = vsel %vm5936, %v5941, %v5940
    %vm5943 = vcmp.lt.s32.totalorder %v5844, 0
    %v5944 = vsub.s32 0, %v5844
    %v5945 = vsel %vm5943, %v5944, %v5844
    %v5946 = vshrl.u32 %v5945, 3
    %v5947 = vand.u32 %v5945, 7
    %v5948 = vsub.s32 0, %v5947
    %v5949 = vsel %vm5943, %v5948, %v5947
    %vm5950 = vcmp.lt.s32.totalorder %v5845, 0
    %v5951 = vsub.s32 0, %v5845
    %v5952 = vsel %vm5950, %v5951, %v5845
    %v5953 = vshrl.u32 %v5952, 3
    %v5954 = vand.u32 %v5952, 7
    %v5955 = vsub.s32 0, %v5954
    %v5956 = vsel %vm5950, %v5955, %v5954
    %vm5957 = vcmp.lt.s32.totalorder %v5846, 0
    %v5958 = vsub.s32 0, %v5846
    %v5959 = vsel %vm5957, %v5958, %v5846
    %v5960 = vshrl.u32 %v5959, 3
    %v5961 = vand.u32 %v5959, 7
    %v5962 = vsub.s32 0, %v5961
    %v5963 = vsel %vm5957, %v5962, %v5961
    %vm5964 = vcmp.lt.s32.totalorder %v5847, 0
    %v5965 = vsub.s32 0, %v5847
    %v5966 = vsel %vm5964, %v5965, %v5847
    %v5967 = vshrl.u32 %v5966, 3
    %v5968 = vand.u32 %v5966, 7
    %v5969 = vsub.s32 0, %v5968
    %v5970 = vsel %vm5964, %v5969, %v5968
    %vm5971 = vcmp.lt.s32.totalorder %v5848, 0
    %v5972 = vsub.s32 0, %v5848
    %v5973 = vsel %vm5971, %v5972, %v5848
    %v5974 = vshrl.u32 %v5973, 3
    %v5975 = vand.u32 %v5973, 7
    %v5976 = vsub.s32 0, %v5975
    %v5977 = vsel %vm5971, %v5976, %v5975
    %vm5978 = vcmp.lt.s32.totalorder %v5849, 0
    %v5979 = vsub.s32 0, %v5849
    %v5980 = vsel %vm5978, %v5979, %v5849
    %v5981 = vshrl.u32 %v5980, 3
    %v5982 = vand.u32 %v5980, 7
    %v5983 = vsub.s32 0, %v5982
    %v5984 = vsel %vm5978, %v5983, %v5982
    %vm5985 = vcmp.lt.s32.totalorder %v5850, 0
    %v5986 = vsub.s32 0, %v5850
    %v5987 = vsel %vm5985, %v5986, %v5850
    %v5988 = vshrl.u32 %v5987, 3
    %v5989 = vand.u32 %v5987, 7
    %v5990 = vsub.s32 0, %v5989
    %v5991 = vsel %vm5985, %v5990, %v5989
    %vm5992 = vcmp.lt.s32.totalorder %v5851, 0
    %v5993 = vsub.s32 0, %v5851
    %v5994 = vsel %vm5992, %v5993, %v5851
    %v5995 = vshrl.u32 %v5994, 3
    %v5996 = vand.u32 %v5994, 7
    %v5997 = vsub.s32 0, %v5996
    %v5998 = vsel %vm5992, %v5997, %v5996
    %vm5999 = vcmp.lt.s32.totalorder %v5852, 0
    %v6000 = vsub.s32 0, %v5852
    %v6001 = vsel %vm5999, %v6000, %v5852
    %v6002 = vshrl.u32 %v6001, 3
    %v6003 = vand.u32 %v6001, 7
    %v6004 = vsub.s32 0, %v6003
    %v6005 = vsel %vm5999, %v6004, %v6003
    %vm6006 = vcmp.lt.s32.totalorder %v5853, 0
    %v6007 = vsub.s32 0, %v5853
    %v6008 = vsel %vm6006, %v6007, %v5853
    %v6009 = vshrl.u32 %v6008, 3
    %v6010 = vand.u32 %v6008, 7
    %v6011 = vsub.s32 0, %v6010
    %v6012 = vsel %vm6006, %v6011, %v6010
    %vm6013 = vcmp.lt.s32.totalorder %v5854, 0
    %v6014 = vsub.s32 0, %v5854
    %v6015 = vsel %vm6013, %v6014, %v5854
    %v6016 = vshrl.u32 %v6015, 3
    %v6017 = vand.u32 %v6015, 7
    %v6018 = vsub.s32 0, %v6017
    %v6019 = vsel %vm6013, %v6018, %v6017
    %vm6020 = vcmp.lt.s32.totalorder %v5855, 0
    %v6021 = vsub.s32 0, %v5855
    %v6022 = vsel %vm6020, %v6021, %v5855
    %v6023 = vshrl.u32 %v6022, 3
    %v6024 = vand.u32 %v6022, 7
    %v6025 = vsub.s32 0, %v6024
    %v6026 = vsel %vm6020, %v6025, %v6024
    %vm6027 = vcmp.lt.s32.totalorder %v5856, 0
    %v6028 = vsub.s32 0, %v5856
    %v6029 = vsel %vm6027, %v6028, %v5856
    %v6030 = vshrl.u32 %v6029, 3
    %v6031 = vand.u32 %v6029, 7
    %v6032 = vsub.s32 0, %v6031
    %v6033 = vsel %vm6027, %v6032, %v6031
    %vm6034 = vcmp.lt.s32.totalorder %v5857, 0
    %v6035 = vsub.s32 0, %v5857
    %v6036 = vsel %vm6034, %v6035, %v5857
    %v6037 = vshrl.u32 %v6036, 3
    %v6038 = vand.u32 %v6036, 7
    %v6039 = vsub.s32 0, %v6038
    %v6040 = vsel %vm6034, %v6039, %v6038
    %vm6041 = vcmp.lt.s32.totalorder %v5858, 0
    %v6042 = vsub.s32 0, %v5858
    %v6043 = vsel %vm6041, %v6042, %v5858
    %v6044 = vshrl.u32 %v6043, 3
    %v6045 = vand.u32 %v6043, 7
    %v6046 = vsub.s32 0, %v6045
    %v6047 = vsel %vm6041, %v6046, %v6045
    %vm6048 = vcmp.lt.s32.totalorder %v5859, 0
    %v6049 = vsub.s32 0, %v5859
    %v6050 = vsel %vm6048, %v6049, %v5859
    %v6051 = vshrl.u32 %v6050, 3
    %v6052 = vand.u32 %v6050, 7
    %v6053 = vsub.s32 0, %v6052
    %v6054 = vsel %vm6048, %v6053, %v6052
    %vm6055 = vcmp.lt.s32.totalorder %v5860, 0
    %v6056 = vsub.s32 0, %v5860
    %v6057 = vsel %vm6055, %v6056, %v5860
    %v6058 = vshrl.u32 %v6057, 3
    %v6059 = vand.u32 %v6057, 7
    %v6060 = vsub.s32 0, %v6059
    %v6061 = vsel %vm6055, %v6060, %v6059
    %vm6062 = vcmp.lt.s32.totalorder %v5861, 0
    %v6063 = vsub.s32 0, %v5861
    %v6064 = vsel %vm6062, %v6063, %v5861
    %v6065 = vshrl.u32 %v6064, 3
    %v6066 = vand.u32 %v6064, 7
    %v6067 = vsub.s32 0, %v6066
    %v6068 = vsel %vm6062, %v6067, %v6066
    %vm6069 = vcmp.lt.s32.totalorder %v5862, 0
    %v6070 = vsub.s32 0, %v5862
    %v6071 = vsel %vm6069, %v6070, %v5862
    %v6072 = vshrl.u32 %v6071, 3
    %v6073 = vand.u32 %v6071, 7
    %v6074 = vsub.s32 0, %v6073
    %v6075 = vsel %vm6069, %v6074, %v6073
    %vm6076 = vcmp.lt.s32.totalorder %v5863, 0
    %v6077 = vsub.s32 0, %v5863
    %v6078 = vsel %vm6076, %v6077, %v5863
    %v6079 = vshrl.u32 %v6078, 3
    %v6080 = vand.u32 %v6078, 7
    %v6081 = vsub.s32 0, %v6080
    %v6082 = vsel %vm6076, %v6081, %v6080
    %vm6083 = vcmp.lt.s32.totalorder %v5864, 0
    %v6084 = vsub.s32 0, %v5864
    %v6085 = vsel %vm6083, %v6084, %v5864
    %v6086 = vshrl.u32 %v6085, 3
    %v6087 = vand.u32 %v6085, 7
    %v6088 = vsub.s32 0, %v6087
    %v6089 = vsel %vm6083, %v6088, %v6087
    %vm6090 = vcmp.lt.s32.totalorder %v5865, 0
    %v6091 = vsub.s32 0, %v5865
    %v6092 = vsel %vm6090, %v6091, %v5865
    %v6093 = vshrl.u32 %v6092, 3
    %v6094 = vand.u32 %v6092, 7
    %v6095 = vsub.s32 0, %v6094
    %v6096 = vsel %vm6090, %v6095, %v6094
    %vm6097 = vcmp.ne.s32.totalorder %v5872, 0
    %vm6098 = vcmp.ne.s32.totalorder %v5879, 0
    %vm6099 = vcmp.ne.s32.totalorder %v5886, 0
    %vm6100 = vcmp.ne.s32.totalorder %v5893, 0
    %vm6101 = vcmp.ne.s32.totalorder %v5900, 0
    %vm6102 = vcmp.ne.s32.totalorder %v5907, 0
    %vm6103 = vcmp.ne.s32.totalorder %v5914, 0
    %vm6104 = vcmp.ne.s32.totalorder %v5921, 0
    %vm6105 = vcmp.ne.s32.totalorder %v5928, 0
    %vm6106 = vcmp.ne.s32.totalorder %v5935, 0
    %vm6107 = vcmp.ne.s32.totalorder %v5942, 0
    %vm6108 = vcmp.ne.s32.totalorder %v5949, 0
    %vm6109 = vcmp.ne.s32.totalorder %v5956, 0
    %vm6110 = vcmp.ne.s32.totalorder %v5963, 0
    %vm6111 = vcmp.ne.s32.totalorder %v5970, 0
    %vm6112 = vcmp.ne.s32.totalorder %v5977, 0
    %vm6113 = vcmp.ne.s32.totalorder %v5984, 0
    %vm6114 = vcmp.ne.s32.totalorder %v5991, 0
    %vm6115 = vcmp.ne.s32.totalorder %v5998, 0
    %vm6116 = vcmp.ne.s32.totalorder %v6005, 0
    %vm6117 = vcmp.ne.s32.totalorder %v6012, 0
    %vm6118 = vcmp.ne.s32.totalorder %v6019, 0
    %vm6119 = vcmp.ne.s32.totalorder %v6026, 0
    %vm6120 = vcmp.ne.s32.totalorder %v6033, 0
    %vm6121 = vcmp.ne.s32.totalorder %v6040, 0
    %vm6122 = vcmp.ne.s32.totalorder %v6047, 0
    %vm6123 = vcmp.ne.s32.totalorder %v6054, 0
    %vm6124 = vcmp.ne.s32.totalorder %v6061, 0
    %vm6125 = vcmp.ne.s32.totalorder %v6068, 0
    %vm6126 = vcmp.ne.s32.totalorder %v6075, 0
    %vm6127 = vcmp.ne.s32.totalorder %v6082, 0
    %vm6128 = vcmp.ne.s32.totalorder %v6089, 0
    %vm6129 = vcmp.ne.s32.totalorder %v6096, 0
    %vm6130 = vcmp.lt.s32.totalorder %v5872, 0
    %vm6131 = vcmp.lt.s32.totalorder %v5879, 0
    %vm6132 = vcmp.lt.s32.totalorder %v5886, 0
    %vm6133 = vcmp.lt.s32.totalorder %v5893, 0
    %vm6134 = vcmp.lt.s32.totalorder %v5900, 0
    %vm6135 = vcmp.lt.s32.totalorder %v5907, 0
    %vm6136 = vcmp.lt.s32.totalorder %v5914, 0
    %vm6137 = vcmp.lt.s32.totalorder %v5921, 0
    %vm6138 = vcmp.lt.s32.totalorder %v5928, 0
    %vm6139 = vcmp.lt.s32.totalorder %v5935, 0
    %vm6140 = vcmp.lt.s32.totalorder %v5942, 0
    %vm6141 = vcmp.lt.s32.totalorder %v5949, 0
    %vm6142 = vcmp.lt.s32.totalorder %v5956, 0
    %vm6143 = vcmp.lt.s32.totalorder %v5963, 0
    %vm6144 = vcmp.lt.s32.totalorder %v5970, 0
    %vm6145 = vcmp.lt.s32.totalorder %v5977, 0
    %vm6146 = vcmp.lt.s32.totalorder %v5984, 0
    %vm6147 = vcmp.lt.s32.totalorder %v5991, 0
    %vm6148 = vcmp.lt.s32.totalorder %v5998, 0
    %vm6149 = vcmp.lt.s32.totalorder %v6005, 0
    %vm6150 = vcmp.lt.s32.totalorder %v6012, 0
    %vm6151 = vcmp.lt.s32.totalorder %v6019, 0
    %vm6152 = vcmp.lt.s32.totalorder %v6026, 0
    %vm6153 = vcmp.lt.s32.totalorder %v6033, 0
    %vm6154 = vcmp.lt.s32.totalorder %v6040, 0
    %vm6155 = vcmp.lt.s32.totalorder %v6047, 0
    %vm6156 = vcmp.lt.s32.totalorder %v6054, 0
    %vm6157 = vcmp.lt.s32.totalorder %v6061, 0
    %vm6158 = vcmp.lt.s32.totalorder %v6068, 0
    %vm6159 = vcmp.lt.s32.totalorder %v6075, 0
    %vm6160 = vcmp.lt.s32.totalorder %v6082, 0
    %vm6161 = vcmp.lt.s32.totalorder %v6089, 0
    %vm6162 = vcmp.lt.s32.totalorder %v6096, 0
    %vm6163 = vmand %vm6130, %vm6097
    %vm6164 = vmand %vm6131, %vm6098
    %vm6165 = vmand %vm6132, %vm6099
    %vm6166 = vmand %vm6133, %vm6100
    %vm6167 = vmand %vm6134, %vm6101
    %vm6168 = vmand %vm6135, %vm6102
    %vm6169 = vmand %vm6136, %vm6103
    %vm6170 = vmand %vm6137, %vm6104
    %vm6171 = vmand %vm6138, %vm6105
    %vm6172 = vmand %vm6139, %vm6106
    %vm6173 = vmand %vm6140, %vm6107
    %vm6174 = vmand %vm6141, %vm6108
    %vm6175 = vmand %vm6142, %vm6109
    %vm6176 = vmand %vm6143, %vm6110
    %vm6177 = vmand %vm6144, %vm6111
    %vm6178 = vmand %vm6145, %vm6112
    %vm6179 = vmand %vm6146, %vm6113
    %vm6180 = vmand %vm6147, %vm6114
    %vm6181 = vmand %vm6148, %vm6115
    %vm6182 = vmand %vm6149, %vm6116
    %vm6183 = vmand %vm6150, %vm6117
    %vm6184 = vmand %vm6151, %vm6118
    %vm6185 = vmand %vm6152, %vm6119
    %vm6186 = vmand %vm6153, %vm6120
    %vm6187 = vmand %vm6154, %vm6121
    %vm6188 = vmand %vm6155, %vm6122
    %vm6189 = vmand %vm6156, %vm6123
    %vm6190 = vmand %vm6157, %vm6124
    %vm6191 = vmand %vm6158, %vm6125
    %vm6192 = vmand %vm6159, %vm6126
    %vm6193 = vmand %vm6160, %vm6127
    %vm6194 = vmand %vm6161, %vm6128
    %vm6195 = vmand %vm6162, %vm6129
    %v6196 = vadd.s32 %v5872, 8
    %v6197 = vadd.s32 %v5879, 8
    %v6198 = vadd.s32 %v5886, 8
    %v6199 = vadd.s32 %v5893, 8
    %v6200 = vadd.s32 %v5900, 8
    %v6201 = vadd.s32 %v5907, 8
    %v6202 = vadd.s32 %v5914, 8
    %v6203 = vadd.s32 %v5921, 8
    %v6204 = vadd.s32 %v5928, 8
    %v6205 = vadd.s32 %v5935, 8
    %v6206 = vadd.s32 %v5942, 8
    %v6207 = vadd.s32 %v5949, 8
    %v6208 = vadd.s32 %v5956, 8
    %v6209 = vadd.s32 %v5963, 8
    %v6210 = vadd.s32 %v5970, 8
    %v6211 = vadd.s32 %v5977, 8
    %v6212 = vadd.s32 %v5984, 8
    %v6213 = vadd.s32 %v5991, 8
    %v6214 = vadd.s32 %v5998, 8
    %v6215 = vadd.s32 %v6005, 8
    %v6216 = vadd.s32 %v6012, 8
    %v6217 = vadd.s32 %v6019, 8
    %v6218 = vadd.s32 %v6026, 8
    %v6219 = vadd.s32 %v6033, 8
    %v6220 = vadd.s32 %v6040, 8
    %v6221 = vadd.s32 %v6047, 8
    %v6222 = vadd.s32 %v6054, 8
    %v6223 = vadd.s32 %v6061, 8
    %v6224 = vadd.s32 %v6068, 8
    %v6225 = vadd.s32 %v6075, 8
    %v6226 = vadd.s32 %v6082, 8
    %v6227 = vadd.s32 %v6089, 8
    %v6228 = vadd.s32 %v6096, 8
    %v6229 = vsel %vm6163, %v6196, %v5872
    %v6230 = vsel %vm6164, %v6197, %v5879
    %v6231 = vsel %vm6165, %v6198, %v5886
    %v6232 = vsel %vm6166, %v6199, %v5893
    %v6233 = vsel %vm6167, %v6200, %v5900
    %v6234 = vsel %vm6168, %v6201, %v5907
    %v6235 = vsel %vm6169, %v6202, %v5914
    %v6236 = vsel %vm6170, %v6203, %v5921
    %v6237 = vsel %vm6171, %v6204, %v5928
    %v6238 = vsel %vm6172, %v6205, %v5935
    %v6239 = vsel %vm6173, %v6206, %v5942
    %v6240 = vsel %vm6174, %v6207, %v5949
    %v6241 = vsel %vm6175, %v6208, %v5956
    %v6242 = vsel %vm6176, %v6209, %v5963
    %v6243 = vsel %vm6177, %v6210, %v5970
    %v6244 = vsel %vm6178, %v6211, %v5977
    %v6245 = vsel %vm6179, %v6212, %v5984
    %v6246 = vsel %vm6180, %v6213, %v5991
    %v6247 = vsel %vm6181, %v6214, %v5998
    %v6248 = vsel %vm6182, %v6215, %v6005
    %v6249 = vsel %vm6183, %v6216, %v6012
    %v6250 = vsel %vm6184, %v6217, %v6019
    %v6251 = vsel %vm6185, %v6218, %v6026
    %v6252 = vsel %vm6186, %v6219, %v6033
    %v6253 = vsel %vm6187, %v6220, %v6040
    %v6254 = vsel %vm6188, %v6221, %v6047
    %v6255 = vsel %vm6189, %v6222, %v6054
    %v6256 = vsel %vm6190, %v6223, %v6061
    %v6257 = vsel %vm6191, %v6224, %v6068
    %v6258 = vsel %vm6192, %v6225, %v6075
    %v6259 = vsel %vm6193, %v6226, %v6082
    %v6260 = vsel %vm6194, %v6227, %v6089
    %v6261 = vsel %vm6195, %v6228, %v6096
    %vm6262 = vcmp.eq.s32.totalorder %v6229, 0
    %vm6263 = vcmp.eq.s32.totalorder %v6230, 0
    %vm6264 = vcmp.eq.s32.totalorder %v6231, 0
    %vm6265 = vcmp.eq.s32.totalorder %v6232, 0
    %vm6266 = vcmp.eq.s32.totalorder %v6233, 0
    %vm6267 = vcmp.eq.s32.totalorder %v6234, 0
    %vm6268 = vcmp.eq.s32.totalorder %v6235, 0
    %vm6269 = vcmp.eq.s32.totalorder %v6236, 0
    %vm6270 = vcmp.eq.s32.totalorder %v6237, 0
    %vm6271 = vcmp.eq.s32.totalorder %v6238, 0
    %vm6272 = vcmp.eq.s32.totalorder %v6239, 0
    %vm6273 = vcmp.eq.s32.totalorder %v6240, 0
    %vm6274 = vcmp.eq.s32.totalorder %v6241, 0
    %vm6275 = vcmp.eq.s32.totalorder %v6242, 0
    %vm6276 = vcmp.eq.s32.totalorder %v6243, 0
    %vm6277 = vcmp.eq.s32.totalorder %v6244, 0
    %vm6278 = vcmp.eq.s32.totalorder %v6245, 0
    %vm6279 = vcmp.eq.s32.totalorder %v6246, 0
    %vm6280 = vcmp.eq.s32.totalorder %v6247, 0
    %vm6281 = vcmp.eq.s32.totalorder %v6248, 0
    %vm6282 = vcmp.eq.s32.totalorder %v6249, 0
    %vm6283 = vcmp.eq.s32.totalorder %v6250, 0
    %vm6284 = vcmp.eq.s32.totalorder %v6251, 0
    %vm6285 = vcmp.eq.s32.totalorder %v6252, 0
    %vm6286 = vcmp.eq.s32.totalorder %v6253, 0
    %vm6287 = vcmp.eq.s32.totalorder %v6254, 0
    %vm6288 = vcmp.eq.s32.totalorder %v6255, 0
    %vm6289 = vcmp.eq.s32.totalorder %v6256, 0
    %vm6290 = vcmp.eq.s32.totalorder %v6257, 0
    %vm6291 = vcmp.eq.s32.totalorder %v6258, 0
    %vm6292 = vcmp.eq.s32.totalorder %v6259, 0
    %vm6293 = vcmp.eq.s32.totalorder %v6260, 0
    %vm6294 = vcmp.eq.s32.totalorder %v6261, 0
    %v6295 = vsel %vm6262, %v5799, -1e+30
    %v6296 = vsel %vm6263, %v5800, -1e+30
    %v6297 = vsel %vm6264, %v5801, -1e+30
    %v6298 = vsel %vm6265, %v5802, -1e+30
    %v6299 = vsel %vm6266, %v5803, -1e+30
    %v6300 = vsel %vm6267, %v5804, -1e+30
    %v6301 = vsel %vm6268, %v5805, -1e+30
    %v6302 = vsel %vm6269, %v5806, -1e+30
    %v6303 = vsel %vm6270, %v5807, -1e+30
    %v6304 = vsel %vm6271, %v5808, -1e+30
    %v6305 = vsel %vm6272, %v5809, -1e+30
    %v6306 = vsel %vm6273, %v5810, -1e+30
    %v6307 = vsel %vm6274, %v5811, -1e+30
    %v6308 = vsel %vm6275, %v5812, -1e+30
    %v6309 = vsel %vm6276, %v5813, -1e+30
    %v6310 = vsel %vm6277, %v5814, -1e+30
    %v6311 = vsel %vm6278, %v5815, -1e+30
    %v6312 = vsel %vm6279, %v5816, -1e+30
    %v6313 = vsel %vm6280, %v5817, -1e+30
    %v6314 = vsel %vm6281, %v5818, -1e+30
    %v6315 = vsel %vm6282, %v5819, -1e+30
    %v6316 = vsel %vm6283, %v5820, -1e+30
    %v6317 = vsel %vm6284, %v5821, -1e+30
    %v6318 = vsel %vm6285, %v5822, -1e+30
    %v6319 = vsel %vm6286, %v5823, -1e+30
    %v6320 = vsel %vm6287, %v5824, -1e+30
    %v6321 = vsel %vm6288, %v5825, -1e+30
    %v6322 = vsel %vm6289, %v5826, -1e+30
    %v6323 = vsel %vm6290, %v5827, -1e+30
    %v6324 = vsel %vm6291, %v5828, -1e+30
    %v6325 = vsel %vm6292, %v5829, -1e+30
    %v6326 = vsel %vm6293, %v5830, -1e+30
    %v6327 = vsel %vm6294, %v5831, -1e+30
    %vm6328 = vcmask 7168
    %v6329 = vsel %vm6328, %v6295, -inf
    %v6330 = vsel %vm6328, %v6296, -inf
    %v6331 = vsel %vm6328, %v6297, -inf
    %v6332 = vsel %vm6328, %v6298, -inf
    %v6333 = vsel %vm6328, %v6299, -inf
    %v6334 = vmax.f32 %v6329, %v6333
    %v6335 = vsel %vm6328, %v6300, -inf
    %v6336 = vmax.f32 %v6330, %v6335
    %v6337 = vsel %vm6328, %v6301, -inf
    %v6338 = vmax.f32 %v6331, %v6337
    %v6339 = vsel %vm6328, %v6302, -inf
    %v6340 = vmax.f32 %v6332, %v6339
    %v6341 = vsel %vm6328, %v6303, -inf
    %v6342 = vmax.f32 %v6334, %v6341
    %v6343 = vsel %vm6328, %v6304, -inf
    %v6344 = vmax.f32 %v6336, %v6343
    %v6345 = vsel %vm6328, %v6305, -inf
    %v6346 = vmax.f32 %v6338, %v6345
    %v6347 = vsel %vm6328, %v6306, -inf
    %v6348 = vmax.f32 %v6340, %v6347
    %v6349 = vsel %vm6328, %v6307, -inf
    %v6350 = vmax.f32 %v6342, %v6349
    %v6351 = vsel %vm6328, %v6308, -inf
    %v6352 = vmax.f32 %v6344, %v6351
    %v6353 = vsel %vm6328, %v6309, -inf
    %v6354 = vmax.f32 %v6346, %v6353
    %v6355 = vsel %vm6328, %v6310, -inf
    %v6356 = vmax.f32 %v6348, %v6355
    %v6357 = vsel %vm6328, %v6311, -inf
    %v6358 = vmax.f32 %v6350, %v6357
    %v6359 = vsel %vm6328, %v6312, -inf
    %v6360 = vmax.f32 %v6352, %v6359
    %v6361 = vsel %vm6328, %v6313, -inf
    %v6362 = vmax.f32 %v6354, %v6361
    %v6363 = vsel %vm6328, %v6314, -inf
    %v6364 = vmax.f32 %v6356, %v6363
    %v6365 = vsel %vm6328, %v6315, -inf
    %v6366 = vmax.f32 %v6358, %v6365
    %v6367 = vsel %vm6328, %v6316, -inf
    %v6368 = vmax.f32 %v6360, %v6367
    %v6369 = vsel %vm6328, %v6317, -inf
    %v6370 = vmax.f32 %v6362, %v6369
    %v6371 = vsel %vm6328, %v6318, -inf
    %v6372 = vmax.f32 %v6364, %v6371
    %v6373 = vsel %vm6328, %v6319, -inf
    %v6374 = vmax.f32 %v6366, %v6373
    %v6375 = vsel %vm6328, %v6320, -inf
    %v6376 = vmax.f32 %v6368, %v6375
    %v6377 = vsel %vm6328, %v6321, -inf
    %v6378 = vmax.f32 %v6370, %v6377
    %v6379 = vsel %vm6328, %v6322, -inf
    %v6380 = vmax.f32 %v6372, %v6379
    %v6381 = vsel %vm6328, %v6323, -inf
    %v6382 = vmax.f32 %v6374, %v6381
    %v6383 = vsel %vm6328, %v6324, -inf
    %v6384 = vmax.f32 %v6376, %v6383
    %v6385 = vsel %vm6328, %v6325, -inf
    %v6386 = vmax.f32 %v6378, %v6385
    %v6387 = vsel %vm6328, %v6326, -inf
    %v6388 = vmax.f32 %v6380, %v6387
    %v6389 = vsel %vm6328, %v6327, -inf
    %v6390 = vmax.f32 %v6382, %v6389
    %v6391 = vmax.f32 %v6390, %v6384
    %v6392 = vmax.f32 %v6386, %v6388
    %v6393 = vmax.f32 %v6391, %v6392
    %6394 = vmax.xlane.f32.xlu0 %v6393
    %v6395 = vpop.xlane.xlu0 %6394
    %v6396 = vrot.slane %v6395, 4
    %v6397 = vmax.f32 %v6395, %v6396
    %v6398 = vrot.slane %v6397, 2
    %v6399 = vmax.f32 %v6397, %v6398
    %v6400 = vrot.slane %v6399, 1
    %v6401 = vmax.f32 %v6399, %v6400
    %s6402 = vtos %v6401
    %v6403 = vstv %s6402
    %v6404 = vsub.f32 %v6295, %v6403
    %v6405 = vsub.f32 %v6296, %v6403
    %v6406 = vsub.f32 %v6297, %v6403
    %v6407 = vsub.f32 %v6298, %v6403
    %v6408 = vsub.f32 %v6299, %v6403
    %v6409 = vsub.f32 %v6300, %v6403
    %v6410 = vsub.f32 %v6301, %v6403
    %v6411 = vsub.f32 %v6302, %v6403
    %v6412 = vsub.f32 %v6303, %v6403
    %v6413 = vsub.f32 %v6304, %v6403
    %v6414 = vsub.f32 %v6305, %v6403
    %v6415 = vsub.f32 %v6306, %v6403
    %v6416 = vsub.f32 %v6307, %v6403
    %v6417 = vsub.f32 %v6308, %v6403
    %v6418 = vsub.f32 %v6309, %v6403
    %v6419 = vsub.f32 %v6310, %v6403
    %v6420 = vsub.f32 %v6311, %v6403
    %v6421 = vsub.f32 %v6312, %v6403
    %v6422 = vsub.f32 %v6313, %v6403
    %v6423 = vsub.f32 %v6314, %v6403
    %v6424 = vsub.f32 %v6315, %v6403
    %v6425 = vsub.f32 %v6316, %v6403
    %v6426 = vsub.f32 %v6317, %v6403
    %v6427 = vsub.f32 %v6318, %v6403
    %v6428 = vsub.f32 %v6319, %v6403
    %v6429 = vsub.f32 %v6320, %v6403
    %v6430 = vsub.f32 %v6321, %v6403
    %v6431 = vsub.f32 %v6322, %v6403
    %v6432 = vsub.f32 %v6323, %v6403
    %v6433 = vsub.f32 %v6324, %v6403
    %v6434 = vsub.f32 %v6325, %v6403
    %v6435 = vsub.f32 %v6326, %v6403
    %v6436 = vsub.f32 %v6327, %v6403
    %v6437 = vmul.f32 %v6404, 1.442695
    %v6438 = vpow.pop %v6437
    %v6439 = vmul.f32 %v6405, 1.442695
    %v6440 = vpow.pop %v6439
    %v6441 = vmul.f32 %v6406, 1.442695
    %v6442 = vpow.pop %v6441
    %v6443 = vmul.f32 %v6407, 1.442695
    %v6444 = vpow.pop %v6443
    %v6445 = vmul.f32 %v6408, 1.442695
    %v6446 = vpow.pop %v6445
    %v6447 = vmul.f32 %v6409, 1.442695
    %v6448 = vpow.pop %v6447
    %v6449 = vmul.f32 %v6410, 1.442695
    %v6450 = vpow.pop %v6449
    %v6451 = vmul.f32 %v6411, 1.442695
    %v6452 = vpow.pop %v6451
    %v6453 = vmul.f32 %v6412, 1.442695
    %v6454 = vpow.pop %v6453
    %v6455 = vmul.f32 %v6413, 1.442695
    %v6456 = vpow.pop %v6455
    %v6457 = vmul.f32 %v6414, 1.442695
    %v6458 = vpow.pop %v6457
    %v6459 = vmul.f32 %v6415, 1.442695
    %v6460 = vpow.pop %v6459
    %v6461 = vmul.f32 %v6416, 1.442695
    %v6462 = vpow.pop %v6461
    %v6463 = vmul.f32 %v6417, 1.442695
    %v6464 = vpow.pop %v6463
    %v6465 = vmul.f32 %v6418, 1.442695
    %v6466 = vpow.pop %v6465
    %v6467 = vmul.f32 %v6419, 1.442695
    %v6468 = vpow.pop %v6467
    %v6469 = vmul.f32 %v6420, 1.442695
    %v6470 = vpow.pop %v6469
    %v6471 = vmul.f32 %v6421, 1.442695
    %v6472 = vpow.pop %v6471
    %v6473 = vmul.f32 %v6422, 1.442695
    %v6474 = vpow.pop %v6473
    %v6475 = vmul.f32 %v6423, 1.442695
    %v6476 = vpow.pop %v6475
    %v6477 = vmul.f32 %v6424, 1.442695
    %v6478 = vpow.pop %v6477
    %v6479 = vmul.f32 %v6425, 1.442695
    %v6480 = vpow.pop %v6479
    %v6481 = vmul.f32 %v6426, 1.442695
    %v6482 = vpow.pop %v6481
    %v6483 = vmul.f32 %v6427, 1.442695
    %v6484 = vpow.pop %v6483
    %v6485 = vmul.f32 %v6428, 1.442695
    %v6486 = vpow.pop %v6485
    %v6487 = vmul.f32 %v6429, 1.442695
    %v6488 = vpow.pop %v6487
    %v6489 = vmul.f32 %v6430, 1.442695
    %v6490 = vpow.pop %v6489
    %v6491 = vmul.f32 %v6431, 1.442695
    %v6492 = vpow.pop %v6491
    %v6493 = vmul.f32 %v6432, 1.442695
    %v6494 = vpow.pop %v6493
    %v6495 = vmul.f32 %v6433, 1.442695
    %v6496 = vpow.pop %v6495
    %v6497 = vmul.f32 %v6434, 1.442695
    %v6498 = vpow.pop %v6497
    %v6499 = vmul.f32 %v6435, 1.442695
    %v6500 = vpow.pop %v6499
    %v6501 = vmul.f32 %v6436, 1.442695
    %v6502 = vpow.pop %v6501
    %v6503 = vsel %vm6262, 1, 0
    %v6504 = vsel %vm6263, 1, 0
    %v6505 = vsel %vm6264, 1, 0
    %v6506 = vsel %vm6265, 1, 0
    %v6507 = vsel %vm6266, 1, 0
    %v6508 = vsel %vm6267, 1, 0
    %v6509 = vsel %vm6268, 1, 0
    %v6510 = vsel %vm6269, 1, 0
    %v6511 = vsel %vm6270, 1, 0
    %v6512 = vsel %vm6271, 1, 0
    %v6513 = vsel %vm6272, 1, 0
    %v6514 = vsel %vm6273, 1, 0
    %v6515 = vsel %vm6274, 1, 0
    %v6516 = vsel %vm6275, 1, 0
    %v6517 = vsel %vm6276, 1, 0
    %v6518 = vsel %vm6277, 1, 0
    %v6519 = vsel %vm6278, 1, 0
    %v6520 = vsel %vm6279, 1, 0
    %v6521 = vsel %vm6280, 1, 0
    %v6522 = vsel %vm6281, 1, 0
    %v6523 = vsel %vm6282, 1, 0
    %v6524 = vsel %vm6283, 1, 0
    %v6525 = vsel %vm6284, 1, 0
    %v6526 = vsel %vm6285, 1, 0
    %v6527 = vsel %vm6286, 1, 0
    %v6528 = vsel %vm6287, 1, 0
    %v6529 = vsel %vm6288, 1, 0
    %v6530 = vsel %vm6289, 1, 0
    %v6531 = vsel %vm6290, 1, 0
    %v6532 = vsel %vm6291, 1, 0
    %v6533 = vsel %vm6292, 1, 0
    %v6534 = vsel %vm6293, 1, 0
    %v6535 = vsel %vm6294, 1, 0
    %v6536 = vcvt.s32.f32 %v6503
    %v6537 = vcvt.s32.f32 %v6504
    %v6538 = vcvt.s32.f32 %v6505
    %v6539 = vcvt.s32.f32 %v6506
    %v6540 = vcvt.s32.f32 %v6507
    %v6541 = vcvt.s32.f32 %v6508
    %v6542 = vcvt.s32.f32 %v6509
    %v6543 = vcvt.s32.f32 %v6510
    %v6544 = vcvt.s32.f32 %v6511
    %v6545 = vcvt.s32.f32 %v6512
    %v6546 = vcvt.s32.f32 %v6513
    %v6547 = vcvt.s32.f32 %v6514
    %v6548 = vcvt.s32.f32 %v6515
    %v6549 = vcvt.s32.f32 %v6516
    %v6550 = vcvt.s32.f32 %v6517
    %v6551 = vcvt.s32.f32 %v6518
    %v6552 = vcvt.s32.f32 %v6519
    %v6553 = vcvt.s32.f32 %v6520
    %v6554 = vcvt.s32.f32 %v6521
    %v6555 = vcvt.s32.f32 %v6522
    %v6556 = vcvt.s32.f32 %v6523
    %v6557 = vcvt.s32.f32 %v6524
    %v6558 = vcvt.s32.f32 %v6525
    %v6559 = vcvt.s32.f32 %v6526
    %v6560 = vcvt.s32.f32 %v6527
    %v6561 = vcvt.s32.f32 %v6528
    %v6562 = vcvt.s32.f32 %v6529
    %v6563 = vcvt.s32.f32 %v6530
    %v6564 = vcvt.s32.f32 %v6531
    %v6565 = vcvt.s32.f32 %v6532
    %v6566 = vcvt.s32.f32 %v6533
    %v6567 = vcvt.s32.f32 %v6534
    %v6568 = vcvt.s32.f32 %v6535
    %v6569 = vmul.f32 %v6438, %v6536
    %v6570 = vmul.f32 %v6440, %v6537
    %v6571 = vmul.f32 %v6442, %v6538
    %v6572 = vmul.f32 %v6444, %v6539
    %v6573 = vmul.f32 %v6446, %v6540
    %v6574 = vmul.f32 %v6448, %v6541
    %v6575 = vmul.f32 %v6450, %v6542
    %v6576 = vmul.f32 %v6452, %v6543
    %v6577 = vmul.f32 %v6454, %v6544
    %v6578 = vmul.f32 %v6456, %v6545
    %v6579 = vmul.f32 %v6458, %v6546
    %v6580 = vmul.f32 %v6460, %v6547
    %v6581 = vmul.f32 %v6462, %v6548
    %v6582 = vmul.f32 %v6464, %v6549
    %v6583 = vmul.f32 %v6466, %v6550
    %v6584 = vmul.f32 %v6468, %v6551
    %v6585 = vmul.f32 %v6470, %v6552
    %v6586 = vmul.f32 %v6472, %v6553
    %v6587 = vmul.f32 %v6474, %v6554
    %v6588 = vmul.f32 %v6476, %v6555
    %v6589 = vmul.f32 %v6478, %v6556
    %v6590 = vmul.f32 %v6480, %v6557
    %v6591 = vmul.f32 %v6482, %v6558
    %v6592 = vmul.f32 %v6484, %v6559
    %v6593 = vmul.f32 %v6486, %v6560
    %v6594 = vmul.f32 %v6488, %v6561
    %v6595 = vmul.f32 %v6490, %v6562
    %v6596 = vmul.f32 %v6492, %v6563
    %v6597 = vmul.f32 %v6494, %v6564
    %v6598 = vmul.f32 %v6496, %v6565
    %v6599 = vmul.f32 %v6498, %v6566
    %v6600 = vmul.f32 %v6500, %v6567
    %v6601 = vmul.f32 %v6502, %v6568
    %v6602 = vsel %vm6328, %v6569, 0.0
    %v6603 = vsel %vm6328, %v6570, 0.0
    %v6604 = vadd.f32 %v6602, %v6603
    %v6605 = vsel %vm6328, %v6571, 0.0
    %v6606 = vadd.f32 %v6604, %v6605
    %v6607 = vsel %vm6328, %v6572, 0.0
    %v6608 = vadd.f32 %v6606, %v6607
    %v6609 = vsel %vm6328, %v6573, 0.0
    %v6610 = vadd.f32 %v6608, %v6609
    %v6611 = vsel %vm6328, %v6574, 0.0
    %v6612 = vadd.f32 %v6610, %v6611
    %v6613 = vsel %vm6328, %v6575, 0.0
    %v6614 = vadd.f32 %v6612, %v6613
    %v6615 = vsel %vm6328, %v6576, 0.0
    %v6616 = vadd.f32 %v6614, %v6615
    %v6617 = vsel %vm6328, %v6577, 0.0
    %v6618 = vadd.f32 %v6616, %v6617
    %v6619 = vsel %vm6328, %v6578, 0.0
    %v6620 = vadd.f32 %v6618, %v6619
    %v6621 = vsel %vm6328, %v6579, 0.0
    %v6622 = vadd.f32 %v6620, %v6621
    %v6623 = vsel %vm6328, %v6580, 0.0
    %v6624 = vadd.f32 %v6622, %v6623
    %v6625 = vsel %vm6328, %v6581, 0.0
    %v6626 = vadd.f32 %v6624, %v6625
    %v6627 = vsel %vm6328, %v6582, 0.0
    %v6628 = vadd.f32 %v6626, %v6627
    %v6629 = vsel %vm6328, %v6583, 0.0
    %v6630 = vadd.f32 %v6628, %v6629
    %v6631 = vsel %vm6328, %v6584, 0.0
    %v6632 = vadd.f32 %v6630, %v6631
    %v6633 = vsel %vm6328, %v6585, 0.0
    %v6634 = vadd.f32 %v6632, %v6633
    %v6635 = vsel %vm6328, %v6586, 0.0
    %v6636 = vadd.f32 %v6634, %v6635
    %v6637 = vsel %vm6328, %v6587, 0.0
    %v6638 = vadd.f32 %v6636, %v6637
    %v6639 = vsel %vm6328, %v6588, 0.0
    %v6640 = vadd.f32 %v6638, %v6639
    %v6641 = vsel %vm6328, %v6589, 0.0
    %v6642 = vadd.f32 %v6640, %v6641
    %v6643 = vsel %vm6328, %v6590, 0.0
    %v6644 = vadd.f32 %v6642, %v6643
    %v6645 = vsel %vm6328, %v6591, 0.0
    %v6646 = vadd.f32 %v6644, %v6645
    %v6647 = vsel %vm6328, %v6592, 0.0
    %v6648 = vadd.f32 %v6646, %v6647
    %v6649 = vsel %vm6328, %v6593, 0.0
    %v6650 = vadd.f32 %v6648, %v6649
    %v6651 = vsel %vm6328, %v6594, 0.0
    %v6652 = vadd.f32 %v6650, %v6651
    %v6653 = vsel %vm6328, %v6595, 0.0
    %v6654 = vadd.f32 %v6652, %v6653
    %v6655 = vsel %vm6328, %v6596, 0.0
    %v6656 = vadd.f32 %v6654, %v6655
    %v6657 = vsel %vm6328, %v6597, 0.0
    %v6658 = vadd.f32 %v6656, %v6657
    %v6659 = vsel %vm6328, %v6598, 0.0
    %v6660 = vadd.f32 %v6658, %v6659
    %v6661 = vsel %vm6328, %v6599, 0.0
    %v6662 = vadd.f32 %v6660, %v6661
    %v6663 = vsel %vm6328, %v6600, 0.0
    %v6664 = vadd.f32 %v6662, %v6663
    %v6665 = vsel %vm6328, %v6601, 0.0
    %v6666 = vadd.f32 %v6664, %v6665
    %6667 = vadd.xlane.f32.xlu0 %v6666
    %v6668 = vpop.xlane.xlu0 %6667
    %v6669 = vrot.slane %v6668, 4
    %v6670 = vadd.f32 %v6668, %v6669
    %v6671 = vrot.slane %v6670, 2
    %v6672 = vadd.f32 %v6670, %v6671
    %v6673 = vrot.slane %v6672, 1
    %v6674 = vadd.f32 %v6672, %v6673
    %s6675 = vtos %v6674
    %v6676 = vstv %s6675
    %v6677 = vrcp.pop %v6676
    %v6678 = vmul.f32 %v6569, %v6677
    %v6679 = vmul.f32 %v6570, %v6677
    %v6680 = vmul.f32 %v6571, %v6677
    %v6681 = vmul.f32 %v6572, %v6677
    %v6682 = vmul.f32 %v6573, %v6677
    %v6683 = vmul.f32 %v6574, %v6677
    %v6684 = vmul.f32 %v6575, %v6677
    %v6685 = vmul.f32 %v6576, %v6677
    %v6686 = vmul.f32 %v6577, %v6677
    %v6687 = vmul.f32 %v6578, %v6677
    %v6688 = vmul.f32 %v6579, %v6677
    %v6689 = vmul.f32 %v6580, %v6677
    %v6690 = vmul.f32 %v6581, %v6677
    %v6691 = vmul.f32 %v6582, %v6677
    %v6692 = vmul.f32 %v6583, %v6677
    %v6693 = vmul.f32 %v6584, %v6677
    %v6694 = vmul.f32 %v6585, %v6677
    %v6695 = vmul.f32 %v6586, %v6677
    %v6696 = vmul.f32 %v6587, %v6677
    %v6697 = vmul.f32 %v6588, %v6677
    %v6698 = vmul.f32 %v6589, %v6677
    %v6699 = vmul.f32 %v6590, %v6677
    %v6700 = vmul.f32 %v6591, %v6677
    %v6701 = vmul.f32 %v6592, %v6677
    %v6702 = vmul.f32 %v6593, %v6677
    %v6703 = vmul.f32 %v6594, %v6677
    %v6704 = vmul.f32 %v6595, %v6677
    %v6705 = vmul.f32 %v6596, %v6677
    %v6706 = vmul.f32 %v6597, %v6677
    %v6707 = vmul.f32 %v6598, %v6677
    %v6708 = vmul.f32 %v6599, %v6677
    %v6709 = vmul.f32 %v6600, %v6677
    %v6710 = vmul.f32 %v6601, %v6677
    %v6711 = vadd.f32 %v6678, 0.0
    %v6712 = vadd.f32 %v6679, 0.0
    %v6713 = vadd.f32 %v6680, 0.0
    %v6714 = vadd.f32 %v6681, 0.0
    %v6715 = vadd.f32 %v6682, 0.0
    %v6716 = vadd.f32 %v6683, 0.0
    %v6717 = vadd.f32 %v6684, 0.0
    %v6718 = vadd.f32 %v6685, 0.0
    %v6719 = vadd.f32 %v6686, 0.0
    %v6720 = vadd.f32 %v6687, 0.0
    %v6721 = vadd.f32 %v6688, 0.0
    %v6722 = vadd.f32 %v6689, 0.0
    %v6723 = vadd.f32 %v6690, 0.0
    %v6724 = vadd.f32 %v6691, 0.0
    %v6725 = vadd.f32 %v6692, 0.0
    %v6726 = vadd.f32 %v6693, 0.0
    %v6727 = vadd.f32 %v6694, 0.0
    %v6728 = vadd.f32 %v6695, 0.0
    %v6729 = vadd.f32 %v6696, 0.0
    %v6730 = vadd.f32 %v6697, 0.0
    %v6731 = vadd.f32 %v6698, 0.0
    %v6732 = vadd.f32 %v6699, 0.0
    %v6733 = vadd.f32 %v6700, 0.0
    %v6734 = vadd.f32 %v6701, 0.0
    %v6735 = vadd.f32 %v6702, 0.0
    %v6736 = vadd.f32 %v6703, 0.0
    %v6737 = vadd.f32 %v6704, 0.0
    %v6738 = vadd.f32 %v6705, 0.0
    %v6739 = vadd.f32 %v6706, 0.0
    %v6740 = vadd.f32 %v6707, 0.0
    %v6741 = vadd.f32 %v6708, 0.0
    %v6742 = vadd.f32 %v6709, 0.0
    %v6743 = vadd.f32 %v6710, 0.0
    %vm6744 = vcmp.eq.s32.totalorder %v6229, 1
    %vm6745 = vcmp.eq.s32.totalorder %v6230, 1
    %vm6746 = vcmp.eq.s32.totalorder %v6231, 1
    %vm6747 = vcmp.eq.s32.totalorder %v6232, 1
    %vm6748 = vcmp.eq.s32.totalorder %v6233, 1
    %vm6749 = vcmp.eq.s32.totalorder %v6234, 1
    %vm6750 = vcmp.eq.s32.totalorder %v6235, 1
    %vm6751 = vcmp.eq.s32.totalorder %v6236, 1
    %vm6752 = vcmp.eq.s32.totalorder %v6237, 1
    %vm6753 = vcmp.eq.s32.totalorder %v6238, 1
    %vm6754 = vcmp.eq.s32.totalorder %v6239, 1
    %vm6755 = vcmp.eq.s32.totalorder %v6240, 1
    %vm6756 = vcmp.eq.s32.totalorder %v6241, 1
    %vm6757 = vcmp.eq.s32.totalorder %v6242, 1
    %vm6758 = vcmp.eq.s32.totalorder %v6243, 1
    %vm6759 = vcmp.eq.s32.totalorder %v6244, 1
    %vm6760 = vcmp.eq.s32.totalorder %v6245, 1
    %vm6761 = vcmp.eq.s32.totalorder %v6246, 1
    %vm6762 = vcmp.eq.s32.totalorder %v6247, 1
    %vm6763 = vcmp.eq.s32.totalorder %v6248, 1
    %vm6764 = vcmp.eq.s32.totalorder %v6249, 1
    %vm6765 = vcmp.eq.s32.totalorder %v6250, 1
    %vm6766 = vcmp.eq.s32.totalorder %v6251, 1
    %vm6767 = vcmp.eq.s32.totalorder %v6252, 1
    %vm6768 = vcmp.eq.s32.totalorder %v6253, 1
    %vm6769 = vcmp.eq.s32.totalorder %v6254, 1
    %vm6770 = vcmp.eq.s32.totalorder %v6255, 1
    %vm6771 = vcmp.eq.s32.totalorder %v6256, 1
    %vm6772 = vcmp.eq.s32.totalorder %v6257, 1
    %vm6773 = vcmp.eq.s32.totalorder %v6258, 1
    %vm6774 = vcmp.eq.s32.totalorder %v6259, 1
    %vm6775 = vcmp.eq.s32.totalorder %v6260, 1
    %vm6776 = vcmp.eq.s32.totalorder %v6261, 1
    %v6777 = vsel %vm6744, %v5799, -1e+30
    %v6778 = vsel %vm6745, %v5800, -1e+30
    %v6779 = vsel %vm6746, %v5801, -1e+30
    %v6780 = vsel %vm6747, %v5802, -1e+30
    %v6781 = vsel %vm6748, %v5803, -1e+30
    %v6782 = vsel %vm6749, %v5804, -1e+30
    %v6783 = vsel %vm6750, %v5805, -1e+30
    %v6784 = vsel %vm6751, %v5806, -1e+30
    %v6785 = vsel %vm6752, %v5807, -1e+30
    %v6786 = vsel %vm6753, %v5808, -1e+30
    %v6787 = vsel %vm6754, %v5809, -1e+30
    %v6788 = vsel %vm6755, %v5810, -1e+30
    %v6789 = vsel %vm6756, %v5811, -1e+30
    %v6790 = vsel %vm6757, %v5812, -1e+30
    %v6791 = vsel %vm6758, %v5813, -1e+30
    %v6792 = vsel %vm6759, %v5814, -1e+30
    %v6793 = vsel %vm6760, %v5815, -1e+30
    %v6794 = vsel %vm6761, %v5816, -1e+30
    %v6795 = vsel %vm6762, %v5817, -1e+30
    %v6796 = vsel %vm6763, %v5818, -1e+30
    %v6797 = vsel %vm6764, %v5819, -1e+30
    %v6798 = vsel %vm6765, %v5820, -1e+30
    %v6799 = vsel %vm6766, %v5821, -1e+30
    %v6800 = vsel %vm6767, %v5822, -1e+30
    %v6801 = vsel %vm6768, %v5823, -1e+30
    %v6802 = vsel %vm6769, %v5824, -1e+30
    %v6803 = vsel %vm6770, %v5825, -1e+30
    %v6804 = vsel %vm6771, %v5826, -1e+30
    %v6805 = vsel %vm6772, %v5827, -1e+30
    %v6806 = vsel %vm6773, %v5828, -1e+30
    %v6807 = vsel %vm6774, %v5829, -1e+30
    %v6808 = vsel %vm6775, %v5830, -1e+30
    %v6809 = vsel %vm6776, %v5831, -1e+30
    %v6810 = vsel %vm6328, %v6777, -inf
    %v6811 = vsel %vm6328, %v6778, -inf
    %v6812 = vsel %vm6328, %v6779, -inf
    %v6813 = vsel %vm6328, %v6780, -inf
    %v6814 = vsel %vm6328, %v6781, -inf
    %v6815 = vmax.f32 %v6810, %v6814
    %v6816 = vsel %vm6328, %v6782, -inf
    %v6817 = vmax.f32 %v6811, %v6816
    %v6818 = vsel %vm6328, %v6783, -inf
    %v6819 = vmax.f32 %v6812, %v6818
    %v6820 = vsel %vm6328, %v6784, -inf
    %v6821 = vmax.f32 %v6813, %v6820
    %v6822 = vsel %vm6328, %v6785, -inf
    %v6823 = vmax.f32 %v6815, %v6822
    %v6824 = vsel %vm6328, %v6786, -inf
    %v6825 = vmax.f32 %v6817, %v6824
    %v6826 = vsel %vm6328, %v6787, -inf
    %v6827 = vmax.f32 %v6819, %v6826
    %v6828 = vsel %vm6328, %v6788, -inf
    %v6829 = vmax.f32 %v6821, %v6828
    %v6830 = vsel %vm6328, %v6789, -inf
    %v6831 = vmax.f32 %v6823, %v6830
    %v6832 = vsel %vm6328, %v6790, -inf
    %v6833 = vmax.f32 %v6825, %v6832
    %v6834 = vsel %vm6328, %v6791, -inf
    %v6835 = vmax.f32 %v6827, %v6834
    %v6836 = vsel %vm6328, %v6792, -inf
    %v6837 = vmax.f32 %v6829, %v6836
    %v6838 = vsel %vm6328, %v6793, -inf
    %v6839 = vmax.f32 %v6831, %v6838
    %v6840 = vsel %vm6328, %v6794, -inf
    %v6841 = vmax.f32 %v6833, %v6840
    %v6842 = vsel %vm6328, %v6795, -inf
    %v6843 = vmax.f32 %v6835, %v6842
    %v6844 = vsel %vm6328, %v6796, -inf
    %v6845 = vmax.f32 %v6837, %v6844
    %v6846 = vsel %vm6328, %v6797, -inf
    %v6847 = vmax.f32 %v6839, %v6846
    %v6848 = vsel %vm6328, %v6798, -inf
    %v6849 = vmax.f32 %v6841, %v6848
    %v6850 = vsel %vm6328, %v6799, -inf
    %v6851 = vmax.f32 %v6843, %v6850
    %v6852 = vsel %vm6328, %v6800, -inf
    %v6853 = vmax.f32 %v6845, %v6852
    %v6854 = vsel %vm6328, %v6801, -inf
    %v6855 = vmax.f32 %v6847, %v6854
    %v6856 = vsel %vm6328, %v6802, -inf
    %v6857 = vmax.f32 %v6849, %v6856
    %v6858 = vsel %vm6328, %v6803, -inf
    %v6859 = vmax.f32 %v6851, %v6858
    %v6860 = vsel %vm6328, %v6804, -inf
    %v6861 = vmax.f32 %v6853, %v6860
    %v6862 = vsel %vm6328, %v6805, -inf
    %v6863 = vmax.f32 %v6855, %v6862
    %v6864 = vsel %vm6328, %v6806, -inf
    %v6865 = vmax.f32 %v6857, %v6864
    %v6866 = vsel %vm6328, %v6807, -inf
    %v6867 = vmax.f32 %v6859, %v6866
    %v6868 = vsel %vm6328, %v6808, -inf
    %v6869 = vmax.f32 %v6861, %v6868
    %v6870 = vsel %vm6328, %v6809, -inf
    %v6871 = vmax.f32 %v6863, %v6870
    %v6872 = vmax.f32 %v6871, %v6865
    %v6873 = vmax.f32 %v6867, %v6869
    %v6874 = vmax.f32 %v6872, %v6873
    %6875 = vmax.xlane.f32.xlu0 %v6874
    %v6876 = vpop.xlane.xlu0 %6875
    %v6877 = vrot.slane %v6876, 4
    %v6878 = vmax.f32 %v6876, %v6877
    %v6879 = vrot.slane %v6878, 2
    %v6880 = vmax.f32 %v6878, %v6879
    %v6881 = vrot.slane %v6880, 1
    %v6882 = vmax.f32 %v6880, %v6881
    %s6883 = vtos %v6882
    %v6884 = vstv %s6883
    %v6885 = vsub.f32 %v6777, %v6884
    %v6886 = vsub.f32 %v6778, %v6884
    %v6887 = vsub.f32 %v6779, %v6884
    %v6888 = vsub.f32 %v6780, %v6884
    %v6889 = vsub.f32 %v6781, %v6884
    %v6890 = vsub.f32 %v6782, %v6884
    %v6891 = vsub.f32 %v6783, %v6884
    %v6892 = vsub.f32 %v6784, %v6884
    %v6893 = vsub.f32 %v6785, %v6884
    %v6894 = vsub.f32 %v6786, %v6884
    %v6895 = vsub.f32 %v6787, %v6884
    %v6896 = vsub.f32 %v6788, %v6884
    %v6897 = vsub.f32 %v6789, %v6884
    %v6898 = vsub.f32 %v6790, %v6884
    %v6899 = vsub.f32 %v6791, %v6884
    %v6900 = vsub.f32 %v6792, %v6884
    %v6901 = vsub.f32 %v6793, %v6884
    %v6902 = vsub.f32 %v6794, %v6884
    %v6903 = vsub.f32 %v6795, %v6884
    %v6904 = vsub.f32 %v6796, %v6884
    %v6905 = vsub.f32 %v6797, %v6884
    %v6906 = vsub.f32 %v6798, %v6884
    %v6907 = vsub.f32 %v6799, %v6884
    %v6908 = vsub.f32 %v6800, %v6884
    %v6909 = vsub.f32 %v6801, %v6884
    %v6910 = vsub.f32 %v6802, %v6884
    %v6911 = vsub.f32 %v6803, %v6884
    %v6912 = vsub.f32 %v6804, %v6884
    %v6913 = vsub.f32 %v6805, %v6884
    %v6914 = vsub.f32 %v6806, %v6884
    %v6915 = vsub.f32 %v6807, %v6884
    %v6916 = vsub.f32 %v6808, %v6884
    %v6917 = vsub.f32 %v6809, %v6884
    %v6918 = vmul.f32 %v6885, 1.442695
    %v6919 = vpow.pop %v6918
    %v6920 = vmul.f32 %v6886, 1.442695
    %v6921 = vpow.pop %v6920
    %v6922 = vmul.f32 %v6887, 1.442695
    %v6923 = vpow.pop %v6922
    %v6924 = vmul.f32 %v6888, 1.442695
    %v6925 = vpow.pop %v6924
    %v6926 = vmul.f32 %v6889, 1.442695
    %v6927 = vpow.pop %v6926
    %v6928 = vmul.f32 %v6890, 1.442695
    %v6929 = vpow.pop %v6928
    %v6930 = vmul.f32 %v6891, 1.442695
    %v6931 = vpow.pop %v6930
    %v6932 = vmul.f32 %v6892, 1.442695
    %v6933 = vpow.pop %v6932
    %v6934 = vmul.f32 %v6893, 1.442695
    %v6935 = vpow.pop %v6934
    %v6936 = vmul.f32 %v6894, 1.442695
    %v6937 = vpow.pop %v6936
    %v6938 = vmul.f32 %v6895, 1.442695
    %v6939 = vpow.pop %v6938
    %v6940 = vmul.f32 %v6896, 1.442695
    %v6941 = vpow.pop %v6940
    %v6942 = vmul.f32 %v6897, 1.442695
    %v6943 = vpow.pop %v6942
    %v6944 = vmul.f32 %v6898, 1.442695
    %v6945 = vpow.pop %v6944
    %v6946 = vmul.f32 %v6899, 1.442695
    %v6947 = vpow.pop %v6946
    %v6948 = vmul.f32 %v6900, 1.442695
    %v6949 = vpow.pop %v6948
    %v6950 = vmul.f32 %v6901, 1.442695
    %v6951 = vpow.pop %v6950
    %v6952 = vmul.f32 %v6902, 1.442695
    %v6953 = vpow.pop %v6952
    %v6954 = vmul.f32 %v6903, 1.442695
    %v6955 = vpow.pop %v6954
    %v6956 = vmul.f32 %v6904, 1.442695
    %v6957 = vpow.pop %v6956
    %v6958 = vmul.f32 %v6905, 1.442695
    %v6959 = vpow.pop %v6958
    %v6960 = vmul.f32 %v6906, 1.442695
    %v6961 = vpow.pop %v6960
    %v6962 = vmul.f32 %v6907, 1.442695
    %v6963 = vpow.pop %v6962
    %v6964 = vmul.f32 %v6908, 1.442695
    %v6965 = vpow.pop %v6964
    %v6966 = vmul.f32 %v6909, 1.442695
    %v6967 = vpow.pop %v6966
    %v6968 = vmul.f32 %v6910, 1.442695
    %v6969 = vpow.pop %v6968
    %v6970 = vmul.f32 %v6911, 1.442695
    %v6971 = vpow.pop %v6970
    %v6972 = vmul.f32 %v6912, 1.442695
    %v6973 = vpow.pop %v6972
    %v6974 = vmul.f32 %v6913, 1.442695
    %v6975 = vpow.pop %v6974
    %v6976 = vmul.f32 %v6914, 1.442695
    %v6977 = vpow.pop %v6976
    %v6978 = vmul.f32 %v6915, 1.442695
    %v6979 = vpow.pop %v6978
    %v6980 = vmul.f32 %v6916, 1.442695
    %v6981 = vpow.pop %v6980
    %v6982 = vmul.f32 %v6917, 1.442695
    %v6983 = vpow.pop %v6982
    %v6984 = vsel %vm6744, 1, 0
    %v6985 = vsel %vm6745, 1, 0
    %v6986 = vsel %vm6746, 1, 0
    %v6987 = vsel %vm6747, 1, 0
    %v6988 = vsel %vm6748, 1, 0
    %v6989 = vsel %vm6749, 1, 0
    %v6990 = vsel %vm6750, 1, 0
    %v6991 = vsel %vm6751, 1, 0
    %v6992 = vsel %vm6752, 1, 0
    %v6993 = vsel %vm6753, 1, 0
    %v6994 = vsel %vm6754, 1, 0
    %v6995 = vsel %vm6755, 1, 0
    %v6996 = vsel %vm6756, 1, 0
    %v6997 = vsel %vm6757, 1, 0
    %v6998 = vsel %vm6758, 1, 0
    %v6999 = vsel %vm6759, 1, 0
    %v7000 = vsel %vm6760, 1, 0
    %v7001 = vsel %vm6761, 1, 0
    %v7002 = vsel %vm6762, 1, 0
    %v7003 = vsel %vm6763, 1, 0
    %v7004 = vsel %vm6764, 1, 0
    %v7005 = vsel %vm6765, 1, 0
    %v7006 = vsel %vm6766, 1, 0
    %v7007 = vsel %vm6767, 1, 0
    %v7008 = vsel %vm6768, 1, 0
    %v7009 = vsel %vm6769, 1, 0
    %v7010 = vsel %vm6770, 1, 0
    %v7011 = vsel %vm6771, 1, 0
    %v7012 = vsel %vm6772, 1, 0
    %v7013 = vsel %vm6773, 1, 0
    %v7014 = vsel %vm6774, 1, 0
    %v7015 = vsel %vm6775, 1, 0
    %v7016 = vsel %vm6776, 1, 0
    %v7017 = vcvt.s32.f32 %v6984
    %v7018 = vcvt.s32.f32 %v6985
    %v7019 = vcvt.s32.f32 %v6986
    %v7020 = vcvt.s32.f32 %v6987
    %v7021 = vcvt.s32.f32 %v6988
    %v7022 = vcvt.s32.f32 %v6989
    %v7023 = vcvt.s32.f32 %v6990
    %v7024 = vcvt.s32.f32 %v6991
    %v7025 = vcvt.s32.f32 %v6992
    %v7026 = vcvt.s32.f32 %v6993
    %v7027 = vcvt.s32.f32 %v6994
    %v7028 = vcvt.s32.f32 %v6995
    %v7029 = vcvt.s32.f32 %v6996
    %v7030 = vcvt.s32.f32 %v6997
    %v7031 = vcvt.s32.f32 %v6998
    %v7032 = vcvt.s32.f32 %v6999
    %v7033 = vcvt.s32.f32 %v7000
    %v7034 = vcvt.s32.f32 %v7001
    %v7035 = vcvt.s32.f32 %v7002
    %v7036 = vcvt.s32.f32 %v7003
    %v7037 = vcvt.s32.f32 %v7004
    %v7038 = vcvt.s32.f32 %v7005
    %v7039 = vcvt.s32.f32 %v7006
    %v7040 = vcvt.s32.f32 %v7007
    %v7041 = vcvt.s32.f32 %v7008
    %v7042 = vcvt.s32.f32 %v7009
    %v7043 = vcvt.s32.f32 %v7010
    %v7044 = vcvt.s32.f32 %v7011
    %v7045 = vcvt.s32.f32 %v7012
    %v7046 = vcvt.s32.f32 %v7013
    %v7047 = vcvt.s32.f32 %v7014
    %v7048 = vcvt.s32.f32 %v7015
    %v7049 = vcvt.s32.f32 %v7016
    %v7050 = vmul.f32 %v6919, %v7017
    %v7051 = vmul.f32 %v6921, %v7018
    %v7052 = vmul.f32 %v6923, %v7019
    %v7053 = vmul.f32 %v6925, %v7020
    %v7054 = vmul.f32 %v6927, %v7021
    %v7055 = vmul.f32 %v6929, %v7022
    %v7056 = vmul.f32 %v6931, %v7023
    %v7057 = vmul.f32 %v6933, %v7024
    %v7058 = vmul.f32 %v6935, %v7025
    %v7059 = vmul.f32 %v6937, %v7026
    %v7060 = vmul.f32 %v6939, %v7027
    %v7061 = vmul.f32 %v6941, %v7028
    %v7062 = vmul.f32 %v6943, %v7029
    %v7063 = vmul.f32 %v6945, %v7030
    %v7064 = vmul.f32 %v6947, %v7031
    %v7065 = vmul.f32 %v6949, %v7032
    %v7066 = vmul.f32 %v6951, %v7033
    %v7067 = vmul.f32 %v6953, %v7034
    %v7068 = vmul.f32 %v6955, %v7035
    %v7069 = vmul.f32 %v6957, %v7036
    %v7070 = vmul.f32 %v6959, %v7037
    %v7071 = vmul.f32 %v6961, %v7038
    %v7072 = vmul.f32 %v6963, %v7039
    %v7073 = vmul.f32 %v6965, %v7040
    %v7074 = vmul.f32 %v6967, %v7041
    %v7075 = vmul.f32 %v6969, %v7042
    %v7076 = vmul.f32 %v6971, %v7043
    %v7077 = vmul.f32 %v6973, %v7044
    %v7078 = vmul.f32 %v6975, %v7045
    %v7079 = vmul.f32 %v6977, %v7046
    %v7080 = vmul.f32 %v6979, %v7047
    %v7081 = vmul.f32 %v6981, %v7048
    %v7082 = vmul.f32 %v6983, %v7049
    %v7083 = vsel %vm6328, %v7050, 0.0
    %v7084 = vsel %vm6328, %v7051, 0.0
    %v7085 = vadd.f32 %v7083, %v7084
    %v7086 = vsel %vm6328, %v7052, 0.0
    %v7087 = vadd.f32 %v7085, %v7086
    %v7088 = vsel %vm6328, %v7053, 0.0
    %v7089 = vadd.f32 %v7087, %v7088
    %v7090 = vsel %vm6328, %v7054, 0.0
    %v7091 = vadd.f32 %v7089, %v7090
    %v7092 = vsel %vm6328, %v7055, 0.0
    %v7093 = vadd.f32 %v7091, %v7092
    %v7094 = vsel %vm6328, %v7056, 0.0
    %v7095 = vadd.f32 %v7093, %v7094
    %v7096 = vsel %vm6328, %v7057, 0.0
    %v7097 = vadd.f32 %v7095, %v7096
    %v7098 = vsel %vm6328, %v7058, 0.0
    %v7099 = vadd.f32 %v7097, %v7098
    %v7100 = vsel %vm6328, %v7059, 0.0
    %v7101 = vadd.f32 %v7099, %v7100
    %v7102 = vsel %vm6328, %v7060, 0.0
    %v7103 = vadd.f32 %v7101, %v7102
    %v7104 = vsel %vm6328, %v7061, 0.0
    %v7105 = vadd.f32 %v7103, %v7104
    %v7106 = vsel %vm6328, %v7062, 0.0
    %v7107 = vadd.f32 %v7105, %v7106
    %v7108 = vsel %vm6328, %v7063, 0.0
    %v7109 = vadd.f32 %v7107, %v7108
    %v7110 = vsel %vm6328, %v7064, 0.0
    %v7111 = vadd.f32 %v7109, %v7110
    %v7112 = vsel %vm6328, %v7065, 0.0
    %v7113 = vadd.f32 %v7111, %v7112
    %v7114 = vsel %vm6328, %v7066, 0.0
    %v7115 = vadd.f32 %v7113, %v7114
    %v7116 = vsel %vm6328, %v7067, 0.0
    %v7117 = vadd.f32 %v7115, %v7116
    %v7118 = vsel %vm6328, %v7068, 0.0
    %v7119 = vadd.f32 %v7117, %v7118
    %v7120 = vsel %vm6328, %v7069, 0.0
    %v7121 = vadd.f32 %v7119, %v7120
    %v7122 = vsel %vm6328, %v7070, 0.0
    %v7123 = vadd.f32 %v7121, %v7122
    %v7124 = vsel %vm6328, %v7071, 0.0
    %v7125 = vadd.f32 %v7123, %v7124
    %v7126 = vsel %vm6328, %v7072, 0.0
    %v7127 = vadd.f32 %v7125, %v7126
    %v7128 = vsel %vm6328, %v7073, 0.0
    %v7129 = vadd.f32 %v7127, %v7128
    %v7130 = vsel %vm6328, %v7074, 0.0
    %v7131 = vadd.f32 %v7129, %v7130
    %v7132 = vsel %vm6328, %v7075, 0.0
    %v7133 = vadd.f32 %v7131, %v7132
    %v7134 = vsel %vm6328, %v7076, 0.0
    %v7135 = vadd.f32 %v7133, %v7134
    %v7136 = vsel %vm6328, %v7077, 0.0
    %v7137 = vadd.f32 %v7135, %v7136
    %v7138 = vsel %vm6328, %v7078, 0.0
    %v7139 = vadd.f32 %v7137, %v7138
    %v7140 = vsel %vm6328, %v7079, 0.0
    %v7141 = vadd.f32 %v7139, %v7140
    %v7142 = vsel %vm6328, %v7080, 0.0
    %v7143 = vadd.f32 %v7141, %v7142
    %v7144 = vsel %vm6328, %v7081, 0.0
    %v7145 = vadd.f32 %v7143, %v7144
    %v7146 = vsel %vm6328, %v7082, 0.0
    %v7147 = vadd.f32 %v7145, %v7146
    %7148 = vadd.xlane.f32.xlu0 %v7147
    %v7149 = vpop.xlane.xlu0 %7148
    %v7150 = vrot.slane %v7149, 4
    %v7151 = vadd.f32 %v7149, %v7150
    %v7152 = vrot.slane %v7151, 2
    %v7153 = vadd.f32 %v7151, %v7152
    %v7154 = vrot.slane %v7153, 1
    %v7155 = vadd.f32 %v7153, %v7154
    %s7156 = vtos %v7155
    %v7157 = vstv %s7156
    %v7158 = vrcp.pop %v7157
    %v7159 = vmul.f32 %v7050, %v7158
    %v7160 = vmul.f32 %v7051, %v7158
    %v7161 = vmul.f32 %v7052, %v7158
    %v7162 = vmul.f32 %v7053, %v7158
    %v7163 = vmul.f32 %v7054, %v7158
    %v7164 = vmul.f32 %v7055, %v7158
    %v7165 = vmul.f32 %v7056, %v7158
    %v7166 = vmul.f32 %v7057, %v7158
    %v7167 = vmul.f32 %v7058, %v7158
    %v7168 = vmul.f32 %v7059, %v7158
    %v7169 = vmul.f32 %v7060, %v7158
    %v7170 = vmul.f32 %v7061, %v7158
    %v7171 = vmul.f32 %v7062, %v7158
    %v7172 = vmul.f32 %v7063, %v7158
    %v7173 = vmul.f32 %v7064, %v7158
    %v7174 = vmul.f32 %v7065, %v7158
    %v7175 = vmul.f32 %v7066, %v7158
    %v7176 = vmul.f32 %v7067, %v7158
    %v7177 = vmul.f32 %v7068, %v7158
    %v7178 = vmul.f32 %v7069, %v7158
    %v7179 = vmul.f32 %v7070, %v7158
    %v7180 = vmul.f32 %v7071, %v7158
    %v7181 = vmul.f32 %v7072, %v7158
    %v7182 = vmul.f32 %v7073, %v7158
    %v7183 = vmul.f32 %v7074, %v7158
    %v7184 = vmul.f32 %v7075, %v7158
    %v7185 = vmul.f32 %v7076, %v7158
    %v7186 = vmul.f32 %v7077, %v7158
    %v7187 = vmul.f32 %v7078, %v7158
    %v7188 = vmul.f32 %v7079, %v7158
    %v7189 = vmul.f32 %v7080, %v7158
    %v7190 = vmul.f32 %v7081, %v7158
    %v7191 = vmul.f32 %v7082, %v7158
    %v7192 = vadd.f32 %v6711, %v7159
    %v7193 = vadd.f32 %v6712, %v7160
    %v7194 = vadd.f32 %v6713, %v7161
    %v7195 = vadd.f32 %v6714, %v7162
    %v7196 = vadd.f32 %v6715, %v7163
    %v7197 = vadd.f32 %v6716, %v7164
    %v7198 = vadd.f32 %v6717, %v7165
    %v7199 = vadd.f32 %v6718, %v7166
    %v7200 = vadd.f32 %v6719, %v7167
    %v7201 = vadd.f32 %v6720, %v7168
    %v7202 = vadd.f32 %v6721, %v7169
    %v7203 = vadd.f32 %v6722, %v7170
    %v7204 = vadd.f32 %v6723, %v7171
    %v7205 = vadd.f32 %v6724, %v7172
    %v7206 = vadd.f32 %v6725, %v7173
    %v7207 = vadd.f32 %v6726, %v7174
    %v7208 = vadd.f32 %v6727, %v7175
    %v7209 = vadd.f32 %v6728, %v7176
    %v7210 = vadd.f32 %v6729, %v7177
    %v7211 = vadd.f32 %v6730, %v7178
    %v7212 = vadd.f32 %v6731, %v7179
    %v7213 = vadd.f32 %v6732, %v7180
    %v7214 = vadd.f32 %v6733, %v7181
    %v7215 = vadd.f32 %v6734, %v7182
    %v7216 = vadd.f32 %v6735, %v7183
    %v7217 = vadd.f32 %v6736, %v7184
    %v7218 = vadd.f32 %v6737, %v7185
    %v7219 = vadd.f32 %v6738, %v7186
    %v7220 = vadd.f32 %v6739, %v7187
    %v7221 = vadd.f32 %v6740, %v7188
    %v7222 = vadd.f32 %v6741, %v7189
    %v7223 = vadd.f32 %v6742, %v7190
    %v7224 = vadd.f32 %v6743, %v7191
    %v7225 = vadd.s32 %v5296, 128
    %v7226 = vadd.s32 %v5296, 256
    %vm7227 = vcmp.lt.s32.totalorder %v5296, 0
    %v7228 = vsub.s32 0, %v5296
    %v7229 = vsel %vm7227, %v7228, %v5296
    %v7230 = vshrl.u32 %v7229, 3
    %v7231 = vand.u32 %v7229, 7
    %v7232 = vsub.s32 0, %v7231
    %v7233 = vsel %vm7227, %v7232, %v7231
    %vm7234 = vcmp.lt.s32.totalorder %v7225, 0
    %v7235 = vsub.s32 0, %v7225
    %v7236 = vsel %vm7234, %v7235, %v7225
    %v7237 = vshrl.u32 %v7236, 3
    %v7238 = vand.u32 %v7236, 7
    %v7239 = vsub.s32 0, %v7238
    %v7240 = vsel %vm7234, %v7239, %v7238
    %vm7241 = vcmp.lt.s32.totalorder %v7226, 0
    %v7242 = vsub.s32 0, %v7226
    %v7243 = vsel %vm7241, %v7242, %v7226
    %v7244 = vshrl.u32 %v7243, 3
    %v7245 = vand.u32 %v7243, 7
    %v7246 = vsub.s32 0, %v7245
    %v7247 = vsel %vm7241, %v7246, %v7245
    %vm7248 = vcmp.ne.s32.totalorder %v7233, 0
    %vm7249 = vcmp.ne.s32.totalorder %v7240, 0
    %vm7250 = vcmp.ne.s32.totalorder %v7247, 0
    %vm7251 = vcmp.lt.s32.totalorder %v7233, 0
    %vm7252 = vcmp.lt.s32.totalorder %v7240, 0
    %vm7253 = vcmp.lt.s32.totalorder %v7247, 0
    %vm7254 = vmand %vm7251, %vm7248
    %vm7255 = vmand %vm7252, %vm7249
    %vm7256 = vmand %vm7253, %vm7250
    %v7257 = vadd.s32 %v7233, 8
    %v7258 = vadd.s32 %v7240, 8
    %v7259 = vadd.s32 %v7247, 8
    %v7260 = vsel %vm7254, %v7257, %v7233
    %v7261 = vsel %vm7255, %v7258, %v7240
    %v7262 = vsel %vm7256, %v7259, %v7247
    %vm7263 = vcmp.eq.s32.totalorder %v7260, %v5833
    %vm7264 = vcmp.eq.s32.totalorder %v7261, %v5833
    %vm7265 = vcmp.eq.s32.totalorder %v7262, %v5833
    %v7266 = vsel %vm7263, 1, 0
    %v7267 = vsel %vm7264, 1, 0
    %v7268 = vsel %vm7265, 1, 0
    %v7269 = vcvt.s32.f32 %v7266
    %v7270 = vcvt.s32.f32 %v7267
    %v7271 = vcvt.s32.f32 %v7268
    %7273 = vset.pattern.permute.xlu0 0
    %7274 = vperm.xlu0 %7273, %v7192
    %v7275 = vpop.permute.xlu0 %7274
    %7278 = vset.pattern.permute.xlu0 0
    %7279 = vperm.xlu0 %7278, %v7193
    %v7280 = vpop.permute.xlu0 %7279
    %7283 = vset.pattern.permute.xlu0 0
    %7284 = vperm.xlu0 %7283, %v7194
    %v7285 = vpop.permute.xlu0 %7284
    %7288 = vset.pattern.permute.xlu0 0
    %7289 = vperm.xlu0 %7288, %v7195
    %v7290 = vpop.permute.xlu0 %7289
    %7293 = vset.pattern.permute.xlu0 0
    %7294 = vperm.xlu0 %7293, %v7196
    %v7295 = vpop.permute.xlu0 %7294
    %7298 = vset.pattern.permute.xlu0 0
    %7299 = vperm.xlu0 %7298, %v7197
    %v7300 = vpop.permute.xlu0 %7299
    %7303 = vset.pattern.permute.xlu0 0
    %7304 = vperm.xlu0 %7303, %v7198
    %v7305 = vpop.permute.xlu0 %7304
    %7308 = vset.pattern.permute.xlu0 0
    %7309 = vperm.xlu0 %7308, %v7199
    %v7310 = vpop.permute.xlu0 %7309
    %7313 = vset.pattern.permute.xlu0 0
    %7314 = vperm.xlu0 %7313, %v7200
    %v7315 = vpop.permute.xlu0 %7314
    %7318 = vset.pattern.permute.xlu0 0
    %7319 = vperm.xlu0 %7318, %v7201
    %v7320 = vpop.permute.xlu0 %7319
    %7323 = vset.pattern.permute.xlu0 0
    %7324 = vperm.xlu0 %7323, %v7202
    %v7325 = vpop.permute.xlu0 %7324
    %7328 = vset.pattern.permute.xlu0 0
    %7329 = vperm.xlu0 %7328, %v7203
    %v7330 = vpop.permute.xlu0 %7329
    %7333 = vset.pattern.permute.xlu0 0
    %7334 = vperm.xlu0 %7333, %v7204
    %v7335 = vpop.permute.xlu0 %7334
    %7338 = vset.pattern.permute.xlu0 0
    %7339 = vperm.xlu0 %7338, %v7205
    %v7340 = vpop.permute.xlu0 %7339
    %7343 = vset.pattern.permute.xlu0 0
    %7344 = vperm.xlu0 %7343, %v7206
    %v7345 = vpop.permute.xlu0 %7344
    %7348 = vset.pattern.permute.xlu0 0
    %7349 = vperm.xlu0 %7348, %v7207
    %v7350 = vpop.permute.xlu0 %7349
    %7353 = vset.pattern.permute.xlu0 0
    %7354 = vperm.xlu0 %7353, %v7208
    %v7355 = vpop.permute.xlu0 %7354
    %7358 = vset.pattern.permute.xlu0 0
    %7359 = vperm.xlu0 %7358, %v7209
    %v7360 = vpop.permute.xlu0 %7359
    %7363 = vset.pattern.permute.xlu0 0
    %7364 = vperm.xlu0 %7363, %v7210
    %v7365 = vpop.permute.xlu0 %7364
    %7368 = vset.pattern.permute.xlu0 0
    %7369 = vperm.xlu0 %7368, %v7211
    %v7370 = vpop.permute.xlu0 %7369
    %7373 = vset.pattern.permute.xlu0 0
    %7374 = vperm.xlu0 %7373, %v7212
    %v7375 = vpop.permute.xlu0 %7374
    %7378 = vset.pattern.permute.xlu0 0
    %7379 = vperm.xlu0 %7378, %v7213
    %v7380 = vpop.permute.xlu0 %7379
    %7383 = vset.pattern.permute.xlu0 0
    %7384 = vperm.xlu0 %7383, %v7214
    %v7385 = vpop.permute.xlu0 %7384
    %7388 = vset.pattern.permute.xlu0 0
    %7389 = vperm.xlu0 %7388, %v7215
    %v7390 = vpop.permute.xlu0 %7389
    %7393 = vset.pattern.permute.xlu0 0
    %7394 = vperm.xlu0 %7393, %v7216
    %v7395 = vpop.permute.xlu0 %7394
    %7398 = vset.pattern.permute.xlu0 0
    %7399 = vperm.xlu0 %7398, %v7217
    %v7400 = vpop.permute.xlu0 %7399
    %7403 = vset.pattern.permute.xlu0 0
    %7404 = vperm.xlu0 %7403, %v7218
    %v7405 = vpop.permute.xlu0 %7404
    %7408 = vset.pattern.permute.xlu0 0
    %7409 = vperm.xlu0 %7408, %v7219
    %v7410 = vpop.permute.xlu0 %7409
    %7413 = vset.pattern.permute.xlu0 0
    %7414 = vperm.xlu0 %7413, %v7220
    %v7415 = vpop.permute.xlu0 %7414
    %7418 = vset.pattern.permute.xlu0 0
    %7419 = vperm.xlu0 %7418, %v7221
    %v7420 = vpop.permute.xlu0 %7419
    %7423 = vset.pattern.permute.xlu0 0
    %7424 = vperm.xlu0 %7423, %v7222
    %v7425 = vpop.permute.xlu0 %7424
    %7428 = vset.pattern.permute.xlu0 0
    %7429 = vperm.xlu0 %7428, %v7223
    %v7430 = vpop.permute.xlu0 %7429
    %7433 = vset.pattern.permute.xlu0 0
    %7434 = vperm.xlu0 %7433, %v7224
    %v7435 = vpop.permute.xlu0 %7434
    %v7437 = vmul.f32 %v5364, %v7275
    %v7438 = vmul.f32 %v5365, %v7280
    %v7439 = vmul.f32 %v5366, %v7285
    %v7440 = vmul.f32 %v5367, %v7290
    %v7441 = vmul.f32 %v5368, %v7295
    %v7442 = vmul.f32 %v5369, %v7300
    %v7443 = vmul.f32 %v5370, %v7305
    %v7444 = vmul.f32 %v5371, %v7310
    %v7445 = vmul.f32 %v5372, %v7315
    %v7446 = vmul.f32 %v5373, %v7320
    %v7447 = vmul.f32 %v5374, %v7325
    %v7448 = vmul.f32 %v5375, %v7330
    %v7449 = vmul.f32 %v5376, %v7335
    %v7450 = vmul.f32 %v5377, %v7340
    %v7451 = vmul.f32 %v5378, %v7345
    %v7452 = vmul.f32 %v5379, %v7350
    %v7453 = vmul.f32 %v5380, %v7355
    %v7454 = vmul.f32 %v5381, %v7360
    %v7455 = vmul.f32 %v5382, %v7365
    %v7456 = vmul.f32 %v5383, %v7370
    %v7457 = vmul.f32 %v5384, %v7375
    %v7458 = vmul.f32 %v5385, %v7380
    %v7459 = vmul.f32 %v5386, %v7385
    %v7460 = vmul.f32 %v5387, %v7390
    %v7461 = vmul.f32 %v5388, %v7395
    %v7462 = vmul.f32 %v5389, %v7400
    %v7463 = vmul.f32 %v5390, %v7405
    %v7464 = vmul.f32 %v5391, %v7410
    %v7465 = vmul.f32 %v5392, %v7415
    %v7466 = vmul.f32 %v5393, %v7420
    %v7467 = vmul.f32 %v5394, %v7425
    %v7468 = vmul.f32 %v5395, %v7430
    %v7469 = vmul.f32 %v5396, %v7435
    %vm7470 = vcmask 64512
    %v7472 = vsel %vm7470, %v7271, 0
    %7474 = vmatprep.subr.mxu0 0.0
    %7475 = vmatpush1.msra.mxu0 %v7437
    %7476 = vmatprep.subr.mxu0 0.0
    %7477 = vmatpush1.msra.mxu0 %v7438
    %7478 = vmatprep.subr.mxu0 0.0
    %7479 = vmatpush1.msra.mxu0 %v7439
    %7480 = vmatprep.subr.mxu0 0.0
    %7481 = vmatpush1.msra.mxu0 %v7440
    %7482 = vmatprep.subr.mxu0 0.0
    %7483 = vmatpush1.msra.mxu0 %v7441
    %7484 = vmatprep.subr.mxu0 0.0
    %7485 = vmatpush1.msra.mxu0 %v7442
    %7486 = vmatprep.subr.mxu0 0.0
    %7487 = vmatpush1.msra.mxu0 %v7443
    %7488 = vmatprep.subr.mxu0 0.0
    %7489 = vmatpush1.msra.mxu0 %v7444
    %7490 = vmatprep.subr.mxu0 0.0
    %7491 = vmatpush1.msra.mxu0 %v7445
    %7492 = vmatprep.subr.mxu0 0.0
    %7493 = vmatpush1.msra.mxu0 %v7446
    %7494 = vmatprep.subr.mxu0 0.0
    %7495 = vmatpush1.msra.mxu0 %v7447
    %7496 = vmatprep.subr.mxu0 0.0
    %7497 = vmatpush1.msra.mxu0 %v7448
    %7498 = vmatprep.subr.mxu0 0.0
    %7499 = vmatpush1.msra.mxu0 %v7449
    %7500 = vmatprep.subr.mxu0 0.0
    %7501 = vmatpush1.msra.mxu0 %v7450
    %7502 = vmatprep.subr.mxu0 0.0
    %7503 = vmatpush1.msra.mxu0 %v7451
    %7504 = vmatprep.subr.mxu0 0.0
    %7505 = vmatpush1.msra.mxu0 %v7452
    %7506 = vmatprep.subr.mxu0 0.0
    %7507 = vmatpush1.msra.mxu0 %v7453
    %7508 = vmatprep.subr.mxu0 0.0
    %7509 = vmatpush1.msra.mxu0 %v7454
    %7510 = vmatprep.subr.mxu0 0.0
    %7511 = vmatpush1.msra.mxu0 %v7455
    %7512 = vmatprep.subr.mxu0 0.0
    %7513 = vmatpush1.msra.mxu0 %v7456
    %7514 = vmatprep.subr.mxu0 0.0
    %7515 = vmatpush1.msra.mxu0 %v7457
    %7516 = vmatprep.subr.mxu0 0.0
    %7517 = vmatpush1.msra.mxu0 %v7458
    %7518 = vmatprep.subr.mxu0 0.0
    %7519 = vmatpush1.msra.mxu0 %v7459
    %7520 = vmatprep.subr.mxu0 0.0
    %7521 = vmatpush1.msra.mxu0 %v7460
    %7522 = vmatprep.subr.mxu0 0.0
    %7523 = vmatpush1.msra.mxu0 %v7461
    %7524 = vmatprep.subr.mxu0 0.0
    %7525 = vmatpush1.msra.mxu0 %v7462
    %7526 = vmatprep.subr.mxu0 0.0
    %7527 = vmatpush1.msra.mxu0 %v7463
    %7528 = vmatprep.subr.mxu0 0.0
    %7529 = vmatpush1.msra.mxu0 %v7464
    %7530 = vmatprep.subr.mxu0 0.0
    %7531 = vmatpush1.msra.mxu0 %v7465
    %7532 = vmatprep.subr.mxu0 0.0
    %7533 = vmatpush1.msra.mxu0 %v7466
    %7534 = vmatprep.subr.mxu0 0.0
    %7535 = vmatpush1.msra.mxu0 %v7467
    %7536 = vmatprep.subr.mxu0 0.0
    %7537 = vmatpush1.msra.mxu0 %v7468
    %7538 = vmatprep.mubr.f32.mxu0 %v7270
    %7539 = vmatmul.mubr.f32.gmra.mrb[0].mxu0 %v7269
    %v7540 = vpop.f32.mrb[0].mxu0
    %v7541 = vadd.f32 0.0, %v7540
    %v7542 = vpop.f32.mrb[0].mxu0
    %7543 = vdwg.mxu0
    %7544 = vmatprep.subr.mxu0 0.0
    %7545 = vmatpush1.msra.mxu0 %v7469
    %7546 = vmatprep.subr.mxu0 0.0
    %7547 = vmatpush1.msra.mxu0 0.0
    %7548 = vmatprep.subr.mxu0 0.0
    %7549 = vmatpush1.msra.mxu0 0.0
    %7550 = vmatprep.subr.mxu0 0.0
    %7551 = vmatpush1.msra.mxu0 0.0
    %7552 = vmatprep.subr.mxu0 0.0
    %7553 = vmatpush1.msra.mxu0 0.0
    %7554 = vmatprep.subr.mxu0 0.0
    %7555 = vmatpush1.msra.mxu0 0.0
    %7556 = vmatprep.subr.mxu0 0.0
    %7557 = vmatpush1.msra.mxu0 0.0
    %7558 = vmatprep.subr.mxu0 0.0
    %7559 = vmatpush1.msra.mxu0 0.0
    %7560 = vmatprep.subr.mxu0 0.0
    %7561 = vmatpush1.msra.mxu0 0.0
    %7562 = vmatprep.subr.mxu0 0.0
    %7563 = vmatpush1.msra.mxu0 0.0
    %7564 = vmatprep.subr.mxu0 0.0
    %7565 = vmatpush1.msra.mxu0 0.0
    %7566 = vmatprep.subr.mxu0 0.0
    %7567 = vmatpush1.msra.mxu0 0.0
    %7568 = vmatprep.subr.mxu0 0.0
    %7569 = vmatpush1.msra.mxu0 0.0
    %7570 = vmatprep.subr.mxu0 0.0
    %7571 = vmatpush1.msra.mxu0 0.0
    %7572 = vmatprep.subr.mxu0 0.0
    %7573 = vmatpush1.msra.mxu0 0.0
    %7574 = vmatprep.subr.mxu0 0.0
    %7575 = vmatpush1.msra.mxu0 0.0
    %7576 = vmatprep.subr.mxu0 0.0
    %7577 = vmatpush1.msra.mxu0 0.0
    %7578 = vmatprep.subr.mxu0 0.0
    %7579 = vmatpush1.msra.mxu0 0.0
    %7580 = vmatprep.subr.mxu0 0.0
    %7581 = vmatpush1.msra.mxu0 0.0
    %7582 = vmatprep.subr.mxu0 0.0
    %7583 = vmatpush1.msra.mxu0 0.0
    %7584 = vmatprep.subr.mxu0 0.0
    %7585 = vmatpush1.msra.mxu0 0.0
    %7586 = vmatprep.subr.mxu0 0.0
    %7587 = vmatpush1.msra.mxu0 0.0
    %7588 = vmatprep.subr.mxu0 0.0
    %7589 = vmatpush1.msra.mxu0 0.0
    %7590 = vmatprep.subr.mxu0 0.0
    %7591 = vmatpush1.msra.mxu0 0.0
    %7592 = vmatprep.subr.mxu0 0.0
    %7593 = vmatpush1.msra.mxu0 0.0
    %7594 = vmatprep.subr.mxu0 0.0
    %7595 = vmatpush1.msra.mxu0 0.0
    %7596 = vmatprep.subr.mxu0 0.0
    %7597 = vmatpush1.msra.mxu0 0.0
    %7598 = vmatprep.subr.mxu0 0.0
    %7599 = vmatpush1.msra.mxu0 0.0
    %7600 = vmatprep.subr.mxu0 0.0
    %7601 = vmatpush1.msra.mxu0 0.0
    %7602 = vmatprep.subr.mxu0 0.0
    %7603 = vmatpush1.msra.mxu0 0.0
    %7604 = vmatprep.subr.mxu0 0.0
    %7605 = vmatpush1.msra.mxu0 0.0
    %7606 = vmatprep.subr.mxu0 0.0
    %7607 = vmatpush1.msra.mxu0 0.0
    %7608 = vmatprep.mubr.f32.mxu0 0.0
    %7609 = vmatmul.mubr.f32.gmra.mrb[0].mxu0 %v7472
    %v7610 = vpop.f32.mrb[0].mxu0
    %v7611 = vadd.f32 %v7541, %v7610
    %v7612 = vpop.f32.mrb[0].mxu0
    %7613 = vdwg.mxu0
    %7614 = vst [vmem:[#allocation7] sm:$0x3] %v7611
    // Predicated region
    $region46: #{context_aware_attention_forward.1} parent=1 // pred_check
      _
    $region47: #{context_aware_attention_forward.1} parent=1 // pred_check_branch
      %7616 = sbr.rel (0) target = $region49
    $region48: #{context_aware_attention_forward.1} parent=1 // pred_region
      %s7618 = ssub.s32 32, 32
      %7619 = vsyncadd [#allocation8], %s7618
      %s7621 = sshll.u32 [#allocation7], 4
      %s7622 = int_to_ptr.vmem [resolvable:$true] %s7621
      %7624 = dma.vmem_to_hbm [thread:$0]  %s7622, 32, %s11, [#allocation8]
    $region49: #{context_aware_attention_forward.1} parent=1 // pred_fallthru
      _
    // Predicated region
    $region50: #{context_aware_attention_forward.1} parent=1 // pred_check
      _
    $region51: #{context_aware_attention_forward.1} parent=1 // pred_check_branch
      %7626 = sbr.rel (0) target = $region53
    $region52: #{context_aware_attention_forward.1} parent=1 // pred_region
      %7627 = dma.done [#allocation8], 32
    $region53: #{context_aware_attention_forward.1} parent=1 // pred_fallthru
      _
    %7628 = vsyncpa [#allocation8], 1

</llo_original>
